<compile_context>
chip_gen: v7x
topology: tpu7x:2x2x1
jax: 0.10.0
libtpu: 0.0.40
codegen_flags: <defaults>
</compile_context>

<pallas_src>
import math
import functools

import jax
import jax.numpy as jnp
from jax.experimental import pallas as pl
from jax.experimental.pallas import tpu as pltpu


def _layernorm_channels(x, gamma, beta, eps=1e-5):
    # x: (C, S); normalize over the channel (sublane) axis.
    mean = jnp.mean(x, axis=0, keepdims=True)
    var = jnp.mean((x - mean) ** 2, axis=0, keepdims=True)
    return (x - mean) * jax.lax.rsqrt(var + eps) * gamma + beta


def _gelu_exact(x):
    # F.gelu default = exact (erf) gelu
    return 0.5 * x * (1.0 + jax.lax.erf(x * (1.0 / math.sqrt(2.0))))


def attn_block_kernel(x_ref, g1_ref, b1_ref, wqkv_ref, bqkv_ref,
                      wo_ref, bo_ref, g2_ref, b2_ref, wp_ref, bp_ref,
                      o_ref, *, num_heads, exp_in_bf16):
    x = x_ref[0]                       # (C, S) f32, current batch element
    C, S = x.shape
    hd = C // num_heads

    # ---- norm1 + fused QKV projection (one MXU pass, bf16 inputs, f32 accumulation).
    # 1/sqrt(head_dim) is pre-folded into the Q rows of wqkv/bqkv (prepare_params).
    xn = _layernorm_channels(x, g1_ref[...], b1_ref[...]).astype(jnp.bfloat16)
    qkv = (jnp.dot(wqkv_ref[...], xn, preferred_element_type=jnp.float32)
           + bqkv_ref[...])            # (3C, S) f32

    # Natural (H, hd, S) head layout for q/k/v -- no XLU transposes, no narrow-lane
    # intermediates.
    q3 = qkv[:C].reshape(num_heads, hd, S).astype(jnp.bfloat16)
    k3 = qkv[C:2 * C].reshape(num_heads, hd, S).astype(jnp.bfloat16)
    v3 = qkv[2 * C:].reshape(num_heads, hd, S).astype(jnp.bfloat16)

    # ---- head-batched attention: scores contract over hd with q kept "transposed";
    # dot_general drives the MXU directly with that dimension order.
    s = jnp.einsum('hdq,hdk->hqk', q3, k3,
                   preferred_element_type=jnp.float32)        # (H, S, S) f32
    s = s - jnp.max(s, axis=-1, keepdims=True)

    if exp_in_bf16:
        # v6e/v7x: bf16 EUP -> exp directly in bf16, halves (H,S,S) traffic and drops
        # the separate f32->bf16 cast pass. Row sums still accumulate in f32.
        p = jnp.exp(s.astype(jnp.bfloat16))                   # (H, S, S) bf16
        row = jnp.sum(p, axis=-1, dtype=jnp.float32)          # (H, S) f32
    else:
        # v5e and older: no bf16 EUP/VPU -- keep exp in f32, cast afterwards.
        pf = jnp.exp(s)
        row = jnp.sum(pf, axis=-1)                            # (H, S) f32
        p = pf.astype(jnp.bfloat16)

    # Deferred softmax normalization: run PV on the unnormalized p and scale the small
    # (H, hd, S) result instead of the big (H, S, S) tensor. Algebraically identical.
    attn = jnp.einsum('hdk,hqk->hdq', v3, p,
                      preferred_element_type=jnp.float32)     # (H, hd, S) f32
    attn = attn * pl.reciprocal(row, approx=True)[:, None, :]
    attn = attn.reshape(C, S)                                 # head-major concat == torch

    attn_out = (jnp.dot(wo_ref[...], attn.astype(jnp.bfloat16),
                        preferred_element_type=jnp.float32) + bo_ref[...])
    x = x + attn_out

    # ---- norm2 + GEGLU mlp ----
    xn2 = _layernorm_channels(x, g2_ref[...], b2_ref[...]).astype(jnp.bfloat16)
    hp = (jnp.dot(wp_ref[...], xn2, preferred_element_type=jnp.float32)
          + bp_ref[...])               # (2C, S) f32
    x = x + hp[:C] * _gelu_exact(hp[C:])

    o_ref[0] = x


def _bf16_eup_available():
    # bf16 VPU/EUP exists on v6e (Trillium) and newer; v5e/v5p/v4/... do exp in f32.
    try:
        kind = jax.devices()[0].device_kind.lower()
    except Exception:
        return False
    return not any(tag in kind for tag in ("v2", "v3", "v4", "v5"))


@functools.partial(jax.jit, static_argnums=(2, 3))
def self_attention_block_2d(x, params, num_heads, exp_in_bf16):
    B, C, H, W = x.shape
    S = H * W
    x_seq = x.reshape(B, C, S)                       # free reshape, no transpose
    (g1, b1, wqkv, bqkv, wo, bo, g2, b2, wp, bp) = params

    def const(arr):
        # Weights/biases are revisited every grid step -> single-buffer them.
        try:
            return pl.BlockSpec(arr.shape, lambda b, _n=arr.ndim: (0,) * _n,
                                pipeline_mode=pl.Buffered(1))
        except TypeError:  # older jax without pipeline_mode: fall back to default
            return pl.BlockSpec(arr.shape, lambda b, _n=arr.ndim: (0,) * _n)

    kernel = functools.partial(attn_block_kernel, num_heads=num_heads,
                               exp_in_bf16=exp_in_bf16)
    out = pl.pallas_call(
        kernel,
        out_shape=jax.ShapeDtypeStruct((B, C, S), jnp.float32),
        grid=(B,),
        in_specs=[
            pl.BlockSpec((1, C, S), lambda b: (b, 0, 0)),   # x, per-batch (C, S) tile
            const(g1), const(b1),                           # norm1 gamma/beta   (C, 1)
            const(wqkv), const(bqkv),                       # fused QKV  (3C, C), (3C, 1)
            const(wo), const(bo),                           # out proj   (C, C),  (C, 1)
            const(g2), const(b2),                           # norm2 gamma/beta   (C, 1)
            const(wp), const(bp),                           # GEGLU proj (2C, C), (2C, 1)
        ],
        out_specs=pl.BlockSpec((1, C, S), lambda b: (b, 0, 0)),
        compiler_params=pltpu.CompilerParams(
            dimension_semantics=("parallel",),              # B even -> both v7x TCs busy
            vmem_limit_bytes=20 * 1024 * 1024,              # live set ~8 MiB + headroom
        ),
    )(x_seq, g1, b1, wqkv, bqkv, wo, bo, g2, b2, wp, bp)

    return out.reshape(B, C, H, W)


def init_torch_params(key, C):
    # Deterministic synthetic params in natural PyTorch layout:
    #   in_proj_weight (3C, C), in_proj_bias (3C,), out_proj (C, C)+(C,),
    #   GEGLU proj (2C, C)+(2C,), LayerNorm gamma=1 / beta=0.
    ks = jax.random.split(key, 6)
    return dict(
        g1=jnp.ones((C,), jnp.float32), b1=jnp.zeros((C,), jnp.float32),
        wqkv=jax.random.normal(ks[0], (3 * C, C), jnp.float32) * 0.05,
        bqkv=jax.random.normal(ks[1], (3 * C,), jnp.float32) * 0.05,
        wo=jax.random.normal(ks[2], (C, C), jnp.float32) * 0.05,
        bo=jax.random.normal(ks[3], (C,), jnp.float32) * 0.05,
        g2=jnp.ones((C,), jnp.float32), b2=jnp.zeros((C,), jnp.float32),
        wp=jax.random.normal(ks[4], (2 * C, C), jnp.float32) * 0.05,
        bp=jax.random.normal(ks[5], (2 * C,), jnp.float32) * 0.05,
    )


def prepare_params(p, C, num_heads):
    # Kernel-ready params: 1/sqrt(head_dim) folded into the Q rows of the fused QKV
    # projection (one-time constant fold, zero per-call cost), matmul weights cast to
    # bf16 for the MXU, biases / LN params as (rows, 1) columns broadcasting over lanes.
    hd = C // num_heads
    scale = 1.0 / math.sqrt(hd)
    wqkv = p["wqkv"].at[:C].multiply(scale).astype(jnp.bfloat16)
    bqkv = p["bqkv"].at[:C].multiply(scale)[:, None]
    return (p["g1"][:, None], p["b1"][:, None],
            wqkv, bqkv,
            p["wo"].astype(jnp.bfloat16), p["bo"][:, None],
            p["g2"][:, None], p["b2"][:, None],
            p["wp"].astype(jnp.bfloat16), p["bp"][:, None])


def reference(x, p, num_heads):
    # Pure-JAX f32 replica of the PyTorch forward (weights bf16-rounded to isolate the
    # kernel's activation-precision trade-offs in the comparison).
    B, C, H, W = x.shape
    S = H * W
    wqkv = p["wqkv"].astype(jnp.bfloat16).astype(jnp.float32)
    wo = p["wo"].astype(jnp.bfloat16).astype(jnp.float32)
    wp = p["wp"].astype(jnp.bfloat16).astype(jnp.float32)

    xs = jnp.transpose(x.reshape(B, C, S), (0, 2, 1))   # (B, S, C)

    def ln(z, g, b):
        m = z.mean(-1, keepdims=True)
        v = ((z - m) ** 2).mean(-1, keepdims=True)
        return (z - m) / jnp.sqrt(v + 1e-5) * g + b

    xn = ln(xs, p["g1"], p["b1"])
    qkv = xn @ wqkv.T + p["bqkv"]
    q, k, v = qkv[..., :C], qkv[..., C:2 * C], qkv[..., 2 * C:]
    hd = C // num_heads

    def split(t):
        return t.reshape(B, S, num_heads, hd).transpose(0, 2, 1, 3)

    qh, kh, vh = split(q), split(k), split(v)
    s = jnp.einsum('bhqd,bhkd->bhqk', qh, kh) / math.sqrt(hd)
    pr = jax.nn.softmax(s, axis=-1)
    o = jnp.einsum('bhqk,bhkd->bhqd', pr, vh).transpose(0, 2, 1, 3).reshape(B, S, C)
    xs = xs + (o @ wo.T + p["bo"])

    xn2 = ln(xs, p["g2"], p["b2"])
    hp = xn2 @ wp.T + p["bp"]
    x1, x2 = hp[..., :C], hp[..., C:]
    xs = xs + x1 * (0.5 * x2 * (1.0 + jax.lax.erf(x2 / math.sqrt(2.0))))
    return jnp.transpose(xs, (0, 2, 1)).reshape(B, C, H, W)


if __name__ == "__main__":
    key = jax.random.PRNGKey(0)
    kx, kp = jax.random.split(key)

    # C=128 channels (8 heads x head_dim 16), S = 16*16 = 256 lanes; B=2 is even so the
    # parallel batch grid splits across both TensorCores on v7x.
    B, C, H, W = 2, 128, 16, 16
    num_heads = 8

    x = jax.random.normal(kx, (B, C, H, W), jnp.float32)
    torch_params = init_torch_params(kp, C)
    kparams = prepare_params(torch_params, C, num_heads)

    out = self_attention_block_2d(x, kparams, num_heads, _bf16_eup_available())
    out = jax.block_until_ready(out)

    ref = reference(x, torch_params, num_heads)
    assert out.shape == (B, C, H, W)
    err = float(jnp.max(jnp.abs(out - ref)))
    # bf16 MXU inputs, (optionally) bf16 exp, and approx reciprocal are deliberate
    # numerics trade-offs, so the comparison tolerance is loosened accordingly.
    assert jnp.allclose(out, ref, atol=3e-2, rtol=3e-2), err

    print("KERNEL_OK")
</pallas_src>

<mosaic_0001>
module attributes {stable_mosaic.version = 11 : i64} {
  func.func @attn_block_kernel(%arg0: i32, %arg1: memref<1x128x256xf32, #tpu.memory_space<vmem>>, %arg2: memref<128x1xf32, #tpu.memory_space<vmem>>, %arg3: memref<128x1xf32, #tpu.memory_space<vmem>>, %arg4: memref<384x128xbf16, #tpu.memory_space<vmem>>, %arg5: memref<384x1xf32, #tpu.memory_space<vmem>>, %arg6: memref<128x128xbf16, #tpu.memory_space<vmem>>, %arg7: memref<128x1xf32, #tpu.memory_space<vmem>>, %arg8: memref<128x1xf32, #tpu.memory_space<vmem>>, %arg9: memref<128x1xf32, #tpu.memory_space<vmem>>, %arg10: memref<256x128xbf16, #tpu.memory_space<vmem>>, %arg11: memref<256x1xf32, #tpu.memory_space<vmem>>, %arg12: memref<1x128x256xf32, #tpu.memory_space<vmem>>) attributes {dimension_semantics = [#tpu.dimension_semantics<parallel>], iteration_bounds = array<i64: 2>, scalar_prefetch = 0 : i64, scratch_operands = 0 : i64, tpu.core_type = #tpu.core_type<tc>, window_params = [{transform_indices = @transform_0, window_bounds = array<i64: 1, 128, 256>}, {pipeline_mode = #tpu.pipeline_mode<synchronous>, transform_indices = @transform_1, window_bounds = array<i64: 128, 1>}, {pipeline_mode = #tpu.pipeline_mode<synchronous>, transform_indices = @transform_2, window_bounds = array<i64: 128, 1>}, {pipeline_mode = #tpu.pipeline_mode<synchronous>, transform_indices = @transform_3, window_bounds = array<i64: 384, 128>}, {pipeline_mode = #tpu.pipeline_mode<synchronous>, transform_indices = @transform_4, window_bounds = array<i64: 384, 1>}, {pipeline_mode = #tpu.pipeline_mode<synchronous>, transform_indices = @transform_5, window_bounds = array<i64: 128, 128>}, {pipeline_mode = #tpu.pipeline_mode<synchronous>, transform_indices = @transform_6, window_bounds = array<i64: 128, 1>}, {pipeline_mode = #tpu.pipeline_mode<synchronous>, transform_indices = @transform_7, window_bounds = array<i64: 128, 1>}, {pipeline_mode = #tpu.pipeline_mode<synchronous>, transform_indices = @transform_8, window_bounds = array<i64: 128, 1>}, {pipeline_mode = #tpu.pipeline_mode<synchronous>, transform_indices = @transform_9, window_bounds = array<i64: 256, 128>}, {pipeline_mode = #tpu.pipeline_mode<synchronous>, transform_indices = @transform_10, window_bounds = array<i64: 256, 1>}, {transform_indices = @transform_11, window_bounds = array<i64: 1, 128, 256>}]} {
    %c0 = arith.constant 0 : index
    %c0_0 = arith.constant 0 : index
    %c0_1 = arith.constant 0 : index
    %0 = vector.load %arg1[%c0, %c0_0, %c0_1] : memref<1x128x256xf32, #tpu.memory_space<vmem>>, vector<1x128x256xf32>
    %1 = vector.shape_cast %0 : vector<1x128x256xf32> to vector<128x256xf32>
    %c0_2 = arith.constant 0 : index
    %c0_3 = arith.constant 0 : index
    %2 = vector.load %arg2[%c0_2, %c0_3] : memref<128x1xf32, #tpu.memory_space<vmem>>, vector<128x1xf32>
    %c0_4 = arith.constant 0 : index
    %c0_5 = arith.constant 0 : index
    %3 = vector.load %arg3[%c0_4, %c0_5] : memref<128x1xf32, #tpu.memory_space<vmem>>, vector<128x1xf32>
    %cst = arith.constant dense<0.000000e+00> : vector<256xf32>
    %4 = vector.multi_reduction <add>, %1, %cst [0] : vector<128x256xf32> to vector<256xf32>
    %5 = vector.shape_cast %4 : vector<256xf32> to vector<1x256xf32>
    %cst_6 = arith.constant 1.280000e+02 : f32
    %6 = vector.broadcast %cst_6 : f32 to vector<1x256xf32>
    %7 = arith.divf %5, %6 : vector<1x256xf32>
    %8 = vector.broadcast %7 : vector<1x256xf32> to vector<128x256xf32>
    %9 = arith.subf %1, %8 : vector<128x256xf32>
    %10 = arith.mulf %9, %9 : vector<128x256xf32>
    %cst_7 = arith.constant dense<0.000000e+00> : vector<256xf32>
    %11 = vector.multi_reduction <add>, %10, %cst_7 [0] : vector<128x256xf32> to vector<256xf32>
    %12 = vector.shape_cast %11 : vector<256xf32> to vector<1x256xf32>
    %cst_8 = arith.constant 1.280000e+02 : f32
    %13 = vector.broadcast %cst_8 : f32 to vector<1x256xf32>
    %14 = arith.divf %12, %13 : vector<1x256xf32>
    %15 = vector.broadcast %7 : vector<1x256xf32> to vector<128x256xf32>
    %16 = arith.subf %1, %15 : vector<128x256xf32>
    %cst_9 = arith.constant 9.99999974E-6 : f32
    %17 = vector.broadcast %cst_9 : f32 to vector<1x256xf32>
    %18 = arith.addf %14, %17 : vector<1x256xf32>
    %19 = math.rsqrt %18 : vector<1x256xf32>
    %20 = vector.broadcast %19 : vector<1x256xf32> to vector<128x256xf32>
    %21 = arith.mulf %16, %20 : vector<128x256xf32>
    %22 = vector.broadcast %2 : vector<128x1xf32> to vector<128x256xf32>
    %23 = arith.mulf %21, %22 : vector<128x256xf32>
    %24 = vector.broadcast %3 : vector<128x1xf32> to vector<128x256xf32>
    %25 = arith.addf %23, %24 : vector<128x256xf32>
    %26 = arith.truncf %25 : vector<128x256xf32> to vector<128x256xbf16>
    %c0_10 = arith.constant 0 : index
    %c0_11 = arith.constant 0 : index
    %27 = vector.load %arg4[%c0_10, %c0_11] : memref<384x128xbf16, #tpu.memory_space<vmem>>, vector<384x128xbf16>
    %cst_12 = arith.constant dense<0.000000e+00> : vector<384x256xf32>
    %28 = tpu.matmul %27, %26, %cst_12 {dimension_numbers = #tpu.dot_dimension_numbers<[1], [0], [0], [1], [0, 0, 1, 1], [], []>} : vector<384x128xbf16>, vector<128x256xbf16>, vector<384x256xf32> -> vector<384x256xf32>
    %c0_13 = arith.constant 0 : index
    %c0_14 = arith.constant 0 : index
    %29 = vector.load %arg5[%c0_13, %c0_14] : memref<384x1xf32, #tpu.memory_space<vmem>>, vector<384x1xf32>
    %30 = vector.broadcast %29 : vector<384x1xf32> to vector<384x256xf32>
    %31 = arith.addf %28, %30 : vector<384x256xf32>
    %32 = vector.extract_strided_slice %31 {offsets = [0, 0], sizes = [128, 256], strides = [1, 1]} : vector<384x256xf32> to vector<128x256xf32>
    %33 = vector.shape_cast %32 : vector<128x256xf32> to vector<8x16x256xf32>
    %34 = arith.truncf %33 : vector<8x16x256xf32> to vector<8x16x256xbf16>
    %35 = vector.extract_strided_slice %31 {offsets = [128, 0], sizes = [128, 256], strides = [1, 1]} : vector<384x256xf32> to vector<128x256xf32>
    %36 = vector.shape_cast %35 : vector<128x256xf32> to vector<8x16x256xf32>
    %37 = arith.truncf %36 : vector<8x16x256xf32> to vector<8x16x256xbf16>
    %38 = vector.extract_strided_slice %31 {offsets = [256, 0], sizes = [128, 256], strides = [1, 1]} : vector<384x256xf32> to vector<128x256xf32>
    %39 = vector.shape_cast %38 : vector<128x256xf32> to vector<8x16x256xf32>
    %40 = arith.truncf %39 : vector<8x16x256xf32> to vector<8x16x256xbf16>
    "tpu.trace_start"() <{level = 10 : i32, message = "hdq,hdk->hqk"}> : () -> ()
    %cst_15 = arith.constant dense<0.000000e+00> : vector<8x256x256xf32>
    %41 = tpu.matmul %34, %37, %cst_15 {dimension_numbers = #tpu.dot_dimension_numbers<[1], [1], [2], [2], [0, 0, 0, 2, 1, 2], [0], [0]>} : vector<8x16x256xbf16>, vector<8x16x256xbf16>, vector<8x256x256xf32> -> vector<8x256x256xf32>
    "tpu.trace_stop"() : () -> ()
    %cst_16 = arith.constant dense<0xFF800000> : vector<8x256xf32>
    %42 = vector.multi_reduction <maximumf>, %41, %cst_16 [2] : vector<8x256x256xf32> to vector<8x256xf32>
    %43 = vector.shape_cast %42 : vector<8x256xf32> to vector<8x256x1xf32>
    %44 = vector.broadcast %43 : vector<8x256x1xf32> to vector<8x256x256xf32>
    %45 = arith.subf %41, %44 : vector<8x256x256xf32>
    %46 = arith.truncf %45 : vector<8x256x256xf32> to vector<8x256x256xbf16>
    %47 = math.exp %46 : vector<8x256x256xbf16>
    %48 = arith.extf %47 : vector<8x256x256xbf16> to vector<8x256x256xf32>
    %cst_17 = arith.constant dense<0.000000e+00> : vector<8x256xf32>
    %49 = vector.multi_reduction <add>, %48, %cst_17 [2] : vector<8x256x256xf32> to vector<8x256xf32>
    "tpu.trace_start"() <{level = 10 : i32, message = "hdk,hqk->hdq"}> : () -> ()
    %cst_18 = arith.constant dense<0.000000e+00> : vector<8x16x256xf32>
    %50 = tpu.matmul %40, %47, %cst_18 {dimension_numbers = #tpu.dot_dimension_numbers<[2], [2], [1], [1], [0, 0, 0, 1, 1, 1], [0], [0]>} : vector<8x16x256xbf16>, vector<8x256x256xbf16>, vector<8x16x256xf32> -> vector<8x16x256xf32>
    "tpu.trace_stop"() : () -> ()
    %51 = tpu.reciprocal %49 {approx = true} : vector<8x256xf32> -> vector<8x256xf32>
    %52 = vector.shape_cast %51 : vector<8x256xf32> to vector<8x1x256xf32>
    %53 = vector.broadcast %52 : vector<8x1x256xf32> to vector<8x16x256xf32>
    %54 = arith.mulf %50, %53 : vector<8x16x256xf32>
    %55 = vector.shape_cast %54 : vector<8x16x256xf32> to vector<128x256xf32>
    %c0_19 = arith.constant 0 : index
    %c0_20 = arith.constant 0 : index
    %56 = vector.load %arg6[%c0_19, %c0_20] : memref<128x128xbf16, #tpu.memory_space<vmem>>, vector<128x128xbf16>
    %57 = arith.truncf %55 : vector<128x256xf32> to vector<128x256xbf16>
    %cst_21 = arith.constant dense<0.000000e+00> : vector<128x256xf32>
    %58 = tpu.matmul %56, %57, %cst_21 {dimension_numbers = #tpu.dot_dimension_numbers<[1], [0], [0], [1], [0, 0, 1, 1], [], []>} : vector<128x128xbf16>, vector<128x256xbf16>, vector<128x256xf32> -> vector<128x256xf32>
    %c0_22 = arith.constant 0 : index
    %c0_23 = arith.constant 0 : index
    %59 = vector.load %arg7[%c0_22, %c0_23] : memref<128x1xf32, #tpu.memory_space<vmem>>, vector<128x1xf32>
    %60 = vector.broadcast %59 : vector<128x1xf32> to vector<128x256xf32>
    %61 = arith.addf %58, %60 : vector<128x256xf32>
    %62 = arith.addf %1, %61 : vector<128x256xf32>
    %c0_24 = arith.constant 0 : index
    %c0_25 = arith.constant 0 : index
    %63 = vector.load %arg8[%c0_24, %c0_25] : memref<128x1xf32, #tpu.memory_space<vmem>>, vector<128x1xf32>
    %c0_26 = arith.constant 0 : index
    %c0_27 = arith.constant 0 : index
    %64 = vector.load %arg9[%c0_26, %c0_27] : memref<128x1xf32, #tpu.memory_space<vmem>>, vector<128x1xf32>
    %cst_28 = arith.constant dense<0.000000e+00> : vector<256xf32>
    %65 = vector.multi_reduction <add>, %62, %cst_28 [0] : vector<128x256xf32> to vector<256xf32>
    %66 = vector.shape_cast %65 : vector<256xf32> to vector<1x256xf32>
    %cst_29 = arith.constant 1.280000e+02 : f32
    %67 = vector.broadcast %cst_29 : f32 to vector<1x256xf32>
    %68 = arith.divf %66, %67 : vector<1x256xf32>
    %69 = vector.broadcast %68 : vector<1x256xf32> to vector<128x256xf32>
    %70 = arith.subf %62, %69 : vector<128x256xf32>
    %71 = arith.mulf %70, %70 : vector<128x256xf32>
    %cst_30 = arith.constant dense<0.000000e+00> : vector<256xf32>
    %72 = vector.multi_reduction <add>, %71, %cst_30 [0] : vector<128x256xf32> to vector<256xf32>
    %73 = vector.shape_cast %72 : vector<256xf32> to vector<1x256xf32>
    %cst_31 = arith.constant 1.280000e+02 : f32
    %74 = vector.broadcast %cst_31 : f32 to vector<1x256xf32>
    %75 = arith.divf %73, %74 : vector<1x256xf32>
    %76 = vector.broadcast %68 : vector<1x256xf32> to vector<128x256xf32>
    %77 = arith.subf %62, %76 : vector<128x256xf32>
    %cst_32 = arith.constant 9.99999974E-6 : f32
    %78 = vector.broadcast %cst_32 : f32 to vector<1x256xf32>
    %79 = arith.addf %75, %78 : vector<1x256xf32>
    %80 = math.rsqrt %79 : vector<1x256xf32>
    %81 = vector.broadcast %80 : vector<1x256xf32> to vector<128x256xf32>
    %82 = arith.mulf %77, %81 : vector<128x256xf32>
    %83 = vector.broadcast %63 : vector<128x1xf32> to vector<128x256xf32>
    %84 = arith.mulf %82, %83 : vector<128x256xf32>
    %85 = vector.broadcast %64 : vector<128x1xf32> to vector<128x256xf32>
    %86 = arith.addf %84, %85 : vector<128x256xf32>
    %87 = arith.truncf %86 : vector<128x256xf32> to vector<128x256xbf16>
    %c0_33 = arith.constant 0 : index
    %c0_34 = arith.constant 0 : index
    %88 = vector.load %arg10[%c0_33, %c0_34] : memref<256x128xbf16, #tpu.memory_space<vmem>>, vector<256x128xbf16>
    %cst_35 = arith.constant dense<0.000000e+00> : vector<256x256xf32>
    %89 = tpu.matmul %88, %87, %cst_35 {dimension_numbers = #tpu.dot_dimension_numbers<[1], [0], [0], [1], [0, 0, 1, 1], [], []>} : vector<256x128xbf16>, vector<128x256xbf16>, vector<256x256xf32> -> vector<256x256xf32>
    %c0_36 = arith.constant 0 : index
    %c0_37 = arith.constant 0 : index
    %90 = vector.load %arg11[%c0_36, %c0_37] : memref<256x1xf32, #tpu.memory_space<vmem>>, vector<256x1xf32>
    %91 = vector.broadcast %90 : vector<256x1xf32> to vector<256x256xf32>
    %92 = arith.addf %89, %91 : vector<256x256xf32>
    %93 = vector.extract_strided_slice %92 {offsets = [0, 0], sizes = [128, 256], strides = [1, 1]} : vector<256x256xf32> to vector<128x256xf32>
    %94 = vector.extract_strided_slice %92 {offsets = [128, 0], sizes = [128, 256], strides = [1, 1]} : vector<256x256xf32> to vector<128x256xf32>
    %cst_38 = arith.constant 5.000000e-01 : f32
    %95 = vector.broadcast %cst_38 : f32 to vector<128x256xf32>
    %96 = arith.mulf %95, %94 : vector<128x256xf32>
    %cst_39 = arith.constant 0.707106769 : f32
    %97 = vector.broadcast %cst_39 : f32 to vector<128x256xf32>
    %98 = arith.mulf %94, %97 : vector<128x256xf32>
    %99 = math.erf %98 : vector<128x256xf32>
    %cst_40 = arith.constant 1.000000e+00 : f32
    %100 = vector.broadcast %cst_40 : f32 to vector<128x256xf32>
    %101 = arith.addf %100, %99 : vector<128x256xf32>
    %102 = arith.mulf %96, %101 : vector<128x256xf32>
    %103 = arith.mulf %93, %102 : vector<128x256xf32>
    %104 = arith.addf %62, %103 : vector<128x256xf32>
    %c0_41 = arith.constant 0 : index
    %c0_42 = arith.constant 0 : index
    %c0_43 = arith.constant 0 : index
    %105 = vector.load %arg12[%c0_41, %c0_42, %c0_43] : memref<1x128x256xf32, #tpu.memory_space<vmem>>, vector<1x128x256xf32>
    %106 = vector.shape_cast %105 : vector<1x128x256xf32> to vector<128x256xf32>
    %107 = vector.shape_cast %104 : vector<128x256xf32> to vector<1x128x256xf32>
    tpu.vector_store %arg12[%c0_41, %c0_42, %c0_43], %107 {strides = array<i32>} : memref<1x128x256xf32, #tpu.memory_space<vmem>>, vector<1x128x256xf32>,
    return
  }
  func.func @transform_0(%arg0: i32) -> (i32, i32, i32) {
    %c0_i32 = arith.constant 0 : i32
    %c0_i32_0 = arith.constant 0 : i32
    %c0_i32_1 = arith.constant 0 : i32
    return %arg0, %c0_i32, %c0_i32_0 : i32, i32, i32
  }
  func.func @transform_1(%arg0: i32) -> (i32, i32) {
    %c0_i32 = arith.constant 0 : i32
    %c0_i32_0 = arith.constant 0 : i32
    %c0_i32_1 = arith.constant 0 : i32
    return %c0_i32, %c0_i32_0 : i32, i32
  }
  func.func @transform_2(%arg0: i32) -> (i32, i32) {
    %c0_i32 = arith.constant 0 : i32
    %c0_i32_0 = arith.constant 0 : i32
    %c0_i32_1 = arith.constant 0 : i32
    return %c0_i32, %c0_i32_0 : i32, i32
  }
  func.func @transform_3(%arg0: i32) -> (i32, i32) {
    %c0_i32 = arith.constant 0 : i32
    %c0_i32_0 = arith.constant 0 : i32
    %c0_i32_1 = arith.constant 0 : i32
    return %c0_i32, %c0_i32_0 : i32, i32
  }
  func.func @transform_4(%arg0: i32) -> (i32, i32) {
    %c0_i32 = arith.constant 0 : i32
    %c0_i32_0 = arith.constant 0 : i32
    %c0_i32_1 = arith.constant 0 : i32
    return %c0_i32, %c0_i32_0 : i32, i32
  }
  func.func @transform_5(%arg0: i32) -> (i32, i32) {
    %c0_i32 = arith.constant 0 : i32
    %c0_i32_0 = arith.constant 0 : i32
    %c0_i32_1 = arith.constant 0 : i32
    return %c0_i32, %c0_i32_0 : i32, i32
  }
  func.func @transform_6(%arg0: i32) -> (i32, i32) {
    %c0_i32 = arith.constant 0 : i32
    %c0_i32_0 = arith.constant 0 : i32
    %c0_i32_1 = arith.constant 0 : i32
    return %c0_i32, %c0_i32_0 : i32, i32
  }
  func.func @transform_7(%arg0: i32) -> (i32, i32) {
    %c0_i32 = arith.constant 0 : i32
    %c0_i32_0 = arith.constant 0 : i32
    %c0_i32_1 = arith.constant 0 : i32
    return %c0_i32, %c0_i32_0 : i32, i32
  }
  func.func @transform_8(%arg0: i32) -> (i32, i32) {
    %c0_i32 = arith.constant 0 : i32
    %c0_i32_0 = arith.constant 0 : i32
    %c0_i32_1 = arith.constant 0 : i32
    return %c0_i32, %c0_i32_0 : i32, i32
  }
  func.func @transform_9(%arg0: i32) -> (i32, i32) {
    %c0_i32 = arith.constant 0 : i32
    %c0_i32_0 = arith.constant 0 : i32
    %c0_i32_1 = arith.constant 0 : i32
    return %c0_i32, %c0_i32_0 : i32, i32
  }
  func.func @transform_10(%arg0: i32) -> (i32, i32) {
    %c0_i32 = arith.constant 0 : i32
    %c0_i32_0 = arith.constant 0 : i32
    %c0_i32_1 = arith.constant 0 : i32
    return %c0_i32, %c0_i32_0 : i32, i32
  }
  func.func @transform_11(%arg0: i32) -> (i32, i32, i32) {
    %c0_i32 = arith.constant 0 : i32
    %c0_i32_0 = arith.constant 0 : i32
    %c0_i32_1 = arith.constant 0 : i32
    return %arg0, %c0_i32, %c0_i32_0 : i32, i32, i32
  }
}

</mosaic_0001>

<llo_original>
// kernel: self_attention_block_2d.1
$region0: #{self_attention_block_2d.1}
  #allocation0 [shape = 'u32[]', space=smem, size = 0x4, offset = 0x4, fixed_abs, tag = 'smem constant byte address 0x4 - core index']
  #allocation1 [shape = 'u32[144,128]{1,0:T(1,128)}', space=vmem, size = 0x12000, scoped, tag = 'internal scratch']
  %s0 = inlined_call_operand.vmem [shape: f32[2,128,256], index: 0, kind: input, shape index: {}]
  %s1 = inlined_call_operand.vmem [shape: f32[128,1], index: 1, kind: input, shape index: {}]
  %s2 = inlined_call_operand.vmem [shape: f32[128,1], index: 2, kind: input, shape index: {}]
  %s3 = inlined_call_operand.vmem [shape: bf16[384,128], index: 3, kind: input, shape index: {}]
  %s4 = inlined_call_operand.vmem [shape: f32[384,1], index: 4, kind: input, shape index: {}]
  %s5 = inlined_call_operand.vmem [shape: bf16[128,128], index: 5, kind: input, shape index: {}]
  %s6 = inlined_call_operand.vmem [shape: f32[128,1], index: 6, kind: input, shape index: {}]
  %s7 = inlined_call_operand.vmem [shape: f32[128,1], index: 7, kind: input, shape index: {}]
  %s8 = inlined_call_operand.vmem [shape: f32[128,1], index: 8, kind: input, shape index: {}]
  %s9 = inlined_call_operand.vmem [shape: bf16[256,128], index: 9, kind: input, shape index: {}]
  %s10 = inlined_call_operand.vmem [shape: f32[256,1], index: 10, kind: input, shape index: {}]
  %s11 = inlined_call_operand.vmem [shape: f32[2,128,256], index: 11, kind: output, shape index: {}]
  %s12 = sld [smem:[#allocation0]]
  $region77: #{self_attention_block_2d.1} parent=0
    _
  %s14 = ssub.s32 1, %s12
  %s15 = scalar_select 0, %s14, %s12
  loop: start=0, step=1, limit=4
  $region2: #{self_attention_block_2d.1} parent=0 // loop_pre_header
    _
  $region3: #{self_attention_block_2d.1} parent=0 // loop_header
    %s17 = sphi 0, %s21
    %p18 = scmp.ge.s32.totalorder %s17, 4
    %s27 = sphi 0, %s29
    %s30 = sphi 0, %s27
    %s31 = sphi 0, %s30
    %s47 = sphi 0, %s31
    %s51 = sphi 0, %s51
    %s53 = sphi 0, %s51
    %s54 = sphi 0, %s53
    %s68 = sphi 0, %s54
    %s72 = sphi 0, %s72
    %s74 = sphi 0, %s72
    %s75 = sphi 0, %s74
    %s89 = sphi 0, %s75
    %s93 = sphi 0, %s93
    %s95 = sphi 0, %s93
    %s96 = sphi 0, %s95
    %s110 = sphi 0, %s96
    %s114 = sphi 0, %s114
    %s116 = sphi 0, %s114
    %s117 = sphi 0, %s116
    %s131 = sphi 0, %s117
    %s135 = sphi 0, %s135
    %s137 = sphi 0, %s135
    %s138 = sphi 0, %s137
    %s152 = sphi 0, %s138
    %s156 = sphi 0, %s156
    %s158 = sphi 0, %s156
    %s159 = sphi 0, %s158
    %s173 = sphi 0, %s159
    %s177 = sphi 0, %s177
    %s179 = sphi 0, %s177
    %s180 = sphi 0, %s179
    %s194 = sphi 0, %s180
    %s198 = sphi 0, %s198
    %s200 = sphi 0, %s198
    %s201 = sphi 0, %s200
    %s215 = sphi 0, %s201
    %s219 = sphi 0, %s219
    %s221 = sphi 0, %s219
    %s222 = sphi 0, %s221
    %s236 = sphi 0, %s222
    %s240 = sphi 0, %s240
    %s242 = sphi 0, %s240
    %s243 = sphi 0, %s242
    %s257 = sphi 0, %s243
    %s263 = sphi 0, %s265
    %s266 = sphi 0, %s263
    %s267 = sphi 0, %s266
    %s283 = sphi 0, %s267
  $region4: #{self_attention_block_2d.1} parent=0 // loop_header_branch
    %20 = sbr.rel (%p18) target = $region8
  $region5: #{self_attention_block_2d.1} parent=0 // loop_body
    %s22 = ssub.s32 %s17, 1
    %s23 = ssub.s32 %s17, 2
    %s24 = sadd.s32 %s17, 1
    %s25 = ssub.s32 %s17, %s24
    %p26 = scmp.eq.s32.totalorder %s25, 0
    %s28 = sadd.s32 %s27, 1
    %s29 = scalar_select %p26, %s27, %s28
    %p32 = pneg %p26
    %p33 = scmp.eq.s32.totalorder %s17, 1
    %p34 = por %p32, %p33
    %p35 = scmp.ne.s32.totalorder %s27, %s30
    %p36 = scmp.eq.s32.totalorder %s17, 0
    %p37 = por %p35, %p36
    %p38 = scmp.ne.s32.totalorder %s27, %s30
    %p39 = scmp.eq.s32.totalorder %s22, 1
    %p40 = por %p38, %p39
    %p41 = scmp.ne.s32.totalorder %s30, %s31
    %p42 = scmp.eq.s32.totalorder %s22, 0
    %p43 = por %p41, %p42
    %p44 = scmp.ne.s32.totalorder %s30, %s31
    %p45 = scmp.eq.s32.totalorder %s23, 1
    %p46 = por %p44, %p45
    %p48 = scmp.ne.s32.totalorder %s31, %s47
    %p49 = scmp.eq.s32.totalorder %s23, 0
    %p50 = por %p48, %p49
    %s52 = sadd.s32 %s51, 1
    %p55 = scmp.eq.s32.totalorder %s17, 1
    %p56 = scmp.ne.s32.totalorder %s51, %s53
    %p57 = scmp.eq.s32.totalorder %s17, 0
    %p58 = por %p56, %p57
    %p59 = scmp.ne.s32.totalorder %s51, %s53
    %p60 = scmp.eq.s32.totalorder %s22, 1
    %p61 = por %p59, %p60
    %p62 = scmp.ne.s32.totalorder %s53, %s54
    %p63 = scmp.eq.s32.totalorder %s22, 0
    %p64 = por %p62, %p63
    %p65 = scmp.ne.s32.totalorder %s53, %s54
    %p66 = scmp.eq.s32.totalorder %s23, 1
    %p67 = por %p65, %p66
    %p69 = scmp.ne.s32.totalorder %s54, %s68
    %p70 = scmp.eq.s32.totalorder %s23, 0
    %p71 = por %p69, %p70
    %s73 = sadd.s32 %s72, 1
    %p76 = scmp.eq.s32.totalorder %s17, 1
    %p77 = scmp.ne.s32.totalorder %s72, %s74
    %p78 = scmp.eq.s32.totalorder %s17, 0
    %p79 = por %p77, %p78
    %p80 = scmp.ne.s32.totalorder %s72, %s74
    %p81 = scmp.eq.s32.totalorder %s22, 1
    %p82 = por %p80, %p81
    %p83 = scmp.ne.s32.totalorder %s74, %s75
    %p84 = scmp.eq.s32.totalorder %s22, 0
    %p85 = por %p83, %p84
    %p86 = scmp.ne.s32.totalorder %s74, %s75
    %p87 = scmp.eq.s32.totalorder %s23, 1
    %p88 = por %p86, %p87
    %p90 = scmp.ne.s32.totalorder %s75, %s89
    %p91 = scmp.eq.s32.totalorder %s23, 0
    %p92 = por %p90, %p91
    %s94 = sadd.s32 %s93, 1
    %p97 = scmp.eq.s32.totalorder %s17, 1
    %p98 = scmp.ne.s32.totalorder %s93, %s95
    %p99 = scmp.eq.s32.totalorder %s17, 0
    %p100 = por %p98, %p99
    %p101 = scmp.ne.s32.totalorder %s93, %s95
    %p102 = scmp.eq.s32.totalorder %s22, 1
    %p103 = por %p101, %p102
    %p104 = scmp.ne.s32.totalorder %s95, %s96
    %p105 = scmp.eq.s32.totalorder %s22, 0
    %p106 = por %p104, %p105
    %p107 = scmp.ne.s32.totalorder %s95, %s96
    %p108 = scmp.eq.s32.totalorder %s23, 1
    %p109 = por %p107, %p108
    %p111 = scmp.ne.s32.totalorder %s96, %s110
    %p112 = scmp.eq.s32.totalorder %s23, 0
    %p113 = por %p111, %p112
    %s115 = sadd.s32 %s114, 1
    %p118 = scmp.eq.s32.totalorder %s17, 1
    %p119 = scmp.ne.s32.totalorder %s114, %s116
    %p120 = scmp.eq.s32.totalorder %s17, 0
    %p121 = por %p119, %p120
    %p122 = scmp.ne.s32.totalorder %s114, %s116
    %p123 = scmp.eq.s32.totalorder %s22, 1
    %p124 = por %p122, %p123
    %p125 = scmp.ne.s32.totalorder %s116, %s117
    %p126 = scmp.eq.s32.totalorder %s22, 0
    %p127 = por %p125, %p126
    %p128 = scmp.ne.s32.totalorder %s116, %s117
    %p129 = scmp.eq.s32.totalorder %s23, 1
    %p130 = por %p128, %p129
    %p132 = scmp.ne.s32.totalorder %s117, %s131
    %p133 = scmp.eq.s32.totalorder %s23, 0
    %p134 = por %p132, %p133
    %s136 = sadd.s32 %s135, 1
    %p139 = scmp.eq.s32.totalorder %s17, 1
    %p140 = scmp.ne.s32.totalorder %s135, %s137
    %p141 = scmp.eq.s32.totalorder %s17, 0
    %p142 = por %p140, %p141
    %p143 = scmp.ne.s32.totalorder %s135, %s137
    %p144 = scmp.eq.s32.totalorder %s22, 1
    %p145 = por %p143, %p144
    %p146 = scmp.ne.s32.totalorder %s137, %s138
    %p147 = scmp.eq.s32.totalorder %s22, 0
    %p148 = por %p146, %p147
    %p149 = scmp.ne.s32.totalorder %s137, %s138
    %p150 = scmp.eq.s32.totalorder %s23, 1
    %p151 = por %p149, %p150
    %p153 = scmp.ne.s32.totalorder %s138, %s152
    %p154 = scmp.eq.s32.totalorder %s23, 0
    %p155 = por %p153, %p154
    %s157 = sadd.s32 %s156, 1
    %p160 = scmp.eq.s32.totalorder %s17, 1
    %p161 = scmp.ne.s32.totalorder %s156, %s158
    %p162 = scmp.eq.s32.totalorder %s17, 0
    %p163 = por %p161, %p162
    %p164 = scmp.ne.s32.totalorder %s156, %s158
    %p165 = scmp.eq.s32.totalorder %s22, 1
    %p166 = por %p164, %p165
    %p167 = scmp.ne.s32.totalorder %s158, %s159
    %p168 = scmp.eq.s32.totalorder %s22, 0
    %p169 = por %p167, %p168
    %p170 = scmp.ne.s32.totalorder %s158, %s159
    %p171 = scmp.eq.s32.totalorder %s23, 1
    %p172 = por %p170, %p171
    %p174 = scmp.ne.s32.totalorder %s159, %s173
    %p175 = scmp.eq.s32.totalorder %s23, 0
    %p176 = por %p174, %p175
    %s178 = sadd.s32 %s177, 1
    %p181 = scmp.eq.s32.totalorder %s17, 1
    %p182 = scmp.ne.s32.totalorder %s177, %s179
    %p183 = scmp.eq.s32.totalorder %s17, 0
    %p184 = por %p182, %p183
    %p185 = scmp.ne.s32.totalorder %s177, %s179
    %p186 = scmp.eq.s32.totalorder %s22, 1
    %p187 = por %p185, %p186
    %p188 = scmp.ne.s32.totalorder %s179, %s180
    %p189 = scmp.eq.s32.totalorder %s22, 0
    %p190 = por %p188, %p189
    %p191 = scmp.ne.s32.totalorder %s179, %s180
    %p192 = scmp.eq.s32.totalorder %s23, 1
    %p193 = por %p191, %p192
    %p195 = scmp.ne.s32.totalorder %s180, %s194
    %p196 = scmp.eq.s32.totalorder %s23, 0
    %p197 = por %p195, %p196
    %s199 = sadd.s32 %s198, 1
    %p202 = scmp.eq.s32.totalorder %s17, 1
    %p203 = scmp.ne.s32.totalorder %s198, %s200
    %p204 = scmp.eq.s32.totalorder %s17, 0
    %p205 = por %p203, %p204
    %p206 = scmp.ne.s32.totalorder %s198, %s200
    %p207 = scmp.eq.s32.totalorder %s22, 1
    %p208 = por %p206, %p207
    %p209 = scmp.ne.s32.totalorder %s200, %s201
    %p210 = scmp.eq.s32.totalorder %s22, 0
    %p211 = por %p209, %p210
    %p212 = scmp.ne.s32.totalorder %s200, %s201
    %p213 = scmp.eq.s32.totalorder %s23, 1
    %p214 = por %p212, %p213
    %p216 = scmp.ne.s32.totalorder %s201, %s215
    %p217 = scmp.eq.s32.totalorder %s23, 0
    %p218 = por %p216, %p217
    %s220 = sadd.s32 %s219, 1
    %p223 = scmp.eq.s32.totalorder %s17, 1
    %p224 = scmp.ne.s32.totalorder %s219, %s221
    %p225 = scmp.eq.s32.totalorder %s17, 0
    %p226 = por %p224, %p225
    %p227 = scmp.ne.s32.totalorder %s219, %s221
    %p228 = scmp.eq.s32.totalorder %s22, 1
    %p229 = por %p227, %p228
    %p230 = scmp.ne.s32.totalorder %s221, %s222
    %p231 = scmp.eq.s32.totalorder %s22, 0
    %p232 = por %p230, %p231
    %p233 = scmp.ne.s32.totalorder %s221, %s222
    %p234 = scmp.eq.s32.totalorder %s23, 1
    %p235 = por %p233, %p234
    %p237 = scmp.ne.s32.totalorder %s222, %s236
    %p238 = scmp.eq.s32.totalorder %s23, 0
    %p239 = por %p237, %p238
    %s241 = sadd.s32 %s240, 1
    %p244 = scmp.eq.s32.totalorder %s17, 1
    %p245 = scmp.ne.s32.totalorder %s240, %s242
    %p246 = scmp.eq.s32.totalorder %s17, 0
    %p247 = por %p245, %p246
    %p248 = scmp.ne.s32.totalorder %s240, %s242
    %p249 = scmp.eq.s32.totalorder %s22, 1
    %p250 = por %p248, %p249
    %p251 = scmp.ne.s32.totalorder %s242, %s243
    %p252 = scmp.eq.s32.totalorder %s22, 0
    %p253 = por %p251, %p252
    %p254 = scmp.ne.s32.totalorder %s242, %s243
    %p255 = scmp.eq.s32.totalorder %s23, 1
    %p256 = por %p254, %p255
    %p258 = scmp.ne.s32.totalorder %s243, %s257
    %p259 = scmp.eq.s32.totalorder %s23, 0
    %p260 = por %p258, %p259
    %s261 = ssub.s32 %s17, %s24
    %p262 = scmp.eq.s32.totalorder %s261, 0
    %s264 = sadd.s32 %s263, 1
    %s265 = scalar_select %p262, %s263, %s264
    %p268 = pneg %p262
    %p269 = scmp.eq.s32.totalorder %s17, 1
    %p270 = por %p268, %p269
    %p271 = scmp.ne.s32.totalorder %s263, %s266
    %p272 = scmp.eq.s32.totalorder %s17, 0
    %p273 = por %p271, %p272
    %p274 = scmp.ne.s32.totalorder %s263, %s266
    %p275 = scmp.eq.s32.totalorder %s22, 1
    %p276 = por %p274, %p275
    %p277 = scmp.ne.s32.totalorder %s266, %s267
    %p278 = scmp.eq.s32.totalorder %s22, 0
    %p279 = por %p277, %p278
    %p280 = scmp.ne.s32.totalorder %s266, %s267
    %p281 = scmp.eq.s32.totalorder %s23, 1
    %p282 = por %p280, %p281
    %p284 = scmp.ne.s32.totalorder %s267, %s283
    %p285 = scmp.eq.s32.totalorder %s23, 0
    %p286 = por %p284, %p285
    %p287 = scmp.le.s32.totalorder 1, %s17
    %p288 = scmp.lt.s32.totalorder %s17, 3
    %p289 = pnand %p287, %p288
    %p290 = pneg %p289
    // Predicated region
    $region9: #{self_attention_block_2d.1} parent=5 // pred_check
      _
    $region10: #{self_attention_block_2d.1} parent=5 // pred_check_branch
      %292 = sbr.rel (%p289) target = $region12
    $region11: #{self_attention_block_2d.1} parent=5 // pred_region
      %s293 = ssub.s32 %s17, 1
      // Predicated region
      $region13: #{self_attention_block_2d.1} parent=11 // pred_check
        %p294 = pneg %p64
      $region14: #{self_attention_block_2d.1} parent=11 // pred_check_branch
        %296 = sbr.rel (%p294) target = $region16
      $region15: #{self_attention_block_2d.1} parent=11 // pred_region
        _
      $region16: #{self_attention_block_2d.1} parent=11 // pred_fallthru
        _
      // Predicated region
      $region17: #{self_attention_block_2d.1} parent=11 // pred_check
        %p297 = pneg %p85
      $region18: #{self_attention_block_2d.1} parent=11 // pred_check_branch
        %299 = sbr.rel (%p297) target = $region20
      $region19: #{self_attention_block_2d.1} parent=11 // pred_region
        _
      $region20: #{self_attention_block_2d.1} parent=11 // pred_fallthru
        _
      // Predicated region
      $region21: #{self_attention_block_2d.1} parent=11 // pred_check
        %p300 = pneg %p106
      $region22: #{self_attention_block_2d.1} parent=11 // pred_check_branch
        %302 = sbr.rel (%p300) target = $region24
      $region23: #{self_attention_block_2d.1} parent=11 // pred_region
        _
      $region24: #{self_attention_block_2d.1} parent=11 // pred_fallthru
        _
      // Predicated region
      $region25: #{self_attention_block_2d.1} parent=11 // pred_check
        %p303 = pneg %p127
      $region26: #{self_attention_block_2d.1} parent=11 // pred_check_branch
        %305 = sbr.rel (%p303) target = $region28
      $region27: #{self_attention_block_2d.1} parent=11 // pred_region
        _
      $region28: #{self_attention_block_2d.1} parent=11 // pred_fallthru
        _
      // Predicated region
      $region29: #{self_attention_block_2d.1} parent=11 // pred_check
        %p306 = pneg %p148
      $region30: #{self_attention_block_2d.1} parent=11 // pred_check_branch
        %308 = sbr.rel (%p306) target = $region32
      $region31: #{self_attention_block_2d.1} parent=11 // pred_region
        _
      $region32: #{self_attention_block_2d.1} parent=11 // pred_fallthru
        _
      // Predicated region
      $region33: #{self_attention_block_2d.1} parent=11 // pred_check
        %p309 = pneg %p169
      $region34: #{self_attention_block_2d.1} parent=11 // pred_check_branch
        %311 = sbr.rel (%p309) target = $region36
      $region35: #{self_attention_block_2d.1} parent=11 // pred_region
        _
      $region36: #{self_attention_block_2d.1} parent=11 // pred_fallthru
        _
      // Predicated region
      $region37: #{self_attention_block_2d.1} parent=11 // pred_check
        %p312 = pneg %p190
      $region38: #{self_attention_block_2d.1} parent=11 // pred_check_branch
        %314 = sbr.rel (%p312) target = $region40
      $region39: #{self_attention_block_2d.1} parent=11 // pred_region
        _
      $region40: #{self_attention_block_2d.1} parent=11 // pred_fallthru
        _
      // Predicated region
      $region41: #{self_attention_block_2d.1} parent=11 // pred_check
        %p315 = pneg %p211
      $region42: #{self_attention_block_2d.1} parent=11 // pred_check_branch
        %317 = sbr.rel (%p315) target = $region44
      $region43: #{self_attention_block_2d.1} parent=11 // pred_region
        _
      $region44: #{self_attention_block_2d.1} parent=11 // pred_fallthru
        _
      // Predicated region
      $region45: #{self_attention_block_2d.1} parent=11 // pred_check
        %p318 = pneg %p232
      $region46: #{self_attention_block_2d.1} parent=11 // pred_check_branch
        %320 = sbr.rel (%p318) target = $region48
      $region47: #{self_attention_block_2d.1} parent=11 // pred_region
        _
      $region48: #{self_attention_block_2d.1} parent=11 // pred_fallthru
        _
      // Predicated region
      $region49: #{self_attention_block_2d.1} parent=11 // pred_check
        %p321 = pneg %p253
      $region50: #{self_attention_block_2d.1} parent=11 // pred_check_branch
        %323 = sbr.rel (%p321) target = $region52
      $region51: #{self_attention_block_2d.1} parent=11 // pred_region
        _
      $region52: #{self_attention_block_2d.1} parent=11 // pred_fallthru
        _
    $region12: #{self_attention_block_2d.1} parent=5 // pred_fallthru
      _
    %p324 = scmp.lt.s32.totalorder %s17, 2
    // Predicated region
    $region53: #{self_attention_block_2d.1} parent=5 // pred_check
      %p325 = pneg %p324
    $region54: #{self_attention_block_2d.1} parent=5 // pred_check_branch
      %327 = sbr.rel (%p325) target = $region56
    $region55: #{self_attention_block_2d.1} parent=5 // pred_region
      // Predicated region
      $region57: #{self_attention_block_2d.1} parent=55 // pred_check
        %p328 = pneg %p37
      $region58: #{self_attention_block_2d.1} parent=55 // pred_check_branch
        %330 = sbr.rel (%p328) target = $region60
      $region59: #{self_attention_block_2d.1} parent=55 // pred_region
        %p331 = scmp.lt.s32.totalorder %s17, 1
        %s332 = scalar_select %p331, %s17, 1
        %s333 = smul.addr %s332, 32
        %s334 = smul.addr %s333, 8
        %s335 = scalar_lea.vmem %s0, %s334
      $region60: #{self_attention_block_2d.1} parent=55 // pred_fallthru
        _
    $region56: #{self_attention_block_2d.1} parent=5 // pred_fallthru
      _
    %p336 = scmp.le.s32.totalorder 1, %s17
    %p337 = scmp.lt.s32.totalorder %s17, 3
    %p338 = pnand %p336, %p337
    %p339 = pneg %p338
    // Predicated region
    $region61: #{self_attention_block_2d.1} parent=5 // pred_check
      _
    $region62: #{self_attention_block_2d.1} parent=5 // pred_check_branch
      %341 = sbr.rel (%p338) target = $region64
    $region63: #{self_attention_block_2d.1} parent=5 // pred_region
      %s342 = ssub.s32 %s17, 1
      %p343 = scmp.lt.s32.totalorder %s22, 1
      %s344 = scalar_select %p343, %s22, 1
      %s345 = smul.addr %s344, 32
      %s346 = smul.addr %s345, 8
      %s347 = scalar_lea.vmem %s0, %s346
      %p348 = pneg %p43
      %p349 = pneg %p40
      %p350 = pneg %p64
      %p351 = pneg %p61
      %p352 = pneg %p85
      %p353 = pneg %p82
      %p354 = pneg %p106
      %p355 = pneg %p103
      %p356 = pneg %p127
      %p357 = pneg %p124
      %p358 = pneg %p148
      %p359 = pneg %p145
      %p360 = pneg %p169
      %p361 = pneg %p166
      %p362 = pneg %p190
      %p363 = pneg %p187
      %p364 = pneg %p211
      %p365 = pneg %p208
      %p366 = pneg %p232
      %p367 = pneg %p229
      %p368 = pneg %p253
      %p369 = pneg %p250
      %p370 = pneg %p279
      %p371 = pneg %p276
      %p372 = scmp.lt.s32.totalorder %s22, 1
      %s373 = scalar_select %p372, %s22, 1
      %s374 = smul.addr %s373, 32
      %s375 = smul.addr %s374, 8
      %s376 = scalar_lea.vmem %s11, %s375
      %p377 = scmp.lt.s32.totalorder %s22, 1
      %s378 = scalar_select %p377, %s22, 1
      %s379 = smul.addr %s378, 32
      %s380 = smul.addr %s379, 8
      %s381 = scalar_lea.vmem %s0, %s380
      %p382 = scmp.lt.s32.totalorder %s22, 1
      %s383 = scalar_select %p382, %s22, 1
      %s384 = smul.addr %s383, 32
      %s385 = smul.addr %s384, 8
      %s386 = scalar_lea.vmem %s11, %s385
      %v388 = vld [vmem:[%s381] sm:$0xff]
      %v389 = vld [vmem:[%s381 + $0x8] sm:$0xff]
      %v390 = vld [vmem:[%s381 + $0x10] sm:$0xff]
      %v391 = vld [vmem:[%s381 + $0x18] sm:$0xff]
      %v392 = vld [vmem:[%s381 + $0x20] sm:$0xff]
      %v393 = vld [vmem:[%s381 + $0x28] sm:$0xff]
      %v394 = vld [vmem:[%s381 + $0x30] sm:$0xff]
      %v395 = vld [vmem:[%s381 + $0x38] sm:$0xff]
      %v396 = vld [vmem:[%s381 + $0x40] sm:$0xff]
      %v397 = vld [vmem:[%s381 + $0x48] sm:$0xff]
      %v398 = vld [vmem:[%s381 + $0x50] sm:$0xff]
      %v399 = vld [vmem:[%s381 + $0x58] sm:$0xff]
      %v400 = vld [vmem:[%s381 + $0x60] sm:$0xff]
      %v401 = vld [vmem:[%s381 + $0x68] sm:$0xff]
      %v402 = vld [vmem:[%s381 + $0x70] sm:$0xff]
      %v403 = vld [vmem:[%s381 + $0x78] sm:$0xff]
      %v404 = vld [vmem:[%s381 + $0x80] sm:$0xff]
      %v405 = vld [vmem:[%s381 + $0x88] sm:$0xff]
      %v406 = vld [vmem:[%s381 + $0x90] sm:$0xff]
      %v407 = vld [vmem:[%s381 + $0x98] sm:$0xff]
      %v408 = vld [vmem:[%s381 + $0xa0] sm:$0xff]
      %v409 = vld [vmem:[%s381 + $0xa8] sm:$0xff]
      %v410 = vld [vmem:[%s381 + $0xb0] sm:$0xff]
      %v411 = vld [vmem:[%s381 + $0xb8] sm:$0xff]
      %v412 = vld [vmem:[%s381 + $0xc0] sm:$0xff]
      %v413 = vld [vmem:[%s381 + $0xc8] sm:$0xff]
      %v414 = vld [vmem:[%s381 + $0xd0] sm:$0xff]
      %v415 = vld [vmem:[%s381 + $0xd8] sm:$0xff]
      %v416 = vld [vmem:[%s381 + $0xe0] sm:$0xff]
      %v417 = vld [vmem:[%s381 + $0xe8] sm:$0xff]
      %v418 = vld [vmem:[%s381 + $0xf0] sm:$0xff]
      %v419 = vld [vmem:[%s381 + $0xf8] sm:$0xff]
      %v420 = vld [vmem:[%s1] sm:$0xff]
      %v421 = vld [vmem:[%s1 + $0x8] sm:$0xff]
      %v422 = vld [vmem:[%s1 + $0x10] sm:$0xff]
      %v423 = vld [vmem:[%s1 + $0x18] sm:$0xff]
      %v424 = vld [vmem:[%s1 + $0x20] sm:$0xff]
      %v425 = vld [vmem:[%s1 + $0x28] sm:$0xff]
      %v426 = vld [vmem:[%s1 + $0x30] sm:$0xff]
      %v427 = vld [vmem:[%s1 + $0x38] sm:$0xff]
      %v428 = vld [vmem:[%s1 + $0x40] sm:$0xff]
      %v429 = vld [vmem:[%s1 + $0x48] sm:$0xff]
      %v430 = vld [vmem:[%s1 + $0x50] sm:$0xff]
      %v431 = vld [vmem:[%s1 + $0x58] sm:$0xff]
      %v432 = vld [vmem:[%s1 + $0x60] sm:$0xff]
      %v433 = vld [vmem:[%s1 + $0x68] sm:$0xff]
      %v434 = vld [vmem:[%s1 + $0x70] sm:$0xff]
      %v435 = vld [vmem:[%s1 + $0x78] sm:$0xff]
      %v436 = vld [vmem:[%s2] sm:$0xff]
      %v437 = vld [vmem:[%s2 + $0x8] sm:$0xff]
      %v438 = vld [vmem:[%s2 + $0x10] sm:$0xff]
      %v439 = vld [vmem:[%s2 + $0x18] sm:$0xff]
      %v440 = vld [vmem:[%s2 + $0x20] sm:$0xff]
      %v441 = vld [vmem:[%s2 + $0x28] sm:$0xff]
      %v442 = vld [vmem:[%s2 + $0x30] sm:$0xff]
      %v443 = vld [vmem:[%s2 + $0x38] sm:$0xff]
      %v444 = vld [vmem:[%s2 + $0x40] sm:$0xff]
      %v445 = vld [vmem:[%s2 + $0x48] sm:$0xff]
      %v446 = vld [vmem:[%s2 + $0x50] sm:$0xff]
      %v447 = vld [vmem:[%s2 + $0x58] sm:$0xff]
      %v448 = vld [vmem:[%s2 + $0x60] sm:$0xff]
      %v449 = vld [vmem:[%s2 + $0x68] sm:$0xff]
      %v450 = vld [vmem:[%s2 + $0x70] sm:$0xff]
      %v451 = vld [vmem:[%s2 + $0x78] sm:$0xff]
      %v452 = vadd.f32 %v388, %v390
      %v453 = vadd.f32 %v452, %v392
      %v454 = vadd.f32 %v453, %v394
      %v455 = vadd.f32 %v454, %v396
      %v456 = vadd.f32 %v455, %v398
      %v457 = vadd.f32 %v456, %v400
      %v458 = vadd.f32 %v457, %v402
      %v459 = vadd.f32 %v458, %v404
      %v460 = vadd.f32 %v459, %v406
      %v461 = vadd.f32 %v460, %v408
      %v462 = vadd.f32 %v461, %v410
      %v463 = vadd.f32 %v462, %v412
      %v464 = vadd.f32 %v463, %v414
      %v465 = vadd.f32 %v464, %v416
      %v466 = vadd.f32 %v465, %v418
      %v467 = vrot.slane %v466, 4
      %v468 = vadd.f32 %v466, %v467
      %v469 = vrot.slane %v468, 2
      %v470 = vadd.f32 %v468, %v469
      %v471 = vrot.slane %v470, 1
      %v472 = vadd.f32 %v470, %v471
      %v473 = vadd.f32 %v389, %v391
      %v474 = vadd.f32 %v473, %v393
      %v475 = vadd.f32 %v474, %v395
      %v476 = vadd.f32 %v475, %v397
      %v477 = vadd.f32 %v476, %v399
      %v478 = vadd.f32 %v477, %v401
      %v479 = vadd.f32 %v478, %v403
      %v480 = vadd.f32 %v479, %v405
      %v481 = vadd.f32 %v480, %v407
      %v482 = vadd.f32 %v481, %v409
      %v483 = vadd.f32 %v482, %v411
      %v484 = vadd.f32 %v483, %v413
      %v485 = vadd.f32 %v484, %v415
      %v486 = vadd.f32 %v485, %v417
      %v487 = vadd.f32 %v486, %v419
      %v488 = vrot.slane %v487, 4
      %v489 = vadd.f32 %v487, %v488
      %v490 = vrot.slane %v489, 2
      %v491 = vadd.f32 %v489, %v490
      %v492 = vrot.slane %v491, 1
      %v493 = vadd.f32 %v491, %v492
      %v494 = vrcp.pop 128.0
      %v495 = vmul.f32 %v472, %v494
      %v496 = vmul.f32 %v493, %v494
      %v497 = vsub.f32 %v388, %v495
      %v498 = vsub.f32 %v389, %v496
      %v499 = vsub.f32 %v390, %v495
      %v500 = vsub.f32 %v391, %v496
      %v501 = vsub.f32 %v392, %v495
      %v502 = vsub.f32 %v393, %v496
      %v503 = vsub.f32 %v394, %v495
      %v504 = vsub.f32 %v395, %v496
      %v505 = vsub.f32 %v396, %v495
      %v506 = vsub.f32 %v397, %v496
      %v507 = vsub.f32 %v398, %v495
      %v508 = vsub.f32 %v399, %v496
      %v509 = vsub.f32 %v400, %v495
      %v510 = vsub.f32 %v401, %v496
      %v511 = vsub.f32 %v402, %v495
      %v512 = vsub.f32 %v403, %v496
      %v513 = vsub.f32 %v404, %v495
      %v514 = vsub.f32 %v405, %v496
      %v515 = vsub.f32 %v406, %v495
      %v516 = vsub.f32 %v407, %v496
      %v517 = vsub.f32 %v408, %v495
      %v518 = vsub.f32 %v409, %v496
      %v519 = vsub.f32 %v410, %v495
      %v520 = vsub.f32 %v411, %v496
      %v521 = vsub.f32 %v412, %v495
      %v522 = vsub.f32 %v413, %v496
      %v523 = vsub.f32 %v414, %v495
      %v524 = vsub.f32 %v415, %v496
      %v525 = vsub.f32 %v416, %v495
      %v526 = vsub.f32 %v417, %v496
      %v527 = vsub.f32 %v418, %v495
      %v528 = vsub.f32 %v419, %v496
      %v529 = vmul.f32 %v497, %v497
      %v530 = vmul.f32 %v498, %v498
      %v531 = vmul.f32 %v499, %v499
      %v532 = vmul.f32 %v500, %v500
      %v533 = vmul.f32 %v501, %v501
      %v534 = vmul.f32 %v502, %v502
      %v535 = vmul.f32 %v503, %v503
      %v536 = vmul.f32 %v504, %v504
      %v537 = vmul.f32 %v505, %v505
      %v538 = vmul.f32 %v506, %v506
      %v539 = vmul.f32 %v507, %v507
      %v540 = vmul.f32 %v508, %v508
      %v541 = vmul.f32 %v509, %v509
      %v542 = vmul.f32 %v510, %v510
      %v543 = vmul.f32 %v511, %v511
      %v544 = vmul.f32 %v512, %v512
      %v545 = vmul.f32 %v513, %v513
      %v546 = vmul.f32 %v514, %v514
      %v547 = vmul.f32 %v515, %v515
      %v548 = vmul.f32 %v516, %v516
      %v549 = vmul.f32 %v517, %v517
      %v550 = vmul.f32 %v518, %v518
      %v551 = vmul.f32 %v519, %v519
      %v552 = vmul.f32 %v520, %v520
      %v553 = vmul.f32 %v521, %v521
      %v554 = vmul.f32 %v522, %v522
      %v555 = vmul.f32 %v523, %v523
      %v556 = vmul.f32 %v524, %v524
      %v557 = vmul.f32 %v525, %v525
      %v558 = vmul.f32 %v526, %v526
      %v559 = vmul.f32 %v527, %v527
      %v560 = vmul.f32 %v528, %v528
      %v561 = vadd.f32 %v529, %v531
      %v562 = vadd.f32 %v561, %v533
      %v563 = vadd.f32 %v562, %v535
      %v564 = vadd.f32 %v563, %v537
      %v565 = vadd.f32 %v564, %v539
      %v566 = vadd.f32 %v565, %v541
      %v567 = vadd.f32 %v566, %v543
      %v568 = vadd.f32 %v567, %v545
      %v569 = vadd.f32 %v568, %v547
      %v570 = vadd.f32 %v569, %v549
      %v571 = vadd.f32 %v570, %v551
      %v572 = vadd.f32 %v571, %v553
      %v573 = vadd.f32 %v572, %v555
      %v574 = vadd.f32 %v573, %v557
      %v575 = vadd.f32 %v574, %v559
      %v576 = vrot.slane %v575, 4
      %v577 = vadd.f32 %v575, %v576
      %v578 = vrot.slane %v577, 2
      %v579 = vadd.f32 %v577, %v578
      %v580 = vrot.slane %v579, 1
      %v581 = vadd.f32 %v579, %v580
      %v582 = vadd.f32 %v530, %v532
      %v583 = vadd.f32 %v582, %v534
      %v584 = vadd.f32 %v583, %v536
      %v585 = vadd.f32 %v584, %v538
      %v586 = vadd.f32 %v585, %v540
      %v587 = vadd.f32 %v586, %v542
      %v588 = vadd.f32 %v587, %v544
      %v589 = vadd.f32 %v588, %v546
      %v590 = vadd.f32 %v589, %v548
      %v591 = vadd.f32 %v590, %v550
      %v592 = vadd.f32 %v591, %v552
      %v593 = vadd.f32 %v592, %v554
      %v594 = vadd.f32 %v593, %v556
      %v595 = vadd.f32 %v594, %v558
      %v596 = vadd.f32 %v595, %v560
      %v597 = vrot.slane %v596, 4
      %v598 = vadd.f32 %v596, %v597
      %v599 = vrot.slane %v598, 2
      %v600 = vadd.f32 %v598, %v599
      %v601 = vrot.slane %v600, 1
      %v602 = vadd.f32 %v600, %v601
      %v603 = vmul.f32 %v581, %v494
      %v604 = vmul.f32 %v602, %v494
      %v605 = vadd.f32 %v603, 1e-05
      %v606 = vadd.f32 %v604, 1e-05
      %v607 = vrsqrt.pop %v605
      %v608 = vrsqrt.pop %v606
      %v609 = vmul.f32 %v497, %v607
      %v610 = vmul.f32 %v498, %v608
      %v611 = vmul.f32 %v499, %v607
      %v612 = vmul.f32 %v500, %v608
      %v613 = vmul.f32 %v501, %v607
      %v614 = vmul.f32 %v502, %v608
      %v615 = vmul.f32 %v503, %v607
      %v616 = vmul.f32 %v504, %v608
      %v617 = vmul.f32 %v505, %v607
      %v618 = vmul.f32 %v506, %v608
      %v619 = vmul.f32 %v507, %v607
      %v620 = vmul.f32 %v508, %v608
      %v621 = vmul.f32 %v509, %v607
      %v622 = vmul.f32 %v510, %v608
      %v623 = vmul.f32 %v511, %v607
      %v624 = vmul.f32 %v512, %v608
      %v625 = vmul.f32 %v513, %v607
      %v626 = vmul.f32 %v514, %v608
      %v627 = vmul.f32 %v515, %v607
      %v628 = vmul.f32 %v516, %v608
      %v629 = vmul.f32 %v517, %v607
      %v630 = vmul.f32 %v518, %v608
      %v631 = vmul.f32 %v519, %v607
      %v632 = vmul.f32 %v520, %v608
      %v633 = vmul.f32 %v521, %v607
      %v634 = vmul.f32 %v522, %v608
      %v635 = vmul.f32 %v523, %v607
      %v636 = vmul.f32 %v524, %v608
      %v637 = vmul.f32 %v525, %v607
      %v638 = vmul.f32 %v526, %v608
      %v639 = vmul.f32 %v527, %v607
      %v640 = vmul.f32 %v528, %v608
      %642 = vset.pattern.permute.xlu0 0
      %643 = vperm.xlu0 %642, %v420
      %v644 = vpop.permute.xlu0 %643
      %647 = vset.pattern.permute.xlu0 0
      %648 = vperm.xlu0 %647, %v421
      %v649 = vpop.permute.xlu0 %648
      %652 = vset.pattern.permute.xlu0 0
      %653 = vperm.xlu0 %652, %v422
      %v654 = vpop.permute.xlu0 %653
      %657 = vset.pattern.permute.xlu0 0
      %658 = vperm.xlu0 %657, %v423
      %v659 = vpop.permute.xlu0 %658
      %662 = vset.pattern.permute.xlu0 0
      %663 = vperm.xlu0 %662, %v424
      %v664 = vpop.permute.xlu0 %663
      %667 = vset.pattern.permute.xlu0 0
      %668 = vperm.xlu0 %667, %v425
      %v669 = vpop.permute.xlu0 %668
      %672 = vset.pattern.permute.xlu0 0
      %673 = vperm.xlu0 %672, %v426
      %v674 = vpop.permute.xlu0 %673
      %677 = vset.pattern.permute.xlu0 0
      %678 = vperm.xlu0 %677, %v427
      %v679 = vpop.permute.xlu0 %678
      %682 = vset.pattern.permute.xlu0 0
      %683 = vperm.xlu0 %682, %v428
      %v684 = vpop.permute.xlu0 %683
      %687 = vset.pattern.permute.xlu0 0
      %688 = vperm.xlu0 %687, %v429
      %v689 = vpop.permute.xlu0 %688
      %692 = vset.pattern.permute.xlu0 0
      %693 = vperm.xlu0 %692, %v430
      %v694 = vpop.permute.xlu0 %693
      %697 = vset.pattern.permute.xlu0 0
      %698 = vperm.xlu0 %697, %v431
      %v699 = vpop.permute.xlu0 %698
      %702 = vset.pattern.permute.xlu0 0
      %703 = vperm.xlu0 %702, %v432
      %v704 = vpop.permute.xlu0 %703
      %707 = vset.pattern.permute.xlu0 0
      %708 = vperm.xlu0 %707, %v433
      %v709 = vpop.permute.xlu0 %708
      %712 = vset.pattern.permute.xlu0 0
      %713 = vperm.xlu0 %712, %v434
      %v714 = vpop.permute.xlu0 %713
      %717 = vset.pattern.permute.xlu0 0
      %718 = vperm.xlu0 %717, %v435
      %v719 = vpop.permute.xlu0 %718
      %v721 = vmul.f32 %v609, %v644
      %v722 = vmul.f32 %v610, %v644
      %v723 = vmul.f32 %v611, %v649
      %v724 = vmul.f32 %v612, %v649
      %v725 = vmul.f32 %v613, %v654
      %v726 = vmul.f32 %v614, %v654
      %v727 = vmul.f32 %v615, %v659
      %v728 = vmul.f32 %v616, %v659
      %v729 = vmul.f32 %v617, %v664
      %v730 = vmul.f32 %v618, %v664
      %v731 = vmul.f32 %v619, %v669
      %v732 = vmul.f32 %v620, %v669
      %v733 = vmul.f32 %v621, %v674
      %v734 = vmul.f32 %v622, %v674
      %v735 = vmul.f32 %v623, %v679
      %v736 = vmul.f32 %v624, %v679
      %v737 = vmul.f32 %v625, %v684
      %v738 = vmul.f32 %v626, %v684
      %v739 = vmul.f32 %v627, %v689
      %v740 = vmul.f32 %v628, %v689
      %v741 = vmul.f32 %v629, %v694
      %v742 = vmul.f32 %v630, %v694
      %v743 = vmul.f32 %v631, %v699
      %v744 = vmul.f32 %v632, %v699
      %v745 = vmul.f32 %v633, %v704
      %v746 = vmul.f32 %v634, %v704
      %v747 = vmul.f32 %v635, %v709
      %v748 = vmul.f32 %v636, %v709
      %v749 = vmul.f32 %v637, %v714
      %v750 = vmul.f32 %v638, %v714
      %v751 = vmul.f32 %v639, %v719
      %v752 = vmul.f32 %v640, %v719
      %754 = vset.pattern.permute.xlu0 0
      %755 = vperm.xlu0 %754, %v436
      %v756 = vpop.permute.xlu0 %755
      %759 = vset.pattern.permute.xlu0 0
      %760 = vperm.xlu0 %759, %v437
      %v761 = vpop.permute.xlu0 %760
      %764 = vset.pattern.permute.xlu0 0
      %765 = vperm.xlu0 %764, %v438
      %v766 = vpop.permute.xlu0 %765
      %769 = vset.pattern.permute.xlu0 0
      %770 = vperm.xlu0 %769, %v439
      %v771 = vpop.permute.xlu0 %770
      %774 = vset.pattern.permute.xlu0 0
      %775 = vperm.xlu0 %774, %v440
      %v776 = vpop.permute.xlu0 %775
      %779 = vset.pattern.permute.xlu0 0
      %780 = vperm.xlu0 %779, %v441
      %v781 = vpop.permute.xlu0 %780
      %784 = vset.pattern.permute.xlu0 0
      %785 = vperm.xlu0 %784, %v442
      %v786 = vpop.permute.xlu0 %785
      %789 = vset.pattern.permute.xlu0 0
      %790 = vperm.xlu0 %789, %v443
      %v791 = vpop.permute.xlu0 %790
      %794 = vset.pattern.permute.xlu0 0
      %795 = vperm.xlu0 %794, %v444
      %v796 = vpop.permute.xlu0 %795
      %799 = vset.pattern.permute.xlu0 0
      %800 = vperm.xlu0 %799, %v445
      %v801 = vpop.permute.xlu0 %800
      %804 = vset.pattern.permute.xlu0 0
      %805 = vperm.xlu0 %804, %v446
      %v806 = vpop.permute.xlu0 %805
      %809 = vset.pattern.permute.xlu0 0
      %810 = vperm.xlu0 %809, %v447
      %v811 = vpop.permute.xlu0 %810
      %814 = vset.pattern.permute.xlu0 0
      %815 = vperm.xlu0 %814, %v448
      %v816 = vpop.permute.xlu0 %815
      %819 = vset.pattern.permute.xlu0 0
      %820 = vperm.xlu0 %819, %v449
      %v821 = vpop.permute.xlu0 %820
      %824 = vset.pattern.permute.xlu0 0
      %825 = vperm.xlu0 %824, %v450
      %v826 = vpop.permute.xlu0 %825
      %829 = vset.pattern.permute.xlu0 0
      %830 = vperm.xlu0 %829, %v451
      %v831 = vpop.permute.xlu0 %830
      %v833 = vadd.f32 %v721, %v756
      %v834 = vadd.f32 %v722, %v756
      %v835 = vadd.f32 %v723, %v761
      %v836 = vadd.f32 %v724, %v761
      %v837 = vadd.f32 %v725, %v766
      %v838 = vadd.f32 %v726, %v766
      %v839 = vadd.f32 %v727, %v771
      %v840 = vadd.f32 %v728, %v771
      %v841 = vadd.f32 %v729, %v776
      %v842 = vadd.f32 %v730, %v776
      %v843 = vadd.f32 %v731, %v781
      %v844 = vadd.f32 %v732, %v781
      %v845 = vadd.f32 %v733, %v786
      %v846 = vadd.f32 %v734, %v786
      %v847 = vadd.f32 %v735, %v791
      %v848 = vadd.f32 %v736, %v791
      %v849 = vadd.f32 %v737, %v796
      %v850 = vadd.f32 %v738, %v796
      %v851 = vadd.f32 %v739, %v801
      %v852 = vadd.f32 %v740, %v801
      %v853 = vadd.f32 %v741, %v806
      %v854 = vadd.f32 %v742, %v806
      %v855 = vadd.f32 %v743, %v811
      %v856 = vadd.f32 %v744, %v811
      %v857 = vadd.f32 %v745, %v816
      %v858 = vadd.f32 %v746, %v816
      %v859 = vadd.f32 %v747, %v821
      %v860 = vadd.f32 %v748, %v821
      %v861 = vadd.f32 %v749, %v826
      %v862 = vadd.f32 %v750, %v826
      %v863 = vadd.f32 %v751, %v831
      %v864 = vadd.f32 %v752, %v831
      %v865 = vpack.c.bf16 %v835, %v833
      %v866 = vpack.c.bf16 %v836, %v834
      %v867 = vpack.c.bf16 %v839, %v837
      %v868 = vpack.c.bf16 %v840, %v838
      %v869 = vpack.c.bf16 %v843, %v841
      %v870 = vpack.c.bf16 %v844, %v842
      %v871 = vpack.c.bf16 %v847, %v845
      %v872 = vpack.c.bf16 %v848, %v846
      %v873 = vpack.c.bf16 %v851, %v849
      %v874 = vpack.c.bf16 %v852, %v850
      %v875 = vpack.c.bf16 %v855, %v853
      %v876 = vpack.c.bf16 %v856, %v854
      %v877 = vpack.c.bf16 %v859, %v857
      %v878 = vpack.c.bf16 %v860, %v858
      %v879 = vpack.c.bf16 %v863, %v861
      %v880 = vpack.c.bf16 %v864, %v862
      %v881 = vld [vmem:[%s3] sm:$0xf]
      %v882 = vld [vmem:[%s3 + $0x4] sm:$0xf]
      %v883 = vld [vmem:[%s3 + $0x8] sm:$0xf]
      %v884 = vld [vmem:[%s3 + $0xc] sm:$0xf]
      %v885 = vld [vmem:[%s3 + $0x10] sm:$0xf]
      %v886 = vld [vmem:[%s3 + $0x14] sm:$0xf]
      %v887 = vld [vmem:[%s3 + $0x18] sm:$0xf]
      %v888 = vld [vmem:[%s3 + $0x1c] sm:$0xf]
      %v889 = vld [vmem:[%s3 + $0x20] sm:$0xf]
      %v890 = vld [vmem:[%s3 + $0x24] sm:$0xf]
      %v891 = vld [vmem:[%s3 + $0x28] sm:$0xf]
      %v892 = vld [vmem:[%s3 + $0x2c] sm:$0xf]
      %v893 = vld [vmem:[%s3 + $0x30] sm:$0xf]
      %v894 = vld [vmem:[%s3 + $0x34] sm:$0xf]
      %v895 = vld [vmem:[%s3 + $0x38] sm:$0xf]
      %v896 = vld [vmem:[%s3 + $0x3c] sm:$0xf]
      %v897 = vld [vmem:[%s3 + $0x40] sm:$0xf]
      %v898 = vld [vmem:[%s3 + $0x44] sm:$0xf]
      %v899 = vld [vmem:[%s3 + $0x48] sm:$0xf]
      %v900 = vld [vmem:[%s3 + $0x4c] sm:$0xf]
      %v901 = vld [vmem:[%s3 + $0x50] sm:$0xf]
      %v902 = vld [vmem:[%s3 + $0x54] sm:$0xf]
      %v903 = vld [vmem:[%s3 + $0x58] sm:$0xf]
      %v904 = vld [vmem:[%s3 + $0x5c] sm:$0xf]
      %v905 = vld [vmem:[%s3 + $0x60] sm:$0xf]
      %v906 = vld [vmem:[%s3 + $0x64] sm:$0xf]
      %v907 = vld [vmem:[%s3 + $0x68] sm:$0xf]
      %v908 = vld [vmem:[%s3 + $0x6c] sm:$0xf]
      %v909 = vld [vmem:[%s3 + $0x70] sm:$0xf]
      %v910 = vld [vmem:[%s3 + $0x74] sm:$0xf]
      %v911 = vld [vmem:[%s3 + $0x78] sm:$0xf]
      %v912 = vld [vmem:[%s3 + $0x7c] sm:$0xf]
      %v913 = vld [vmem:[%s3 + $0x80] sm:$0xf]
      %v914 = vld [vmem:[%s3 + $0x84] sm:$0xf]
      %v915 = vld [vmem:[%s3 + $0x88] sm:$0xf]
      %v916 = vld [vmem:[%s3 + $0x8c] sm:$0xf]
      %v917 = vld [vmem:[%s3 + $0x90] sm:$0xf]
      %v918 = vld [vmem:[%s3 + $0x94] sm:$0xf]
      %v919 = vld [vmem:[%s3 + $0x98] sm:$0xf]
      %v920 = vld [vmem:[%s3 + $0x9c] sm:$0xf]
      %v921 = vld [vmem:[%s3 + $0xa0] sm:$0xf]
      %v922 = vld [vmem:[%s3 + $0xa4] sm:$0xf]
      %v923 = vld [vmem:[%s3 + $0xa8] sm:$0xf]
      %v924 = vld [vmem:[%s3 + $0xac] sm:$0xf]
      %v925 = vld [vmem:[%s3 + $0xb0] sm:$0xf]
      %v926 = vld [vmem:[%s3 + $0xb4] sm:$0xf]
      %v927 = vld [vmem:[%s3 + $0xb8] sm:$0xf]
      %v928 = vld [vmem:[%s3 + $0xbc] sm:$0xf]
      %v929 = vld [vmem:[%s4] sm:$0xff]
      %v930 = vld [vmem:[%s4 + $0x8] sm:$0xff]
      %v931 = vld [vmem:[%s4 + $0x10] sm:$0xff]
      %v932 = vld [vmem:[%s4 + $0x18] sm:$0xff]
      %v933 = vld [vmem:[%s4 + $0x20] sm:$0xff]
      %v934 = vld [vmem:[%s4 + $0x28] sm:$0xff]
      %v935 = vld [vmem:[%s4 + $0x30] sm:$0xff]
      %v936 = vld [vmem:[%s4 + $0x38] sm:$0xff]
      %v937 = vld [vmem:[%s4 + $0x40] sm:$0xff]
      %v938 = vld [vmem:[%s4 + $0x48] sm:$0xff]
      %v939 = vld [vmem:[%s4 + $0x50] sm:$0xff]
      %v940 = vld [vmem:[%s4 + $0x58] sm:$0xff]
      %v941 = vld [vmem:[%s4 + $0x60] sm:$0xff]
      %v942 = vld [vmem:[%s4 + $0x68] sm:$0xff]
      %v943 = vld [vmem:[%s4 + $0x70] sm:$0xff]
      %v944 = vld [vmem:[%s4 + $0x78] sm:$0xff]
      %v945 = vld [vmem:[%s4 + $0x80] sm:$0xff]
      %v946 = vld [vmem:[%s4 + $0x88] sm:$0xff]
      %v947 = vld [vmem:[%s4 + $0x90] sm:$0xff]
      %v948 = vld [vmem:[%s4 + $0x98] sm:$0xff]
      %v949 = vld [vmem:[%s4 + $0xa0] sm:$0xff]
      %v950 = vld [vmem:[%s4 + $0xa8] sm:$0xff]
      %v951 = vld [vmem:[%s4 + $0xb0] sm:$0xff]
      %v952 = vld [vmem:[%s4 + $0xb8] sm:$0xff]
      %v953 = vld [vmem:[%s4 + $0xc0] sm:$0xff]
      %v954 = vld [vmem:[%s4 + $0xc8] sm:$0xff]
      %v955 = vld [vmem:[%s4 + $0xd0] sm:$0xff]
      %v956 = vld [vmem:[%s4 + $0xd8] sm:$0xff]
      %v957 = vld [vmem:[%s4 + $0xe0] sm:$0xff]
      %v958 = vld [vmem:[%s4 + $0xe8] sm:$0xff]
      %v959 = vld [vmem:[%s4 + $0xf0] sm:$0xff]
      %v960 = vld [vmem:[%s4 + $0xf8] sm:$0xff]
      %v961 = vld [vmem:[%s4 + $0x100] sm:$0xff]
      %v962 = vld [vmem:[%s4 + $0x108] sm:$0xff]
      %v963 = vld [vmem:[%s4 + $0x110] sm:$0xff]
      %v964 = vld [vmem:[%s4 + $0x118] sm:$0xff]
      %v965 = vld [vmem:[%s4 + $0x120] sm:$0xff]
      %v966 = vld [vmem:[%s4 + $0x128] sm:$0xff]
      %v967 = vld [vmem:[%s4 + $0x130] sm:$0xff]
      %v968 = vld [vmem:[%s4 + $0x138] sm:$0xff]
      %v969 = vld [vmem:[%s4 + $0x140] sm:$0xff]
      %v970 = vld [vmem:[%s4 + $0x148] sm:$0xff]
      %v971 = vld [vmem:[%s4 + $0x150] sm:$0xff]
      %v972 = vld [vmem:[%s4 + $0x158] sm:$0xff]
      %v973 = vld [vmem:[%s4 + $0x160] sm:$0xff]
      %v974 = vld [vmem:[%s4 + $0x168] sm:$0xff]
      %v975 = vld [vmem:[%s4 + $0x170] sm:$0xff]
      %v976 = vld [vmem:[%s4 + $0x178] sm:$0xff]
      %978 = vset.pattern.permute.xlu0 0
      %979 = vperm.xlu0 %978, %v929
      %v980 = vpop.permute.xlu0 %979
      %983 = vset.pattern.permute.xlu0 0
      %984 = vperm.xlu0 %983, %v930
      %v985 = vpop.permute.xlu0 %984
      %988 = vset.pattern.permute.xlu0 0
      %989 = vperm.xlu0 %988, %v931
      %v990 = vpop.permute.xlu0 %989
      %993 = vset.pattern.permute.xlu0 0
      %994 = vperm.xlu0 %993, %v932
      %v995 = vpop.permute.xlu0 %994
      %998 = vset.pattern.permute.xlu0 0
      %999 = vperm.xlu0 %998, %v933
      %v1000 = vpop.permute.xlu0 %999
      %1003 = vset.pattern.permute.xlu0 0
      %1004 = vperm.xlu0 %1003, %v934
      %v1005 = vpop.permute.xlu0 %1004
      %1008 = vset.pattern.permute.xlu0 0
      %1009 = vperm.xlu0 %1008, %v935
      %v1010 = vpop.permute.xlu0 %1009
      %1013 = vset.pattern.permute.xlu0 0
      %1014 = vperm.xlu0 %1013, %v936
      %v1015 = vpop.permute.xlu0 %1014
      %1018 = vset.pattern.permute.xlu0 0
      %1019 = vperm.xlu0 %1018, %v937
      %v1020 = vpop.permute.xlu0 %1019
      %1023 = vset.pattern.permute.xlu0 0
      %1024 = vperm.xlu0 %1023, %v938
      %v1025 = vpop.permute.xlu0 %1024
      %1028 = vset.pattern.permute.xlu0 0
      %1029 = vperm.xlu0 %1028, %v939
      %v1030 = vpop.permute.xlu0 %1029
      %1033 = vset.pattern.permute.xlu0 0
      %1034 = vperm.xlu0 %1033, %v940
      %v1035 = vpop.permute.xlu0 %1034
      %1038 = vset.pattern.permute.xlu0 0
      %1039 = vperm.xlu0 %1038, %v941
      %v1040 = vpop.permute.xlu0 %1039
      %1043 = vset.pattern.permute.xlu0 0
      %1044 = vperm.xlu0 %1043, %v942
      %v1045 = vpop.permute.xlu0 %1044
      %1048 = vset.pattern.permute.xlu0 0
      %1049 = vperm.xlu0 %1048, %v943
      %v1050 = vpop.permute.xlu0 %1049
      %1053 = vset.pattern.permute.xlu0 0
      %1054 = vperm.xlu0 %1053, %v944
      %v1055 = vpop.permute.xlu0 %1054
      %1058 = vset.pattern.permute.xlu0 0
      %1059 = vperm.xlu0 %1058, %v945
      %v1060 = vpop.permute.xlu0 %1059
      %1063 = vset.pattern.permute.xlu0 0
      %1064 = vperm.xlu0 %1063, %v946
      %v1065 = vpop.permute.xlu0 %1064
      %1068 = vset.pattern.permute.xlu0 0
      %1069 = vperm.xlu0 %1068, %v947
      %v1070 = vpop.permute.xlu0 %1069
      %1073 = vset.pattern.permute.xlu0 0
      %1074 = vperm.xlu0 %1073, %v948
      %v1075 = vpop.permute.xlu0 %1074
      %1078 = vset.pattern.permute.xlu0 0
      %1079 = vperm.xlu0 %1078, %v949
      %v1080 = vpop.permute.xlu0 %1079
      %1083 = vset.pattern.permute.xlu0 0
      %1084 = vperm.xlu0 %1083, %v950
      %v1085 = vpop.permute.xlu0 %1084
      %1088 = vset.pattern.permute.xlu0 0
      %1089 = vperm.xlu0 %1088, %v951
      %v1090 = vpop.permute.xlu0 %1089
      %1093 = vset.pattern.permute.xlu0 0
      %1094 = vperm.xlu0 %1093, %v952
      %v1095 = vpop.permute.xlu0 %1094
      %1098 = vset.pattern.permute.xlu0 0
      %1099 = vperm.xlu0 %1098, %v953
      %v1100 = vpop.permute.xlu0 %1099
      %1103 = vset.pattern.permute.xlu0 0
      %1104 = vperm.xlu0 %1103, %v954
      %v1105 = vpop.permute.xlu0 %1104
      %1108 = vset.pattern.permute.xlu0 0
      %1109 = vperm.xlu0 %1108, %v955
      %v1110 = vpop.permute.xlu0 %1109
      %1113 = vset.pattern.permute.xlu0 0
      %1114 = vperm.xlu0 %1113, %v956
      %v1115 = vpop.permute.xlu0 %1114
      %1118 = vset.pattern.permute.xlu0 0
      %1119 = vperm.xlu0 %1118, %v957
      %v1120 = vpop.permute.xlu0 %1119
      %1123 = vset.pattern.permute.xlu0 0
      %1124 = vperm.xlu0 %1123, %v958
      %v1125 = vpop.permute.xlu0 %1124
      %1128 = vset.pattern.permute.xlu0 0
      %1129 = vperm.xlu0 %1128, %v959
      %v1130 = vpop.permute.xlu0 %1129
      %1133 = vset.pattern.permute.xlu0 0
      %1134 = vperm.xlu0 %1133, %v960
      %v1135 = vpop.permute.xlu0 %1134
      %1138 = vset.pattern.permute.xlu0 0
      %1139 = vperm.xlu0 %1138, %v961
      %v1140 = vpop.permute.xlu0 %1139
      %1143 = vset.pattern.permute.xlu0 0
      %1144 = vperm.xlu0 %1143, %v962
      %v1145 = vpop.permute.xlu0 %1144
      %1148 = vset.pattern.permute.xlu0 0
      %1149 = vperm.xlu0 %1148, %v963
      %v1150 = vpop.permute.xlu0 %1149
      %1153 = vset.pattern.permute.xlu0 0
      %1154 = vperm.xlu0 %1153, %v964
      %v1155 = vpop.permute.xlu0 %1154
      %1158 = vset.pattern.permute.xlu0 0
      %1159 = vperm.xlu0 %1158, %v965
      %v1160 = vpop.permute.xlu0 %1159
      %1163 = vset.pattern.permute.xlu0 0
      %1164 = vperm.xlu0 %1163, %v966
      %v1165 = vpop.permute.xlu0 %1164
      %1168 = vset.pattern.permute.xlu0 0
      %1169 = vperm.xlu0 %1168, %v967
      %v1170 = vpop.permute.xlu0 %1169
      %1173 = vset.pattern.permute.xlu0 0
      %1174 = vperm.xlu0 %1173, %v968
      %v1175 = vpop.permute.xlu0 %1174
      %1178 = vset.pattern.permute.xlu0 0
      %1179 = vperm.xlu0 %1178, %v969
      %v1180 = vpop.permute.xlu0 %1179
      %1183 = vset.pattern.permute.xlu0 0
      %1184 = vperm.xlu0 %1183, %v970
      %v1185 = vpop.permute.xlu0 %1184
      %1188 = vset.pattern.permute.xlu0 0
      %1189 = vperm.xlu0 %1188, %v971
      %v1190 = vpop.permute.xlu0 %1189
      %1193 = vset.pattern.permute.xlu0 0
      %1194 = vperm.xlu0 %1193, %v972
      %v1195 = vpop.permute.xlu0 %1194
      %1198 = vset.pattern.permute.xlu0 0
      %1199 = vperm.xlu0 %1198, %v973
      %v1200 = vpop.permute.xlu0 %1199
      %1203 = vset.pattern.permute.xlu0 0
      %1204 = vperm.xlu0 %1203, %v974
      %v1205 = vpop.permute.xlu0 %1204
      %1208 = vset.pattern.permute.xlu0 0
      %1209 = vperm.xlu0 %1208, %v975
      %v1210 = vpop.permute.xlu0 %1209
      %1213 = vset.pattern.permute.xlu0 0
      %1214 = vperm.xlu0 %1213, %v976
      %v1215 = vpop.permute.xlu0 %1214
      %v1265 = vunpack.c.l.b16 %v881
      %v1266 = vunpack.c.l.b16 %v882
      %v1267 = vunpack.c.l.b16 %v883
      %v1268 = vunpack.c.l.b16 %v884
      %v1269 = vunpack.c.l.b16 %v885
      %v1270 = vunpack.c.l.b16 %v886
      %v1271 = vunpack.c.l.b16 %v887
      %v1272 = vunpack.c.l.b16 %v888
      %v1273 = vunpack.c.l.b16 %v889
      %v1274 = vunpack.c.l.b16 %v890
      %v1275 = vunpack.c.l.b16 %v891
      %v1276 = vunpack.c.l.b16 %v892
      %v1277 = vunpack.c.l.b16 %v893
      %v1278 = vunpack.c.l.b16 %v894
      %v1279 = vunpack.c.l.b16 %v895
      %v1280 = vunpack.c.l.b16 %v896
      %v1281 = vunpack.c.l.b16 %v897
      %v1282 = vunpack.c.l.b16 %v898
      %v1283 = vunpack.c.l.b16 %v899
      %v1284 = vunpack.c.l.b16 %v900
      %v1285 = vunpack.c.l.b16 %v901
      %v1286 = vunpack.c.l.b16 %v902
      %v1287 = vunpack.c.l.b16 %v903
      %v1288 = vunpack.c.l.b16 %v904
      %v1289 = vunpack.c.l.b16 %v905
      %v1290 = vunpack.c.l.b16 %v906
      %v1291 = vunpack.c.l.b16 %v907
      %v1292 = vunpack.c.l.b16 %v908
      %v1293 = vunpack.c.l.b16 %v909
      %v1294 = vunpack.c.l.b16 %v910
      %v1295 = vunpack.c.l.b16 %v911
      %v1296 = vunpack.c.l.b16 %v912
      %v1297 = vunpack.c.l.b16 %v913
      %v1298 = vunpack.c.l.b16 %v914
      %v1299 = vunpack.c.l.b16 %v915
      %v1300 = vunpack.c.l.b16 %v916
      %v1301 = vunpack.c.l.b16 %v917
      %v1302 = vunpack.c.l.b16 %v918
      %v1303 = vunpack.c.l.b16 %v919
      %v1304 = vunpack.c.l.b16 %v920
      %v1305 = vunpack.c.l.b16 %v921
      %v1306 = vunpack.c.l.b16 %v922
      %v1307 = vunpack.c.l.b16 %v923
      %v1308 = vunpack.c.l.b16 %v924
      %v1309 = vunpack.c.l.b16 %v925
      %v1310 = vunpack.c.l.b16 %v926
      %v1311 = vunpack.c.l.b16 %v927
      %v1312 = vunpack.c.l.b16 %v928
      %v1313 = vpack.c.b16 %v1266, %v1265
      %v1314 = vpack.c.b16 %v1268, %v1267
      %v1315 = vpack.c.b16 %v1270, %v1269
      %v1316 = vpack.c.b16 %v1272, %v1271
      %v1317 = vpack.c.b16 %v1274, %v1273
      %v1318 = vpack.c.b16 %v1276, %v1275
      %v1319 = vpack.c.b16 %v1278, %v1277
      %v1320 = vpack.c.b16 %v1280, %v1279
      %v1321 = vpack.c.b16 %v1282, %v1281
      %v1322 = vpack.c.b16 %v1284, %v1283
      %v1323 = vpack.c.b16 %v1286, %v1285
      %v1324 = vpack.c.b16 %v1288, %v1287
      %v1325 = vpack.c.b16 %v1290, %v1289
      %v1326 = vpack.c.b16 %v1292, %v1291
      %v1327 = vpack.c.b16 %v1294, %v1293
      %v1328 = vpack.c.b16 %v1296, %v1295
      %v1329 = vpack.c.b16 %v1298, %v1297
      %v1330 = vpack.c.b16 %v1300, %v1299
      %v1331 = vpack.c.b16 %v1302, %v1301
      %v1332 = vpack.c.b16 %v1304, %v1303
      %v1333 = vpack.c.b16 %v1306, %v1305
      %v1334 = vpack.c.b16 %v1308, %v1307
      %v1335 = vpack.c.b16 %v1310, %v1309
      %v1336 = vpack.c.b16 %v1312, %v1311
      %1361 = vmatprep.subr.bf16.mxu0 %v866
      %1362 = vmatpush1.bf16.msra.mxu0 %v865
      %1363 = vmatprep.subr.bf16.mxu0 %v868
      %1364 = vmatpush1.bf16.msra.mxu0 %v867
      %1365 = vmatprep.subr.bf16.mxu0 %v870
      %1366 = vmatpush1.bf16.msra.mxu0 %v869
      %1367 = vmatprep.subr.bf16.mxu0 %v872
      %1368 = vmatpush1.bf16.msra.mxu0 %v871
      %1369 = vmatprep.subr.bf16.mxu0 %v874
      %1370 = vmatpush1.bf16.msra.mxu0 %v873
      %1371 = vmatprep.subr.bf16.mxu0 %v876
      %1372 = vmatpush1.bf16.msra.mxu0 %v875
      %1373 = vmatprep.subr.bf16.mxu0 %v878
      %1374 = vmatpush1.bf16.msra.mxu0 %v877
      %1375 = vmatprep.subr.bf16.mxu0 %v880
      %1376 = vmatpush1.bf16.msra.mxu0 %v879
      %1377 = vmatprep.subr.bf16.mxu0 0
      %1378 = vmatpush1.bf16.msra.mxu0 0
      %1379 = vmatprep.subr.bf16.mxu0 0
      %1380 = vmatpush1.bf16.msra.mxu0 0
      %1381 = vmatprep.subr.bf16.mxu0 0
      %1382 = vmatpush1.bf16.msra.mxu0 0
      %1383 = vmatprep.subr.bf16.mxu0 0
      %1384 = vmatpush1.bf16.msra.mxu0 0
      %1385 = vmatprep.subr.bf16.mxu0 0
      %1386 = vmatpush1.bf16.msra.mxu0 0
      %1387 = vmatprep.subr.bf16.mxu0 0
      %1388 = vmatpush1.bf16.msra.mxu0 0
      %1389 = vmatprep.subr.bf16.mxu0 0
      %1390 = vmatpush1.bf16.msra.mxu0 0
      %1391 = vmatprep.subr.bf16.mxu0 0
      %1392 = vmatpush1.bf16.msra.mxu0 0
      %1393 = vmatprep.mubr.bf16.mxu0 0
      %1394 = vmatmul.mubr.bf16.gmra.mrb[0].mxu0 %v1313
      %v1395 = vpop.f32.mrb[0].mxu0
      %v1396 = vadd.f32 %v980, %v1395
      %v1397 = vpop.f32.mrb[0].mxu0
      %v1398 = vadd.f32 %v980, %v1397
      %v1399 = vpop.f32.mrb[0].mxu0
      %v1400 = vadd.f32 %v985, %v1399
      %v1401 = vpop.f32.mrb[0].mxu0
      %v1402 = vadd.f32 %v985, %v1401
      %1403 = vmatprep.mubr.bf16.mxu0 0
      %1404 = vmatmul.mubr.bf16.gmra.mrb[0].mxu0 %v1314
      %v1405 = vpop.f32.mrb[0].mxu0
      %v1406 = vadd.f32 %v990, %v1405
      %v1407 = vpop.f32.mrb[0].mxu0
      %v1408 = vadd.f32 %v990, %v1407
      %v1409 = vpop.f32.mrb[0].mxu0
      %v1410 = vadd.f32 %v995, %v1409
      %v1411 = vpop.f32.mrb[0].mxu0
      %v1412 = vadd.f32 %v995, %v1411
      %1413 = vmatprep.mubr.bf16.mxu0 0
      %1414 = vmatmul.mubr.bf16.gmra.mrb[0].mxu0 %v1315
      %v1415 = vpop.f32.mrb[0].mxu0
      %v1416 = vadd.f32 %v1000, %v1415
      %v1417 = vpop.f32.mrb[0].mxu0
      %v1418 = vadd.f32 %v1000, %v1417
      %v1419 = vpop.f32.mrb[0].mxu0
      %v1420 = vadd.f32 %v1005, %v1419
      %v1421 = vpop.f32.mrb[0].mxu0
      %v1422 = vadd.f32 %v1005, %v1421
      %1423 = vmatprep.mubr.bf16.mxu0 0
      %1424 = vmatmul.mubr.bf16.gmra.mrb[0].mxu0 %v1316
      %v1425 = vpop.f32.mrb[0].mxu0
      %v1426 = vadd.f32 %v1010, %v1425
      %v1427 = vpop.f32.mrb[0].mxu0
      %v1428 = vadd.f32 %v1010, %v1427
      %v1429 = vpop.f32.mrb[0].mxu0
      %v1430 = vadd.f32 %v1015, %v1429
      %v1431 = vpop.f32.mrb[0].mxu0
      %v1432 = vadd.f32 %v1015, %v1431
      %1433 = vmatprep.mubr.bf16.mxu0 0
      %1434 = vmatmul.mubr.bf16.gmra.mrb[0].mxu0 %v1317
      %v1435 = vpop.f32.mrb[0].mxu0
      %v1436 = vadd.f32 %v1020, %v1435
      %v1437 = vpop.f32.mrb[0].mxu0
      %v1438 = vadd.f32 %v1020, %v1437
      %v1439 = vpop.f32.mrb[0].mxu0
      %v1440 = vadd.f32 %v1025, %v1439
      %v1441 = vpop.f32.mrb[0].mxu0
      %v1442 = vadd.f32 %v1025, %v1441
      %1443 = vmatprep.mubr.bf16.mxu0 0
      %1444 = vmatmul.mubr.bf16.gmra.mrb[0].mxu0 %v1318
      %v1445 = vpop.f32.mrb[0].mxu0
      %v1446 = vadd.f32 %v1030, %v1445
      %v1447 = vpop.f32.mrb[0].mxu0
      %v1448 = vadd.f32 %v1030, %v1447
      %v1449 = vpop.f32.mrb[0].mxu0
      %v1450 = vadd.f32 %v1035, %v1449
      %v1451 = vpop.f32.mrb[0].mxu0
      %v1452 = vadd.f32 %v1035, %v1451
      %1453 = vmatprep.mubr.bf16.mxu0 0
      %1454 = vmatmul.mubr.bf16.gmra.mrb[0].mxu0 %v1319
      %v1455 = vpop.f32.mrb[0].mxu0
      %v1456 = vadd.f32 %v1040, %v1455
      %v1457 = vpop.f32.mrb[0].mxu0
      %v1458 = vadd.f32 %v1040, %v1457
      %v1459 = vpop.f32.mrb[0].mxu0
      %v1460 = vadd.f32 %v1045, %v1459
      %v1461 = vpop.f32.mrb[0].mxu0
      %v1462 = vadd.f32 %v1045, %v1461
      %1463 = vmatprep.mubr.bf16.mxu0 0
      %1464 = vmatmul.mubr.bf16.gmra.mrb[0].mxu0 %v1320
      %v1465 = vpop.f32.mrb[0].mxu0
      %v1466 = vadd.f32 %v1050, %v1465
      %v1467 = vpop.f32.mrb[0].mxu0
      %v1468 = vadd.f32 %v1050, %v1467
      %v1469 = vpop.f32.mrb[0].mxu0
      %v1470 = vadd.f32 %v1055, %v1469
      %v1471 = vpop.f32.mrb[0].mxu0
      %v1472 = vadd.f32 %v1055, %v1471
      %1473 = vmatprep.mubr.bf16.mxu0 0
      %1474 = vmatmul.mubr.bf16.gmra.mrb[0].mxu0 %v1321
      %v1475 = vpop.f32.mrb[0].mxu0
      %v1476 = vadd.f32 %v1060, %v1475
      %v1477 = vpop.f32.mrb[0].mxu0
      %v1478 = vadd.f32 %v1060, %v1477
      %v1479 = vpop.f32.mrb[0].mxu0
      %v1480 = vadd.f32 %v1065, %v1479
      %v1481 = vpop.f32.mrb[0].mxu0
      %v1482 = vadd.f32 %v1065, %v1481
      %1483 = vmatprep.mubr.bf16.mxu0 0
      %1484 = vmatmul.mubr.bf16.gmra.mrb[0].mxu0 %v1322
      %v1485 = vpop.f32.mrb[0].mxu0
      %v1486 = vadd.f32 %v1070, %v1485
      %v1487 = vpop.f32.mrb[0].mxu0
      %v1488 = vadd.f32 %v1070, %v1487
      %v1489 = vpop.f32.mrb[0].mxu0
      %v1490 = vadd.f32 %v1075, %v1489
      %v1491 = vpop.f32.mrb[0].mxu0
      %v1492 = vadd.f32 %v1075, %v1491
      %1493 = vmatprep.mubr.bf16.mxu0 0
      %1494 = vmatmul.mubr.bf16.gmra.mrb[0].mxu0 %v1323
      %v1495 = vpop.f32.mrb[0].mxu0
      %v1496 = vadd.f32 %v1080, %v1495
      %v1497 = vpop.f32.mrb[0].mxu0
      %v1498 = vadd.f32 %v1080, %v1497
      %v1499 = vpop.f32.mrb[0].mxu0
      %v1500 = vadd.f32 %v1085, %v1499
      %v1501 = vpop.f32.mrb[0].mxu0
      %v1502 = vadd.f32 %v1085, %v1501
      %1503 = vmatprep.mubr.bf16.mxu0 0
      %1504 = vmatmul.mubr.bf16.gmra.mrb[0].mxu0 %v1324
      %v1505 = vpop.f32.mrb[0].mxu0
      %v1506 = vadd.f32 %v1090, %v1505
      %v1507 = vpop.f32.mrb[0].mxu0
      %v1508 = vadd.f32 %v1090, %v1507
      %v1509 = vpop.f32.mrb[0].mxu0
      %v1510 = vadd.f32 %v1095, %v1509
      %v1511 = vpop.f32.mrb[0].mxu0
      %v1512 = vadd.f32 %v1095, %v1511
      %1513 = vmatprep.mubr.bf16.mxu0 0
      %1514 = vmatmul.mubr.bf16.gmra.mrb[0].mxu0 %v1325
      %v1515 = vpop.f32.mrb[0].mxu0
      %v1516 = vadd.f32 %v1100, %v1515
      %v1517 = vpop.f32.mrb[0].mxu0
      %v1518 = vadd.f32 %v1100, %v1517
      %v1519 = vpop.f32.mrb[0].mxu0
      %v1520 = vadd.f32 %v1105, %v1519
      %v1521 = vpop.f32.mrb[0].mxu0
      %v1522 = vadd.f32 %v1105, %v1521
      %1523 = vmatprep.mubr.bf16.mxu0 0
      %1524 = vmatmul.mubr.bf16.gmra.mrb[0].mxu0 %v1326
      %v1525 = vpop.f32.mrb[0].mxu0
      %v1526 = vadd.f32 %v1110, %v1525
      %v1527 = vpop.f32.mrb[0].mxu0
      %v1528 = vadd.f32 %v1110, %v1527
      %v1529 = vpop.f32.mrb[0].mxu0
      %v1530 = vadd.f32 %v1115, %v1529
      %v1531 = vpop.f32.mrb[0].mxu0
      %v1532 = vadd.f32 %v1115, %v1531
      %1533 = vmatprep.mubr.bf16.mxu0 0
      %1534 = vmatmul.mubr.bf16.gmra.mrb[0].mxu0 %v1327
      %v1535 = vpop.f32.mrb[0].mxu0
      %v1536 = vadd.f32 %v1120, %v1535
      %v1537 = vpop.f32.mrb[0].mxu0
      %v1538 = vadd.f32 %v1120, %v1537
      %v1539 = vpop.f32.mrb[0].mxu0
      %v1540 = vadd.f32 %v1125, %v1539
      %v1541 = vpop.f32.mrb[0].mxu0
      %v1542 = vadd.f32 %v1125, %v1541
      %1543 = vmatprep.mubr.bf16.mxu0 0
      %1544 = vmatmul.mubr.bf16.gmra.mrb[0].mxu0 %v1328
      %v1545 = vpop.f32.mrb[0].mxu0
      %v1546 = vadd.f32 %v1130, %v1545
      %v1547 = vpop.f32.mrb[0].mxu0
      %v1548 = vadd.f32 %v1130, %v1547
      %v1549 = vpop.f32.mrb[0].mxu0
      %v1550 = vadd.f32 %v1135, %v1549
      %v1551 = vpop.f32.mrb[0].mxu0
      %v1552 = vadd.f32 %v1135, %v1551
      %1553 = vmatprep.mubr.bf16.mxu0 0
      %1554 = vmatmul.mubr.bf16.gmra.mrb[0].mxu0 %v1329
      %v1555 = vpop.f32.mrb[0].mxu0
      %v1556 = vadd.f32 %v1140, %v1555
      %v1557 = vpop.f32.mrb[0].mxu0
      %v1558 = vadd.f32 %v1140, %v1557
      %v1559 = vpop.f32.mrb[0].mxu0
      %v1560 = vadd.f32 %v1145, %v1559
      %v1561 = vpop.f32.mrb[0].mxu0
      %v1562 = vadd.f32 %v1145, %v1561
      %1563 = vmatprep.mubr.bf16.mxu0 0
      %1564 = vmatmul.mubr.bf16.gmra.mrb[0].mxu0 %v1330
      %v1565 = vpop.f32.mrb[0].mxu0
      %v1566 = vadd.f32 %v1150, %v1565
      %v1567 = vpop.f32.mrb[0].mxu0
      %v1568 = vadd.f32 %v1150, %v1567
      %v1569 = vpop.f32.mrb[0].mxu0
      %v1570 = vadd.f32 %v1155, %v1569
      %v1571 = vpop.f32.mrb[0].mxu0
      %v1572 = vadd.f32 %v1155, %v1571
      %1573 = vmatprep.mubr.bf16.mxu0 0
      %1574 = vmatmul.mubr.bf16.gmra.mrb[0].mxu0 %v1331
      %v1575 = vpop.f32.mrb[0].mxu0
      %v1576 = vadd.f32 %v1160, %v1575
      %v1577 = vpop.f32.mrb[0].mxu0
      %v1578 = vadd.f32 %v1160, %v1577
      %v1579 = vpop.f32.mrb[0].mxu0
      %v1580 = vadd.f32 %v1165, %v1579
      %v1581 = vpop.f32.mrb[0].mxu0
      %v1582 = vadd.f32 %v1165, %v1581
      %1583 = vmatprep.mubr.bf16.mxu0 0
      %1584 = vmatmul.mubr.bf16.gmra.mrb[0].mxu0 %v1332
      %v1585 = vpop.f32.mrb[0].mxu0
      %v1586 = vadd.f32 %v1170, %v1585
      %v1587 = vpop.f32.mrb[0].mxu0
      %v1588 = vadd.f32 %v1170, %v1587
      %v1589 = vpop.f32.mrb[0].mxu0
      %v1590 = vadd.f32 %v1175, %v1589
      %v1591 = vpop.f32.mrb[0].mxu0
      %v1592 = vadd.f32 %v1175, %v1591
      %1593 = vmatprep.mubr.bf16.mxu0 0
      %1594 = vmatmul.mubr.bf16.gmra.mrb[0].mxu0 %v1333
      %v1595 = vpop.f32.mrb[0].mxu0
      %v1596 = vadd.f32 %v1180, %v1595
      %v1597 = vpop.f32.mrb[0].mxu0
      %v1598 = vadd.f32 %v1180, %v1597
      %v1599 = vpop.f32.mrb[0].mxu0
      %v1600 = vadd.f32 %v1185, %v1599
      %v1601 = vpop.f32.mrb[0].mxu0
      %v1602 = vadd.f32 %v1185, %v1601
      %1603 = vmatprep.mubr.bf16.mxu0 0
      %1604 = vmatmul.mubr.bf16.gmra.mrb[0].mxu0 %v1334
      %v1605 = vpop.f32.mrb[0].mxu0
      %v1606 = vadd.f32 %v1190, %v1605
      %v1607 = vpop.f32.mrb[0].mxu0
      %v1608 = vadd.f32 %v1190, %v1607
      %v1609 = vpop.f32.mrb[0].mxu0
      %v1610 = vadd.f32 %v1195, %v1609
      %v1611 = vpop.f32.mrb[0].mxu0
      %v1612 = vadd.f32 %v1195, %v1611
      %1613 = vmatprep.mubr.bf16.mxu0 0
      %1614 = vmatmul.mubr.bf16.gmra.mrb[0].mxu0 %v1335
      %v1615 = vpop.f32.mrb[0].mxu0
      %v1616 = vadd.f32 %v1200, %v1615
      %v1617 = vpop.f32.mrb[0].mxu0
      %v1618 = vadd.f32 %v1200, %v1617
      %v1619 = vpop.f32.mrb[0].mxu0
      %v1620 = vadd.f32 %v1205, %v1619
      %v1621 = vpop.f32.mrb[0].mxu0
      %v1622 = vadd.f32 %v1205, %v1621
      %1623 = vmatprep.mubr.bf16.mxu0 0
      %1624 = vmatmul.mubr.bf16.gmra.mrb[0].mxu0 %v1336
      %v1625 = vpop.f32.mrb[0].mxu0
      %v1626 = vadd.f32 %v1210, %v1625
      %v1627 = vpop.f32.mrb[0].mxu0
      %v1628 = vadd.f32 %v1210, %v1627
      %v1629 = vpop.f32.mrb[0].mxu0
      %v1630 = vadd.f32 %v1215, %v1629
      %v1631 = vpop.f32.mrb[0].mxu0
      %v1632 = vadd.f32 %v1215, %v1631
      %1633 = vdwg.mxu0
      %v1634 = vpack.c.bf16 %v1400, %v1396
      %v1635 = vpack.c.bf16 %v1402, %v1398
      %v1636 = vpack.c.bf16 %v1410, %v1406
      %v1637 = vpack.c.bf16 %v1412, %v1408
      %v1638 = vpack.c.bf16 %v1420, %v1416
      %v1639 = vpack.c.bf16 %v1422, %v1418
      %v1640 = vpack.c.bf16 %v1430, %v1426
      %v1641 = vpack.c.bf16 %v1432, %v1428
      %v1642 = vpack.c.bf16 %v1440, %v1436
      %v1643 = vpack.c.bf16 %v1442, %v1438
      %v1644 = vpack.c.bf16 %v1450, %v1446
      %v1645 = vpack.c.bf16 %v1452, %v1448
      %v1646 = vpack.c.bf16 %v1460, %v1456
      %v1647 = vpack.c.bf16 %v1462, %v1458
      %v1648 = vpack.c.bf16 %v1470, %v1466
      %v1649 = vpack.c.bf16 %v1472, %v1468
      %v1650 = vpack.c.bf16 %v1480, %v1476
      %v1651 = vpack.c.bf16 %v1482, %v1478
      %v1652 = vpack.c.bf16 %v1490, %v1486
      %v1653 = vpack.c.bf16 %v1492, %v1488
      %v1654 = vpack.c.bf16 %v1500, %v1496
      %v1655 = vpack.c.bf16 %v1502, %v1498
      %v1656 = vpack.c.bf16 %v1510, %v1506
      %v1657 = vpack.c.bf16 %v1512, %v1508
      %v1658 = vpack.c.bf16 %v1520, %v1516
      %v1659 = vpack.c.bf16 %v1522, %v1518
      %v1660 = vpack.c.bf16 %v1530, %v1526
      %v1661 = vpack.c.bf16 %v1532, %v1528
      %v1662 = vpack.c.bf16 %v1540, %v1536
      %v1663 = vpack.c.bf16 %v1542, %v1538
      %v1664 = vpack.c.bf16 %v1550, %v1546
      %v1665 = vpack.c.bf16 %v1552, %v1548
      %v1666 = vpack.c.bf16 %v1560, %v1556
      %v1667 = vpack.c.bf16 %v1562, %v1558
      %v1668 = vpack.c.bf16 %v1570, %v1566
      %v1669 = vpack.c.bf16 %v1572, %v1568
      %v1670 = vpack.c.bf16 %v1580, %v1576
      %v1671 = vpack.c.bf16 %v1582, %v1578
      %v1672 = vpack.c.bf16 %v1590, %v1586
      %v1673 = vpack.c.bf16 %v1592, %v1588
      %v1674 = vpack.c.bf16 %v1600, %v1596
      %v1675 = vpack.c.bf16 %v1602, %v1598
      %v1676 = vpack.c.bf16 %v1610, %v1606
      %v1677 = vpack.c.bf16 %v1612, %v1608
      %v1678 = vpack.c.bf16 %v1620, %v1616
      %v1679 = vpack.c.bf16 %v1622, %v1618
      %v1680 = vpack.c.bf16 %v1630, %v1626
      %v1681 = vpack.c.bf16 %v1632, %v1628
      %1682 = vxpose.xlu0.c.b16.start [1/8] %v1634, 128
      %1683 = vxpose.xlu0.c.b16.cont [2/8] 0, 128
      %1684 = vxpose.xlu0.c.b16.cont [3/8] 0, 128
      %1685 = vxpose.xlu0.c.b16.cont [4/8] 0, 128
      %1686 = vxpose.xlu0.c.b16.cont [5/8] 0, 128
      %1687 = vxpose.xlu0.c.b16.cont [6/8] 0, 128
      %1688 = vxpose.xlu0.c.b16.cont [7/8] 0, 128
      %1689 = vxpose.xlu0.c.b16.end [8/8] 0, 128
      %v1690 = vpop.trf.xlu0
      %v1691 = vpop.trf.xlu0
      %v1692 = vpop.trf.xlu0
      %v1693 = vpop.trf.xlu0
      %v1694 = vpop.trf.xlu0
      %v1695 = vpop.trf.xlu0
      %v1696 = vpop.trf.xlu0
      %v1697 = vpop.trf.xlu0
      %1698 = vxpose.xlu0.c.b16.start [1/8] %v1635, 128
      %1699 = vxpose.xlu0.c.b16.cont [2/8] 0, 128
      %1700 = vxpose.xlu0.c.b16.cont [3/8] 0, 128
      %1701 = vxpose.xlu0.c.b16.cont [4/8] 0, 128
      %1702 = vxpose.xlu0.c.b16.cont [5/8] 0, 128
      %1703 = vxpose.xlu0.c.b16.cont [6/8] 0, 128
      %1704 = vxpose.xlu0.c.b16.cont [7/8] 0, 128
      %1705 = vxpose.xlu0.c.b16.end [8/8] 0, 128
      %v1706 = vpop.trf.xlu0
      %v1707 = vpop.trf.xlu0
      %v1708 = vpop.trf.xlu0
      %v1709 = vpop.trf.xlu0
      %v1710 = vpop.trf.xlu0
      %v1711 = vpop.trf.xlu0
      %v1712 = vpop.trf.xlu0
      %v1713 = vpop.trf.xlu0
      %vm1714 = vcmask 130048
      %v1716 = vsel %vm1714, %v1690, 0
      %v1719 = vsel %vm1714, %v1691, 0
      %v1722 = vsel %vm1714, %v1692, 0
      %v1725 = vsel %vm1714, %v1693, 0
      %v1728 = vsel %vm1714, %v1694, 0
      %v1731 = vsel %vm1714, %v1695, 0
      %v1734 = vsel %vm1714, %v1696, 0
      %v1737 = vsel %vm1714, %v1697, 0
      %v1740 = vsel %vm1714, %v1706, 0
      %v1743 = vsel %vm1714, %v1707, 0
      %v1746 = vsel %vm1714, %v1708, 0
      %v1749 = vsel %vm1714, %v1709, 0
      %v1752 = vsel %vm1714, %v1710, 0
      %v1755 = vsel %vm1714, %v1711, 0
      %v1758 = vsel %vm1714, %v1712, 0
      %v1761 = vsel %vm1714, %v1713, 0
      %1763 = vmatprep.subr.bf16.mxu0 %v1651
      %1764 = vmatpush1.bf16.msra.mxu0 %v1650
      %1765 = vmatprep.subr.bf16.mxu0 0
      %1766 = vmatpush1.bf16.msra.mxu0 0
      %1767 = vmatprep.subr.bf16.mxu0 0
      %1768 = vmatpush1.bf16.msra.mxu0 0
      %1769 = vmatprep.subr.bf16.mxu0 0
      %1770 = vmatpush1.bf16.msra.mxu0 0
      %1771 = vmatprep.subr.bf16.mxu0 0
      %1772 = vmatpush1.bf16.msra.mxu0 0
      %1773 = vmatprep.subr.bf16.mxu0 0
      %1774 = vmatpush1.bf16.msra.mxu0 0
      %1775 = vmatprep.subr.bf16.mxu0 0
      %1776 = vmatpush1.bf16.msra.mxu0 0
      %1777 = vmatprep.subr.bf16.mxu0 0
      %1778 = vmatpush1.bf16.msra.mxu0 0
      %1779 = vmatprep.subr.bf16.mxu0 0
      %1780 = vmatpush1.bf16.msra.mxu0 0
      %1781 = vmatprep.subr.bf16.mxu0 0
      %1782 = vmatpush1.bf16.msra.mxu0 0
      %1783 = vmatprep.subr.bf16.mxu0 0
      %1784 = vmatpush1.bf16.msra.mxu0 0
      %1785 = vmatprep.subr.bf16.mxu0 0
      %1786 = vmatpush1.bf16.msra.mxu0 0
      %1787 = vmatprep.subr.bf16.mxu0 0
      %1788 = vmatpush1.bf16.msra.mxu0 0
      %1789 = vmatprep.subr.bf16.mxu0 0
      %1790 = vmatpush1.bf16.msra.mxu0 0
      %1791 = vmatprep.subr.bf16.mxu0 0
      %1792 = vmatpush1.bf16.msra.mxu0 0
      %1793 = vmatprep.subr.bf16.mxu0 0
      %1794 = vmatpush1.bf16.msra.mxu0 0
      %1795 = vmatprep.mubr.bf16.mxu0 0
      %1796 = vmatmul.mubr.bf16.gmra.mrb[0].mxu0 %v1716
      %v1797 = vpop.f32.mrb[0].mxu0
      %v1798 = vadd.f32 0.0, %v1797
      %v1799 = vpop.f32.mrb[0].mxu0
      %v1800 = vadd.f32 0.0, %v1799
      %v1801 = vpop.f32.mrb[0].mxu0
      %v1802 = vadd.f32 0.0, %v1801
      %v1803 = vpop.f32.mrb[0].mxu0
      %v1804 = vadd.f32 0.0, %v1803
      %1805 = vmatprep.mubr.bf16.mxu0 0
      %1806 = vmatmul.mubr.bf16.gmra.mrb[0].mxu0 %v1719
      %v1807 = vpop.f32.mrb[0].mxu0
      %v1808 = vadd.f32 0.0, %v1807
      %v1809 = vpop.f32.mrb[0].mxu0
      %v1810 = vadd.f32 0.0, %v1809
      %v1811 = vpop.f32.mrb[0].mxu0
      %v1812 = vadd.f32 0.0, %v1811
      %v1813 = vpop.f32.mrb[0].mxu0
      %v1814 = vadd.f32 0.0, %v1813
      %1815 = vmatprep.mubr.bf16.mxu0 0
      %1816 = vmatmul.mubr.bf16.gmra.mrb[0].mxu0 %v1722
      %v1817 = vpop.f32.mrb[0].mxu0
      %v1818 = vadd.f32 0.0, %v1817
      %v1819 = vpop.f32.mrb[0].mxu0
      %v1820 = vadd.f32 0.0, %v1819
      %v1821 = vpop.f32.mrb[0].mxu0
      %v1822 = vadd.f32 0.0, %v1821
      %v1823 = vpop.f32.mrb[0].mxu0
      %v1824 = vadd.f32 0.0, %v1823
      %1825 = vmatprep.mubr.bf16.mxu0 0
      %1826 = vmatmul.mubr.bf16.gmra.mrb[0].mxu0 %v1725
      %v1827 = vpop.f32.mrb[0].mxu0
      %v1828 = vadd.f32 0.0, %v1827
      %v1829 = vpop.f32.mrb[0].mxu0
      %v1830 = vadd.f32 0.0, %v1829
      %v1831 = vpop.f32.mrb[0].mxu0
      %v1832 = vadd.f32 0.0, %v1831
      %v1833 = vpop.f32.mrb[0].mxu0
      %v1834 = vadd.f32 0.0, %v1833
      %1835 = vmatprep.mubr.bf16.mxu0 0
      %1836 = vmatmul.mubr.bf16.gmra.mrb[0].mxu0 %v1728
      %v1837 = vpop.f32.mrb[0].mxu0
      %v1838 = vadd.f32 0.0, %v1837
      %v1839 = vpop.f32.mrb[0].mxu0
      %v1840 = vadd.f32 0.0, %v1839
      %v1841 = vpop.f32.mrb[0].mxu0
      %v1842 = vadd.f32 0.0, %v1841
      %v1843 = vpop.f32.mrb[0].mxu0
      %v1844 = vadd.f32 0.0, %v1843
      %1845 = vmatprep.mubr.bf16.mxu0 0
      %1846 = vmatmul.mubr.bf16.gmra.mrb[0].mxu0 %v1731
      %v1847 = vpop.f32.mrb[0].mxu0
      %v1848 = vadd.f32 0.0, %v1847
      %v1849 = vpop.f32.mrb[0].mxu0
      %v1850 = vadd.f32 0.0, %v1849
      %v1851 = vpop.f32.mrb[0].mxu0
      %v1852 = vadd.f32 0.0, %v1851
      %v1853 = vpop.f32.mrb[0].mxu0
      %v1854 = vadd.f32 0.0, %v1853
      %1855 = vmatprep.mubr.bf16.mxu0 0
      %1856 = vmatmul.mubr.bf16.gmra.mrb[0].mxu0 %v1734
      %v1857 = vpop.f32.mrb[0].mxu0
      %v1858 = vadd.f32 0.0, %v1857
      %v1859 = vpop.f32.mrb[0].mxu0
      %v1860 = vadd.f32 0.0, %v1859
      %v1861 = vpop.f32.mrb[0].mxu0
      %v1862 = vadd.f32 0.0, %v1861
      %v1863 = vpop.f32.mrb[0].mxu0
      %v1864 = vadd.f32 0.0, %v1863
      %1865 = vmatprep.mubr.bf16.mxu0 0
      %1866 = vmatmul.mubr.bf16.gmra.mrb[0].mxu0 %v1737
      %v1867 = vpop.f32.mrb[0].mxu0
      %v1868 = vadd.f32 0.0, %v1867
      %v1869 = vpop.f32.mrb[0].mxu0
      %v1870 = vadd.f32 0.0, %v1869
      %v1871 = vpop.f32.mrb[0].mxu0
      %v1872 = vadd.f32 0.0, %v1871
      %v1873 = vpop.f32.mrb[0].mxu0
      %v1874 = vadd.f32 0.0, %v1873
      %1875 = vmatprep.mubr.bf16.mxu0 0
      %1876 = vmatmul.mubr.bf16.gmra.mrb[0].mxu0 %v1740
      %v1877 = vpop.f32.mrb[0].mxu0
      %v1878 = vadd.f32 0.0, %v1877
      %v1879 = vpop.f32.mrb[0].mxu0
      %v1880 = vadd.f32 0.0, %v1879
      %v1881 = vpop.f32.mrb[0].mxu0
      %v1882 = vadd.f32 0.0, %v1881
      %v1883 = vpop.f32.mrb[0].mxu0
      %v1884 = vadd.f32 0.0, %v1883
      %1885 = vmatprep.mubr.bf16.mxu0 0
      %1886 = vmatmul.mubr.bf16.gmra.mrb[0].mxu0 %v1743
      %v1887 = vpop.f32.mrb[0].mxu0
      %v1888 = vadd.f32 0.0, %v1887
      %v1889 = vpop.f32.mrb[0].mxu0
      %v1890 = vadd.f32 0.0, %v1889
      %v1891 = vpop.f32.mrb[0].mxu0
      %v1892 = vadd.f32 0.0, %v1891
      %v1893 = vpop.f32.mrb[0].mxu0
      %v1894 = vadd.f32 0.0, %v1893
      %1895 = vmatprep.mubr.bf16.mxu0 0
      %1896 = vmatmul.mubr.bf16.gmra.mrb[0].mxu0 %v1746
      %v1897 = vpop.f32.mrb[0].mxu0
      %v1898 = vadd.f32 0.0, %v1897
      %v1899 = vpop.f32.mrb[0].mxu0
      %v1900 = vadd.f32 0.0, %v1899
      %v1901 = vpop.f32.mrb[0].mxu0
      %v1902 = vadd.f32 0.0, %v1901
      %v1903 = vpop.f32.mrb[0].mxu0
      %v1904 = vadd.f32 0.0, %v1903
      %1905 = vmatprep.mubr.bf16.mxu0 0
      %1906 = vmatmul.mubr.bf16.gmra.mrb[0].mxu0 %v1749
      %v1907 = vpop.f32.mrb[0].mxu0
      %v1908 = vadd.f32 0.0, %v1907
      %v1909 = vpop.f32.mrb[0].mxu0
      %v1910 = vadd.f32 0.0, %v1909
      %v1911 = vpop.f32.mrb[0].mxu0
      %v1912 = vadd.f32 0.0, %v1911
      %v1913 = vpop.f32.mrb[0].mxu0
      %v1914 = vadd.f32 0.0, %v1913
      %1915 = vmatprep.mubr.bf16.mxu0 0
      %1916 = vmatmul.mubr.bf16.gmra.mrb[0].mxu0 %v1752
      %v1917 = vpop.f32.mrb[0].mxu0
      %v1918 = vadd.f32 0.0, %v1917
      %v1919 = vpop.f32.mrb[0].mxu0
      %v1920 = vadd.f32 0.0, %v1919
      %v1921 = vpop.f32.mrb[0].mxu0
      %v1922 = vadd.f32 0.0, %v1921
      %v1923 = vpop.f32.mrb[0].mxu0
      %v1924 = vadd.f32 0.0, %v1923
      %1925 = vmatprep.mubr.bf16.mxu0 0
      %1926 = vmatmul.mubr.bf16.gmra.mrb[0].mxu0 %v1755
      %v1927 = vpop.f32.mrb[0].mxu0
      %v1928 = vadd.f32 0.0, %v1927
      %v1929 = vpop.f32.mrb[0].mxu0
      %v1930 = vadd.f32 0.0, %v1929
      %v1931 = vpop.f32.mrb[0].mxu0
      %v1932 = vadd.f32 0.0, %v1931
      %v1933 = vpop.f32.mrb[0].mxu0
      %v1934 = vadd.f32 0.0, %v1933
      %1935 = vmatprep.mubr.bf16.mxu0 0
      %1936 = vmatmul.mubr.bf16.gmra.mrb[0].mxu0 %v1758
      %v1937 = vpop.f32.mrb[0].mxu0
      %v1938 = vadd.f32 0.0, %v1937
      %v1939 = vpop.f32.mrb[0].mxu0
      %v1940 = vadd.f32 0.0, %v1939
      %v1941 = vpop.f32.mrb[0].mxu0
      %v1942 = vadd.f32 0.0, %v1941
      %v1943 = vpop.f32.mrb[0].mxu0
      %v1944 = vadd.f32 0.0, %v1943
      %1945 = vmatprep.mubr.bf16.mxu0 0
      %1946 = vmatmul.mubr.bf16.gmra.mrb[0].mxu0 %v1761
      %v1947 = vpop.f32.mrb[0].mxu0
      %v1948 = vadd.f32 0.0, %v1947
      %v1949 = vpop.f32.mrb[0].mxu0
      %v1950 = vadd.f32 0.0, %v1949
      %v1951 = vpop.f32.mrb[0].mxu0
      %v1952 = vadd.f32 0.0, %v1951
      %v1953 = vpop.f32.mrb[0].mxu0
      %v1954 = vadd.f32 0.0, %v1953
      %1955 = vdwg.mxu0
      %1956 = vxpose.xlu0.c.b16.start [1/8] %v1636, 128
      %1957 = vxpose.xlu0.c.b16.cont [2/8] 0, 128
      %1958 = vxpose.xlu0.c.b16.cont [3/8] 0, 128
      %1959 = vxpose.xlu0.c.b16.cont [4/8] 0, 128
      %1960 = vxpose.xlu0.c.b16.cont [5/8] 0, 128
      %1961 = vxpose.xlu0.c.b16.cont [6/8] 0, 128
      %1962 = vxpose.xlu0.c.b16.cont [7/8] 0, 128
      %1963 = vxpose.xlu0.c.b16.end [8/8] 0, 128
      %v1964 = vpop.trf.xlu0
      %v1965 = vpop.trf.xlu0
      %v1966 = vpop.trf.xlu0
      %v1967 = vpop.trf.xlu0
      %v1968 = vpop.trf.xlu0
      %v1969 = vpop.trf.xlu0
      %v1970 = vpop.trf.xlu0
      %v1971 = vpop.trf.xlu0
      %1972 = vxpose.xlu0.c.b16.start [1/8] %v1637, 128
      %1973 = vxpose.xlu0.c.b16.cont [2/8] 0, 128
      %1974 = vxpose.xlu0.c.b16.cont [3/8] 0, 128
      %1975 = vxpose.xlu0.c.b16.cont [4/8] 0, 128
      %1976 = vxpose.xlu0.c.b16.cont [5/8] 0, 128
      %1977 = vxpose.xlu0.c.b16.cont [6/8] 0, 128
      %1978 = vxpose.xlu0.c.b16.cont [7/8] 0, 128
      %1979 = vxpose.xlu0.c.b16.end [8/8] 0, 128
      %v1980 = vpop.trf.xlu0
      %v1981 = vpop.trf.xlu0
      %v1982 = vpop.trf.xlu0
      %v1983 = vpop.trf.xlu0
      %v1984 = vpop.trf.xlu0
      %v1985 = vpop.trf.xlu0
      %v1986 = vpop.trf.xlu0
      %v1987 = vpop.trf.xlu0
      %v1989 = vsel %vm1714, %v1964, 0
      %v1992 = vsel %vm1714, %v1965, 0
      %v1995 = vsel %vm1714, %v1966, 0
      %v1998 = vsel %vm1714, %v1967, 0
      %v2001 = vsel %vm1714, %v1968, 0
      %v2004 = vsel %vm1714, %v1969, 0
      %v2007 = vsel %vm1714, %v1970, 0
      %v2010 = vsel %vm1714, %v1971, 0
      %v2013 = vsel %vm1714, %v1980, 0
      %v2016 = vsel %vm1714, %v1981, 0
      %v2019 = vsel %vm1714, %v1982, 0
      %v2022 = vsel %vm1714, %v1983, 0
      %v2025 = vsel %vm1714, %v1984, 0
      %v2028 = vsel %vm1714, %v1985, 0
      %v2031 = vsel %vm1714, %v1986, 0
      %v2034 = vsel %vm1714, %v1987, 0
      %2036 = vmatprep.subr.bf16.mxu0 %v1653
      %2037 = vmatpush1.bf16.msra.mxu0 %v1652
      %2038 = vmatprep.subr.bf16.mxu0 0
      %2039 = vmatpush1.bf16.msra.mxu0 0
      %2040 = vmatprep.subr.bf16.mxu0 0
      %2041 = vmatpush1.bf16.msra.mxu0 0
      %2042 = vmatprep.subr.bf16.mxu0 0
      %2043 = vmatpush1.bf16.msra.mxu0 0
      %2044 = vmatprep.subr.bf16.mxu0 0
      %2045 = vmatpush1.bf16.msra.mxu0 0
      %2046 = vmatprep.subr.bf16.mxu0 0
      %2047 = vmatpush1.bf16.msra.mxu0 0
      %2048 = vmatprep.subr.bf16.mxu0 0
      %2049 = vmatpush1.bf16.msra.mxu0 0
      %2050 = vmatprep.subr.bf16.mxu0 0
      %2051 = vmatpush1.bf16.msra.mxu0 0
      %2052 = vmatprep.subr.bf16.mxu0 0
      %2053 = vmatpush1.bf16.msra.mxu0 0
      %2054 = vmatprep.subr.bf16.mxu0 0
      %2055 = vmatpush1.bf16.msra.mxu0 0
      %2056 = vmatprep.subr.bf16.mxu0 0
      %2057 = vmatpush1.bf16.msra.mxu0 0
      %2058 = vmatprep.subr.bf16.mxu0 0
      %2059 = vmatpush1.bf16.msra.mxu0 0
      %2060 = vmatprep.subr.bf16.mxu0 0
      %2061 = vmatpush1.bf16.msra.mxu0 0
      %2062 = vmatprep.subr.bf16.mxu0 0
      %2063 = vmatpush1.bf16.msra.mxu0 0
      %2064 = vmatprep.subr.bf16.mxu0 0
      %2065 = vmatpush1.bf16.msra.mxu0 0
      %2066 = vmatprep.subr.bf16.mxu0 0
      %2067 = vmatpush1.bf16.msra.mxu0 0
      %2068 = vmatprep.mubr.bf16.mxu0 0
      %2069 = vmatmul.mubr.bf16.gmra.mrb[0].mxu0 %v1989
      %v2070 = vpop.f32.mrb[0].mxu0
      %v2071 = vadd.f32 0.0, %v2070
      %v2072 = vpop.f32.mrb[0].mxu0
      %v2073 = vadd.f32 0.0, %v2072
      %v2074 = vpop.f32.mrb[0].mxu0
      %v2075 = vadd.f32 0.0, %v2074
      %v2076 = vpop.f32.mrb[0].mxu0
      %v2077 = vadd.f32 0.0, %v2076
      %2078 = vmatprep.mubr.bf16.mxu0 0
      %2079 = vmatmul.mubr.bf16.gmra.mrb[0].mxu0 %v1992
      %v2080 = vpop.f32.mrb[0].mxu0
      %v2081 = vadd.f32 0.0, %v2080
      %v2082 = vpop.f32.mrb[0].mxu0
      %v2083 = vadd.f32 0.0, %v2082
      %v2084 = vpop.f32.mrb[0].mxu0
      %v2085 = vadd.f32 0.0, %v2084
      %v2086 = vpop.f32.mrb[0].mxu0
      %v2087 = vadd.f32 0.0, %v2086
      %2088 = vmatprep.mubr.bf16.mxu0 0
      %2089 = vmatmul.mubr.bf16.gmra.mrb[0].mxu0 %v1995
      %v2090 = vpop.f32.mrb[0].mxu0
      %v2091 = vadd.f32 0.0, %v2090
      %v2092 = vpop.f32.mrb[0].mxu0
      %v2093 = vadd.f32 0.0, %v2092
      %v2094 = vpop.f32.mrb[0].mxu0
      %v2095 = vadd.f32 0.0, %v2094
      %v2096 = vpop.f32.mrb[0].mxu0
      %v2097 = vadd.f32 0.0, %v2096
      %2098 = vmatprep.mubr.bf16.mxu0 0
      %2099 = vmatmul.mubr.bf16.gmra.mrb[0].mxu0 %v1998
      %v2100 = vpop.f32.mrb[0].mxu0
      %v2101 = vadd.f32 0.0, %v2100
      %v2102 = vpop.f32.mrb[0].mxu0
      %v2103 = vadd.f32 0.0, %v2102
      %v2104 = vpop.f32.mrb[0].mxu0
      %v2105 = vadd.f32 0.0, %v2104
      %v2106 = vpop.f32.mrb[0].mxu0
      %v2107 = vadd.f32 0.0, %v2106
      %2108 = vmatprep.mubr.bf16.mxu0 0
      %2109 = vmatmul.mubr.bf16.gmra.mrb[0].mxu0 %v2001
      %v2110 = vpop.f32.mrb[0].mxu0
      %v2111 = vadd.f32 0.0, %v2110
      %v2112 = vpop.f32.mrb[0].mxu0
      %v2113 = vadd.f32 0.0, %v2112
      %v2114 = vpop.f32.mrb[0].mxu0
      %v2115 = vadd.f32 0.0, %v2114
      %v2116 = vpop.f32.mrb[0].mxu0
      %v2117 = vadd.f32 0.0, %v2116
      %2118 = vmatprep.mubr.bf16.mxu0 0
      %2119 = vmatmul.mubr.bf16.gmra.mrb[0].mxu0 %v2004
      %v2120 = vpop.f32.mrb[0].mxu0
      %v2121 = vadd.f32 0.0, %v2120
      %v2122 = vpop.f32.mrb[0].mxu0
      %v2123 = vadd.f32 0.0, %v2122
      %v2124 = vpop.f32.mrb[0].mxu0
      %v2125 = vadd.f32 0.0, %v2124
      %v2126 = vpop.f32.mrb[0].mxu0
      %v2127 = vadd.f32 0.0, %v2126
      %2128 = vmatprep.mubr.bf16.mxu0 0
      %2129 = vmatmul.mubr.bf16.gmra.mrb[0].mxu0 %v2007
      %v2130 = vpop.f32.mrb[0].mxu0
      %v2131 = vadd.f32 0.0, %v2130
      %v2132 = vpop.f32.mrb[0].mxu0
      %v2133 = vadd.f32 0.0, %v2132
      %v2134 = vpop.f32.mrb[0].mxu0
      %v2135 = vadd.f32 0.0, %v2134
      %v2136 = vpop.f32.mrb[0].mxu0
      %v2137 = vadd.f32 0.0, %v2136
      %2138 = vmatprep.mubr.bf16.mxu0 0
      %2139 = vmatmul.mubr.bf16.gmra.mrb[0].mxu0 %v2010
      %v2140 = vpop.f32.mrb[0].mxu0
      %v2141 = vadd.f32 0.0, %v2140
      %v2142 = vpop.f32.mrb[0].mxu0
      %v2143 = vadd.f32 0.0, %v2142
      %v2144 = vpop.f32.mrb[0].mxu0
      %v2145 = vadd.f32 0.0, %v2144
      %v2146 = vpop.f32.mrb[0].mxu0
      %v2147 = vadd.f32 0.0, %v2146
      %2148 = vmatprep.mubr.bf16.mxu0 0
      %2149 = vmatmul.mubr.bf16.gmra.mrb[0].mxu0 %v2013
      %v2150 = vpop.f32.mrb[0].mxu0
      %v2151 = vadd.f32 0.0, %v2150
      %v2152 = vpop.f32.mrb[0].mxu0
      %v2153 = vadd.f32 0.0, %v2152
      %v2154 = vpop.f32.mrb[0].mxu0
      %v2155 = vadd.f32 0.0, %v2154
      %v2156 = vpop.f32.mrb[0].mxu0
      %v2157 = vadd.f32 0.0, %v2156
      %2158 = vmatprep.mubr.bf16.mxu0 0
      %2159 = vmatmul.mubr.bf16.gmra.mrb[0].mxu0 %v2016
      %v2160 = vpop.f32.mrb[0].mxu0
      %v2161 = vadd.f32 0.0, %v2160
      %v2162 = vpop.f32.mrb[0].mxu0
      %v2163 = vadd.f32 0.0, %v2162
      %v2164 = vpop.f32.mrb[0].mxu0
      %v2165 = vadd.f32 0.0, %v2164
      %v2166 = vpop.f32.mrb[0].mxu0
      %v2167 = vadd.f32 0.0, %v2166
      %2168 = vmatprep.mubr.bf16.mxu0 0
      %2169 = vmatmul.mubr.bf16.gmra.mrb[0].mxu0 %v2019
      %v2170 = vpop.f32.mrb[0].mxu0
      %v2171 = vadd.f32 0.0, %v2170
      %v2172 = vpop.f32.mrb[0].mxu0
      %v2173 = vadd.f32 0.0, %v2172
      %v2174 = vpop.f32.mrb[0].mxu0
      %v2175 = vadd.f32 0.0, %v2174
      %v2176 = vpop.f32.mrb[0].mxu0
      %v2177 = vadd.f32 0.0, %v2176
      %2178 = vmatprep.mubr.bf16.mxu0 0
      %2179 = vmatmul.mubr.bf16.gmra.mrb[0].mxu0 %v2022
      %v2180 = vpop.f32.mrb[0].mxu0
      %v2181 = vadd.f32 0.0, %v2180
      %v2182 = vpop.f32.mrb[0].mxu0
      %v2183 = vadd.f32 0.0, %v2182
      %v2184 = vpop.f32.mrb[0].mxu0
      %v2185 = vadd.f32 0.0, %v2184
      %v2186 = vpop.f32.mrb[0].mxu0
      %v2187 = vadd.f32 0.0, %v2186
      %2188 = vmatprep.mubr.bf16.mxu0 0
      %2189 = vmatmul.mubr.bf16.gmra.mrb[0].mxu0 %v2025
      %v2190 = vpop.f32.mrb[0].mxu0
      %v2191 = vadd.f32 0.0, %v2190
      %v2192 = vpop.f32.mrb[0].mxu0
      %v2193 = vadd.f32 0.0, %v2192
      %v2194 = vpop.f32.mrb[0].mxu0
      %v2195 = vadd.f32 0.0, %v2194
      %v2196 = vpop.f32.mrb[0].mxu0
      %v2197 = vadd.f32 0.0, %v2196
      %2198 = vmatprep.mubr.bf16.mxu0 0
      %2199 = vmatmul.mubr.bf16.gmra.mrb[0].mxu0 %v2028
      %v2200 = vpop.f32.mrb[0].mxu0
      %v2201 = vadd.f32 0.0, %v2200
      %v2202 = vpop.f32.mrb[0].mxu0
      %v2203 = vadd.f32 0.0, %v2202
      %v2204 = vpop.f32.mrb[0].mxu0
      %v2205 = vadd.f32 0.0, %v2204
      %v2206 = vpop.f32.mrb[0].mxu0
      %v2207 = vadd.f32 0.0, %v2206
      %2208 = vmatprep.mubr.bf16.mxu0 0
      %2209 = vmatmul.mubr.bf16.gmra.mrb[0].mxu0 %v2031
      %v2210 = vpop.f32.mrb[0].mxu0
      %v2211 = vadd.f32 0.0, %v2210
      %v2212 = vpop.f32.mrb[0].mxu0
      %v2213 = vadd.f32 0.0, %v2212
      %v2214 = vpop.f32.mrb[0].mxu0
      %v2215 = vadd.f32 0.0, %v2214
      %v2216 = vpop.f32.mrb[0].mxu0
      %v2217 = vadd.f32 0.0, %v2216
      %2218 = vmatprep.mubr.bf16.mxu0 0
      %2219 = vmatmul.mubr.bf16.gmra.mrb[0].mxu0 %v2034
      %v2220 = vpop.f32.mrb[0].mxu0
      %v2221 = vadd.f32 0.0, %v2220
      %v2222 = vpop.f32.mrb[0].mxu0
      %v2223 = vadd.f32 0.0, %v2222
      %v2224 = vpop.f32.mrb[0].mxu0
      %v2225 = vadd.f32 0.0, %v2224
      %v2226 = vpop.f32.mrb[0].mxu0
      %v2227 = vadd.f32 0.0, %v2226
      %2228 = vdwg.mxu0
      %2229 = vxpose.xlu0.c.b16.start [1/8] %v1638, 128
      %2230 = vxpose.xlu0.c.b16.cont [2/8] 0, 128
      %2231 = vxpose.xlu0.c.b16.cont [3/8] 0, 128
      %2232 = vxpose.xlu0.c.b16.cont [4/8] 0, 128
      %2233 = vxpose.xlu0.c.b16.cont [5/8] 0, 128
      %2234 = vxpose.xlu0.c.b16.cont [6/8] 0, 128
      %2235 = vxpose.xlu0.c.b16.cont [7/8] 0, 128
      %2236 = vxpose.xlu0.c.b16.end [8/8] 0, 128
      %v2237 = vpop.trf.xlu0
      %v2238 = vpop.trf.xlu0
      %v2239 = vpop.trf.xlu0
      %v2240 = vpop.trf.xlu0
      %v2241 = vpop.trf.xlu0
      %v2242 = vpop.trf.xlu0
      %v2243 = vpop.trf.xlu0
      %v2244 = vpop.trf.xlu0
      %2245 = vxpose.xlu0.c.b16.start [1/8] %v1639, 128
      %2246 = vxpose.xlu0.c.b16.cont [2/8] 0, 128
      %2247 = vxpose.xlu0.c.b16.cont [3/8] 0, 128
      %2248 = vxpose.xlu0.c.b16.cont [4/8] 0, 128
      %2249 = vxpose.xlu0.c.b16.cont [5/8] 0, 128
      %2250 = vxpose.xlu0.c.b16.cont [6/8] 0, 128
      %2251 = vxpose.xlu0.c.b16.cont [7/8] 0, 128
      %2252 = vxpose.xlu0.c.b16.end [8/8] 0, 128
      %v2253 = vpop.trf.xlu0
      %v2254 = vpop.trf.xlu0
      %v2255 = vpop.trf.xlu0
      %v2256 = vpop.trf.xlu0
      %v2257 = vpop.trf.xlu0
      %v2258 = vpop.trf.xlu0
      %v2259 = vpop.trf.xlu0
      %v2260 = vpop.trf.xlu0
      %v2262 = vsel %vm1714, %v2237, 0
      %v2265 = vsel %vm1714, %v2238, 0
      %v2268 = vsel %vm1714, %v2239, 0
      %v2271 = vsel %vm1714, %v2240, 0
      %v2274 = vsel %vm1714, %v2241, 0
      %v2277 = vsel %vm1714, %v2242, 0
      %v2280 = vsel %vm1714, %v2243, 0
      %v2283 = vsel %vm1714, %v2244, 0
      %v2286 = vsel %vm1714, %v2253, 0
      %v2289 = vsel %vm1714, %v2254, 0
      %v2292 = vsel %vm1714, %v2255, 0
      %v2295 = vsel %vm1714, %v2256, 0
      %v2298 = vsel %vm1714, %v2257, 0
      %v2301 = vsel %vm1714, %v2258, 0
      %v2304 = vsel %vm1714, %v2259, 0
      %v2307 = vsel %vm1714, %v2260, 0
      %2309 = vmatprep.subr.bf16.mxu0 %v1655
      %2310 = vmatpush1.bf16.msra.mxu0 %v1654
      %2311 = vmatprep.subr.bf16.mxu0 0
      %2312 = vmatpush1.bf16.msra.mxu0 0
      %2313 = vmatprep.subr.bf16.mxu0 0
      %2314 = vmatpush1.bf16.msra.mxu0 0
      %2315 = vmatprep.subr.bf16.mxu0 0
      %2316 = vmatpush1.bf16.msra.mxu0 0
      %2317 = vmatprep.subr.bf16.mxu0 0
      %2318 = vmatpush1.bf16.msra.mxu0 0
      %2319 = vmatprep.subr.bf16.mxu0 0
      %2320 = vmatpush1.bf16.msra.mxu0 0
      %2321 = vmatprep.subr.bf16.mxu0 0
      %2322 = vmatpush1.bf16.msra.mxu0 0
      %2323 = vmatprep.subr.bf16.mxu0 0
      %2324 = vmatpush1.bf16.msra.mxu0 0
      %2325 = vmatprep.subr.bf16.mxu0 0
      %2326 = vmatpush1.bf16.msra.mxu0 0
      %2327 = vmatprep.subr.bf16.mxu0 0
      %2328 = vmatpush1.bf16.msra.mxu0 0
      %2329 = vmatprep.subr.bf16.mxu0 0
      %2330 = vmatpush1.bf16.msra.mxu0 0
      %2331 = vmatprep.subr.bf16.mxu0 0
      %2332 = vmatpush1.bf16.msra.mxu0 0
      %2333 = vmatprep.subr.bf16.mxu0 0
      %2334 = vmatpush1.bf16.msra.mxu0 0
      %2335 = vmatprep.subr.bf16.mxu0 0
      %2336 = vmatpush1.bf16.msra.mxu0 0
      %2337 = vmatprep.subr.bf16.mxu0 0
      %2338 = vmatpush1.bf16.msra.mxu0 0
      %2339 = vmatprep.subr.bf16.mxu0 0
      %2340 = vmatpush1.bf16.msra.mxu0 0
      %2341 = vmatprep.mubr.bf16.mxu0 0
      %2342 = vmatmul.mubr.bf16.gmra.mrb[0].mxu0 %v2262
      %v2343 = vpop.f32.mrb[0].mxu0
      %v2344 = vadd.f32 0.0, %v2343
      %v2345 = vpop.f32.mrb[0].mxu0
      %v2346 = vadd.f32 0.0, %v2345
      %v2347 = vpop.f32.mrb[0].mxu0
      %v2348 = vadd.f32 0.0, %v2347
      %v2349 = vpop.f32.mrb[0].mxu0
      %v2350 = vadd.f32 0.0, %v2349
      %2351 = vmatprep.mubr.bf16.mxu0 0
      %2352 = vmatmul.mubr.bf16.gmra.mrb[0].mxu0 %v2265
      %v2353 = vpop.f32.mrb[0].mxu0
      %v2354 = vadd.f32 0.0, %v2353
      %v2355 = vpop.f32.mrb[0].mxu0
      %v2356 = vadd.f32 0.0, %v2355
      %v2357 = vpop.f32.mrb[0].mxu0
      %v2358 = vadd.f32 0.0, %v2357
      %v2359 = vpop.f32.mrb[0].mxu0
      %v2360 = vadd.f32 0.0, %v2359
      %2361 = vmatprep.mubr.bf16.mxu0 0
      %2362 = vmatmul.mubr.bf16.gmra.mrb[0].mxu0 %v2268
      %v2363 = vpop.f32.mrb[0].mxu0
      %v2364 = vadd.f32 0.0, %v2363
      %v2365 = vpop.f32.mrb[0].mxu0
      %v2366 = vadd.f32 0.0, %v2365
      %v2367 = vpop.f32.mrb[0].mxu0
      %v2368 = vadd.f32 0.0, %v2367
      %v2369 = vpop.f32.mrb[0].mxu0
      %v2370 = vadd.f32 0.0, %v2369
      %2371 = vmatprep.mubr.bf16.mxu0 0
      %2372 = vmatmul.mubr.bf16.gmra.mrb[0].mxu0 %v2271
      %v2373 = vpop.f32.mrb[0].mxu0
      %v2374 = vadd.f32 0.0, %v2373
      %v2375 = vpop.f32.mrb[0].mxu0
      %v2376 = vadd.f32 0.0, %v2375
      %v2377 = vpop.f32.mrb[0].mxu0
      %v2378 = vadd.f32 0.0, %v2377
      %v2379 = vpop.f32.mrb[0].mxu0
      %v2380 = vadd.f32 0.0, %v2379
      %2381 = vmatprep.mubr.bf16.mxu0 0
      %2382 = vmatmul.mubr.bf16.gmra.mrb[0].mxu0 %v2274
      %v2383 = vpop.f32.mrb[0].mxu0
      %v2384 = vadd.f32 0.0, %v2383
      %v2385 = vpop.f32.mrb[0].mxu0
      %v2386 = vadd.f32 0.0, %v2385
      %v2387 = vpop.f32.mrb[0].mxu0
      %v2388 = vadd.f32 0.0, %v2387
      %v2389 = vpop.f32.mrb[0].mxu0
      %v2390 = vadd.f32 0.0, %v2389
      %2391 = vmatprep.mubr.bf16.mxu0 0
      %2392 = vmatmul.mubr.bf16.gmra.mrb[0].mxu0 %v2277
      %v2393 = vpop.f32.mrb[0].mxu0
      %v2394 = vadd.f32 0.0, %v2393
      %v2395 = vpop.f32.mrb[0].mxu0
      %v2396 = vadd.f32 0.0, %v2395
      %v2397 = vpop.f32.mrb[0].mxu0
      %v2398 = vadd.f32 0.0, %v2397
      %v2399 = vpop.f32.mrb[0].mxu0
      %v2400 = vadd.f32 0.0, %v2399
      %2401 = vmatprep.mubr.bf16.mxu0 0
      %2402 = vmatmul.mubr.bf16.gmra.mrb[0].mxu0 %v2280
      %v2403 = vpop.f32.mrb[0].mxu0
      %v2404 = vadd.f32 0.0, %v2403
      %v2405 = vpop.f32.mrb[0].mxu0
      %v2406 = vadd.f32 0.0, %v2405
      %v2407 = vpop.f32.mrb[0].mxu0
      %v2408 = vadd.f32 0.0, %v2407
      %v2409 = vpop.f32.mrb[0].mxu0
      %v2410 = vadd.f32 0.0, %v2409
      %2411 = vmatprep.mubr.bf16.mxu0 0
      %2412 = vmatmul.mubr.bf16.gmra.mrb[0].mxu0 %v2283
      %v2413 = vpop.f32.mrb[0].mxu0
      %v2414 = vadd.f32 0.0, %v2413
      %v2415 = vpop.f32.mrb[0].mxu0
      %v2416 = vadd.f32 0.0, %v2415
      %v2417 = vpop.f32.mrb[0].mxu0
      %v2418 = vadd.f32 0.0, %v2417
      %v2419 = vpop.f32.mrb[0].mxu0
      %v2420 = vadd.f32 0.0, %v2419
      %2421 = vmatprep.mubr.bf16.mxu0 0
      %2422 = vmatmul.mubr.bf16.gmra.mrb[0].mxu0 %v2286
      %v2423 = vpop.f32.mrb[0].mxu0
      %v2424 = vadd.f32 0.0, %v2423
      %v2425 = vpop.f32.mrb[0].mxu0
      %v2426 = vadd.f32 0.0, %v2425
      %v2427 = vpop.f32.mrb[0].mxu0
      %v2428 = vadd.f32 0.0, %v2427
      %v2429 = vpop.f32.mrb[0].mxu0
      %v2430 = vadd.f32 0.0, %v2429
      %2431 = vmatprep.mubr.bf16.mxu0 0
      %2432 = vmatmul.mubr.bf16.gmra.mrb[0].mxu0 %v2289
      %v2433 = vpop.f32.mrb[0].mxu0
      %v2434 = vadd.f32 0.0, %v2433
      %v2435 = vpop.f32.mrb[0].mxu0
      %v2436 = vadd.f32 0.0, %v2435
      %v2437 = vpop.f32.mrb[0].mxu0
      %v2438 = vadd.f32 0.0, %v2437
      %v2439 = vpop.f32.mrb[0].mxu0
      %v2440 = vadd.f32 0.0, %v2439
      %2441 = vmatprep.mubr.bf16.mxu0 0
      %2442 = vmatmul.mubr.bf16.gmra.mrb[0].mxu0 %v2292
      %v2443 = vpop.f32.mrb[0].mxu0
      %v2444 = vadd.f32 0.0, %v2443
      %v2445 = vpop.f32.mrb[0].mxu0
      %v2446 = vadd.f32 0.0, %v2445
      %v2447 = vpop.f32.mrb[0].mxu0
      %v2448 = vadd.f32 0.0, %v2447
      %v2449 = vpop.f32.mrb[0].mxu0
      %v2450 = vadd.f32 0.0, %v2449
      %2451 = vmatprep.mubr.bf16.mxu0 0
      %2452 = vmatmul.mubr.bf16.gmra.mrb[0].mxu0 %v2295
      %v2453 = vpop.f32.mrb[0].mxu0
      %v2454 = vadd.f32 0.0, %v2453
      %v2455 = vpop.f32.mrb[0].mxu0
      %v2456 = vadd.f32 0.0, %v2455
      %v2457 = vpop.f32.mrb[0].mxu0
      %v2458 = vadd.f32 0.0, %v2457
      %v2459 = vpop.f32.mrb[0].mxu0
      %v2460 = vadd.f32 0.0, %v2459
      %2461 = vmatprep.mubr.bf16.mxu0 0
      %2462 = vmatmul.mubr.bf16.gmra.mrb[0].mxu0 %v2298
      %v2463 = vpop.f32.mrb[0].mxu0
      %v2464 = vadd.f32 0.0, %v2463
      %v2465 = vpop.f32.mrb[0].mxu0
      %v2466 = vadd.f32 0.0, %v2465
      %v2467 = vpop.f32.mrb[0].mxu0
      %v2468 = vadd.f32 0.0, %v2467
      %v2469 = vpop.f32.mrb[0].mxu0
      %v2470 = vadd.f32 0.0, %v2469
      %2471 = vmatprep.mubr.bf16.mxu0 0
      %2472 = vmatmul.mubr.bf16.gmra.mrb[0].mxu0 %v2301
      %v2473 = vpop.f32.mrb[0].mxu0
      %v2474 = vadd.f32 0.0, %v2473
      %v2475 = vpop.f32.mrb[0].mxu0
      %v2476 = vadd.f32 0.0, %v2475
      %v2477 = vpop.f32.mrb[0].mxu0
      %v2478 = vadd.f32 0.0, %v2477
      %v2479 = vpop.f32.mrb[0].mxu0
      %v2480 = vadd.f32 0.0, %v2479
      %2481 = vmatprep.mubr.bf16.mxu0 0
      %2482 = vmatmul.mubr.bf16.gmra.mrb[0].mxu0 %v2304
      %v2483 = vpop.f32.mrb[0].mxu0
      %v2484 = vadd.f32 0.0, %v2483
      %v2485 = vpop.f32.mrb[0].mxu0
      %v2486 = vadd.f32 0.0, %v2485
      %v2487 = vpop.f32.mrb[0].mxu0
      %v2488 = vadd.f32 0.0, %v2487
      %v2489 = vpop.f32.mrb[0].mxu0
      %v2490 = vadd.f32 0.0, %v2489
      %2491 = vmatprep.mubr.bf16.mxu0 0
      %2492 = vmatmul.mubr.bf16.gmra.mrb[0].mxu0 %v2307
      %v2493 = vpop.f32.mrb[0].mxu0
      %v2494 = vadd.f32 0.0, %v2493
      %v2495 = vpop.f32.mrb[0].mxu0
      %v2496 = vadd.f32 0.0, %v2495
      %v2497 = vpop.f32.mrb[0].mxu0
      %v2498 = vadd.f32 0.0, %v2497
      %v2499 = vpop.f32.mrb[0].mxu0
      %v2500 = vadd.f32 0.0, %v2499
      %2501 = vdwg.mxu0
      %2502 = vxpose.xlu0.c.b16.start [1/8] %v1640, 128
      %2503 = vxpose.xlu0.c.b16.cont [2/8] 0, 128
      %2504 = vxpose.xlu0.c.b16.cont [3/8] 0, 128
      %2505 = vxpose.xlu0.c.b16.cont [4/8] 0, 128
      %2506 = vxpose.xlu0.c.b16.cont [5/8] 0, 128
      %2507 = vxpose.xlu0.c.b16.cont [6/8] 0, 128
      %2508 = vxpose.xlu0.c.b16.cont [7/8] 0, 128
      %2509 = vxpose.xlu0.c.b16.end [8/8] 0, 128
      %v2510 = vpop.trf.xlu0
      %v2511 = vpop.trf.xlu0
      %v2512 = vpop.trf.xlu0
      %v2513 = vpop.trf.xlu0
      %v2514 = vpop.trf.xlu0
      %v2515 = vpop.trf.xlu0
      %v2516 = vpop.trf.xlu0
      %v2517 = vpop.trf.xlu0
      %2518 = vxpose.xlu0.c.b16.start [1/8] %v1641, 128
      %2519 = vxpose.xlu0.c.b16.cont [2/8] 0, 128
      %2520 = vxpose.xlu0.c.b16.cont [3/8] 0, 128
      %2521 = vxpose.xlu0.c.b16.cont [4/8] 0, 128
      %2522 = vxpose.xlu0.c.b16.cont [5/8] 0, 128
      %2523 = vxpose.xlu0.c.b16.cont [6/8] 0, 128
      %2524 = vxpose.xlu0.c.b16.cont [7/8] 0, 128
      %2525 = vxpose.xlu0.c.b16.end [8/8] 0, 128
      %v2526 = vpop.trf.xlu0
      %v2527 = vpop.trf.xlu0
      %v2528 = vpop.trf.xlu0
      %v2529 = vpop.trf.xlu0
      %v2530 = vpop.trf.xlu0
      %v2531 = vpop.trf.xlu0
      %v2532 = vpop.trf.xlu0
      %v2533 = vpop.trf.xlu0
      %v2535 = vsel %vm1714, %v2510, 0
      %v2538 = vsel %vm1714, %v2511, 0
      %v2541 = vsel %vm1714, %v2512, 0
      %v2544 = vsel %vm1714, %v2513, 0
      %v2547 = vsel %vm1714, %v2514, 0
      %v2550 = vsel %vm1714, %v2515, 0
      %v2553 = vsel %vm1714, %v2516, 0
      %v2556 = vsel %vm1714, %v2517, 0
      %v2559 = vsel %vm1714, %v2526, 0
      %v2562 = vsel %vm1714, %v2527, 0
      %v2565 = vsel %vm1714, %v2528, 0
      %v2568 = vsel %vm1714, %v2529, 0
      %v2571 = vsel %vm1714, %v2530, 0
      %v2574 = vsel %vm1714, %v2531, 0
      %v2577 = vsel %vm1714, %v2532, 0
      %v2580 = vsel %vm1714, %v2533, 0
      %2582 = vmatprep.subr.bf16.mxu0 %v1657
      %2583 = vmatpush1.bf16.msra.mxu0 %v1656
      %2584 = vmatprep.subr.bf16.mxu0 0
      %2585 = vmatpush1.bf16.msra.mxu0 0
      %2586 = vmatprep.subr.bf16.mxu0 0
      %2587 = vmatpush1.bf16.msra.mxu0 0
      %2588 = vmatprep.subr.bf16.mxu0 0
      %2589 = vmatpush1.bf16.msra.mxu0 0
      %2590 = vmatprep.subr.bf16.mxu0 0
      %2591 = vmatpush1.bf16.msra.mxu0 0
      %2592 = vmatprep.subr.bf16.mxu0 0
      %2593 = vmatpush1.bf16.msra.mxu0 0
      %2594 = vmatprep.subr.bf16.mxu0 0
      %2595 = vmatpush1.bf16.msra.mxu0 0
      %2596 = vmatprep.subr.bf16.mxu0 0
      %2597 = vmatpush1.bf16.msra.mxu0 0
      %2598 = vmatprep.subr.bf16.mxu0 0
      %2599 = vmatpush1.bf16.msra.mxu0 0
      %2600 = vmatprep.subr.bf16.mxu0 0
      %2601 = vmatpush1.bf16.msra.mxu0 0
      %2602 = vmatprep.subr.bf16.mxu0 0
      %2603 = vmatpush1.bf16.msra.mxu0 0
      %2604 = vmatprep.subr.bf16.mxu0 0
      %2605 = vmatpush1.bf16.msra.mxu0 0
      %2606 = vmatprep.subr.bf16.mxu0 0
      %2607 = vmatpush1.bf16.msra.mxu0 0
      %2608 = vmatprep.subr.bf16.mxu0 0
      %2609 = vmatpush1.bf16.msra.mxu0 0
      %2610 = vmatprep.subr.bf16.mxu0 0
      %2611 = vmatpush1.bf16.msra.mxu0 0
      %2612 = vmatprep.subr.bf16.mxu0 0
      %2613 = vmatpush1.bf16.msra.mxu0 0
      %2614 = vmatprep.mubr.bf16.mxu0 0
      %2615 = vmatmul.mubr.bf16.gmra.mrb[0].mxu0 %v2535
      %v2616 = vpop.f32.mrb[0].mxu0
      %v2617 = vadd.f32 0.0, %v2616
      %v2618 = vpop.f32.mrb[0].mxu0
      %v2619 = vadd.f32 0.0, %v2618
      %v2620 = vpop.f32.mrb[0].mxu0
      %v2621 = vadd.f32 0.0, %v2620
      %v2622 = vpop.f32.mrb[0].mxu0
      %v2623 = vadd.f32 0.0, %v2622
      %2624 = vmatprep.mubr.bf16.mxu0 0
      %2625 = vmatmul.mubr.bf16.gmra.mrb[0].mxu0 %v2538
      %v2626 = vpop.f32.mrb[0].mxu0
      %v2627 = vadd.f32 0.0, %v2626
      %v2628 = vpop.f32.mrb[0].mxu0
      %v2629 = vadd.f32 0.0, %v2628
      %v2630 = vpop.f32.mrb[0].mxu0
      %v2631 = vadd.f32 0.0, %v2630
      %v2632 = vpop.f32.mrb[0].mxu0
      %v2633 = vadd.f32 0.0, %v2632
      %2634 = vmatprep.mubr.bf16.mxu0 0
      %2635 = vmatmul.mubr.bf16.gmra.mrb[0].mxu0 %v2541
      %v2636 = vpop.f32.mrb[0].mxu0
      %v2637 = vadd.f32 0.0, %v2636
      %v2638 = vpop.f32.mrb[0].mxu0
      %v2639 = vadd.f32 0.0, %v2638
      %v2640 = vpop.f32.mrb[0].mxu0
      %v2641 = vadd.f32 0.0, %v2640
      %v2642 = vpop.f32.mrb[0].mxu0
      %v2643 = vadd.f32 0.0, %v2642
      %2644 = vmatprep.mubr.bf16.mxu0 0
      %2645 = vmatmul.mubr.bf16.gmra.mrb[0].mxu0 %v2544
      %v2646 = vpop.f32.mrb[0].mxu0
      %v2647 = vadd.f32 0.0, %v2646
      %v2648 = vpop.f32.mrb[0].mxu0
      %v2649 = vadd.f32 0.0, %v2648
      %v2650 = vpop.f32.mrb[0].mxu0
      %v2651 = vadd.f32 0.0, %v2650
      %v2652 = vpop.f32.mrb[0].mxu0
      %v2653 = vadd.f32 0.0, %v2652
      %2654 = vmatprep.mubr.bf16.mxu0 0
      %2655 = vmatmul.mubr.bf16.gmra.mrb[0].mxu0 %v2547
      %v2656 = vpop.f32.mrb[0].mxu0
      %v2657 = vadd.f32 0.0, %v2656
      %v2658 = vpop.f32.mrb[0].mxu0
      %v2659 = vadd.f32 0.0, %v2658
      %v2660 = vpop.f32.mrb[0].mxu0
      %v2661 = vadd.f32 0.0, %v2660
      %v2662 = vpop.f32.mrb[0].mxu0
      %v2663 = vadd.f32 0.0, %v2662
      %2664 = vmatprep.mubr.bf16.mxu0 0
      %2665 = vmatmul.mubr.bf16.gmra.mrb[0].mxu0 %v2550
      %v2666 = vpop.f32.mrb[0].mxu0
      %v2667 = vadd.f32 0.0, %v2666
      %v2668 = vpop.f32.mrb[0].mxu0
      %v2669 = vadd.f32 0.0, %v2668
      %v2670 = vpop.f32.mrb[0].mxu0
      %v2671 = vadd.f32 0.0, %v2670
      %v2672 = vpop.f32.mrb[0].mxu0
      %v2673 = vadd.f32 0.0, %v2672
      %2674 = vmatprep.mubr.bf16.mxu0 0
      %2675 = vmatmul.mubr.bf16.gmra.mrb[0].mxu0 %v2553
      %v2676 = vpop.f32.mrb[0].mxu0
      %v2677 = vadd.f32 0.0, %v2676
      %v2678 = vpop.f32.mrb[0].mxu0
      %v2679 = vadd.f32 0.0, %v2678
      %v2680 = vpop.f32.mrb[0].mxu0
      %v2681 = vadd.f32 0.0, %v2680
      %v2682 = vpop.f32.mrb[0].mxu0
      %v2683 = vadd.f32 0.0, %v2682
      %2684 = vmatprep.mubr.bf16.mxu0 0
      %2685 = vmatmul.mubr.bf16.gmra.mrb[0].mxu0 %v2556
      %v2686 = vpop.f32.mrb[0].mxu0
      %v2687 = vadd.f32 0.0, %v2686
      %v2688 = vpop.f32.mrb[0].mxu0
      %v2689 = vadd.f32 0.0, %v2688
      %v2690 = vpop.f32.mrb[0].mxu0
      %v2691 = vadd.f32 0.0, %v2690
      %v2692 = vpop.f32.mrb[0].mxu0
      %v2693 = vadd.f32 0.0, %v2692
      %2694 = vmatprep.mubr.bf16.mxu0 0
      %2695 = vmatmul.mubr.bf16.gmra.mrb[0].mxu0 %v2559
      %v2696 = vpop.f32.mrb[0].mxu0
      %v2697 = vadd.f32 0.0, %v2696
      %v2698 = vpop.f32.mrb[0].mxu0
      %v2699 = vadd.f32 0.0, %v2698
      %v2700 = vpop.f32.mrb[0].mxu0
      %v2701 = vadd.f32 0.0, %v2700
      %v2702 = vpop.f32.mrb[0].mxu0
      %v2703 = vadd.f32 0.0, %v2702
      %2704 = vmatprep.mubr.bf16.mxu0 0
      %2705 = vmatmul.mubr.bf16.gmra.mrb[0].mxu0 %v2562
      %v2706 = vpop.f32.mrb[0].mxu0
      %v2707 = vadd.f32 0.0, %v2706
      %v2708 = vpop.f32.mrb[0].mxu0
      %v2709 = vadd.f32 0.0, %v2708
      %v2710 = vpop.f32.mrb[0].mxu0
      %v2711 = vadd.f32 0.0, %v2710
      %v2712 = vpop.f32.mrb[0].mxu0
      %v2713 = vadd.f32 0.0, %v2712
      %2714 = vmatprep.mubr.bf16.mxu0 0
      %2715 = vmatmul.mubr.bf16.gmra.mrb[0].mxu0 %v2565
      %v2716 = vpop.f32.mrb[0].mxu0
      %v2717 = vadd.f32 0.0, %v2716
      %v2718 = vpop.f32.mrb[0].mxu0
      %v2719 = vadd.f32 0.0, %v2718
      %v2720 = vpop.f32.mrb[0].mxu0
      %v2721 = vadd.f32 0.0, %v2720
      %v2722 = vpop.f32.mrb[0].mxu0
      %v2723 = vadd.f32 0.0, %v2722
      %2724 = vmatprep.mubr.bf16.mxu0 0
      %2725 = vmatmul.mubr.bf16.gmra.mrb[0].mxu0 %v2568
      %v2726 = vpop.f32.mrb[0].mxu0
      %v2727 = vadd.f32 0.0, %v2726
      %v2728 = vpop.f32.mrb[0].mxu0
      %v2729 = vadd.f32 0.0, %v2728
      %v2730 = vpop.f32.mrb[0].mxu0
      %v2731 = vadd.f32 0.0, %v2730
      %v2732 = vpop.f32.mrb[0].mxu0
      %v2733 = vadd.f32 0.0, %v2732
      %2734 = vmatprep.mubr.bf16.mxu0 0
      %2735 = vmatmul.mubr.bf16.gmra.mrb[0].mxu0 %v2571
      %v2736 = vpop.f32.mrb[0].mxu0
      %v2737 = vadd.f32 0.0, %v2736
      %v2738 = vpop.f32.mrb[0].mxu0
      %v2739 = vadd.f32 0.0, %v2738
      %v2740 = vpop.f32.mrb[0].mxu0
      %v2741 = vadd.f32 0.0, %v2740
      %v2742 = vpop.f32.mrb[0].mxu0
      %v2743 = vadd.f32 0.0, %v2742
      %2744 = vmatprep.mubr.bf16.mxu0 0
      %2745 = vmatmul.mubr.bf16.gmra.mrb[0].mxu0 %v2574
      %v2746 = vpop.f32.mrb[0].mxu0
      %v2747 = vadd.f32 0.0, %v2746
      %v2748 = vpop.f32.mrb[0].mxu0
      %v2749 = vadd.f32 0.0, %v2748
      %v2750 = vpop.f32.mrb[0].mxu0
      %v2751 = vadd.f32 0.0, %v2750
      %v2752 = vpop.f32.mrb[0].mxu0
      %v2753 = vadd.f32 0.0, %v2752
      %2754 = vmatprep.mubr.bf16.mxu0 0
      %2755 = vmatmul.mubr.bf16.gmra.mrb[0].mxu0 %v2577
      %v2756 = vpop.f32.mrb[0].mxu0
      %v2757 = vadd.f32 0.0, %v2756
      %v2758 = vpop.f32.mrb[0].mxu0
      %v2759 = vadd.f32 0.0, %v2758
      %v2760 = vpop.f32.mrb[0].mxu0
      %v2761 = vadd.f32 0.0, %v2760
      %v2762 = vpop.f32.mrb[0].mxu0
      %v2763 = vadd.f32 0.0, %v2762
      %2764 = vmatprep.mubr.bf16.mxu0 0
      %2765 = vmatmul.mubr.bf16.gmra.mrb[0].mxu0 %v2580
      %v2766 = vpop.f32.mrb[0].mxu0
      %v2767 = vadd.f32 0.0, %v2766
      %v2768 = vpop.f32.mrb[0].mxu0
      %v2769 = vadd.f32 0.0, %v2768
      %v2770 = vpop.f32.mrb[0].mxu0
      %v2771 = vadd.f32 0.0, %v2770
      %v2772 = vpop.f32.mrb[0].mxu0
      %v2773 = vadd.f32 0.0, %v2772
      %2774 = vdwg.mxu0
      %2775 = vxpose.xlu0.c.b16.start [1/8] %v1642, 128
      %2776 = vxpose.xlu0.c.b16.cont [2/8] 0, 128
      %2777 = vxpose.xlu0.c.b16.cont [3/8] 0, 128
      %2778 = vxpose.xlu0.c.b16.cont [4/8] 0, 128
      %2779 = vxpose.xlu0.c.b16.cont [5/8] 0, 128
      %2780 = vxpose.xlu0.c.b16.cont [6/8] 0, 128
      %2781 = vxpose.xlu0.c.b16.cont [7/8] 0, 128
      %2782 = vxpose.xlu0.c.b16.end [8/8] 0, 128
      %v2783 = vpop.trf.xlu0
      %v2784 = vpop.trf.xlu0
      %v2785 = vpop.trf.xlu0
      %v2786 = vpop.trf.xlu0
      %v2787 = vpop.trf.xlu0
      %v2788 = vpop.trf.xlu0
      %v2789 = vpop.trf.xlu0
      %v2790 = vpop.trf.xlu0
      %2791 = vxpose.xlu0.c.b16.start [1/8] %v1643, 128
      %2792 = vxpose.xlu0.c.b16.cont [2/8] 0, 128
      %2793 = vxpose.xlu0.c.b16.cont [3/8] 0, 128
      %2794 = vxpose.xlu0.c.b16.cont [4/8] 0, 128
      %2795 = vxpose.xlu0.c.b16.cont [5/8] 0, 128
      %2796 = vxpose.xlu0.c.b16.cont [6/8] 0, 128
      %2797 = vxpose.xlu0.c.b16.cont [7/8] 0, 128
      %2798 = vxpose.xlu0.c.b16.end [8/8] 0, 128
      %v2799 = vpop.trf.xlu0
      %v2800 = vpop.trf.xlu0
      %v2801 = vpop.trf.xlu0
      %v2802 = vpop.trf.xlu0
      %v2803 = vpop.trf.xlu0
      %v2804 = vpop.trf.xlu0
      %v2805 = vpop.trf.xlu0
      %v2806 = vpop.trf.xlu0
      %v2808 = vsel %vm1714, %v2783, 0
      %v2811 = vsel %vm1714, %v2784, 0
      %v2814 = vsel %vm1714, %v2785, 0
      %v2817 = vsel %vm1714, %v2786, 0
      %v2820 = vsel %vm1714, %v2787, 0
      %v2823 = vsel %vm1714, %v2788, 0
      %v2826 = vsel %vm1714, %v2789, 0
      %v2829 = vsel %vm1714, %v2790, 0
      %v2832 = vsel %vm1714, %v2799, 0
      %v2835 = vsel %vm1714, %v2800, 0
      %v2838 = vsel %vm1714, %v2801, 0
      %v2841 = vsel %vm1714, %v2802, 0
      %v2844 = vsel %vm1714, %v2803, 0
      %v2847 = vsel %vm1714, %v2804, 0
      %v2850 = vsel %vm1714, %v2805, 0
      %v2853 = vsel %vm1714, %v2806, 0
      %2855 = vmatprep.subr.bf16.mxu0 %v1659
      %2856 = vmatpush1.bf16.msra.mxu0 %v1658
      %2857 = vmatprep.subr.bf16.mxu0 0
      %2858 = vmatpush1.bf16.msra.mxu0 0
      %2859 = vmatprep.subr.bf16.mxu0 0
      %2860 = vmatpush1.bf16.msra.mxu0 0
      %2861 = vmatprep.subr.bf16.mxu0 0
      %2862 = vmatpush1.bf16.msra.mxu0 0
      %2863 = vmatprep.subr.bf16.mxu0 0
      %2864 = vmatpush1.bf16.msra.mxu0 0
      %2865 = vmatprep.subr.bf16.mxu0 0
      %2866 = vmatpush1.bf16.msra.mxu0 0
      %2867 = vmatprep.subr.bf16.mxu0 0
      %2868 = vmatpush1.bf16.msra.mxu0 0
      %2869 = vmatprep.subr.bf16.mxu0 0
      %2870 = vmatpush1.bf16.msra.mxu0 0
      %2871 = vmatprep.subr.bf16.mxu0 0
      %2872 = vmatpush1.bf16.msra.mxu0 0
      %2873 = vmatprep.subr.bf16.mxu0 0
      %2874 = vmatpush1.bf16.msra.mxu0 0
      %2875 = vmatprep.subr.bf16.mxu0 0
      %2876 = vmatpush1.bf16.msra.mxu0 0
      %2877 = vmatprep.subr.bf16.mxu0 0
      %2878 = vmatpush1.bf16.msra.mxu0 0
      %2879 = vmatprep.subr.bf16.mxu0 0
      %2880 = vmatpush1.bf16.msra.mxu0 0
      %2881 = vmatprep.subr.bf16.mxu0 0
      %2882 = vmatpush1.bf16.msra.mxu0 0
      %2883 = vmatprep.subr.bf16.mxu0 0
      %2884 = vmatpush1.bf16.msra.mxu0 0
      %2885 = vmatprep.subr.bf16.mxu0 0
      %2886 = vmatpush1.bf16.msra.mxu0 0
      %2887 = vmatprep.mubr.bf16.mxu0 0
      %2888 = vmatmul.mubr.bf16.gmra.mrb[0].mxu0 %v2808
      %v2889 = vpop.f32.mrb[0].mxu0
      %v2890 = vadd.f32 0.0, %v2889
      %v2891 = vpop.f32.mrb[0].mxu0
      %v2892 = vadd.f32 0.0, %v2891
      %v2893 = vpop.f32.mrb[0].mxu0
      %v2894 = vadd.f32 0.0, %v2893
      %v2895 = vpop.f32.mrb[0].mxu0
      %v2896 = vadd.f32 0.0, %v2895
      %2897 = vmatprep.mubr.bf16.mxu0 0
      %2898 = vmatmul.mubr.bf16.gmra.mrb[0].mxu0 %v2811
      %v2899 = vpop.f32.mrb[0].mxu0
      %v2900 = vadd.f32 0.0, %v2899
      %v2901 = vpop.f32.mrb[0].mxu0
      %v2902 = vadd.f32 0.0, %v2901
      %v2903 = vpop.f32.mrb[0].mxu0
      %v2904 = vadd.f32 0.0, %v2903
      %v2905 = vpop.f32.mrb[0].mxu0
      %v2906 = vadd.f32 0.0, %v2905
      %2907 = vmatprep.mubr.bf16.mxu0 0
      %2908 = vmatmul.mubr.bf16.gmra.mrb[0].mxu0 %v2814
      %v2909 = vpop.f32.mrb[0].mxu0
      %v2910 = vadd.f32 0.0, %v2909
      %v2911 = vpop.f32.mrb[0].mxu0
      %v2912 = vadd.f32 0.0, %v2911
      %v2913 = vpop.f32.mrb[0].mxu0
      %v2914 = vadd.f32 0.0, %v2913
      %v2915 = vpop.f32.mrb[0].mxu0
      %v2916 = vadd.f32 0.0, %v2915
      %2917 = vmatprep.mubr.bf16.mxu0 0
      %2918 = vmatmul.mubr.bf16.gmra.mrb[0].mxu0 %v2817
      %v2919 = vpop.f32.mrb[0].mxu0
      %v2920 = vadd.f32 0.0, %v2919
      %v2921 = vpop.f32.mrb[0].mxu0
      %v2922 = vadd.f32 0.0, %v2921
      %v2923 = vpop.f32.mrb[0].mxu0
      %v2924 = vadd.f32 0.0, %v2923
      %v2925 = vpop.f32.mrb[0].mxu0
      %v2926 = vadd.f32 0.0, %v2925
      %2927 = vmatprep.mubr.bf16.mxu0 0
      %2928 = vmatmul.mubr.bf16.gmra.mrb[0].mxu0 %v2820
      %v2929 = vpop.f32.mrb[0].mxu0
      %v2930 = vadd.f32 0.0, %v2929
      %v2931 = vpop.f32.mrb[0].mxu0
      %v2932 = vadd.f32 0.0, %v2931
      %v2933 = vpop.f32.mrb[0].mxu0
      %v2934 = vadd.f32 0.0, %v2933
      %v2935 = vpop.f32.mrb[0].mxu0
      %v2936 = vadd.f32 0.0, %v2935
      %2937 = vmatprep.mubr.bf16.mxu0 0
      %2938 = vmatmul.mubr.bf16.gmra.mrb[0].mxu0 %v2823
      %v2939 = vpop.f32.mrb[0].mxu0
      %v2940 = vadd.f32 0.0, %v2939
      %v2941 = vpop.f32.mrb[0].mxu0
      %v2942 = vadd.f32 0.0, %v2941
      %v2943 = vpop.f32.mrb[0].mxu0
      %v2944 = vadd.f32 0.0, %v2943
      %v2945 = vpop.f32.mrb[0].mxu0
      %v2946 = vadd.f32 0.0, %v2945
      %2947 = vmatprep.mubr.bf16.mxu0 0
      %2948 = vmatmul.mubr.bf16.gmra.mrb[0].mxu0 %v2826
      %v2949 = vpop.f32.mrb[0].mxu0
      %v2950 = vadd.f32 0.0, %v2949
      %v2951 = vpop.f32.mrb[0].mxu0
      %v2952 = vadd.f32 0.0, %v2951
      %v2953 = vpop.f32.mrb[0].mxu0
      %v2954 = vadd.f32 0.0, %v2953
      %v2955 = vpop.f32.mrb[0].mxu0
      %v2956 = vadd.f32 0.0, %v2955
      %2957 = vmatprep.mubr.bf16.mxu0 0
      %2958 = vmatmul.mubr.bf16.gmra.mrb[0].mxu0 %v2829
      %v2959 = vpop.f32.mrb[0].mxu0
      %v2960 = vadd.f32 0.0, %v2959
      %v2961 = vpop.f32.mrb[0].mxu0
      %v2962 = vadd.f32 0.0, %v2961
      %v2963 = vpop.f32.mrb[0].mxu0
      %v2964 = vadd.f32 0.0, %v2963
      %v2965 = vpop.f32.mrb[0].mxu0
      %v2966 = vadd.f32 0.0, %v2965
      %2967 = vmatprep.mubr.bf16.mxu0 0
      %2968 = vmatmul.mubr.bf16.gmra.mrb[0].mxu0 %v2832
      %v2969 = vpop.f32.mrb[0].mxu0
      %v2970 = vadd.f32 0.0, %v2969
      %v2971 = vpop.f32.mrb[0].mxu0
      %v2972 = vadd.f32 0.0, %v2971
      %v2973 = vpop.f32.mrb[0].mxu0
      %v2974 = vadd.f32 0.0, %v2973
      %v2975 = vpop.f32.mrb[0].mxu0
      %v2976 = vadd.f32 0.0, %v2975
      %2977 = vmatprep.mubr.bf16.mxu0 0
      %2978 = vmatmul.mubr.bf16.gmra.mrb[0].mxu0 %v2835
      %v2979 = vpop.f32.mrb[0].mxu0
      %v2980 = vadd.f32 0.0, %v2979
      %v2981 = vpop.f32.mrb[0].mxu0
      %v2982 = vadd.f32 0.0, %v2981
      %v2983 = vpop.f32.mrb[0].mxu0
      %v2984 = vadd.f32 0.0, %v2983
      %v2985 = vpop.f32.mrb[0].mxu0
      %v2986 = vadd.f32 0.0, %v2985
      %2987 = vmatprep.mubr.bf16.mxu0 0
      %2988 = vmatmul.mubr.bf16.gmra.mrb[0].mxu0 %v2838
      %v2989 = vpop.f32.mrb[0].mxu0
      %v2990 = vadd.f32 0.0, %v2989
      %v2991 = vpop.f32.mrb[0].mxu0
      %v2992 = vadd.f32 0.0, %v2991
      %v2993 = vpop.f32.mrb[0].mxu0
      %v2994 = vadd.f32 0.0, %v2993
      %v2995 = vpop.f32.mrb[0].mxu0
      %v2996 = vadd.f32 0.0, %v2995
      %2997 = vmatprep.mubr.bf16.mxu0 0
      %2998 = vmatmul.mubr.bf16.gmra.mrb[0].mxu0 %v2841
      %v2999 = vpop.f32.mrb[0].mxu0
      %v3000 = vadd.f32 0.0, %v2999
      %v3001 = vpop.f32.mrb[0].mxu0
      %v3002 = vadd.f32 0.0, %v3001
      %v3003 = vpop.f32.mrb[0].mxu0
      %v3004 = vadd.f32 0.0, %v3003
      %v3005 = vpop.f32.mrb[0].mxu0
      %v3006 = vadd.f32 0.0, %v3005
      %3007 = vmatprep.mubr.bf16.mxu0 0
      %3008 = vmatmul.mubr.bf16.gmra.mrb[0].mxu0 %v2844
      %v3009 = vpop.f32.mrb[0].mxu0
      %v3010 = vadd.f32 0.0, %v3009
      %v3011 = vpop.f32.mrb[0].mxu0
      %v3012 = vadd.f32 0.0, %v3011
      %v3013 = vpop.f32.mrb[0].mxu0
      %v3014 = vadd.f32 0.0, %v3013
      %v3015 = vpop.f32.mrb[0].mxu0
      %v3016 = vadd.f32 0.0, %v3015
      %3017 = vmatprep.mubr.bf16.mxu0 0
      %3018 = vmatmul.mubr.bf16.gmra.mrb[0].mxu0 %v2847
      %v3019 = vpop.f32.mrb[0].mxu0
      %v3020 = vadd.f32 0.0, %v3019
      %v3021 = vpop.f32.mrb[0].mxu0
      %v3022 = vadd.f32 0.0, %v3021
      %v3023 = vpop.f32.mrb[0].mxu0
      %v3024 = vadd.f32 0.0, %v3023
      %v3025 = vpop.f32.mrb[0].mxu0
      %v3026 = vadd.f32 0.0, %v3025
      %3027 = vmatprep.mubr.bf16.mxu0 0
      %3028 = vmatmul.mubr.bf16.gmra.mrb[0].mxu0 %v2850
      %v3029 = vpop.f32.mrb[0].mxu0
      %v3030 = vadd.f32 0.0, %v3029
      %v3031 = vpop.f32.mrb[0].mxu0
      %v3032 = vadd.f32 0.0, %v3031
      %v3033 = vpop.f32.mrb[0].mxu0
      %v3034 = vadd.f32 0.0, %v3033
      %v3035 = vpop.f32.mrb[0].mxu0
      %v3036 = vadd.f32 0.0, %v3035
      %3037 = vmatprep.mubr.bf16.mxu0 0
      %3038 = vmatmul.mubr.bf16.gmra.mrb[0].mxu0 %v2853
      %v3039 = vpop.f32.mrb[0].mxu0
      %v3040 = vadd.f32 0.0, %v3039
      %v3041 = vpop.f32.mrb[0].mxu0
      %v3042 = vadd.f32 0.0, %v3041
      %v3043 = vpop.f32.mrb[0].mxu0
      %v3044 = vadd.f32 0.0, %v3043
      %v3045 = vpop.f32.mrb[0].mxu0
      %v3046 = vadd.f32 0.0, %v3045
      %3047 = vdwg.mxu0
      %3048 = vxpose.xlu0.c.b16.start [1/8] %v1644, 128
      %3049 = vxpose.xlu0.c.b16.cont [2/8] 0, 128
      %3050 = vxpose.xlu0.c.b16.cont [3/8] 0, 128
      %3051 = vxpose.xlu0.c.b16.cont [4/8] 0, 128
      %3052 = vxpose.xlu0.c.b16.cont [5/8] 0, 128
      %3053 = vxpose.xlu0.c.b16.cont [6/8] 0, 128
      %3054 = vxpose.xlu0.c.b16.cont [7/8] 0, 128
      %3055 = vxpose.xlu0.c.b16.end [8/8] 0, 128
      %v3056 = vpop.trf.xlu0
      %v3057 = vpop.trf.xlu0
      %v3058 = vpop.trf.xlu0
      %v3059 = vpop.trf.xlu0
      %v3060 = vpop.trf.xlu0
      %v3061 = vpop.trf.xlu0
      %v3062 = vpop.trf.xlu0
      %v3063 = vpop.trf.xlu0
      %3064 = vxpose.xlu0.c.b16.start [1/8] %v1645, 128
      %3065 = vxpose.xlu0.c.b16.cont [2/8] 0, 128
      %3066 = vxpose.xlu0.c.b16.cont [3/8] 0, 128
      %3067 = vxpose.xlu0.c.b16.cont [4/8] 0, 128
      %3068 = vxpose.xlu0.c.b16.cont [5/8] 0, 128
      %3069 = vxpose.xlu0.c.b16.cont [6/8] 0, 128
      %3070 = vxpose.xlu0.c.b16.cont [7/8] 0, 128
      %3071 = vxpose.xlu0.c.b16.end [8/8] 0, 128
      %v3072 = vpop.trf.xlu0
      %v3073 = vpop.trf.xlu0
      %v3074 = vpop.trf.xlu0
      %v3075 = vpop.trf.xlu0
      %v3076 = vpop.trf.xlu0
      %v3077 = vpop.trf.xlu0
      %v3078 = vpop.trf.xlu0
      %v3079 = vpop.trf.xlu0
      %v3081 = vsel %vm1714, %v3056, 0
      %v3084 = vsel %vm1714, %v3057, 0
      %v3087 = vsel %vm1714, %v3058, 0
      %v3090 = vsel %vm1714, %v3059, 0
      %v3093 = vsel %vm1714, %v3060, 0
      %v3096 = vsel %vm1714, %v3061, 0
      %v3099 = vsel %vm1714, %v3062, 0
      %v3102 = vsel %vm1714, %v3063, 0
      %v3105 = vsel %vm1714, %v3072, 0
      %v3108 = vsel %vm1714, %v3073, 0
      %v3111 = vsel %vm1714, %v3074, 0
      %v3114 = vsel %vm1714, %v3075, 0
      %v3117 = vsel %vm1714, %v3076, 0
      %v3120 = vsel %vm1714, %v3077, 0
      %v3123 = vsel %vm1714, %v3078, 0
      %v3126 = vsel %vm1714, %v3079, 0
      %3128 = vmatprep.subr.bf16.mxu0 %v1661
      %3129 = vmatpush1.bf16.msra.mxu0 %v1660
      %3130 = vmatprep.subr.bf16.mxu0 0
      %3131 = vmatpush1.bf16.msra.mxu0 0
      %3132 = vmatprep.subr.bf16.mxu0 0
      %3133 = vmatpush1.bf16.msra.mxu0 0
      %3134 = vmatprep.subr.bf16.mxu0 0
      %3135 = vmatpush1.bf16.msra.mxu0 0
      %3136 = vmatprep.subr.bf16.mxu0 0
      %3137 = vmatpush1.bf16.msra.mxu0 0
      %3138 = vmatprep.subr.bf16.mxu0 0
      %3139 = vmatpush1.bf16.msra.mxu0 0
      %3140 = vmatprep.subr.bf16.mxu0 0
      %3141 = vmatpush1.bf16.msra.mxu0 0
      %3142 = vmatprep.subr.bf16.mxu0 0
      %3143 = vmatpush1.bf16.msra.mxu0 0
      %3144 = vmatprep.subr.bf16.mxu0 0
      %3145 = vmatpush1.bf16.msra.mxu0 0
      %3146 = vmatprep.subr.bf16.mxu0 0
      %3147 = vmatpush1.bf16.msra.mxu0 0
      %3148 = vmatprep.subr.bf16.mxu0 0
      %3149 = vmatpush1.bf16.msra.mxu0 0
      %3150 = vmatprep.subr.bf16.mxu0 0
      %3151 = vmatpush1.bf16.msra.mxu0 0
      %3152 = vmatprep.subr.bf16.mxu0 0
      %3153 = vmatpush1.bf16.msra.mxu0 0
      %3154 = vmatprep.subr.bf16.mxu0 0
      %3155 = vmatpush1.bf16.msra.mxu0 0
      %3156 = vmatprep.subr.bf16.mxu0 0
      %3157 = vmatpush1.bf16.msra.mxu0 0
      %3158 = vmatprep.subr.bf16.mxu0 0
      %3159 = vmatpush1.bf16.msra.mxu0 0
      %3160 = vmatprep.mubr.bf16.mxu0 0
      %3161 = vmatmul.mubr.bf16.gmra.mrb[0].mxu0 %v3081
      %v3162 = vpop.f32.mrb[0].mxu0
      %v3163 = vadd.f32 0.0, %v3162
      %v3164 = vpop.f32.mrb[0].mxu0
      %v3165 = vadd.f32 0.0, %v3164
      %v3166 = vpop.f32.mrb[0].mxu0
      %v3167 = vadd.f32 0.0, %v3166
      %v3168 = vpop.f32.mrb[0].mxu0
      %v3169 = vadd.f32 0.0, %v3168
      %3170 = vmatprep.mubr.bf16.mxu0 0
      %3171 = vmatmul.mubr.bf16.gmra.mrb[0].mxu0 %v3084
      %v3172 = vpop.f32.mrb[0].mxu0
      %v3173 = vadd.f32 0.0, %v3172
      %v3174 = vpop.f32.mrb[0].mxu0
      %v3175 = vadd.f32 0.0, %v3174
      %v3176 = vpop.f32.mrb[0].mxu0
      %v3177 = vadd.f32 0.0, %v3176
      %v3178 = vpop.f32.mrb[0].mxu0
      %v3179 = vadd.f32 0.0, %v3178
      %3180 = vmatprep.mubr.bf16.mxu0 0
      %3181 = vmatmul.mubr.bf16.gmra.mrb[0].mxu0 %v3087
      %v3182 = vpop.f32.mrb[0].mxu0
      %v3183 = vadd.f32 0.0, %v3182
      %v3184 = vpop.f32.mrb[0].mxu0
      %v3185 = vadd.f32 0.0, %v3184
      %v3186 = vpop.f32.mrb[0].mxu0
      %v3187 = vadd.f32 0.0, %v3186
      %v3188 = vpop.f32.mrb[0].mxu0
      %v3189 = vadd.f32 0.0, %v3188
      %3190 = vmatprep.mubr.bf16.mxu0 0
      %3191 = vmatmul.mubr.bf16.gmra.mrb[0].mxu0 %v3090
      %v3192 = vpop.f32.mrb[0].mxu0
      %v3193 = vadd.f32 0.0, %v3192
      %v3194 = vpop.f32.mrb[0].mxu0
      %v3195 = vadd.f32 0.0, %v3194
      %v3196 = vpop.f32.mrb[0].mxu0
      %v3197 = vadd.f32 0.0, %v3196
      %v3198 = vpop.f32.mrb[0].mxu0
      %v3199 = vadd.f32 0.0, %v3198
      %3200 = vmatprep.mubr.bf16.mxu0 0
      %3201 = vmatmul.mubr.bf16.gmra.mrb[0].mxu0 %v3093
      %v3202 = vpop.f32.mrb[0].mxu0
      %v3203 = vadd.f32 0.0, %v3202
      %v3204 = vpop.f32.mrb[0].mxu0
      %v3205 = vadd.f32 0.0, %v3204
      %v3206 = vpop.f32.mrb[0].mxu0
      %v3207 = vadd.f32 0.0, %v3206
      %v3208 = vpop.f32.mrb[0].mxu0
      %v3209 = vadd.f32 0.0, %v3208
      %3210 = vmatprep.mubr.bf16.mxu0 0
      %3211 = vmatmul.mubr.bf16.gmra.mrb[0].mxu0 %v3096
      %v3212 = vpop.f32.mrb[0].mxu0
      %v3213 = vadd.f32 0.0, %v3212
      %v3214 = vpop.f32.mrb[0].mxu0
      %v3215 = vadd.f32 0.0, %v3214
      %v3216 = vpop.f32.mrb[0].mxu0
      %v3217 = vadd.f32 0.0, %v3216
      %v3218 = vpop.f32.mrb[0].mxu0
      %v3219 = vadd.f32 0.0, %v3218
      %3220 = vmatprep.mubr.bf16.mxu0 0
      %3221 = vmatmul.mubr.bf16.gmra.mrb[0].mxu0 %v3099
      %v3222 = vpop.f32.mrb[0].mxu0
      %v3223 = vadd.f32 0.0, %v3222
      %v3224 = vpop.f32.mrb[0].mxu0
      %v3225 = vadd.f32 0.0, %v3224
      %v3226 = vpop.f32.mrb[0].mxu0
      %v3227 = vadd.f32 0.0, %v3226
      %v3228 = vpop.f32.mrb[0].mxu0
      %v3229 = vadd.f32 0.0, %v3228
      %3230 = vmatprep.mubr.bf16.mxu0 0
      %3231 = vmatmul.mubr.bf16.gmra.mrb[0].mxu0 %v3102
      %v3232 = vpop.f32.mrb[0].mxu0
      %v3233 = vadd.f32 0.0, %v3232
      %v3234 = vpop.f32.mrb[0].mxu0
      %v3235 = vadd.f32 0.0, %v3234
      %v3236 = vpop.f32.mrb[0].mxu0
      %v3237 = vadd.f32 0.0, %v3236
      %v3238 = vpop.f32.mrb[0].mxu0
      %v3239 = vadd.f32 0.0, %v3238
      %3240 = vmatprep.mubr.bf16.mxu0 0
      %3241 = vmatmul.mubr.bf16.gmra.mrb[0].mxu0 %v3105
      %v3242 = vpop.f32.mrb[0].mxu0
      %v3243 = vadd.f32 0.0, %v3242
      %v3244 = vpop.f32.mrb[0].mxu0
      %v3245 = vadd.f32 0.0, %v3244
      %v3246 = vpop.f32.mrb[0].mxu0
      %v3247 = vadd.f32 0.0, %v3246
      %v3248 = vpop.f32.mrb[0].mxu0
      %v3249 = vadd.f32 0.0, %v3248
      %3250 = vmatprep.mubr.bf16.mxu0 0
      %3251 = vmatmul.mubr.bf16.gmra.mrb[0].mxu0 %v3108
      %v3252 = vpop.f32.mrb[0].mxu0
      %v3253 = vadd.f32 0.0, %v3252
      %v3254 = vpop.f32.mrb[0].mxu0
      %v3255 = vadd.f32 0.0, %v3254
      %v3256 = vpop.f32.mrb[0].mxu0
      %v3257 = vadd.f32 0.0, %v3256
      %v3258 = vpop.f32.mrb[0].mxu0
      %v3259 = vadd.f32 0.0, %v3258
      %3260 = vmatprep.mubr.bf16.mxu0 0
      %3261 = vmatmul.mubr.bf16.gmra.mrb[0].mxu0 %v3111
      %v3262 = vpop.f32.mrb[0].mxu0
      %v3263 = vadd.f32 0.0, %v3262
      %v3264 = vpop.f32.mrb[0].mxu0
      %v3265 = vadd.f32 0.0, %v3264
      %v3266 = vpop.f32.mrb[0].mxu0
      %v3267 = vadd.f32 0.0, %v3266
      %v3268 = vpop.f32.mrb[0].mxu0
      %v3269 = vadd.f32 0.0, %v3268
      %3270 = vmatprep.mubr.bf16.mxu0 0
      %3271 = vmatmul.mubr.bf16.gmra.mrb[0].mxu0 %v3114
      %v3272 = vpop.f32.mrb[0].mxu0
      %v3273 = vadd.f32 0.0, %v3272
      %v3274 = vpop.f32.mrb[0].mxu0
      %v3275 = vadd.f32 0.0, %v3274
      %v3276 = vpop.f32.mrb[0].mxu0
      %v3277 = vadd.f32 0.0, %v3276
      %v3278 = vpop.f32.mrb[0].mxu0
      %v3279 = vadd.f32 0.0, %v3278
      %3280 = vmatprep.mubr.bf16.mxu0 0
      %3281 = vmatmul.mubr.bf16.gmra.mrb[0].mxu0 %v3117
      %v3282 = vpop.f32.mrb[0].mxu0
      %v3283 = vadd.f32 0.0, %v3282
      %v3284 = vpop.f32.mrb[0].mxu0
      %v3285 = vadd.f32 0.0, %v3284
      %v3286 = vpop.f32.mrb[0].mxu0
      %v3287 = vadd.f32 0.0, %v3286
      %v3288 = vpop.f32.mrb[0].mxu0
      %v3289 = vadd.f32 0.0, %v3288
      %3290 = vmatprep.mubr.bf16.mxu0 0
      %3291 = vmatmul.mubr.bf16.gmra.mrb[0].mxu0 %v3120
      %v3292 = vpop.f32.mrb[0].mxu0
      %v3293 = vadd.f32 0.0, %v3292
      %v3294 = vpop.f32.mrb[0].mxu0
      %v3295 = vadd.f32 0.0, %v3294
      %v3296 = vpop.f32.mrb[0].mxu0
      %v3297 = vadd.f32 0.0, %v3296
      %v3298 = vpop.f32.mrb[0].mxu0
      %v3299 = vadd.f32 0.0, %v3298
      %3300 = vmatprep.mubr.bf16.mxu0 0
      %3301 = vmatmul.mubr.bf16.gmra.mrb[0].mxu0 %v3123
      %v3302 = vpop.f32.mrb[0].mxu0
      %v3303 = vadd.f32 0.0, %v3302
      %v3304 = vpop.f32.mrb[0].mxu0
      %v3305 = vadd.f32 0.0, %v3304
      %v3306 = vpop.f32.mrb[0].mxu0
      %v3307 = vadd.f32 0.0, %v3306
      %v3308 = vpop.f32.mrb[0].mxu0
      %v3309 = vadd.f32 0.0, %v3308
      %3310 = vmatprep.mubr.bf16.mxu0 0
      %3311 = vmatmul.mubr.bf16.gmra.mrb[0].mxu0 %v3126
      %v3312 = vpop.f32.mrb[0].mxu0
      %v3313 = vadd.f32 0.0, %v3312
      %v3314 = vpop.f32.mrb[0].mxu0
      %v3315 = vadd.f32 0.0, %v3314
      %v3316 = vpop.f32.mrb[0].mxu0
      %v3317 = vadd.f32 0.0, %v3316
      %v3318 = vpop.f32.mrb[0].mxu0
      %v3319 = vadd.f32 0.0, %v3318
      %3320 = vdwg.mxu0
      %3321 = vxpose.xlu0.c.b16.start [1/8] %v1646, 128
      %3322 = vxpose.xlu0.c.b16.cont [2/8] 0, 128
      %3323 = vxpose.xlu0.c.b16.cont [3/8] 0, 128
      %3324 = vxpose.xlu0.c.b16.cont [4/8] 0, 128
      %3325 = vxpose.xlu0.c.b16.cont [5/8] 0, 128
      %3326 = vxpose.xlu0.c.b16.cont [6/8] 0, 128
      %3327 = vxpose.xlu0.c.b16.cont [7/8] 0, 128
      %3328 = vxpose.xlu0.c.b16.end [8/8] 0, 128
      %v3329 = vpop.trf.xlu0
      %v3330 = vpop.trf.xlu0
      %v3331 = vpop.trf.xlu0
      %v3332 = vpop.trf.xlu0
      %v3333 = vpop.trf.xlu0
      %v3334 = vpop.trf.xlu0
      %v3335 = vpop.trf.xlu0
      %v3336 = vpop.trf.xlu0
      %3337 = vxpose.xlu0.c.b16.start [1/8] %v1647, 128
      %3338 = vxpose.xlu0.c.b16.cont [2/8] 0, 128
      %3339 = vxpose.xlu0.c.b16.cont [3/8] 0, 128
      %3340 = vxpose.xlu0.c.b16.cont [4/8] 0, 128
      %3341 = vxpose.xlu0.c.b16.cont [5/8] 0, 128
      %3342 = vxpose.xlu0.c.b16.cont [6/8] 0, 128
      %3343 = vxpose.xlu0.c.b16.cont [7/8] 0, 128
      %3344 = vxpose.xlu0.c.b16.end [8/8] 0, 128
      %v3345 = vpop.trf.xlu0
      %v3346 = vpop.trf.xlu0
      %v3347 = vpop.trf.xlu0
      %v3348 = vpop.trf.xlu0
      %v3349 = vpop.trf.xlu0
      %v3350 = vpop.trf.xlu0
      %v3351 = vpop.trf.xlu0
      %v3352 = vpop.trf.xlu0
      %v3354 = vsel %vm1714, %v3329, 0
      %v3357 = vsel %vm1714, %v3330, 0
      %v3360 = vsel %vm1714, %v3331, 0
      %v3363 = vsel %vm1714, %v3332, 0
      %v3366 = vsel %vm1714, %v3333, 0
      %v3369 = vsel %vm1714, %v3334, 0
      %v3372 = vsel %vm1714, %v3335, 0
      %v3375 = vsel %vm1714, %v3336, 0
      %v3378 = vsel %vm1714, %v3345, 0
      %v3381 = vsel %vm1714, %v3346, 0
      %v3384 = vsel %vm1714, %v3347, 0
      %v3387 = vsel %vm1714, %v3348, 0
      %v3390 = vsel %vm1714, %v3349, 0
      %v3393 = vsel %vm1714, %v3350, 0
      %v3396 = vsel %vm1714, %v3351, 0
      %v3399 = vsel %vm1714, %v3352, 0
      %3401 = vmatprep.subr.bf16.mxu0 %v1663
      %3402 = vmatpush1.bf16.msra.mxu0 %v1662
      %3403 = vmatprep.subr.bf16.mxu0 0
      %3404 = vmatpush1.bf16.msra.mxu0 0
      %3405 = vmatprep.subr.bf16.mxu0 0
      %3406 = vmatpush1.bf16.msra.mxu0 0
      %3407 = vmatprep.subr.bf16.mxu0 0
      %3408 = vmatpush1.bf16.msra.mxu0 0
      %3409 = vmatprep.subr.bf16.mxu0 0
      %3410 = vmatpush1.bf16.msra.mxu0 0
      %3411 = vmatprep.subr.bf16.mxu0 0
      %3412 = vmatpush1.bf16.msra.mxu0 0
      %3413 = vmatprep.subr.bf16.mxu0 0
      %3414 = vmatpush1.bf16.msra.mxu0 0
      %3415 = vmatprep.subr.bf16.mxu0 0
      %3416 = vmatpush1.bf16.msra.mxu0 0
      %3417 = vmatprep.subr.bf16.mxu0 0
      %3418 = vmatpush1.bf16.msra.mxu0 0
      %3419 = vmatprep.subr.bf16.mxu0 0
      %3420 = vmatpush1.bf16.msra.mxu0 0
      %3421 = vmatprep.subr.bf16.mxu0 0
      %3422 = vmatpush1.bf16.msra.mxu0 0
      %3423 = vmatprep.subr.bf16.mxu0 0
      %3424 = vmatpush1.bf16.msra.mxu0 0
      %3425 = vmatprep.subr.bf16.mxu0 0
      %3426 = vmatpush1.bf16.msra.mxu0 0
      %3427 = vmatprep.subr.bf16.mxu0 0
      %3428 = vmatpush1.bf16.msra.mxu0 0
      %3429 = vmatprep.subr.bf16.mxu0 0
      %3430 = vmatpush1.bf16.msra.mxu0 0
      %3431 = vmatprep.subr.bf16.mxu0 0
      %3432 = vmatpush1.bf16.msra.mxu0 0
      %3433 = vmatprep.mubr.bf16.mxu0 0
      %3434 = vmatmul.mubr.bf16.gmra.mrb[0].mxu0 %v3354
      %v3435 = vpop.f32.mrb[0].mxu0
      %v3436 = vadd.f32 0.0, %v3435
      %v3437 = vpop.f32.mrb[0].mxu0
      %v3438 = vadd.f32 0.0, %v3437
      %v3439 = vpop.f32.mrb[0].mxu0
      %v3440 = vadd.f32 0.0, %v3439
      %v3441 = vpop.f32.mrb[0].mxu0
      %v3442 = vadd.f32 0.0, %v3441
      %3443 = vmatprep.mubr.bf16.mxu0 0
      %3444 = vmatmul.mubr.bf16.gmra.mrb[0].mxu0 %v3357
      %v3445 = vpop.f32.mrb[0].mxu0
      %v3446 = vadd.f32 0.0, %v3445
      %v3447 = vpop.f32.mrb[0].mxu0
      %v3448 = vadd.f32 0.0, %v3447
      %v3449 = vpop.f32.mrb[0].mxu0
      %v3450 = vadd.f32 0.0, %v3449
      %v3451 = vpop.f32.mrb[0].mxu0
      %v3452 = vadd.f32 0.0, %v3451
      %3453 = vmatprep.mubr.bf16.mxu0 0
      %3454 = vmatmul.mubr.bf16.gmra.mrb[0].mxu0 %v3360
      %v3455 = vpop.f32.mrb[0].mxu0
      %v3456 = vadd.f32 0.0, %v3455
      %v3457 = vpop.f32.mrb[0].mxu0
      %v3458 = vadd.f32 0.0, %v3457
      %v3459 = vpop.f32.mrb[0].mxu0
      %v3460 = vadd.f32 0.0, %v3459
      %v3461 = vpop.f32.mrb[0].mxu0
      %v3462 = vadd.f32 0.0, %v3461
      %3463 = vmatprep.mubr.bf16.mxu0 0
      %3464 = vmatmul.mubr.bf16.gmra.mrb[0].mxu0 %v3363
      %v3465 = vpop.f32.mrb[0].mxu0
      %v3466 = vadd.f32 0.0, %v3465
      %v3467 = vpop.f32.mrb[0].mxu0
      %v3468 = vadd.f32 0.0, %v3467
      %v3469 = vpop.f32.mrb[0].mxu0
      %v3470 = vadd.f32 0.0, %v3469
      %v3471 = vpop.f32.mrb[0].mxu0
      %v3472 = vadd.f32 0.0, %v3471
      %3473 = vmatprep.mubr.bf16.mxu0 0
      %3474 = vmatmul.mubr.bf16.gmra.mrb[0].mxu0 %v3366
      %v3475 = vpop.f32.mrb[0].mxu0
      %v3476 = vadd.f32 0.0, %v3475
      %v3477 = vpop.f32.mrb[0].mxu0
      %v3478 = vadd.f32 0.0, %v3477
      %v3479 = vpop.f32.mrb[0].mxu0
      %v3480 = vadd.f32 0.0, %v3479
      %v3481 = vpop.f32.mrb[0].mxu0
      %v3482 = vadd.f32 0.0, %v3481
      %3483 = vmatprep.mubr.bf16.mxu0 0
      %3484 = vmatmul.mubr.bf16.gmra.mrb[0].mxu0 %v3369
      %v3485 = vpop.f32.mrb[0].mxu0
      %v3486 = vadd.f32 0.0, %v3485
      %v3487 = vpop.f32.mrb[0].mxu0
      %v3488 = vadd.f32 0.0, %v3487
      %v3489 = vpop.f32.mrb[0].mxu0
      %v3490 = vadd.f32 0.0, %v3489
      %v3491 = vpop.f32.mrb[0].mxu0
      %v3492 = vadd.f32 0.0, %v3491
      %3493 = vmatprep.mubr.bf16.mxu0 0
      %3494 = vmatmul.mubr.bf16.gmra.mrb[0].mxu0 %v3372
      %v3495 = vpop.f32.mrb[0].mxu0
      %v3496 = vadd.f32 0.0, %v3495
      %v3497 = vpop.f32.mrb[0].mxu0
      %v3498 = vadd.f32 0.0, %v3497
      %v3499 = vpop.f32.mrb[0].mxu0
      %v3500 = vadd.f32 0.0, %v3499
      %v3501 = vpop.f32.mrb[0].mxu0
      %v3502 = vadd.f32 0.0, %v3501
      %3503 = vmatprep.mubr.bf16.mxu0 0
      %3504 = vmatmul.mubr.bf16.gmra.mrb[0].mxu0 %v3375
      %v3505 = vpop.f32.mrb[0].mxu0
      %v3506 = vadd.f32 0.0, %v3505
      %v3507 = vpop.f32.mrb[0].mxu0
      %v3508 = vadd.f32 0.0, %v3507
      %v3509 = vpop.f32.mrb[0].mxu0
      %v3510 = vadd.f32 0.0, %v3509
      %v3511 = vpop.f32.mrb[0].mxu0
      %v3512 = vadd.f32 0.0, %v3511
      %3513 = vmatprep.mubr.bf16.mxu0 0
      %3514 = vmatmul.mubr.bf16.gmra.mrb[0].mxu0 %v3378
      %v3515 = vpop.f32.mrb[0].mxu0
      %v3516 = vadd.f32 0.0, %v3515
      %v3517 = vpop.f32.mrb[0].mxu0
      %v3518 = vadd.f32 0.0, %v3517
      %v3519 = vpop.f32.mrb[0].mxu0
      %v3520 = vadd.f32 0.0, %v3519
      %v3521 = vpop.f32.mrb[0].mxu0
      %v3522 = vadd.f32 0.0, %v3521
      %3523 = vmatprep.mubr.bf16.mxu0 0
      %3524 = vmatmul.mubr.bf16.gmra.mrb[0].mxu0 %v3381
      %v3525 = vpop.f32.mrb[0].mxu0
      %v3526 = vadd.f32 0.0, %v3525
      %v3527 = vpop.f32.mrb[0].mxu0
      %v3528 = vadd.f32 0.0, %v3527
      %v3529 = vpop.f32.mrb[0].mxu0
      %v3530 = vadd.f32 0.0, %v3529
      %v3531 = vpop.f32.mrb[0].mxu0
      %v3532 = vadd.f32 0.0, %v3531
      %3533 = vmatprep.mubr.bf16.mxu0 0
      %3534 = vmatmul.mubr.bf16.gmra.mrb[0].mxu0 %v3384
      %v3535 = vpop.f32.mrb[0].mxu0
      %v3536 = vadd.f32 0.0, %v3535
      %v3537 = vpop.f32.mrb[0].mxu0
      %v3538 = vadd.f32 0.0, %v3537
      %v3539 = vpop.f32.mrb[0].mxu0
      %v3540 = vadd.f32 0.0, %v3539
      %v3541 = vpop.f32.mrb[0].mxu0
      %v3542 = vadd.f32 0.0, %v3541
      %3543 = vmatprep.mubr.bf16.mxu0 0
      %3544 = vmatmul.mubr.bf16.gmra.mrb[0].mxu0 %v3387
      %v3545 = vpop.f32.mrb[0].mxu0
      %v3546 = vadd.f32 0.0, %v3545
      %v3547 = vpop.f32.mrb[0].mxu0
      %v3548 = vadd.f32 0.0, %v3547
      %v3549 = vpop.f32.mrb[0].mxu0
      %v3550 = vadd.f32 0.0, %v3549
      %v3551 = vpop.f32.mrb[0].mxu0
      %v3552 = vadd.f32 0.0, %v3551
      %3553 = vmatprep.mubr.bf16.mxu0 0
      %3554 = vmatmul.mubr.bf16.gmra.mrb[0].mxu0 %v3390
      %v3555 = vpop.f32.mrb[0].mxu0
      %v3556 = vadd.f32 0.0, %v3555
      %v3557 = vpop.f32.mrb[0].mxu0
      %v3558 = vadd.f32 0.0, %v3557
      %v3559 = vpop.f32.mrb[0].mxu0
      %v3560 = vadd.f32 0.0, %v3559
      %v3561 = vpop.f32.mrb[0].mxu0
      %v3562 = vadd.f32 0.0, %v3561
      %3563 = vmatprep.mubr.bf16.mxu0 0
      %3564 = vmatmul.mubr.bf16.gmra.mrb[0].mxu0 %v3393
      %v3565 = vpop.f32.mrb[0].mxu0
      %v3566 = vadd.f32 0.0, %v3565
      %v3567 = vpop.f32.mrb[0].mxu0
      %v3568 = vadd.f32 0.0, %v3567
      %v3569 = vpop.f32.mrb[0].mxu0
      %v3570 = vadd.f32 0.0, %v3569
      %v3571 = vpop.f32.mrb[0].mxu0
      %v3572 = vadd.f32 0.0, %v3571
      %3573 = vmatprep.mubr.bf16.mxu0 0
      %3574 = vmatmul.mubr.bf16.gmra.mrb[0].mxu0 %v3396
      %v3575 = vpop.f32.mrb[0].mxu0
      %v3576 = vadd.f32 0.0, %v3575
      %v3577 = vpop.f32.mrb[0].mxu0
      %v3578 = vadd.f32 0.0, %v3577
      %v3579 = vpop.f32.mrb[0].mxu0
      %v3580 = vadd.f32 0.0, %v3579
      %v3581 = vpop.f32.mrb[0].mxu0
      %v3582 = vadd.f32 0.0, %v3581
      %3583 = vmatprep.mubr.bf16.mxu0 0
      %3584 = vmatmul.mubr.bf16.gmra.mrb[0].mxu0 %v3399
      %v3585 = vpop.f32.mrb[0].mxu0
      %v3586 = vadd.f32 0.0, %v3585
      %v3587 = vpop.f32.mrb[0].mxu0
      %v3588 = vadd.f32 0.0, %v3587
      %v3589 = vpop.f32.mrb[0].mxu0
      %v3590 = vadd.f32 0.0, %v3589
      %v3591 = vpop.f32.mrb[0].mxu0
      %v3592 = vadd.f32 0.0, %v3591
      %3593 = vdwg.mxu0
      %3594 = vxpose.xlu0.c.b16.start [1/8] %v1648, 128
      %3595 = vxpose.xlu0.c.b16.cont [2/8] 0, 128
      %3596 = vxpose.xlu0.c.b16.cont [3/8] 0, 128
      %3597 = vxpose.xlu0.c.b16.cont [4/8] 0, 128
      %3598 = vxpose.xlu0.c.b16.cont [5/8] 0, 128
      %3599 = vxpose.xlu0.c.b16.cont [6/8] 0, 128
      %3600 = vxpose.xlu0.c.b16.cont [7/8] 0, 128
      %3601 = vxpose.xlu0.c.b16.end [8/8] 0, 128
      %v3602 = vpop.trf.xlu0
      %v3603 = vpop.trf.xlu0
      %v3604 = vpop.trf.xlu0
      %v3605 = vpop.trf.xlu0
      %v3606 = vpop.trf.xlu0
      %v3607 = vpop.trf.xlu0
      %v3608 = vpop.trf.xlu0
      %v3609 = vpop.trf.xlu0
      %3610 = vxpose.xlu0.c.b16.start [1/8] %v1649, 128
      %3611 = vxpose.xlu0.c.b16.cont [2/8] 0, 128
      %3612 = vxpose.xlu0.c.b16.cont [3/8] 0, 128
      %3613 = vxpose.xlu0.c.b16.cont [4/8] 0, 128
      %3614 = vxpose.xlu0.c.b16.cont [5/8] 0, 128
      %3615 = vxpose.xlu0.c.b16.cont [6/8] 0, 128
      %3616 = vxpose.xlu0.c.b16.cont [7/8] 0, 128
      %3617 = vxpose.xlu0.c.b16.end [8/8] 0, 128
      %v3618 = vpop.trf.xlu0
      %v3619 = vpop.trf.xlu0
      %v3620 = vpop.trf.xlu0
      %v3621 = vpop.trf.xlu0
      %v3622 = vpop.trf.xlu0
      %v3623 = vpop.trf.xlu0
      %v3624 = vpop.trf.xlu0
      %v3625 = vpop.trf.xlu0
      %v3627 = vsel %vm1714, %v3602, 0
      %v3630 = vsel %vm1714, %v3603, 0
      %v3633 = vsel %vm1714, %v3604, 0
      %v3636 = vsel %vm1714, %v3605, 0
      %v3639 = vsel %vm1714, %v3606, 0
      %v3642 = vsel %vm1714, %v3607, 0
      %v3645 = vsel %vm1714, %v3608, 0
      %v3648 = vsel %vm1714, %v3609, 0
      %v3651 = vsel %vm1714, %v3618, 0
      %v3654 = vsel %vm1714, %v3619, 0
      %v3657 = vsel %vm1714, %v3620, 0
      %v3660 = vsel %vm1714, %v3621, 0
      %v3663 = vsel %vm1714, %v3622, 0
      %v3666 = vsel %vm1714, %v3623, 0
      %v3669 = vsel %vm1714, %v3624, 0
      %v3672 = vsel %vm1714, %v3625, 0
      %3674 = vmatprep.subr.bf16.mxu0 %v1665
      %3675 = vmatpush1.bf16.msra.mxu0 %v1664
      %3676 = vmatprep.subr.bf16.mxu0 0
      %3677 = vmatpush1.bf16.msra.mxu0 0
      %3678 = vmatprep.subr.bf16.mxu0 0
      %3679 = vmatpush1.bf16.msra.mxu0 0
      %3680 = vmatprep.subr.bf16.mxu0 0
      %3681 = vmatpush1.bf16.msra.mxu0 0
      %3682 = vmatprep.subr.bf16.mxu0 0
      %3683 = vmatpush1.bf16.msra.mxu0 0
      %3684 = vmatprep.subr.bf16.mxu0 0
      %3685 = vmatpush1.bf16.msra.mxu0 0
      %3686 = vmatprep.subr.bf16.mxu0 0
      %3687 = vmatpush1.bf16.msra.mxu0 0
      %3688 = vmatprep.subr.bf16.mxu0 0
      %3689 = vmatpush1.bf16.msra.mxu0 0
      %3690 = vmatprep.subr.bf16.mxu0 0
      %3691 = vmatpush1.bf16.msra.mxu0 0
      %3692 = vmatprep.subr.bf16.mxu0 0
      %3693 = vmatpush1.bf16.msra.mxu0 0
      %3694 = vmatprep.subr.bf16.mxu0 0
      %3695 = vmatpush1.bf16.msra.mxu0 0
      %3696 = vmatprep.subr.bf16.mxu0 0
      %3697 = vmatpush1.bf16.msra.mxu0 0
      %3698 = vmatprep.subr.bf16.mxu0 0
      %3699 = vmatpush1.bf16.msra.mxu0 0
      %3700 = vmatprep.subr.bf16.mxu0 0
      %3701 = vmatpush1.bf16.msra.mxu0 0
      %3702 = vmatprep.subr.bf16.mxu0 0
      %3703 = vmatpush1.bf16.msra.mxu0 0
      %3704 = vmatprep.subr.bf16.mxu0 0
      %3705 = vmatpush1.bf16.msra.mxu0 0
      %3706 = vmatprep.mubr.bf16.mxu0 0
      %3707 = vmatmul.mubr.bf16.gmra.mrb[0].mxu0 %v3627
      %v3708 = vpop.f32.mrb[0].mxu0
      %v3709 = vadd.f32 0.0, %v3708
      %v3710 = vpop.f32.mrb[0].mxu0
      %v3711 = vadd.f32 0.0, %v3710
      %v3712 = vpop.f32.mrb[0].mxu0
      %v3713 = vadd.f32 0.0, %v3712
      %v3714 = vpop.f32.mrb[0].mxu0
      %v3715 = vadd.f32 0.0, %v3714
      %3716 = vmatprep.mubr.bf16.mxu0 0
      %3717 = vmatmul.mubr.bf16.gmra.mrb[0].mxu0 %v3630
      %v3718 = vpop.f32.mrb[0].mxu0
      %v3719 = vadd.f32 0.0, %v3718
      %v3720 = vpop.f32.mrb[0].mxu0
      %v3721 = vadd.f32 0.0, %v3720
      %v3722 = vpop.f32.mrb[0].mxu0
      %v3723 = vadd.f32 0.0, %v3722
      %v3724 = vpop.f32.mrb[0].mxu0
      %v3725 = vadd.f32 0.0, %v3724
      %3726 = vmatprep.mubr.bf16.mxu0 0
      %3727 = vmatmul.mubr.bf16.gmra.mrb[0].mxu0 %v3633
      %v3728 = vpop.f32.mrb[0].mxu0
      %v3729 = vadd.f32 0.0, %v3728
      %v3730 = vpop.f32.mrb[0].mxu0
      %v3731 = vadd.f32 0.0, %v3730
      %v3732 = vpop.f32.mrb[0].mxu0
      %v3733 = vadd.f32 0.0, %v3732
      %v3734 = vpop.f32.mrb[0].mxu0
      %v3735 = vadd.f32 0.0, %v3734
      %3736 = vmatprep.mubr.bf16.mxu0 0
      %3737 = vmatmul.mubr.bf16.gmra.mrb[0].mxu0 %v3636
      %v3738 = vpop.f32.mrb[0].mxu0
      %v3739 = vadd.f32 0.0, %v3738
      %v3740 = vpop.f32.mrb[0].mxu0
      %v3741 = vadd.f32 0.0, %v3740
      %v3742 = vpop.f32.mrb[0].mxu0
      %v3743 = vadd.f32 0.0, %v3742
      %v3744 = vpop.f32.mrb[0].mxu0
      %v3745 = vadd.f32 0.0, %v3744
      %3746 = vmatprep.mubr.bf16.mxu0 0
      %3747 = vmatmul.mubr.bf16.gmra.mrb[0].mxu0 %v3639
      %v3748 = vpop.f32.mrb[0].mxu0
      %v3749 = vadd.f32 0.0, %v3748
      %v3750 = vpop.f32.mrb[0].mxu0
      %v3751 = vadd.f32 0.0, %v3750
      %v3752 = vpop.f32.mrb[0].mxu0
      %v3753 = vadd.f32 0.0, %v3752
      %v3754 = vpop.f32.mrb[0].mxu0
      %v3755 = vadd.f32 0.0, %v3754
      %3756 = vmatprep.mubr.bf16.mxu0 0
      %3757 = vmatmul.mubr.bf16.gmra.mrb[0].mxu0 %v3642
      %v3758 = vpop.f32.mrb[0].mxu0
      %v3759 = vadd.f32 0.0, %v3758
      %v3760 = vpop.f32.mrb[0].mxu0
      %v3761 = vadd.f32 0.0, %v3760
      %v3762 = vpop.f32.mrb[0].mxu0
      %v3763 = vadd.f32 0.0, %v3762
      %v3764 = vpop.f32.mrb[0].mxu0
      %v3765 = vadd.f32 0.0, %v3764
      %3766 = vmatprep.mubr.bf16.mxu0 0
      %3767 = vmatmul.mubr.bf16.gmra.mrb[0].mxu0 %v3645
      %v3768 = vpop.f32.mrb[0].mxu0
      %v3769 = vadd.f32 0.0, %v3768
      %v3770 = vpop.f32.mrb[0].mxu0
      %v3771 = vadd.f32 0.0, %v3770
      %v3772 = vpop.f32.mrb[0].mxu0
      %v3773 = vadd.f32 0.0, %v3772
      %v3774 = vpop.f32.mrb[0].mxu0
      %v3775 = vadd.f32 0.0, %v3774
      %3776 = vmatprep.mubr.bf16.mxu0 0
      %3777 = vmatmul.mubr.bf16.gmra.mrb[0].mxu0 %v3648
      %v3778 = vpop.f32.mrb[0].mxu0
      %v3779 = vadd.f32 0.0, %v3778
      %v3780 = vpop.f32.mrb[0].mxu0
      %v3781 = vadd.f32 0.0, %v3780
      %v3782 = vpop.f32.mrb[0].mxu0
      %v3783 = vadd.f32 0.0, %v3782
      %v3784 = vpop.f32.mrb[0].mxu0
      %v3785 = vadd.f32 0.0, %v3784
      %3786 = vmatprep.mubr.bf16.mxu0 0
      %3787 = vmatmul.mubr.bf16.gmra.mrb[0].mxu0 %v3651
      %v3788 = vpop.f32.mrb[0].mxu0
      %v3789 = vadd.f32 0.0, %v3788
      %v3790 = vpop.f32.mrb[0].mxu0
      %v3791 = vadd.f32 0.0, %v3790
      %v3792 = vpop.f32.mrb[0].mxu0
      %v3793 = vadd.f32 0.0, %v3792
      %v3794 = vpop.f32.mrb[0].mxu0
      %v3795 = vadd.f32 0.0, %v3794
      %3796 = vmatprep.mubr.bf16.mxu0 0
      %3797 = vmatmul.mubr.bf16.gmra.mrb[0].mxu0 %v3654
      %v3798 = vpop.f32.mrb[0].mxu0
      %v3799 = vadd.f32 0.0, %v3798
      %v3800 = vpop.f32.mrb[0].mxu0
      %v3801 = vadd.f32 0.0, %v3800
      %v3802 = vpop.f32.mrb[0].mxu0
      %v3803 = vadd.f32 0.0, %v3802
      %v3804 = vpop.f32.mrb[0].mxu0
      %v3805 = vadd.f32 0.0, %v3804
      %3806 = vmatprep.mubr.bf16.mxu0 0
      %3807 = vmatmul.mubr.bf16.gmra.mrb[0].mxu0 %v3657
      %v3808 = vpop.f32.mrb[0].mxu0
      %v3809 = vadd.f32 0.0, %v3808
      %v3810 = vpop.f32.mrb[0].mxu0
      %v3811 = vadd.f32 0.0, %v3810
      %v3812 = vpop.f32.mrb[0].mxu0
      %v3813 = vadd.f32 0.0, %v3812
      %v3814 = vpop.f32.mrb[0].mxu0
      %v3815 = vadd.f32 0.0, %v3814
      %3816 = vmatprep.mubr.bf16.mxu0 0
      %3817 = vmatmul.mubr.bf16.gmra.mrb[0].mxu0 %v3660
      %v3818 = vpop.f32.mrb[0].mxu0
      %v3819 = vadd.f32 0.0, %v3818
      %v3820 = vpop.f32.mrb[0].mxu0
      %v3821 = vadd.f32 0.0, %v3820
      %v3822 = vpop.f32.mrb[0].mxu0
      %v3823 = vadd.f32 0.0, %v3822
      %v3824 = vpop.f32.mrb[0].mxu0
      %v3825 = vadd.f32 0.0, %v3824
      %3826 = vmatprep.mubr.bf16.mxu0 0
      %3827 = vmatmul.mubr.bf16.gmra.mrb[0].mxu0 %v3663
      %v3828 = vpop.f32.mrb[0].mxu0
      %v3829 = vadd.f32 0.0, %v3828
      %v3830 = vpop.f32.mrb[0].mxu0
      %v3831 = vadd.f32 0.0, %v3830
      %v3832 = vpop.f32.mrb[0].mxu0
      %v3833 = vadd.f32 0.0, %v3832
      %v3834 = vpop.f32.mrb[0].mxu0
      %v3835 = vadd.f32 0.0, %v3834
      %3836 = vmatprep.mubr.bf16.mxu0 0
      %3837 = vmatmul.mubr.bf16.gmra.mrb[0].mxu0 %v3666
      %v3838 = vpop.f32.mrb[0].mxu0
      %v3839 = vadd.f32 0.0, %v3838
      %v3840 = vpop.f32.mrb[0].mxu0
      %v3841 = vadd.f32 0.0, %v3840
      %v3842 = vpop.f32.mrb[0].mxu0
      %v3843 = vadd.f32 0.0, %v3842
      %v3844 = vpop.f32.mrb[0].mxu0
      %v3845 = vadd.f32 0.0, %v3844
      %3846 = vmatprep.mubr.bf16.mxu0 0
      %3847 = vmatmul.mubr.bf16.gmra.mrb[0].mxu0 %v3669
      %v3848 = vpop.f32.mrb[0].mxu0
      %v3849 = vadd.f32 0.0, %v3848
      %v3850 = vpop.f32.mrb[0].mxu0
      %v3851 = vadd.f32 0.0, %v3850
      %v3852 = vpop.f32.mrb[0].mxu0
      %v3853 = vadd.f32 0.0, %v3852
      %v3854 = vpop.f32.mrb[0].mxu0
      %v3855 = vadd.f32 0.0, %v3854
      %3856 = vmatprep.mubr.bf16.mxu0 0
      %3857 = vmatmul.mubr.bf16.gmra.mrb[0].mxu0 %v3672
      %v3858 = vpop.f32.mrb[0].mxu0
      %v3859 = vadd.f32 0.0, %v3858
      %v3860 = vpop.f32.mrb[0].mxu0
      %v3861 = vadd.f32 0.0, %v3860
      %v3862 = vpop.f32.mrb[0].mxu0
      %v3863 = vadd.f32 0.0, %v3862
      %v3864 = vpop.f32.mrb[0].mxu0
      %v3865 = vadd.f32 0.0, %v3864
      %3866 = vdwg.mxu0
      %v3867 = vmax.f32 %v1798, %v1800
      %3868 = vmax.xlane.f32.xlu0 %v3867
      %v3869 = vpop.xlane.xlu0 %3868
      %v3870 = vmax.f32 %v1802, %v1804
      %3871 = vmax.xlane.f32.xlu0 %v3870
      %v3872 = vpop.xlane.xlu0 %3871
      %v3873 = vmax.f32 %v1808, %v1810
      %3874 = vmax.xlane.f32.xlu0 %v3873
      %v3875 = vpop.xlane.xlu0 %3874
      %v3876 = vmax.f32 %v1812, %v1814
      %3877 = vmax.xlane.f32.xlu0 %v3876
      %v3878 = vpop.xlane.xlu0 %3877
      %v3879 = vmax.f32 %v1818, %v1820
      %3880 = vmax.xlane.f32.xlu0 %v3879
      %v3881 = vpop.xlane.xlu0 %3880
      %v3882 = vmax.f32 %v1822, %v1824
      %3883 = vmax.xlane.f32.xlu0 %v3882
      %v3884 = vpop.xlane.xlu0 %3883
      %v3885 = vmax.f32 %v1828, %v1830
      %3886 = vmax.xlane.f32.xlu0 %v3885
      %v3887 = vpop.xlane.xlu0 %3886
      %v3888 = vmax.f32 %v1832, %v1834
      %3889 = vmax.xlane.f32.xlu0 %v3888
      %v3890 = vpop.xlane.xlu0 %3889
      %v3891 = vmax.f32 %v1838, %v1840
      %3892 = vmax.xlane.f32.xlu0 %v3891
      %v3893 = vpop.xlane.xlu0 %3892
      %v3894 = vmax.f32 %v1842, %v1844
      %3895 = vmax.xlane.f32.xlu0 %v3894
      %v3896 = vpop.xlane.xlu0 %3895
      %v3897 = vmax.f32 %v1848, %v1850
      %3898 = vmax.xlane.f32.xlu0 %v3897
      %v3899 = vpop.xlane.xlu0 %3898
      %v3900 = vmax.f32 %v1852, %v1854
      %3901 = vmax.xlane.f32.xlu0 %v3900
      %v3902 = vpop.xlane.xlu0 %3901
      %v3903 = vmax.f32 %v1858, %v1860
      %3904 = vmax.xlane.f32.xlu0 %v3903
      %v3905 = vpop.xlane.xlu0 %3904
      %v3906 = vmax.f32 %v1862, %v1864
      %3907 = vmax.xlane.f32.xlu0 %v3906
      %v3908 = vpop.xlane.xlu0 %3907
      %v3909 = vmax.f32 %v1868, %v1870
      %3910 = vmax.xlane.f32.xlu0 %v3909
      %v3911 = vpop.xlane.xlu0 %3910
      %v3912 = vmax.f32 %v1872, %v1874
      %3913 = vmax.xlane.f32.xlu0 %v3912
      %v3914 = vpop.xlane.xlu0 %3913
      %v3915 = vmax.f32 %v1878, %v1880
      %3916 = vmax.xlane.f32.xlu0 %v3915
      %v3917 = vpop.xlane.xlu0 %3916
      %v3918 = vmax.f32 %v1882, %v1884
      %3919 = vmax.xlane.f32.xlu0 %v3918
      %v3920 = vpop.xlane.xlu0 %3919
      %v3921 = vmax.f32 %v1888, %v1890
      %3922 = vmax.xlane.f32.xlu0 %v3921
      %v3923 = vpop.xlane.xlu0 %3922
      %v3924 = vmax.f32 %v1892, %v1894
      %3925 = vmax.xlane.f32.xlu0 %v3924
      %v3926 = vpop.xlane.xlu0 %3925
      %v3927 = vmax.f32 %v1898, %v1900
      %3928 = vmax.xlane.f32.xlu0 %v3927
      %v3929 = vpop.xlane.xlu0 %3928
      %v3930 = vmax.f32 %v1902, %v1904
      %3931 = vmax.xlane.f32.xlu0 %v3930
      %v3932 = vpop.xlane.xlu0 %3931
      %v3933 = vmax.f32 %v1908, %v1910
      %3934 = vmax.xlane.f32.xlu0 %v3933
      %v3935 = vpop.xlane.xlu0 %3934
      %v3936 = vmax.f32 %v1912, %v1914
      %3937 = vmax.xlane.f32.xlu0 %v3936
      %v3938 = vpop.xlane.xlu0 %3937
      %v3939 = vmax.f32 %v1918, %v1920
      %3940 = vmax.xlane.f32.xlu0 %v3939
      %v3941 = vpop.xlane.xlu0 %3940
      %v3942 = vmax.f32 %v1922, %v1924
      %3943 = vmax.xlane.f32.xlu0 %v3942
      %v3944 = vpop.xlane.xlu0 %3943
      %v3945 = vmax.f32 %v1928, %v1930
      %3946 = vmax.xlane.f32.xlu0 %v3945
      %v3947 = vpop.xlane.xlu0 %3946
      %v3948 = vmax.f32 %v1932, %v1934
      %3949 = vmax.xlane.f32.xlu0 %v3948
      %v3950 = vpop.xlane.xlu0 %3949
      %v3951 = vmax.f32 %v1938, %v1940
      %3952 = vmax.xlane.f32.xlu0 %v3951
      %v3953 = vpop.xlane.xlu0 %3952
      %v3954 = vmax.f32 %v1942, %v1944
      %3955 = vmax.xlane.f32.xlu0 %v3954
      %v3956 = vpop.xlane.xlu0 %3955
      %v3957 = vmax.f32 %v1948, %v1950
      %3958 = vmax.xlane.f32.xlu0 %v3957
      %v3959 = vpop.xlane.xlu0 %3958
      %v3960 = vmax.f32 %v1952, %v1954
      %3961 = vmax.xlane.f32.xlu0 %v3960
      %v3962 = vpop.xlane.xlu0 %3961
      %v3963 = vmax.f32 %v2071, %v2073
      %3964 = vmax.xlane.f32.xlu0 %v3963
      %v3965 = vpop.xlane.xlu0 %3964
      %v3966 = vmax.f32 %v2075, %v2077
      %3967 = vmax.xlane.f32.xlu0 %v3966
      %v3968 = vpop.xlane.xlu0 %3967
      %v3969 = vmax.f32 %v2081, %v2083
      %3970 = vmax.xlane.f32.xlu0 %v3969
      %v3971 = vpop.xlane.xlu0 %3970
      %v3972 = vmax.f32 %v2085, %v2087
      %3973 = vmax.xlane.f32.xlu0 %v3972
      %v3974 = vpop.xlane.xlu0 %3973
      %v3975 = vmax.f32 %v2091, %v2093
      %3976 = vmax.xlane.f32.xlu0 %v3975
      %v3977 = vpop.xlane.xlu0 %3976
      %v3978 = vmax.f32 %v2095, %v2097
      %3979 = vmax.xlane.f32.xlu0 %v3978
      %v3980 = vpop.xlane.xlu0 %3979
      %v3981 = vmax.f32 %v2101, %v2103
      %3982 = vmax.xlane.f32.xlu0 %v3981
      %v3983 = vpop.xlane.xlu0 %3982
      %v3984 = vmax.f32 %v2105, %v2107
      %3985 = vmax.xlane.f32.xlu0 %v3984
      %v3986 = vpop.xlane.xlu0 %3985
      %v3987 = vmax.f32 %v2111, %v2113
      %3988 = vmax.xlane.f32.xlu0 %v3987
      %v3989 = vpop.xlane.xlu0 %3988
      %v3990 = vmax.f32 %v2115, %v2117
      %3991 = vmax.xlane.f32.xlu0 %v3990
      %v3992 = vpop.xlane.xlu0 %3991
      %v3993 = vmax.f32 %v2121, %v2123
      %3994 = vmax.xlane.f32.xlu0 %v3993
      %v3995 = vpop.xlane.xlu0 %3994
      %v3996 = vmax.f32 %v2125, %v2127
      %3997 = vmax.xlane.f32.xlu0 %v3996
      %v3998 = vpop.xlane.xlu0 %3997
      %v3999 = vmax.f32 %v2131, %v2133
      %4000 = vmax.xlane.f32.xlu0 %v3999
      %v4001 = vpop.xlane.xlu0 %4000
      %v4002 = vmax.f32 %v2135, %v2137
      %4003 = vmax.xlane.f32.xlu0 %v4002
      %v4004 = vpop.xlane.xlu0 %4003
      %v4005 = vmax.f32 %v2141, %v2143
      %4006 = vmax.xlane.f32.xlu0 %v4005
      %v4007 = vpop.xlane.xlu0 %4006
      %v4008 = vmax.f32 %v2145, %v2147
      %4009 = vmax.xlane.f32.xlu0 %v4008
      %v4010 = vpop.xlane.xlu0 %4009
      %v4011 = vmax.f32 %v2151, %v2153
      %4012 = vmax.xlane.f32.xlu0 %v4011
      %v4013 = vpop.xlane.xlu0 %4012
      %v4014 = vmax.f32 %v2155, %v2157
      %4015 = vmax.xlane.f32.xlu0 %v4014
      %v4016 = vpop.xlane.xlu0 %4015
      %v4017 = vmax.f32 %v2161, %v2163
      %4018 = vmax.xlane.f32.xlu0 %v4017
      %v4019 = vpop.xlane.xlu0 %4018
      %v4020 = vmax.f32 %v2165, %v2167
      %4021 = vmax.xlane.f32.xlu0 %v4020
      %v4022 = vpop.xlane.xlu0 %4021
      %v4023 = vmax.f32 %v2171, %v2173
      %4024 = vmax.xlane.f32.xlu0 %v4023
      %v4025 = vpop.xlane.xlu0 %4024
      %v4026 = vmax.f32 %v2175, %v2177
      %4027 = vmax.xlane.f32.xlu0 %v4026
      %v4028 = vpop.xlane.xlu0 %4027
      %v4029 = vmax.f32 %v2181, %v2183
      %4030 = vmax.xlane.f32.xlu0 %v4029
      %v4031 = vpop.xlane.xlu0 %4030
      %v4032 = vmax.f32 %v2185, %v2187
      %4033 = vmax.xlane.f32.xlu0 %v4032
      %v4034 = vpop.xlane.xlu0 %4033
      %v4035 = vmax.f32 %v2191, %v2193
      %4036 = vmax.xlane.f32.xlu0 %v4035
      %v4037 = vpop.xlane.xlu0 %4036
      %v4038 = vmax.f32 %v2195, %v2197
      %4039 = vmax.xlane.f32.xlu0 %v4038
      %v4040 = vpop.xlane.xlu0 %4039
      %v4041 = vmax.f32 %v2201, %v2203
      %4042 = vmax.xlane.f32.xlu0 %v4041
      %v4043 = vpop.xlane.xlu0 %4042
      %v4044 = vmax.f32 %v2205, %v2207
      %4045 = vmax.xlane.f32.xlu0 %v4044
      %v4046 = vpop.xlane.xlu0 %4045
      %v4047 = vmax.f32 %v2211, %v2213
      %4048 = vmax.xlane.f32.xlu0 %v4047
      %v4049 = vpop.xlane.xlu0 %4048
      %v4050 = vmax.f32 %v2215, %v2217
      %4051 = vmax.xlane.f32.xlu0 %v4050
      %v4052 = vpop.xlane.xlu0 %4051
      %v4053 = vmax.f32 %v2221, %v2223
      %4054 = vmax.xlane.f32.xlu0 %v4053
      %v4055 = vpop.xlane.xlu0 %4054
      %v4056 = vmax.f32 %v2225, %v2227
      %4057 = vmax.xlane.f32.xlu0 %v4056
      %v4058 = vpop.xlane.xlu0 %4057
      %v4059 = vmax.f32 %v2344, %v2346
      %4060 = vmax.xlane.f32.xlu0 %v4059
      %v4061 = vpop.xlane.xlu0 %4060
      %v4062 = vmax.f32 %v2348, %v2350
      %4063 = vmax.xlane.f32.xlu0 %v4062
      %v4064 = vpop.xlane.xlu0 %4063
      %v4065 = vmax.f32 %v2354, %v2356
      %4066 = vmax.xlane.f32.xlu0 %v4065
      %v4067 = vpop.xlane.xlu0 %4066
      %v4068 = vmax.f32 %v2358, %v2360
      %4069 = vmax.xlane.f32.xlu0 %v4068
      %v4070 = vpop.xlane.xlu0 %4069
      %v4071 = vmax.f32 %v2364, %v2366
      %4072 = vmax.xlane.f32.xlu0 %v4071
      %v4073 = vpop.xlane.xlu0 %4072
      %v4074 = vmax.f32 %v2368, %v2370
      %4075 = vmax.xlane.f32.xlu0 %v4074
      %v4076 = vpop.xlane.xlu0 %4075
      %v4077 = vmax.f32 %v2374, %v2376
      %4078 = vmax.xlane.f32.xlu0 %v4077
      %v4079 = vpop.xlane.xlu0 %4078
      %v4080 = vmax.f32 %v2378, %v2380
      %4081 = vmax.xlane.f32.xlu0 %v4080
      %v4082 = vpop.xlane.xlu0 %4081
      %v4083 = vmax.f32 %v2384, %v2386
      %4084 = vmax.xlane.f32.xlu0 %v4083
      %v4085 = vpop.xlane.xlu0 %4084
      %v4086 = vmax.f32 %v2388, %v2390
      %4087 = vmax.xlane.f32.xlu0 %v4086
      %v4088 = vpop.xlane.xlu0 %4087
      %v4089 = vmax.f32 %v2394, %v2396
      %4090 = vmax.xlane.f32.xlu0 %v4089
      %v4091 = vpop.xlane.xlu0 %4090
      %v4092 = vmax.f32 %v2398, %v2400
      %4093 = vmax.xlane.f32.xlu0 %v4092
      %v4094 = vpop.xlane.xlu0 %4093
      %v4095 = vmax.f32 %v2404, %v2406
      %4096 = vmax.xlane.f32.xlu0 %v4095
      %v4097 = vpop.xlane.xlu0 %4096
      %v4098 = vmax.f32 %v2408, %v2410
      %4099 = vmax.xlane.f32.xlu0 %v4098
      %v4100 = vpop.xlane.xlu0 %4099
      %v4101 = vmax.f32 %v2414, %v2416
      %4102 = vmax.xlane.f32.xlu0 %v4101
      %v4103 = vpop.xlane.xlu0 %4102
      %v4104 = vmax.f32 %v2418, %v2420
      %4105 = vmax.xlane.f32.xlu0 %v4104
      %v4106 = vpop.xlane.xlu0 %4105
      %v4107 = vmax.f32 %v2424, %v2426
      %4108 = vmax.xlane.f32.xlu0 %v4107
      %v4109 = vpop.xlane.xlu0 %4108
      %v4110 = vmax.f32 %v2428, %v2430
      %4111 = vmax.xlane.f32.xlu0 %v4110
      %v4112 = vpop.xlane.xlu0 %4111
      %v4113 = vmax.f32 %v2434, %v2436
      %4114 = vmax.xlane.f32.xlu0 %v4113
      %v4115 = vpop.xlane.xlu0 %4114
      %v4116 = vmax.f32 %v2438, %v2440
      %4117 = vmax.xlane.f32.xlu0 %v4116
      %v4118 = vpop.xlane.xlu0 %4117
      %v4119 = vmax.f32 %v2444, %v2446
      %4120 = vmax.xlane.f32.xlu0 %v4119
      %v4121 = vpop.xlane.xlu0 %4120
      %v4122 = vmax.f32 %v2448, %v2450
      %4123 = vmax.xlane.f32.xlu0 %v4122
      %v4124 = vpop.xlane.xlu0 %4123
      %v4125 = vmax.f32 %v2454, %v2456
      %4126 = vmax.xlane.f32.xlu0 %v4125
      %v4127 = vpop.xlane.xlu0 %4126
      %v4128 = vmax.f32 %v2458, %v2460
      %4129 = vmax.xlane.f32.xlu0 %v4128
      %v4130 = vpop.xlane.xlu0 %4129
      %v4131 = vmax.f32 %v2464, %v2466
      %4132 = vmax.xlane.f32.xlu0 %v4131
      %v4133 = vpop.xlane.xlu0 %4132
      %v4134 = vmax.f32 %v2468, %v2470
      %4135 = vmax.xlane.f32.xlu0 %v4134
      %v4136 = vpop.xlane.xlu0 %4135
      %v4137 = vmax.f32 %v2474, %v2476
      %4138 = vmax.xlane.f32.xlu0 %v4137
      %v4139 = vpop.xlane.xlu0 %4138
      %v4140 = vmax.f32 %v2478, %v2480
      %4141 = vmax.xlane.f32.xlu0 %v4140
      %v4142 = vpop.xlane.xlu0 %4141
      %v4143 = vmax.f32 %v2484, %v2486
      %4144 = vmax.xlane.f32.xlu0 %v4143
      %v4145 = vpop.xlane.xlu0 %4144
      %v4146 = vmax.f32 %v2488, %v2490
      %4147 = vmax.xlane.f32.xlu0 %v4146
      %v4148 = vpop.xlane.xlu0 %4147
      %v4149 = vmax.f32 %v2494, %v2496
      %4150 = vmax.xlane.f32.xlu0 %v4149
      %v4151 = vpop.xlane.xlu0 %4150
      %v4152 = vmax.f32 %v2498, %v2500
      %4153 = vmax.xlane.f32.xlu0 %v4152
      %v4154 = vpop.xlane.xlu0 %4153
      %v4155 = vmax.f32 %v2617, %v2619
      %4156 = vmax.xlane.f32.xlu0 %v4155
      %v4157 = vpop.xlane.xlu0 %4156
      %v4158 = vmax.f32 %v2621, %v2623
      %4159 = vmax.xlane.f32.xlu0 %v4158
      %v4160 = vpop.xlane.xlu0 %4159
      %v4161 = vmax.f32 %v2627, %v2629
      %4162 = vmax.xlane.f32.xlu0 %v4161
      %v4163 = vpop.xlane.xlu0 %4162
      %v4164 = vmax.f32 %v2631, %v2633
      %4165 = vmax.xlane.f32.xlu0 %v4164
      %v4166 = vpop.xlane.xlu0 %4165
      %v4167 = vmax.f32 %v2637, %v2639
      %4168 = vmax.xlane.f32.xlu0 %v4167
      %v4169 = vpop.xlane.xlu0 %4168
      %v4170 = vmax.f32 %v2641, %v2643
      %4171 = vmax.xlane.f32.xlu0 %v4170
      %v4172 = vpop.xlane.xlu0 %4171
      %v4173 = vmax.f32 %v2647, %v2649
      %4174 = vmax.xlane.f32.xlu0 %v4173
      %v4175 = vpop.xlane.xlu0 %4174
      %v4176 = vmax.f32 %v2651, %v2653
      %4177 = vmax.xlane.f32.xlu0 %v4176
      %v4178 = vpop.xlane.xlu0 %4177
      %v4179 = vmax.f32 %v2657, %v2659
      %4180 = vmax.xlane.f32.xlu0 %v4179
      %v4181 = vpop.xlane.xlu0 %4180
      %v4182 = vmax.f32 %v2661, %v2663
      %4183 = vmax.xlane.f32.xlu0 %v4182
      %v4184 = vpop.xlane.xlu0 %4183
      %v4185 = vmax.f32 %v2667, %v2669
      %4186 = vmax.xlane.f32.xlu0 %v4185
      %v4187 = vpop.xlane.xlu0 %4186
      %v4188 = vmax.f32 %v2671, %v2673
      %4189 = vmax.xlane.f32.xlu0 %v4188
      %v4190 = vpop.xlane.xlu0 %4189
      %v4191 = vmax.f32 %v2677, %v2679
      %4192 = vmax.xlane.f32.xlu0 %v4191
      %v4193 = vpop.xlane.xlu0 %4192
      %v4194 = vmax.f32 %v2681, %v2683
      %4195 = vmax.xlane.f32.xlu0 %v4194
      %v4196 = vpop.xlane.xlu0 %4195
      %v4197 = vmax.f32 %v2687, %v2689
      %4198 = vmax.xlane.f32.xlu0 %v4197
      %v4199 = vpop.xlane.xlu0 %4198
      %v4200 = vmax.f32 %v2691, %v2693
      %4201 = vmax.xlane.f32.xlu0 %v4200
      %v4202 = vpop.xlane.xlu0 %4201
      %v4203 = vmax.f32 %v2697, %v2699
      %4204 = vmax.xlane.f32.xlu0 %v4203
      %v4205 = vpop.xlane.xlu0 %4204
      %v4206 = vmax.f32 %v2701, %v2703
      %4207 = vmax.xlane.f32.xlu0 %v4206
      %v4208 = vpop.xlane.xlu0 %4207
      %v4209 = vmax.f32 %v2707, %v2709
      %4210 = vmax.xlane.f32.xlu0 %v4209
      %v4211 = vpop.xlane.xlu0 %4210
      %v4212 = vmax.f32 %v2711, %v2713
      %4213 = vmax.xlane.f32.xlu0 %v4212
      %v4214 = vpop.xlane.xlu0 %4213
      %v4215 = vmax.f32 %v2717, %v2719
      %4216 = vmax.xlane.f32.xlu0 %v4215
      %v4217 = vpop.xlane.xlu0 %4216
      %v4218 = vmax.f32 %v2721, %v2723
      %4219 = vmax.xlane.f32.xlu0 %v4218
      %v4220 = vpop.xlane.xlu0 %4219
      %v4221 = vmax.f32 %v2727, %v2729
      %4222 = vmax.xlane.f32.xlu0 %v4221
      %v4223 = vpop.xlane.xlu0 %4222
      %v4224 = vmax.f32 %v2731, %v2733
      %4225 = vmax.xlane.f32.xlu0 %v4224
      %v4226 = vpop.xlane.xlu0 %4225
      %v4227 = vmax.f32 %v2737, %v2739
      %4228 = vmax.xlane.f32.xlu0 %v4227
      %v4229 = vpop.xlane.xlu0 %4228
      %v4230 = vmax.f32 %v2741, %v2743
      %4231 = vmax.xlane.f32.xlu0 %v4230
      %v4232 = vpop.xlane.xlu0 %4231
      %v4233 = vmax.f32 %v2747, %v2749
      %4234 = vmax.xlane.f32.xlu0 %v4233
      %v4235 = vpop.xlane.xlu0 %4234
      %v4236 = vmax.f32 %v2751, %v2753
      %4237 = vmax.xlane.f32.xlu0 %v4236
      %v4238 = vpop.xlane.xlu0 %4237
      %v4239 = vmax.f32 %v2757, %v2759
      %4240 = vmax.xlane.f32.xlu0 %v4239
      %v4241 = vpop.xlane.xlu0 %4240
      %v4242 = vmax.f32 %v2761, %v2763
      %4243 = vmax.xlane.f32.xlu0 %v4242
      %v4244 = vpop.xlane.xlu0 %4243
      %v4245 = vmax.f32 %v2767, %v2769
      %4246 = vmax.xlane.f32.xlu0 %v4245
      %v4247 = vpop.xlane.xlu0 %4246
      %v4248 = vmax.f32 %v2771, %v2773
      %4249 = vmax.xlane.f32.xlu0 %v4248
      %v4250 = vpop.xlane.xlu0 %4249
      %v4251 = vmax.f32 %v2890, %v2892
      %4252 = vmax.xlane.f32.xlu0 %v4251
      %v4253 = vpop.xlane.xlu0 %4252
      %v4254 = vmax.f32 %v2894, %v2896
      %4255 = vmax.xlane.f32.xlu0 %v4254
      %v4256 = vpop.xlane.xlu0 %4255
      %v4257 = vmax.f32 %v2900, %v2902
      %4258 = vmax.xlane.f32.xlu0 %v4257
      %v4259 = vpop.xlane.xlu0 %4258
      %v4260 = vmax.f32 %v2904, %v2906
      %4261 = vmax.xlane.f32.xlu0 %v4260
      %v4262 = vpop.xlane.xlu0 %4261
      %v4263 = vmax.f32 %v2910, %v2912
      %4264 = vmax.xlane.f32.xlu0 %v4263
      %v4265 = vpop.xlane.xlu0 %4264
      %v4266 = vmax.f32 %v2914, %v2916
      %4267 = vmax.xlane.f32.xlu0 %v4266
      %v4268 = vpop.xlane.xlu0 %4267
      %v4269 = vmax.f32 %v2920, %v2922
      %4270 = vmax.xlane.f32.xlu0 %v4269
      %v4271 = vpop.xlane.xlu0 %4270
      %v4272 = vmax.f32 %v2924, %v2926
      %4273 = vmax.xlane.f32.xlu0 %v4272
      %v4274 = vpop.xlane.xlu0 %4273
      %v4275 = vmax.f32 %v2930, %v2932
      %4276 = vmax.xlane.f32.xlu0 %v4275
      %v4277 = vpop.xlane.xlu0 %4276
      %v4278 = vmax.f32 %v2934, %v2936
      %4279 = vmax.xlane.f32.xlu0 %v4278
      %v4280 = vpop.xlane.xlu0 %4279
      %v4281 = vmax.f32 %v2940, %v2942
      %4282 = vmax.xlane.f32.xlu0 %v4281
      %v4283 = vpop.xlane.xlu0 %4282
      %v4284 = vmax.f32 %v2944, %v2946
      %4285 = vmax.xlane.f32.xlu0 %v4284
      %v4286 = vpop.xlane.xlu0 %4285
      %v4287 = vmax.f32 %v2950, %v2952
      %4288 = vmax.xlane.f32.xlu0 %v4287
      %v4289 = vpop.xlane.xlu0 %4288
      %v4290 = vmax.f32 %v2954, %v2956
      %4291 = vmax.xlane.f32.xlu0 %v4290
      %v4292 = vpop.xlane.xlu0 %4291
      %v4293 = vmax.f32 %v2960, %v2962
      %4294 = vmax.xlane.f32.xlu0 %v4293
      %v4295 = vpop.xlane.xlu0 %4294
      %v4296 = vmax.f32 %v2964, %v2966
      %4297 = vmax.xlane.f32.xlu0 %v4296
      %v4298 = vpop.xlane.xlu0 %4297
      %v4299 = vmax.f32 %v2970, %v2972
      %4300 = vmax.xlane.f32.xlu0 %v4299
      %v4301 = vpop.xlane.xlu0 %4300
      %v4302 = vmax.f32 %v2974, %v2976
      %4303 = vmax.xlane.f32.xlu0 %v4302
      %v4304 = vpop.xlane.xlu0 %4303
      %v4305 = vmax.f32 %v2980, %v2982
      %4306 = vmax.xlane.f32.xlu0 %v4305
      %v4307 = vpop.xlane.xlu0 %4306
      %v4308 = vmax.f32 %v2984, %v2986
      %4309 = vmax.xlane.f32.xlu0 %v4308
      %v4310 = vpop.xlane.xlu0 %4309
      %v4311 = vmax.f32 %v2990, %v2992
      %4312 = vmax.xlane.f32.xlu0 %v4311
      %v4313 = vpop.xlane.xlu0 %4312
      %v4314 = vmax.f32 %v2994, %v2996
      %4315 = vmax.xlane.f32.xlu0 %v4314
      %v4316 = vpop.xlane.xlu0 %4315
      %v4317 = vmax.f32 %v3000, %v3002
      %4318 = vmax.xlane.f32.xlu0 %v4317
      %v4319 = vpop.xlane.xlu0 %4318
      %v4320 = vmax.f32 %v3004, %v3006
      %4321 = vmax.xlane.f32.xlu0 %v4320
      %v4322 = vpop.xlane.xlu0 %4321
      %v4323 = vmax.f32 %v3010, %v3012
      %4324 = vmax.xlane.f32.xlu0 %v4323
      %v4325 = vpop.xlane.xlu0 %4324
      %v4326 = vmax.f32 %v3014, %v3016
      %4327 = vmax.xlane.f32.xlu0 %v4326
      %v4328 = vpop.xlane.xlu0 %4327
      %v4329 = vmax.f32 %v3020, %v3022
      %4330 = vmax.xlane.f32.xlu0 %v4329
      %v4331 = vpop.xlane.xlu0 %4330
      %v4332 = vmax.f32 %v3024, %v3026
      %4333 = vmax.xlane.f32.xlu0 %v4332
      %v4334 = vpop.xlane.xlu0 %4333
      %v4335 = vmax.f32 %v3030, %v3032
      %4336 = vmax.xlane.f32.xlu0 %v4335
      %v4337 = vpop.xlane.xlu0 %4336
      %v4338 = vmax.f32 %v3034, %v3036
      %4339 = vmax.xlane.f32.xlu0 %v4338
      %v4340 = vpop.xlane.xlu0 %4339
      %v4341 = vmax.f32 %v3040, %v3042
      %4342 = vmax.xlane.f32.xlu0 %v4341
      %v4343 = vpop.xlane.xlu0 %4342
      %v4344 = vmax.f32 %v3044, %v3046
      %4345 = vmax.xlane.f32.xlu0 %v4344
      %v4346 = vpop.xlane.xlu0 %4345
      %v4347 = vmax.f32 %v3163, %v3165
      %4348 = vmax.xlane.f32.xlu0 %v4347
      %v4349 = vpop.xlane.xlu0 %4348
      %v4350 = vmax.f32 %v3167, %v3169
      %4351 = vmax.xlane.f32.xlu0 %v4350
      %v4352 = vpop.xlane.xlu0 %4351
      %v4353 = vmax.f32 %v3173, %v3175
      %4354 = vmax.xlane.f32.xlu0 %v4353
      %v4355 = vpop.xlane.xlu0 %4354
      %v4356 = vmax.f32 %v3177, %v3179
      %4357 = vmax.xlane.f32.xlu0 %v4356
      %v4358 = vpop.xlane.xlu0 %4357
      %v4359 = vmax.f32 %v3183, %v3185
      %4360 = vmax.xlane.f32.xlu0 %v4359
      %v4361 = vpop.xlane.xlu0 %4360
      %v4362 = vmax.f32 %v3187, %v3189
      %4363 = vmax.xlane.f32.xlu0 %v4362
      %v4364 = vpop.xlane.xlu0 %4363
      %v4365 = vmax.f32 %v3193, %v3195
      %4366 = vmax.xlane.f32.xlu0 %v4365
      %v4367 = vpop.xlane.xlu0 %4366
      %v4368 = vmax.f32 %v3197, %v3199
      %4369 = vmax.xlane.f32.xlu0 %v4368
      %v4370 = vpop.xlane.xlu0 %4369
      %v4371 = vmax.f32 %v3203, %v3205
      %4372 = vmax.xlane.f32.xlu0 %v4371
      %v4373 = vpop.xlane.xlu0 %4372
      %v4374 = vmax.f32 %v3207, %v3209
      %4375 = vmax.xlane.f32.xlu0 %v4374
      %v4376 = vpop.xlane.xlu0 %4375
      %v4377 = vmax.f32 %v3213, %v3215
      %4378 = vmax.xlane.f32.xlu0 %v4377
      %v4379 = vpop.xlane.xlu0 %4378
      %v4380 = vmax.f32 %v3217, %v3219
      %4381 = vmax.xlane.f32.xlu0 %v4380
      %v4382 = vpop.xlane.xlu0 %4381
      %v4383 = vmax.f32 %v3223, %v3225
      %4384 = vmax.xlane.f32.xlu0 %v4383
      %v4385 = vpop.xlane.xlu0 %4384
      %v4386 = vmax.f32 %v3227, %v3229
      %4387 = vmax.xlane.f32.xlu0 %v4386
      %v4388 = vpop.xlane.xlu0 %4387
      %v4389 = vmax.f32 %v3233, %v3235
      %4390 = vmax.xlane.f32.xlu0 %v4389
      %v4391 = vpop.xlane.xlu0 %4390
      %v4392 = vmax.f32 %v3237, %v3239
      %4393 = vmax.xlane.f32.xlu0 %v4392
      %v4394 = vpop.xlane.xlu0 %4393
      %v4395 = vmax.f32 %v3243, %v3245
      %4396 = vmax.xlane.f32.xlu0 %v4395
      %v4397 = vpop.xlane.xlu0 %4396
      %v4398 = vmax.f32 %v3247, %v3249
      %4399 = vmax.xlane.f32.xlu0 %v4398
      %v4400 = vpop.xlane.xlu0 %4399
      %v4401 = vmax.f32 %v3253, %v3255
      %4402 = vmax.xlane.f32.xlu0 %v4401
      %v4403 = vpop.xlane.xlu0 %4402
      %v4404 = vmax.f32 %v3257, %v3259
      %4405 = vmax.xlane.f32.xlu0 %v4404
      %v4406 = vpop.xlane.xlu0 %4405
      %v4407 = vmax.f32 %v3263, %v3265
      %4408 = vmax.xlane.f32.xlu0 %v4407
      %v4409 = vpop.xlane.xlu0 %4408
      %v4410 = vmax.f32 %v3267, %v3269
      %4411 = vmax.xlane.f32.xlu0 %v4410
      %v4412 = vpop.xlane.xlu0 %4411
      %v4413 = vmax.f32 %v3273, %v3275
      %4414 = vmax.xlane.f32.xlu0 %v4413
      %v4415 = vpop.xlane.xlu0 %4414
      %v4416 = vmax.f32 %v3277, %v3279
      %4417 = vmax.xlane.f32.xlu0 %v4416
      %v4418 = vpop.xlane.xlu0 %4417
      %v4419 = vmax.f32 %v3283, %v3285
      %4420 = vmax.xlane.f32.xlu0 %v4419
      %v4421 = vpop.xlane.xlu0 %4420
      %v4422 = vmax.f32 %v3287, %v3289
      %4423 = vmax.xlane.f32.xlu0 %v4422
      %v4424 = vpop.xlane.xlu0 %4423
      %v4425 = vmax.f32 %v3293, %v3295
      %4426 = vmax.xlane.f32.xlu0 %v4425
      %v4427 = vpop.xlane.xlu0 %4426
      %v4428 = vmax.f32 %v3297, %v3299
      %4429 = vmax.xlane.f32.xlu0 %v4428
      %v4430 = vpop.xlane.xlu0 %4429
      %v4431 = vmax.f32 %v3303, %v3305
      %4432 = vmax.xlane.f32.xlu0 %v4431
      %v4433 = vpop.xlane.xlu0 %4432
      %v4434 = vmax.f32 %v3307, %v3309
      %4435 = vmax.xlane.f32.xlu0 %v4434
      %v4436 = vpop.xlane.xlu0 %4435
      %v4437 = vmax.f32 %v3313, %v3315
      %4438 = vmax.xlane.f32.xlu0 %v4437
      %v4439 = vpop.xlane.xlu0 %4438
      %v4440 = vmax.f32 %v3317, %v3319
      %4441 = vmax.xlane.f32.xlu0 %v4440
      %v4442 = vpop.xlane.xlu0 %4441
      %v4443 = vmax.f32 %v3436, %v3438
      %4444 = vmax.xlane.f32.xlu0 %v4443
      %v4445 = vpop.xlane.xlu0 %4444
      %v4446 = vmax.f32 %v3440, %v3442
      %4447 = vmax.xlane.f32.xlu0 %v4446
      %v4448 = vpop.xlane.xlu0 %4447
      %v4449 = vmax.f32 %v3446, %v3448
      %4450 = vmax.xlane.f32.xlu0 %v4449
      %v4451 = vpop.xlane.xlu0 %4450
      %v4452 = vmax.f32 %v3450, %v3452
      %4453 = vmax.xlane.f32.xlu0 %v4452
      %v4454 = vpop.xlane.xlu0 %4453
      %v4455 = vmax.f32 %v3456, %v3458
      %4456 = vmax.xlane.f32.xlu0 %v4455
      %v4457 = vpop.xlane.xlu0 %4456
      %v4458 = vmax.f32 %v3460, %v3462
      %4459 = vmax.xlane.f32.xlu0 %v4458
      %v4460 = vpop.xlane.xlu0 %4459
      %v4461 = vmax.f32 %v3466, %v3468
      %4462 = vmax.xlane.f32.xlu0 %v4461
      %v4463 = vpop.xlane.xlu0 %4462
      %v4464 = vmax.f32 %v3470, %v3472
      %4465 = vmax.xlane.f32.xlu0 %v4464
      %v4466 = vpop.xlane.xlu0 %4465
      %v4467 = vmax.f32 %v3476, %v3478
      %4468 = vmax.xlane.f32.xlu0 %v4467
      %v4469 = vpop.xlane.xlu0 %4468
      %v4470 = vmax.f32 %v3480, %v3482
      %4471 = vmax.xlane.f32.xlu0 %v4470
      %v4472 = vpop.xlane.xlu0 %4471
      %v4473 = vmax.f32 %v3486, %v3488
      %4474 = vmax.xlane.f32.xlu0 %v4473
      %v4475 = vpop.xlane.xlu0 %4474
      %v4476 = vmax.f32 %v3490, %v3492
      %4477 = vmax.xlane.f32.xlu0 %v4476
      %v4478 = vpop.xlane.xlu0 %4477
      %v4479 = vmax.f32 %v3496, %v3498
      %4480 = vmax.xlane.f32.xlu0 %v4479
      %v4481 = vpop.xlane.xlu0 %4480
      %v4482 = vmax.f32 %v3500, %v3502
      %4483 = vmax.xlane.f32.xlu0 %v4482
      %v4484 = vpop.xlane.xlu0 %4483
      %v4485 = vmax.f32 %v3506, %v3508
      %4486 = vmax.xlane.f32.xlu0 %v4485
      %v4487 = vpop.xlane.xlu0 %4486
      %v4488 = vmax.f32 %v3510, %v3512
      %4489 = vmax.xlane.f32.xlu0 %v4488
      %v4490 = vpop.xlane.xlu0 %4489
      %v4491 = vmax.f32 %v3516, %v3518
      %4492 = vmax.xlane.f32.xlu0 %v4491
      %v4493 = vpop.xlane.xlu0 %4492
      %v4494 = vmax.f32 %v3520, %v3522
      %4495 = vmax.xlane.f32.xlu0 %v4494
      %v4496 = vpop.xlane.xlu0 %4495
      %v4497 = vmax.f32 %v3526, %v3528
      %4498 = vmax.xlane.f32.xlu0 %v4497
      %v4499 = vpop.xlane.xlu0 %4498
      %v4500 = vmax.f32 %v3530, %v3532
      %4501 = vmax.xlane.f32.xlu0 %v4500
      %v4502 = vpop.xlane.xlu0 %4501
      %v4503 = vmax.f32 %v3536, %v3538
      %4504 = vmax.xlane.f32.xlu0 %v4503
      %v4505 = vpop.xlane.xlu0 %4504
      %v4506 = vmax.f32 %v3540, %v3542
      %4507 = vmax.xlane.f32.xlu0 %v4506
      %v4508 = vpop.xlane.xlu0 %4507
      %v4509 = vmax.f32 %v3546, %v3548
      %4510 = vmax.xlane.f32.xlu0 %v4509
      %v4511 = vpop.xlane.xlu0 %4510
      %v4512 = vmax.f32 %v3550, %v3552
      %4513 = vmax.xlane.f32.xlu0 %v4512
      %v4514 = vpop.xlane.xlu0 %4513
      %v4515 = vmax.f32 %v3556, %v3558
      %4516 = vmax.xlane.f32.xlu0 %v4515
      %v4517 = vpop.xlane.xlu0 %4516
      %v4518 = vmax.f32 %v3560, %v3562
      %4519 = vmax.xlane.f32.xlu0 %v4518
      %v4520 = vpop.xlane.xlu0 %4519
      %v4521 = vmax.f32 %v3566, %v3568
      %4522 = vmax.xlane.f32.xlu0 %v4521
      %v4523 = vpop.xlane.xlu0 %4522
      %v4524 = vmax.f32 %v3570, %v3572
      %4525 = vmax.xlane.f32.xlu0 %v4524
      %v4526 = vpop.xlane.xlu0 %4525
      %v4527 = vmax.f32 %v3576, %v3578
      %4528 = vmax.xlane.f32.xlu0 %v4527
      %v4529 = vpop.xlane.xlu0 %4528
      %v4530 = vmax.f32 %v3580, %v3582
      %4531 = vmax.xlane.f32.xlu0 %v4530
      %v4532 = vpop.xlane.xlu0 %4531
      %v4533 = vmax.f32 %v3586, %v3588
      %4534 = vmax.xlane.f32.xlu0 %v4533
      %v4535 = vpop.xlane.xlu0 %4534
      %v4536 = vmax.f32 %v3590, %v3592
      %4537 = vmax.xlane.f32.xlu0 %v4536
      %v4538 = vpop.xlane.xlu0 %4537
      %v4539 = vmax.f32 %v3709, %v3711
      %4540 = vmax.xlane.f32.xlu0 %v4539
      %v4541 = vpop.xlane.xlu0 %4540
      %v4542 = vmax.f32 %v3713, %v3715
      %4543 = vmax.xlane.f32.xlu0 %v4542
      %v4544 = vpop.xlane.xlu0 %4543
      %v4545 = vmax.f32 %v3719, %v3721
      %4546 = vmax.xlane.f32.xlu0 %v4545
      %v4547 = vpop.xlane.xlu0 %4546
      %v4548 = vmax.f32 %v3723, %v3725
      %4549 = vmax.xlane.f32.xlu0 %v4548
      %v4550 = vpop.xlane.xlu0 %4549
      %v4551 = vmax.f32 %v3729, %v3731
      %4552 = vmax.xlane.f32.xlu0 %v4551
      %v4553 = vpop.xlane.xlu0 %4552
      %v4554 = vmax.f32 %v3733, %v3735
      %4555 = vmax.xlane.f32.xlu0 %v4554
      %v4556 = vpop.xlane.xlu0 %4555
      %v4557 = vmax.f32 %v3739, %v3741
      %4558 = vmax.xlane.f32.xlu0 %v4557
      %v4559 = vpop.xlane.xlu0 %4558
      %v4560 = vmax.f32 %v3743, %v3745
      %4561 = vmax.xlane.f32.xlu0 %v4560
      %v4562 = vpop.xlane.xlu0 %4561
      %v4563 = vmax.f32 %v3749, %v3751
      %4564 = vmax.xlane.f32.xlu0 %v4563
      %v4565 = vpop.xlane.xlu0 %4564
      %v4566 = vmax.f32 %v3753, %v3755
      %4567 = vmax.xlane.f32.xlu0 %v4566
      %v4568 = vpop.xlane.xlu0 %4567
      %v4569 = vmax.f32 %v3759, %v3761
      %4570 = vmax.xlane.f32.xlu0 %v4569
      %v4571 = vpop.xlane.xlu0 %4570
      %v4572 = vmax.f32 %v3763, %v3765
      %4573 = vmax.xlane.f32.xlu0 %v4572
      %v4574 = vpop.xlane.xlu0 %4573
      %v4575 = vmax.f32 %v3769, %v3771
      %4576 = vmax.xlane.f32.xlu0 %v4575
      %v4577 = vpop.xlane.xlu0 %4576
      %v4578 = vmax.f32 %v3773, %v3775
      %4579 = vmax.xlane.f32.xlu0 %v4578
      %v4580 = vpop.xlane.xlu0 %4579
      %v4581 = vmax.f32 %v3779, %v3781
      %4582 = vmax.xlane.f32.xlu0 %v4581
      %v4583 = vpop.xlane.xlu0 %4582
      %v4584 = vmax.f32 %v3783, %v3785
      %4585 = vmax.xlane.f32.xlu0 %v4584
      %v4586 = vpop.xlane.xlu0 %4585
      %v4587 = vmax.f32 %v3789, %v3791
      %4588 = vmax.xlane.f32.xlu0 %v4587
      %v4589 = vpop.xlane.xlu0 %4588
      %v4590 = vmax.f32 %v3793, %v3795
      %4591 = vmax.xlane.f32.xlu0 %v4590
      %v4592 = vpop.xlane.xlu0 %4591
      %v4593 = vmax.f32 %v3799, %v3801
      %4594 = vmax.xlane.f32.xlu0 %v4593
      %v4595 = vpop.xlane.xlu0 %4594
      %v4596 = vmax.f32 %v3803, %v3805
      %4597 = vmax.xlane.f32.xlu0 %v4596
      %v4598 = vpop.xlane.xlu0 %4597
      %v4599 = vmax.f32 %v3809, %v3811
      %4600 = vmax.xlane.f32.xlu0 %v4599
      %v4601 = vpop.xlane.xlu0 %4600
      %v4602 = vmax.f32 %v3813, %v3815
      %4603 = vmax.xlane.f32.xlu0 %v4602
      %v4604 = vpop.xlane.xlu0 %4603
      %v4605 = vmax.f32 %v3819, %v3821
      %4606 = vmax.xlane.f32.xlu0 %v4605
      %v4607 = vpop.xlane.xlu0 %4606
      %v4608 = vmax.f32 %v3823, %v3825
      %4609 = vmax.xlane.f32.xlu0 %v4608
      %v4610 = vpop.xlane.xlu0 %4609
      %v4611 = vmax.f32 %v3829, %v3831
      %4612 = vmax.xlane.f32.xlu0 %v4611
      %v4613 = vpop.xlane.xlu0 %4612
      %v4614 = vmax.f32 %v3833, %v3835
      %4615 = vmax.xlane.f32.xlu0 %v4614
      %v4616 = vpop.xlane.xlu0 %4615
      %v4617 = vmax.f32 %v3839, %v3841
      %4618 = vmax.xlane.f32.xlu0 %v4617
      %v4619 = vpop.xlane.xlu0 %4618
      %v4620 = vmax.f32 %v3843, %v3845
      %4621 = vmax.xlane.f32.xlu0 %v4620
      %v4622 = vpop.xlane.xlu0 %4621
      %v4623 = vmax.f32 %v3849, %v3851
      %4624 = vmax.xlane.f32.xlu0 %v4623
      %v4625 = vpop.xlane.xlu0 %4624
      %v4626 = vmax.f32 %v3853, %v3855
      %4627 = vmax.xlane.f32.xlu0 %v4626
      %v4628 = vpop.xlane.xlu0 %4627
      %v4629 = vmax.f32 %v3859, %v3861
      %4630 = vmax.xlane.f32.xlu0 %v4629
      %v4631 = vpop.xlane.xlu0 %4630
      %v4632 = vmax.f32 %v3863, %v3865
      %4633 = vmax.xlane.f32.xlu0 %v4632
      %v4634 = vpop.xlane.xlu0 %4633
      %v4635 = vsub.f32 %v1798, %v3869
      %v4636 = vsub.f32 %v1800, %v3869
      %v4637 = vsub.f32 %v1802, %v3872
      %v4638 = vsub.f32 %v1804, %v3872
      %v4639 = vsub.f32 %v1808, %v3875
      %v4640 = vsub.f32 %v1810, %v3875
      %v4641 = vsub.f32 %v1812, %v3878
      %v4642 = vsub.f32 %v1814, %v3878
      %v4643 = vsub.f32 %v1818, %v3881
      %v4644 = vsub.f32 %v1820, %v3881
      %v4645 = vsub.f32 %v1822, %v3884
      %v4646 = vsub.f32 %v1824, %v3884
      %v4647 = vsub.f32 %v1828, %v3887
      %v4648 = vsub.f32 %v1830, %v3887
      %v4649 = vsub.f32 %v1832, %v3890
      %v4650 = vsub.f32 %v1834, %v3890
      %v4651 = vsub.f32 %v1838, %v3893
      %v4652 = vsub.f32 %v1840, %v3893
      %v4653 = vsub.f32 %v1842, %v3896
      %v4654 = vsub.f32 %v1844, %v3896
      %v4655 = vsub.f32 %v1848, %v3899
      %v4656 = vsub.f32 %v1850, %v3899
      %v4657 = vsub.f32 %v1852, %v3902
      %v4658 = vsub.f32 %v1854, %v3902
      %v4659 = vsub.f32 %v1858, %v3905
      %v4660 = vsub.f32 %v1860, %v3905
      %v4661 = vsub.f32 %v1862, %v3908
      %v4662 = vsub.f32 %v1864, %v3908
      %v4663 = vsub.f32 %v1868, %v3911
      %v4664 = vsub.f32 %v1870, %v3911
      %v4665 = vsub.f32 %v1872, %v3914
      %v4666 = vsub.f32 %v1874, %v3914
      %v4667 = vsub.f32 %v1878, %v3917
      %v4668 = vsub.f32 %v1880, %v3917
      %v4669 = vsub.f32 %v1882, %v3920
      %v4670 = vsub.f32 %v1884, %v3920
      %v4671 = vsub.f32 %v1888, %v3923
      %v4672 = vsub.f32 %v1890, %v3923
      %v4673 = vsub.f32 %v1892, %v3926
      %v4674 = vsub.f32 %v1894, %v3926
      %v4675 = vsub.f32 %v1898, %v3929
      %v4676 = vsub.f32 %v1900, %v3929
      %v4677 = vsub.f32 %v1902, %v3932
      %v4678 = vsub.f32 %v1904, %v3932
      %v4679 = vsub.f32 %v1908, %v3935
      %v4680 = vsub.f32 %v1910, %v3935
      %v4681 = vsub.f32 %v1912, %v3938
      %v4682 = vsub.f32 %v1914, %v3938
      %v4683 = vsub.f32 %v1918, %v3941
      %v4684 = vsub.f32 %v1920, %v3941
      %v4685 = vsub.f32 %v1922, %v3944
      %v4686 = vsub.f32 %v1924, %v3944
      %v4687 = vsub.f32 %v1928, %v3947
      %v4688 = vsub.f32 %v1930, %v3947
      %v4689 = vsub.f32 %v1932, %v3950
      %v4690 = vsub.f32 %v1934, %v3950
      %v4691 = vsub.f32 %v1938, %v3953
      %v4692 = vsub.f32 %v1940, %v3953
      %v4693 = vsub.f32 %v1942, %v3956
      %v4694 = vsub.f32 %v1944, %v3956
      %v4695 = vsub.f32 %v1948, %v3959
      %v4696 = vsub.f32 %v1950, %v3959
      %v4697 = vsub.f32 %v1952, %v3962
      %v4698 = vsub.f32 %v1954, %v3962
      %v4699 = vsub.f32 %v2071, %v3965
      %v4700 = vsub.f32 %v2073, %v3965
      %v4701 = vsub.f32 %v2075, %v3968
      %v4702 = vsub.f32 %v2077, %v3968
      %v4703 = vsub.f32 %v2081, %v3971
      %v4704 = vsub.f32 %v2083, %v3971
      %v4705 = vsub.f32 %v2085, %v3974
      %v4706 = vsub.f32 %v2087, %v3974
      %v4707 = vsub.f32 %v2091, %v3977
      %v4708 = vsub.f32 %v2093, %v3977
      %v4709 = vsub.f32 %v2095, %v3980
      %v4710 = vsub.f32 %v2097, %v3980
      %v4711 = vsub.f32 %v2101, %v3983
      %v4712 = vsub.f32 %v2103, %v3983
      %v4713 = vsub.f32 %v2105, %v3986
      %v4714 = vsub.f32 %v2107, %v3986
      %v4715 = vsub.f32 %v2111, %v3989
      %v4716 = vsub.f32 %v2113, %v3989
      %v4717 = vsub.f32 %v2115, %v3992
      %v4718 = vsub.f32 %v2117, %v3992
      %v4719 = vsub.f32 %v2121, %v3995
      %v4720 = vsub.f32 %v2123, %v3995
      %v4721 = vsub.f32 %v2125, %v3998
      %v4722 = vsub.f32 %v2127, %v3998
      %v4723 = vsub.f32 %v2131, %v4001
      %v4724 = vsub.f32 %v2133, %v4001
      %v4725 = vsub.f32 %v2135, %v4004
      %v4726 = vsub.f32 %v2137, %v4004
      %v4727 = vsub.f32 %v2141, %v4007
      %v4728 = vsub.f32 %v2143, %v4007
      %v4729 = vsub.f32 %v2145, %v4010
      %v4730 = vsub.f32 %v2147, %v4010
      %v4731 = vsub.f32 %v2151, %v4013
      %v4732 = vsub.f32 %v2153, %v4013
      %v4733 = vsub.f32 %v2155, %v4016
      %v4734 = vsub.f32 %v2157, %v4016
      %v4735 = vsub.f32 %v2161, %v4019
      %v4736 = vsub.f32 %v2163, %v4019
      %v4737 = vsub.f32 %v2165, %v4022
      %v4738 = vsub.f32 %v2167, %v4022
      %v4739 = vsub.f32 %v2171, %v4025
      %v4740 = vsub.f32 %v2173, %v4025
      %v4741 = vsub.f32 %v2175, %v4028
      %v4742 = vsub.f32 %v2177, %v4028
      %v4743 = vsub.f32 %v2181, %v4031
      %v4744 = vsub.f32 %v2183, %v4031
      %v4745 = vsub.f32 %v2185, %v4034
      %v4746 = vsub.f32 %v2187, %v4034
      %v4747 = vsub.f32 %v2191, %v4037
      %v4748 = vsub.f32 %v2193, %v4037
      %v4749 = vsub.f32 %v2195, %v4040
      %v4750 = vsub.f32 %v2197, %v4040
      %v4751 = vsub.f32 %v2201, %v4043
      %v4752 = vsub.f32 %v2203, %v4043
      %v4753 = vsub.f32 %v2205, %v4046
      %v4754 = vsub.f32 %v2207, %v4046
      %v4755 = vsub.f32 %v2211, %v4049
      %v4756 = vsub.f32 %v2213, %v4049
      %v4757 = vsub.f32 %v2215, %v4052
      %v4758 = vsub.f32 %v2217, %v4052
      %v4759 = vsub.f32 %v2221, %v4055
      %v4760 = vsub.f32 %v2223, %v4055
      %v4761 = vsub.f32 %v2225, %v4058
      %v4762 = vsub.f32 %v2227, %v4058
      %v4763 = vsub.f32 %v2344, %v4061
      %v4764 = vsub.f32 %v2346, %v4061
      %v4765 = vsub.f32 %v2348, %v4064
      %v4766 = vsub.f32 %v2350, %v4064
      %v4767 = vsub.f32 %v2354, %v4067
      %v4768 = vsub.f32 %v2356, %v4067
      %v4769 = vsub.f32 %v2358, %v4070
      %v4770 = vsub.f32 %v2360, %v4070
      %v4771 = vsub.f32 %v2364, %v4073
      %v4772 = vsub.f32 %v2366, %v4073
      %v4773 = vsub.f32 %v2368, %v4076
      %v4774 = vsub.f32 %v2370, %v4076
      %v4775 = vsub.f32 %v2374, %v4079
      %v4776 = vsub.f32 %v2376, %v4079
      %v4777 = vsub.f32 %v2378, %v4082
      %v4778 = vsub.f32 %v2380, %v4082
      %v4779 = vsub.f32 %v2384, %v4085
      %v4780 = vsub.f32 %v2386, %v4085
      %v4781 = vsub.f32 %v2388, %v4088
      %v4782 = vsub.f32 %v2390, %v4088
      %v4783 = vsub.f32 %v2394, %v4091
      %v4784 = vsub.f32 %v2396, %v4091
      %v4785 = vsub.f32 %v2398, %v4094
      %v4786 = vsub.f32 %v2400, %v4094
      %v4787 = vsub.f32 %v2404, %v4097
      %v4788 = vsub.f32 %v2406, %v4097
      %v4789 = vsub.f32 %v2408, %v4100
      %v4790 = vsub.f32 %v2410, %v4100
      %v4791 = vsub.f32 %v2414, %v4103
      %v4792 = vsub.f32 %v2416, %v4103
      %v4793 = vsub.f32 %v2418, %v4106
      %v4794 = vsub.f32 %v2420, %v4106
      %v4795 = vsub.f32 %v2424, %v4109
      %v4796 = vsub.f32 %v2426, %v4109
      %v4797 = vsub.f32 %v2428, %v4112
      %v4798 = vsub.f32 %v2430, %v4112
      %v4799 = vsub.f32 %v2434, %v4115
      %v4800 = vsub.f32 %v2436, %v4115
      %v4801 = vsub.f32 %v2438, %v4118
      %v4802 = vsub.f32 %v2440, %v4118
      %v4803 = vsub.f32 %v2444, %v4121
      %v4804 = vsub.f32 %v2446, %v4121
      %v4805 = vsub.f32 %v2448, %v4124
      %v4806 = vsub.f32 %v2450, %v4124
      %v4807 = vsub.f32 %v2454, %v4127
      %v4808 = vsub.f32 %v2456, %v4127
      %v4809 = vsub.f32 %v2458, %v4130
      %v4810 = vsub.f32 %v2460, %v4130
      %v4811 = vsub.f32 %v2464, %v4133
      %v4812 = vsub.f32 %v2466, %v4133
      %v4813 = vsub.f32 %v2468, %v4136
      %v4814 = vsub.f32 %v2470, %v4136
      %v4815 = vsub.f32 %v2474, %v4139
      %v4816 = vsub.f32 %v2476, %v4139
      %v4817 = vsub.f32 %v2478, %v4142
      %v4818 = vsub.f32 %v2480, %v4142
      %v4819 = vsub.f32 %v2484, %v4145
      %v4820 = vsub.f32 %v2486, %v4145
      %v4821 = vsub.f32 %v2488, %v4148
      %v4822 = vsub.f32 %v2490, %v4148
      %v4823 = vsub.f32 %v2494, %v4151
      %v4824 = vsub.f32 %v2496, %v4151
      %v4825 = vsub.f32 %v2498, %v4154
      %v4826 = vsub.f32 %v2500, %v4154
      %v4827 = vsub.f32 %v2617, %v4157
      %v4828 = vsub.f32 %v2619, %v4157
      %v4829 = vsub.f32 %v2621, %v4160
      %v4830 = vsub.f32 %v2623, %v4160
      %v4831 = vsub.f32 %v2627, %v4163
      %v4832 = vsub.f32 %v2629, %v4163
      %v4833 = vsub.f32 %v2631, %v4166
      %v4834 = vsub.f32 %v2633, %v4166
      %v4835 = vsub.f32 %v2637, %v4169
      %v4836 = vsub.f32 %v2639, %v4169
      %v4837 = vsub.f32 %v2641, %v4172
      %v4838 = vsub.f32 %v2643, %v4172
      %v4839 = vsub.f32 %v2647, %v4175
      %v4840 = vsub.f32 %v2649, %v4175
      %v4841 = vsub.f32 %v2651, %v4178
      %v4842 = vsub.f32 %v2653, %v4178
      %v4843 = vsub.f32 %v2657, %v4181
      %v4844 = vsub.f32 %v2659, %v4181
      %v4845 = vsub.f32 %v2661, %v4184
      %v4846 = vsub.f32 %v2663, %v4184
      %v4847 = vsub.f32 %v2667, %v4187
      %v4848 = vsub.f32 %v2669, %v4187
      %v4849 = vsub.f32 %v2671, %v4190
      %v4850 = vsub.f32 %v2673, %v4190
      %v4851 = vsub.f32 %v2677, %v4193
      %v4852 = vsub.f32 %v2679, %v4193
      %v4853 = vsub.f32 %v2681, %v4196
      %v4854 = vsub.f32 %v2683, %v4196
      %v4855 = vsub.f32 %v2687, %v4199
      %v4856 = vsub.f32 %v2689, %v4199
      %v4857 = vsub.f32 %v2691, %v4202
      %v4858 = vsub.f32 %v2693, %v4202
      %v4859 = vsub.f32 %v2697, %v4205
      %v4860 = vsub.f32 %v2699, %v4205
      %v4861 = vsub.f32 %v2701, %v4208
      %v4862 = vsub.f32 %v2703, %v4208
      %v4863 = vsub.f32 %v2707, %v4211
      %v4864 = vsub.f32 %v2709, %v4211
      %v4865 = vsub.f32 %v2711, %v4214
      %v4866 = vsub.f32 %v2713, %v4214
      %v4867 = vsub.f32 %v2717, %v4217
      %v4868 = vsub.f32 %v2719, %v4217
      %v4869 = vsub.f32 %v2721, %v4220
      %v4870 = vsub.f32 %v2723, %v4220
      %v4871 = vsub.f32 %v2727, %v4223
      %v4872 = vsub.f32 %v2729, %v4223
      %v4873 = vsub.f32 %v2731, %v4226
      %v4874 = vsub.f32 %v2733, %v4226
      %v4875 = vsub.f32 %v2737, %v4229
      %v4876 = vsub.f32 %v2739, %v4229
      %v4877 = vsub.f32 %v2741, %v4232
      %v4878 = vsub.f32 %v2743, %v4232
      %v4879 = vsub.f32 %v2747, %v4235
      %v4880 = vsub.f32 %v2749, %v4235
      %v4881 = vsub.f32 %v2751, %v4238
      %v4882 = vsub.f32 %v2753, %v4238
      %v4883 = vsub.f32 %v2757, %v4241
      %v4884 = vsub.f32 %v2759, %v4241
      %v4885 = vsub.f32 %v2761, %v4244
      %v4886 = vsub.f32 %v2763, %v4244
      %v4887 = vsub.f32 %v2767, %v4247
      %v4888 = vsub.f32 %v2769, %v4247
      %v4889 = vsub.f32 %v2771, %v4250
      %v4890 = vsub.f32 %v2773, %v4250
      %v4891 = vsub.f32 %v2890, %v4253
      %v4892 = vsub.f32 %v2892, %v4253
      %v4893 = vsub.f32 %v2894, %v4256
      %v4894 = vsub.f32 %v2896, %v4256
      %v4895 = vsub.f32 %v2900, %v4259
      %v4896 = vsub.f32 %v2902, %v4259
      %v4897 = vsub.f32 %v2904, %v4262
      %v4898 = vsub.f32 %v2906, %v4262
      %v4899 = vsub.f32 %v2910, %v4265
      %v4900 = vsub.f32 %v2912, %v4265
      %v4901 = vsub.f32 %v2914, %v4268
      %v4902 = vsub.f32 %v2916, %v4268
      %v4903 = vsub.f32 %v2920, %v4271
      %v4904 = vsub.f32 %v2922, %v4271
      %v4905 = vsub.f32 %v2924, %v4274
      %v4906 = vsub.f32 %v2926, %v4274
      %v4907 = vsub.f32 %v2930, %v4277
      %v4908 = vsub.f32 %v2932, %v4277
      %v4909 = vsub.f32 %v2934, %v4280
      %v4910 = vsub.f32 %v2936, %v4280
      %v4911 = vsub.f32 %v2940, %v4283
      %v4912 = vsub.f32 %v2942, %v4283
      %v4913 = vsub.f32 %v2944, %v4286
      %v4914 = vsub.f32 %v2946, %v4286
      %v4915 = vsub.f32 %v2950, %v4289
      %v4916 = vsub.f32 %v2952, %v4289
      %v4917 = vsub.f32 %v2954, %v4292
      %v4918 = vsub.f32 %v2956, %v4292
      %v4919 = vsub.f32 %v2960, %v4295
      %v4920 = vsub.f32 %v2962, %v4295
      %v4921 = vsub.f32 %v2964, %v4298
      %v4922 = vsub.f32 %v2966, %v4298
      %v4923 = vsub.f32 %v2970, %v4301
      %v4924 = vsub.f32 %v2972, %v4301
      %v4925 = vsub.f32 %v2974, %v4304
      %v4926 = vsub.f32 %v2976, %v4304
      %v4927 = vsub.f32 %v2980, %v4307
      %v4928 = vsub.f32 %v2982, %v4307
      %v4929 = vsub.f32 %v2984, %v4310
      %v4930 = vsub.f32 %v2986, %v4310
      %v4931 = vsub.f32 %v2990, %v4313
      %v4932 = vsub.f32 %v2992, %v4313
      %v4933 = vsub.f32 %v2994, %v4316
      %v4934 = vsub.f32 %v2996, %v4316
      %v4935 = vsub.f32 %v3000, %v4319
      %v4936 = vsub.f32 %v3002, %v4319
      %v4937 = vsub.f32 %v3004, %v4322
      %v4938 = vsub.f32 %v3006, %v4322
      %v4939 = vsub.f32 %v3010, %v4325
      %v4940 = vsub.f32 %v3012, %v4325
      %v4941 = vsub.f32 %v3014, %v4328
      %v4942 = vsub.f32 %v3016, %v4328
      %v4943 = vsub.f32 %v3020, %v4331
      %v4944 = vsub.f32 %v3022, %v4331
      %v4945 = vsub.f32 %v3024, %v4334
      %v4946 = vsub.f32 %v3026, %v4334
      %v4947 = vsub.f32 %v3030, %v4337
      %v4948 = vsub.f32 %v3032, %v4337
      %v4949 = vsub.f32 %v3034, %v4340
      %v4950 = vsub.f32 %v3036, %v4340
      %v4951 = vsub.f32 %v3040, %v4343
      %v4952 = vsub.f32 %v3042, %v4343
      %v4953 = vsub.f32 %v3044, %v4346
      %v4954 = vsub.f32 %v3046, %v4346
      %v4955 = vsub.f32 %v3163, %v4349
      %v4956 = vsub.f32 %v3165, %v4349
      %v4957 = vsub.f32 %v3167, %v4352
      %v4958 = vsub.f32 %v3169, %v4352
      %v4959 = vsub.f32 %v3173, %v4355
      %v4960 = vsub.f32 %v3175, %v4355
      %v4961 = vsub.f32 %v3177, %v4358
      %v4962 = vsub.f32 %v3179, %v4358
      %v4963 = vsub.f32 %v3183, %v4361
      %v4964 = vsub.f32 %v3185, %v4361
      %v4965 = vsub.f32 %v3187, %v4364
      %v4966 = vsub.f32 %v3189, %v4364
      %v4967 = vsub.f32 %v3193, %v4367
      %v4968 = vsub.f32 %v3195, %v4367
      %v4969 = vsub.f32 %v3197, %v4370
      %v4970 = vsub.f32 %v3199, %v4370
      %v4971 = vsub.f32 %v3203, %v4373
      %v4972 = vsub.f32 %v3205, %v4373
      %v4973 = vsub.f32 %v3207, %v4376
      %v4974 = vsub.f32 %v3209, %v4376
      %v4975 = vsub.f32 %v3213, %v4379
      %v4976 = vsub.f32 %v3215, %v4379
      %v4977 = vsub.f32 %v3217, %v4382
      %v4978 = vsub.f32 %v3219, %v4382
      %v4979 = vsub.f32 %v3223, %v4385
      %v4980 = vsub.f32 %v3225, %v4385
      %v4981 = vsub.f32 %v3227, %v4388
      %v4982 = vsub.f32 %v3229, %v4388
      %v4983 = vsub.f32 %v3233, %v4391
      %v4984 = vsub.f32 %v3235, %v4391
      %v4985 = vsub.f32 %v3237, %v4394
      %v4986 = vsub.f32 %v3239, %v4394
      %v4987 = vsub.f32 %v3243, %v4397
      %v4988 = vsub.f32 %v3245, %v4397
      %v4989 = vsub.f32 %v3247, %v4400
      %v4990 = vsub.f32 %v3249, %v4400
      %v4991 = vsub.f32 %v3253, %v4403
      %v4992 = vsub.f32 %v3255, %v4403
      %v4993 = vsub.f32 %v3257, %v4406
      %v4994 = vsub.f32 %v3259, %v4406
      %v4995 = vsub.f32 %v3263, %v4409
      %v4996 = vsub.f32 %v3265, %v4409
      %v4997 = vsub.f32 %v3267, %v4412
      %v4998 = vsub.f32 %v3269, %v4412
      %v4999 = vsub.f32 %v3273, %v4415
      %v5000 = vsub.f32 %v3275, %v4415
      %v5001 = vsub.f32 %v3277, %v4418
      %v5002 = vsub.f32 %v3279, %v4418
      %v5003 = vsub.f32 %v3283, %v4421
      %v5004 = vsub.f32 %v3285, %v4421
      %v5005 = vsub.f32 %v3287, %v4424
      %v5006 = vsub.f32 %v3289, %v4424
      %v5007 = vsub.f32 %v3293, %v4427
      %v5008 = vsub.f32 %v3295, %v4427
      %v5009 = vsub.f32 %v3297, %v4430
      %v5010 = vsub.f32 %v3299, %v4430
      %v5011 = vsub.f32 %v3303, %v4433
      %v5012 = vsub.f32 %v3305, %v4433
      %v5013 = vsub.f32 %v3307, %v4436
      %v5014 = vsub.f32 %v3309, %v4436
      %v5015 = vsub.f32 %v3313, %v4439
      %v5016 = vsub.f32 %v3315, %v4439
      %v5017 = vsub.f32 %v3317, %v4442
      %v5018 = vsub.f32 %v3319, %v4442
      %v5019 = vsub.f32 %v3436, %v4445
      %v5020 = vsub.f32 %v3438, %v4445
      %v5021 = vsub.f32 %v3440, %v4448
      %v5022 = vsub.f32 %v3442, %v4448
      %v5023 = vsub.f32 %v3446, %v4451
      %v5024 = vsub.f32 %v3448, %v4451
      %v5025 = vsub.f32 %v3450, %v4454
      %v5026 = vsub.f32 %v3452, %v4454
      %v5027 = vsub.f32 %v3456, %v4457
      %v5028 = vsub.f32 %v3458, %v4457
      %v5029 = vsub.f32 %v3460, %v4460
      %v5030 = vsub.f32 %v3462, %v4460
      %v5031 = vsub.f32 %v3466, %v4463
      %v5032 = vsub.f32 %v3468, %v4463
      %v5033 = vsub.f32 %v3470, %v4466
      %v5034 = vsub.f32 %v3472, %v4466
      %v5035 = vsub.f32 %v3476, %v4469
      %v5036 = vsub.f32 %v3478, %v4469
      %v5037 = vsub.f32 %v3480, %v4472
      %v5038 = vsub.f32 %v3482, %v4472
      %v5039 = vsub.f32 %v3486, %v4475
      %v5040 = vsub.f32 %v3488, %v4475
      %v5041 = vsub.f32 %v3490, %v4478
      %v5042 = vsub.f32 %v3492, %v4478
      %v5043 = vsub.f32 %v3496, %v4481
      %v5044 = vsub.f32 %v3498, %v4481
      %v5045 = vsub.f32 %v3500, %v4484
      %v5046 = vsub.f32 %v3502, %v4484
      %v5047 = vsub.f32 %v3506, %v4487
      %v5048 = vsub.f32 %v3508, %v4487
      %v5049 = vsub.f32 %v3510, %v4490
      %v5050 = vsub.f32 %v3512, %v4490
      %v5051 = vsub.f32 %v3516, %v4493
      %v5052 = vsub.f32 %v3518, %v4493
      %v5053 = vsub.f32 %v3520, %v4496
      %v5054 = vsub.f32 %v3522, %v4496
      %v5055 = vsub.f32 %v3526, %v4499
      %v5056 = vsub.f32 %v3528, %v4499
      %v5057 = vsub.f32 %v3530, %v4502
      %v5058 = vsub.f32 %v3532, %v4502
      %v5059 = vsub.f32 %v3536, %v4505
      %v5060 = vsub.f32 %v3538, %v4505
      %v5061 = vsub.f32 %v3540, %v4508
      %v5062 = vsub.f32 %v3542, %v4508
      %v5063 = vsub.f32 %v3546, %v4511
      %v5064 = vsub.f32 %v3548, %v4511
      %v5065 = vsub.f32 %v3550, %v4514
      %v5066 = vsub.f32 %v3552, %v4514
      %v5067 = vsub.f32 %v3556, %v4517
      %v5068 = vsub.f32 %v3558, %v4517
      %v5069 = vsub.f32 %v3560, %v4520
      %v5070 = vsub.f32 %v3562, %v4520
      %v5071 = vsub.f32 %v3566, %v4523
      %v5072 = vsub.f32 %v3568, %v4523
      %v5073 = vsub.f32 %v3570, %v4526
      %v5074 = vsub.f32 %v3572, %v4526
      %v5075 = vsub.f32 %v3576, %v4529
      %v5076 = vsub.f32 %v3578, %v4529
      %v5077 = vsub.f32 %v3580, %v4532
      %v5078 = vsub.f32 %v3582, %v4532
      %v5079 = vsub.f32 %v3586, %v4535
      %v5080 = vsub.f32 %v3588, %v4535
      %v5081 = vsub.f32 %v3590, %v4538
      %v5082 = vsub.f32 %v3592, %v4538
      %v5083 = vsub.f32 %v3709, %v4541
      %v5084 = vsub.f32 %v3711, %v4541
      %v5085 = vsub.f32 %v3713, %v4544
      %v5086 = vsub.f32 %v3715, %v4544
      %v5087 = vsub.f32 %v3719, %v4547
      %v5088 = vsub.f32 %v3721, %v4547
      %v5089 = vsub.f32 %v3723, %v4550
      %v5090 = vsub.f32 %v3725, %v4550
      %v5091 = vsub.f32 %v3729, %v4553
      %v5092 = vsub.f32 %v3731, %v4553
      %v5093 = vsub.f32 %v3733, %v4556
      %v5094 = vsub.f32 %v3735, %v4556
      %v5095 = vsub.f32 %v3739, %v4559
      %v5096 = vsub.f32 %v3741, %v4559
      %v5097 = vsub.f32 %v3743, %v4562
      %v5098 = vsub.f32 %v3745, %v4562
      %v5099 = vsub.f32 %v3749, %v4565
      %v5100 = vsub.f32 %v3751, %v4565
      %v5101 = vsub.f32 %v3753, %v4568
      %v5102 = vsub.f32 %v3755, %v4568
      %v5103 = vsub.f32 %v3759, %v4571
      %v5104 = vsub.f32 %v3761, %v4571
      %v5105 = vsub.f32 %v3763, %v4574
      %v5106 = vsub.f32 %v3765, %v4574
      %v5107 = vsub.f32 %v3769, %v4577
      %v5108 = vsub.f32 %v3771, %v4577
      %v5109 = vsub.f32 %v3773, %v4580
      %v5110 = vsub.f32 %v3775, %v4580
      %v5111 = vsub.f32 %v3779, %v4583
      %v5112 = vsub.f32 %v3781, %v4583
      %v5113 = vsub.f32 %v3783, %v4586
      %v5114 = vsub.f32 %v3785, %v4586
      %v5115 = vsub.f32 %v3789, %v4589
      %v5116 = vsub.f32 %v3791, %v4589
      %v5117 = vsub.f32 %v3793, %v4592
      %v5118 = vsub.f32 %v3795, %v4592
      %v5119 = vsub.f32 %v3799, %v4595
      %v5120 = vsub.f32 %v3801, %v4595
      %v5121 = vsub.f32 %v3803, %v4598
      %v5122 = vsub.f32 %v3805, %v4598
      %v5123 = vsub.f32 %v3809, %v4601
      %v5124 = vsub.f32 %v3811, %v4601
      %v5125 = vsub.f32 %v3813, %v4604
      %v5126 = vsub.f32 %v3815, %v4604
      %v5127 = vsub.f32 %v3819, %v4607
      %v5128 = vsub.f32 %v3821, %v4607
      %v5129 = vsub.f32 %v3823, %v4610
      %v5130 = vsub.f32 %v3825, %v4610
      %v5131 = vsub.f32 %v3829, %v4613
      %v5132 = vsub.f32 %v3831, %v4613
      %v5133 = vsub.f32 %v3833, %v4616
      %v5134 = vsub.f32 %v3835, %v4616
      %v5135 = vsub.f32 %v3839, %v4619
      %v5136 = vsub.f32 %v3841, %v4619
      %v5137 = vsub.f32 %v3843, %v4622
      %v5138 = vsub.f32 %v3845, %v4622
      %v5139 = vsub.f32 %v3849, %v4625
      %v5140 = vsub.f32 %v3851, %v4625
      %v5141 = vsub.f32 %v3853, %v4628
      %v5142 = vsub.f32 %v3855, %v4628
      %v5143 = vsub.f32 %v3859, %v4631
      %v5144 = vsub.f32 %v3861, %v4631
      %v5145 = vsub.f32 %v3863, %v4634
      %v5146 = vsub.f32 %v3865, %v4634
      %v5147 = vpack.c.bf16 %v4637, %v4635
      %v5148 = vpack.c.bf16 %v4638, %v4636
      %v5149 = vpack.c.bf16 %v4641, %v4639
      %v5150 = vpack.c.bf16 %v4642, %v4640
      %v5151 = vpack.c.bf16 %v4645, %v4643
      %v5152 = vpack.c.bf16 %v4646, %v4644
      %v5153 = vpack.c.bf16 %v4649, %v4647
      %v5154 = vpack.c.bf16 %v4650, %v4648
      %v5155 = vpack.c.bf16 %v4653, %v4651
      %v5156 = vpack.c.bf16 %v4654, %v4652
      %v5157 = vpack.c.bf16 %v4657, %v4655
      %v5158 = vpack.c.bf16 %v4658, %v4656
      %v5159 = vpack.c.bf16 %v4661, %v4659
      %v5160 = vpack.c.bf16 %v4662, %v4660
      %v5161 = vpack.c.bf16 %v4665, %v4663
      %v5162 = vpack.c.bf16 %v4666, %v4664
      %v5163 = vpack.c.bf16 %v4669, %v4667
      %v5164 = vpack.c.bf16 %v4670, %v4668
      %v5165 = vpack.c.bf16 %v4673, %v4671
      %v5166 = vpack.c.bf16 %v4674, %v4672
      %v5167 = vpack.c.bf16 %v4677, %v4675
      %v5168 = vpack.c.bf16 %v4678, %v4676
      %v5169 = vpack.c.bf16 %v4681, %v4679
      %v5170 = vpack.c.bf16 %v4682, %v4680
      %v5171 = vpack.c.bf16 %v4685, %v4683
      %v5172 = vpack.c.bf16 %v4686, %v4684
      %v5173 = vpack.c.bf16 %v4689, %v4687
      %v5174 = vpack.c.bf16 %v4690, %v4688
      %v5175 = vpack.c.bf16 %v4693, %v4691
      %v5176 = vpack.c.bf16 %v4694, %v4692
      %v5177 = vpack.c.bf16 %v4697, %v4695
      %v5178 = vpack.c.bf16 %v4698, %v4696
      %v5179 = vpack.c.bf16 %v4701, %v4699
      %v5180 = vpack.c.bf16 %v4702, %v4700
      %v5181 = vpack.c.bf16 %v4705, %v4703
      %v5182 = vpack.c.bf16 %v4706, %v4704
      %v5183 = vpack.c.bf16 %v4709, %v4707
      %v5184 = vpack.c.bf16 %v4710, %v4708
      %v5185 = vpack.c.bf16 %v4713, %v4711
      %v5186 = vpack.c.bf16 %v4714, %v4712
      %v5187 = vpack.c.bf16 %v4717, %v4715
      %v5188 = vpack.c.bf16 %v4718, %v4716
      %v5189 = vpack.c.bf16 %v4721, %v4719
      %v5190 = vpack.c.bf16 %v4722, %v4720
      %v5191 = vpack.c.bf16 %v4725, %v4723
      %v5192 = vpack.c.bf16 %v4726, %v4724
      %v5193 = vpack.c.bf16 %v4729, %v4727
      %v5194 = vpack.c.bf16 %v4730, %v4728
      %v5195 = vpack.c.bf16 %v4733, %v4731
      %v5196 = vpack.c.bf16 %v4734, %v4732
      %v5197 = vpack.c.bf16 %v4737, %v4735
      %v5198 = vpack.c.bf16 %v4738, %v4736
      %v5199 = vpack.c.bf16 %v4741, %v4739
      %v5200 = vpack.c.bf16 %v4742, %v4740
      %v5201 = vpack.c.bf16 %v4745, %v4743
      %v5202 = vpack.c.bf16 %v4746, %v4744
      %v5203 = vpack.c.bf16 %v4749, %v4747
      %v5204 = vpack.c.bf16 %v4750, %v4748
      %v5205 = vpack.c.bf16 %v4753, %v4751
      %v5206 = vpack.c.bf16 %v4754, %v4752
      %v5207 = vpack.c.bf16 %v4757, %v4755
      %v5208 = vpack.c.bf16 %v4758, %v4756
      %v5209 = vpack.c.bf16 %v4761, %v4759
      %v5210 = vpack.c.bf16 %v4762, %v4760
      %v5211 = vpack.c.bf16 %v4765, %v4763
      %v5212 = vpack.c.bf16 %v4766, %v4764
      %v5213 = vpack.c.bf16 %v4769, %v4767
      %v5214 = vpack.c.bf16 %v4770, %v4768
      %v5215 = vpack.c.bf16 %v4773, %v4771
      %v5216 = vpack.c.bf16 %v4774, %v4772
      %v5217 = vpack.c.bf16 %v4777, %v4775
      %v5218 = vpack.c.bf16 %v4778, %v4776
      %v5219 = vpack.c.bf16 %v4781, %v4779
      %v5220 = vpack.c.bf16 %v4782, %v4780
      %v5221 = vpack.c.bf16 %v4785, %v4783
      %v5222 = vpack.c.bf16 %v4786, %v4784
      %v5223 = vpack.c.bf16 %v4789, %v4787
      %v5224 = vpack.c.bf16 %v4790, %v4788
      %v5225 = vpack.c.bf16 %v4793, %v4791
      %v5226 = vpack.c.bf16 %v4794, %v4792
      %v5227 = vpack.c.bf16 %v4797, %v4795
      %v5228 = vpack.c.bf16 %v4798, %v4796
      %v5229 = vpack.c.bf16 %v4801, %v4799
      %v5230 = vpack.c.bf16 %v4802, %v4800
      %v5231 = vpack.c.bf16 %v4805, %v4803
      %v5232 = vpack.c.bf16 %v4806, %v4804
      %v5233 = vpack.c.bf16 %v4809, %v4807
      %v5234 = vpack.c.bf16 %v4810, %v4808
      %v5235 = vpack.c.bf16 %v4813, %v4811
      %v5236 = vpack.c.bf16 %v4814, %v4812
      %v5237 = vpack.c.bf16 %v4817, %v4815
      %v5238 = vpack.c.bf16 %v4818, %v4816
      %v5239 = vpack.c.bf16 %v4821, %v4819
      %v5240 = vpack.c.bf16 %v4822, %v4820
      %v5241 = vpack.c.bf16 %v4825, %v4823
      %v5242 = vpack.c.bf16 %v4826, %v4824
      %v5243 = vpack.c.bf16 %v4829, %v4827
      %v5244 = vpack.c.bf16 %v4830, %v4828
      %v5245 = vpack.c.bf16 %v4833, %v4831
      %v5246 = vpack.c.bf16 %v4834, %v4832
      %v5247 = vpack.c.bf16 %v4837, %v4835
      %v5248 = vpack.c.bf16 %v4838, %v4836
      %v5249 = vpack.c.bf16 %v4841, %v4839
      %v5250 = vpack.c.bf16 %v4842, %v4840
      %v5251 = vpack.c.bf16 %v4845, %v4843
      %v5252 = vpack.c.bf16 %v4846, %v4844
      %v5253 = vpack.c.bf16 %v4849, %v4847
      %v5254 = vpack.c.bf16 %v4850, %v4848
      %v5255 = vpack.c.bf16 %v4853, %v4851
      %v5256 = vpack.c.bf16 %v4854, %v4852
      %v5257 = vpack.c.bf16 %v4857, %v4855
      %v5258 = vpack.c.bf16 %v4858, %v4856
      %v5259 = vpack.c.bf16 %v4861, %v4859
      %v5260 = vpack.c.bf16 %v4862, %v4860
      %v5261 = vpack.c.bf16 %v4865, %v4863
      %v5262 = vpack.c.bf16 %v4866, %v4864
      %v5263 = vpack.c.bf16 %v4869, %v4867
      %v5264 = vpack.c.bf16 %v4870, %v4868
      %v5265 = vpack.c.bf16 %v4873, %v4871
      %v5266 = vpack.c.bf16 %v4874, %v4872
      %v5267 = vpack.c.bf16 %v4877, %v4875
      %v5268 = vpack.c.bf16 %v4878, %v4876
      %v5269 = vpack.c.bf16 %v4881, %v4879
      %v5270 = vpack.c.bf16 %v4882, %v4880
      %v5271 = vpack.c.bf16 %v4885, %v4883
      %v5272 = vpack.c.bf16 %v4886, %v4884
      %v5273 = vpack.c.bf16 %v4889, %v4887
      %v5274 = vpack.c.bf16 %v4890, %v4888
      %v5275 = vpack.c.bf16 %v4893, %v4891
      %v5276 = vpack.c.bf16 %v4894, %v4892
      %v5277 = vpack.c.bf16 %v4897, %v4895
      %v5278 = vpack.c.bf16 %v4898, %v4896
      %v5279 = vpack.c.bf16 %v4901, %v4899
      %v5280 = vpack.c.bf16 %v4902, %v4900
      %v5281 = vpack.c.bf16 %v4905, %v4903
      %v5282 = vpack.c.bf16 %v4906, %v4904
      %v5283 = vpack.c.bf16 %v4909, %v4907
      %v5284 = vpack.c.bf16 %v4910, %v4908
      %v5285 = vpack.c.bf16 %v4913, %v4911
      %v5286 = vpack.c.bf16 %v4914, %v4912
      %v5287 = vpack.c.bf16 %v4917, %v4915
      %v5288 = vpack.c.bf16 %v4918, %v4916
      %v5289 = vpack.c.bf16 %v4921, %v4919
      %v5290 = vpack.c.bf16 %v4922, %v4920
      %v5291 = vpack.c.bf16 %v4925, %v4923
      %v5292 = vpack.c.bf16 %v4926, %v4924
      %v5293 = vpack.c.bf16 %v4929, %v4927
      %v5294 = vpack.c.bf16 %v4930, %v4928
      %v5295 = vpack.c.bf16 %v4933, %v4931
      %v5296 = vpack.c.bf16 %v4934, %v4932
      %v5297 = vpack.c.bf16 %v4937, %v4935
      %v5298 = vpack.c.bf16 %v4938, %v4936
      %v5299 = vpack.c.bf16 %v4941, %v4939
      %v5300 = vpack.c.bf16 %v4942, %v4940
      %v5301 = vpack.c.bf16 %v4945, %v4943
      %v5302 = vpack.c.bf16 %v4946, %v4944
      %v5303 = vpack.c.bf16 %v4949, %v4947
      %v5304 = vpack.c.bf16 %v4950, %v4948
      %v5305 = vpack.c.bf16 %v4953, %v4951
      %v5306 = vpack.c.bf16 %v4954, %v4952
      %v5307 = vpack.c.bf16 %v4957, %v4955
      %v5308 = vpack.c.bf16 %v4958, %v4956
      %v5309 = vpack.c.bf16 %v4961, %v4959
      %v5310 = vpack.c.bf16 %v4962, %v4960
      %v5311 = vpack.c.bf16 %v4965, %v4963
      %v5312 = vpack.c.bf16 %v4966, %v4964
      %v5313 = vpack.c.bf16 %v4969, %v4967
      %v5314 = vpack.c.bf16 %v4970, %v4968
      %v5315 = vpack.c.bf16 %v4973, %v4971
      %v5316 = vpack.c.bf16 %v4974, %v4972
      %v5317 = vpack.c.bf16 %v4977, %v4975
      %v5318 = vpack.c.bf16 %v4978, %v4976
      %v5319 = vpack.c.bf16 %v4981, %v4979
      %v5320 = vpack.c.bf16 %v4982, %v4980
      %v5321 = vpack.c.bf16 %v4985, %v4983
      %v5322 = vpack.c.bf16 %v4986, %v4984
      %v5323 = vpack.c.bf16 %v4989, %v4987
      %v5324 = vpack.c.bf16 %v4990, %v4988
      %v5325 = vpack.c.bf16 %v4993, %v4991
      %v5326 = vpack.c.bf16 %v4994, %v4992
      %v5327 = vpack.c.bf16 %v4997, %v4995
      %v5328 = vpack.c.bf16 %v4998, %v4996
      %v5329 = vpack.c.bf16 %v5001, %v4999
      %v5330 = vpack.c.bf16 %v5002, %v5000
      %v5331 = vpack.c.bf16 %v5005, %v5003
      %v5332 = vpack.c.bf16 %v5006, %v5004
      %v5333 = vpack.c.bf16 %v5009, %v5007
      %v5334 = vpack.c.bf16 %v5010, %v5008
      %v5335 = vpack.c.bf16 %v5013, %v5011
      %v5336 = vpack.c.bf16 %v5014, %v5012
      %v5337 = vpack.c.bf16 %v5017, %v5015
      %v5338 = vpack.c.bf16 %v5018, %v5016
      %v5339 = vpack.c.bf16 %v5021, %v5019
      %v5340 = vpack.c.bf16 %v5022, %v5020
      %v5341 = vpack.c.bf16 %v5025, %v5023
      %v5342 = vpack.c.bf16 %v5026, %v5024
      %v5343 = vpack.c.bf16 %v5029, %v5027
      %v5344 = vpack.c.bf16 %v5030, %v5028
      %v5345 = vpack.c.bf16 %v5033, %v5031
      %v5346 = vpack.c.bf16 %v5034, %v5032
      %v5347 = vpack.c.bf16 %v5037, %v5035
      %v5348 = vpack.c.bf16 %v5038, %v5036
      %v5349 = vpack.c.bf16 %v5041, %v5039
      %v5350 = vpack.c.bf16 %v5042, %v5040
      %v5351 = vpack.c.bf16 %v5045, %v5043
      %v5352 = vpack.c.bf16 %v5046, %v5044
      %v5353 = vpack.c.bf16 %v5049, %v5047
      %v5354 = vpack.c.bf16 %v5050, %v5048
      %v5355 = vpack.c.bf16 %v5053, %v5051
      %v5356 = vpack.c.bf16 %v5054, %v5052
      %v5357 = vpack.c.bf16 %v5057, %v5055
      %v5358 = vpack.c.bf16 %v5058, %v5056
      %v5359 = vpack.c.bf16 %v5061, %v5059
      %v5360 = vpack.c.bf16 %v5062, %v5060
      %v5361 = vpack.c.bf16 %v5065, %v5063
      %v5362 = vpack.c.bf16 %v5066, %v5064
      %v5363 = vpack.c.bf16 %v5069, %v5067
      %v5364 = vpack.c.bf16 %v5070, %v5068
      %v5365 = vpack.c.bf16 %v5073, %v5071
      %v5366 = vpack.c.bf16 %v5074, %v5072
      %v5367 = vpack.c.bf16 %v5077, %v5075
      %v5368 = vpack.c.bf16 %v5078, %v5076
      %v5369 = vpack.c.bf16 %v5081, %v5079
      %v5370 = vpack.c.bf16 %v5082, %v5080
      %v5371 = vpack.c.bf16 %v5085, %v5083
      %v5372 = vpack.c.bf16 %v5086, %v5084
      %v5373 = vpack.c.bf16 %v5089, %v5087
      %v5374 = vpack.c.bf16 %v5090, %v5088
      %v5375 = vpack.c.bf16 %v5093, %v5091
      %v5376 = vpack.c.bf16 %v5094, %v5092
      %v5377 = vpack.c.bf16 %v5097, %v5095
      %v5378 = vpack.c.bf16 %v5098, %v5096
      %v5379 = vpack.c.bf16 %v5101, %v5099
      %v5380 = vpack.c.bf16 %v5102, %v5100
      %v5381 = vpack.c.bf16 %v5105, %v5103
      %v5382 = vpack.c.bf16 %v5106, %v5104
      %v5383 = vpack.c.bf16 %v5109, %v5107
      %v5384 = vpack.c.bf16 %v5110, %v5108
      %v5385 = vpack.c.bf16 %v5113, %v5111
      %v5386 = vpack.c.bf16 %v5114, %v5112
      %v5387 = vpack.c.bf16 %v5117, %v5115
      %v5388 = vpack.c.bf16 %v5118, %v5116
      %v5389 = vpack.c.bf16 %v5121, %v5119
      %v5390 = vpack.c.bf16 %v5122, %v5120
      %v5391 = vpack.c.bf16 %v5125, %v5123
      %v5392 = vpack.c.bf16 %v5126, %v5124
      %v5393 = vpack.c.bf16 %v5129, %v5127
      %v5394 = vpack.c.bf16 %v5130, %v5128
      %v5395 = vpack.c.bf16 %v5133, %v5131
      %v5396 = vpack.c.bf16 %v5134, %v5132
      %v5397 = vpack.c.bf16 %v5137, %v5135
      %v5398 = vpack.c.bf16 %v5138, %v5136
      %v5399 = vpack.c.bf16 %v5141, %v5139
      %v5400 = vpack.c.bf16 %v5142, %v5140
      %v5401 = vpack.c.bf16 %v5145, %v5143
      %v5402 = vpack.c.bf16 %v5146, %v5144
      %v5404 = vmul.bf16 %v5147, 1069105081
      %v5405 = vpow.bf16.pop %v5404
      %v5407 = vmul.bf16 %v5148, 1069105081
      %v5408 = vpow.bf16.pop %v5407
      %v5410 = vmul.bf16 %v5149, 1069105081
      %v5411 = vpow.bf16.pop %v5410
      %v5413 = vmul.bf16 %v5150, 1069105081
      %v5414 = vpow.bf16.pop %v5413
      %v5416 = vmul.bf16 %v5151, 1069105081
      %v5417 = vpow.bf16.pop %v5416
      %v5419 = vmul.bf16 %v5152, 1069105081
      %v5420 = vpow.bf16.pop %v5419
      %v5422 = vmul.bf16 %v5153, 1069105081
      %v5423 = vpow.bf16.pop %v5422
      %v5425 = vmul.bf16 %v5154, 1069105081
      %v5426 = vpow.bf16.pop %v5425
      %v5428 = vmul.bf16 %v5155, 1069105081
      %v5429 = vpow.bf16.pop %v5428
      %v5431 = vmul.bf16 %v5156, 1069105081
      %v5432 = vpow.bf16.pop %v5431
      %v5434 = vmul.bf16 %v5157, 1069105081
      %v5435 = vpow.bf16.pop %v5434
      %v5437 = vmul.bf16 %v5158, 1069105081
      %v5438 = vpow.bf16.pop %v5437
      %v5440 = vmul.bf16 %v5159, 1069105081
      %v5441 = vpow.bf16.pop %v5440
      %v5443 = vmul.bf16 %v5160, 1069105081
      %v5444 = vpow.bf16.pop %v5443
      %v5446 = vmul.bf16 %v5161, 1069105081
      %v5447 = vpow.bf16.pop %v5446
      %v5449 = vmul.bf16 %v5162, 1069105081
      %v5450 = vpow.bf16.pop %v5449
      %v5452 = vmul.bf16 %v5163, 1069105081
      %v5453 = vpow.bf16.pop %v5452
      %v5455 = vmul.bf16 %v5164, 1069105081
      %v5456 = vpow.bf16.pop %v5455
      %v5458 = vmul.bf16 %v5165, 1069105081
      %v5459 = vpow.bf16.pop %v5458
      %v5461 = vmul.bf16 %v5166, 1069105081
      %v5462 = vpow.bf16.pop %v5461
      %v5464 = vmul.bf16 %v5167, 1069105081
      %v5465 = vpow.bf16.pop %v5464
      %v5467 = vmul.bf16 %v5168, 1069105081
      %v5468 = vpow.bf16.pop %v5467
      %v5470 = vmul.bf16 %v5169, 1069105081
      %v5471 = vpow.bf16.pop %v5470
      %v5473 = vmul.bf16 %v5170, 1069105081
      %v5474 = vpow.bf16.pop %v5473
      %v5476 = vmul.bf16 %v5171, 1069105081
      %v5477 = vpow.bf16.pop %v5476
      %v5479 = vmul.bf16 %v5172, 1069105081
      %v5480 = vpow.bf16.pop %v5479
      %v5482 = vmul.bf16 %v5173, 1069105081
      %v5483 = vpow.bf16.pop %v5482
      %v5485 = vmul.bf16 %v5174, 1069105081
      %v5486 = vpow.bf16.pop %v5485
      %v5488 = vmul.bf16 %v5175, 1069105081
      %v5489 = vpow.bf16.pop %v5488
      %v5491 = vmul.bf16 %v5176, 1069105081
      %v5492 = vpow.bf16.pop %v5491
      %v5494 = vmul.bf16 %v5177, 1069105081
      %v5495 = vpow.bf16.pop %v5494
      %v5497 = vmul.bf16 %v5178, 1069105081
      %v5498 = vpow.bf16.pop %v5497
      %v5500 = vmul.bf16 %v5179, 1069105081
      %v5501 = vpow.bf16.pop %v5500
      %v5503 = vmul.bf16 %v5180, 1069105081
      %v5504 = vpow.bf16.pop %v5503
      %v5506 = vmul.bf16 %v5181, 1069105081
      %v5507 = vpow.bf16.pop %v5506
      %v5509 = vmul.bf16 %v5182, 1069105081
      %v5510 = vpow.bf16.pop %v5509
      %v5512 = vmul.bf16 %v5183, 1069105081
      %v5513 = vpow.bf16.pop %v5512
      %v5515 = vmul.bf16 %v5184, 1069105081
      %v5516 = vpow.bf16.pop %v5515
      %v5518 = vmul.bf16 %v5185, 1069105081
      %v5519 = vpow.bf16.pop %v5518
      %v5521 = vmul.bf16 %v5186, 1069105081
      %v5522 = vpow.bf16.pop %v5521
      %v5524 = vmul.bf16 %v5187, 1069105081
      %v5525 = vpow.bf16.pop %v5524
      %v5527 = vmul.bf16 %v5188, 1069105081
      %v5528 = vpow.bf16.pop %v5527
      %v5530 = vmul.bf16 %v5189, 1069105081
      %v5531 = vpow.bf16.pop %v5530
      %v5533 = vmul.bf16 %v5190, 1069105081
      %v5534 = vpow.bf16.pop %v5533
      %v5536 = vmul.bf16 %v5191, 1069105081
      %v5537 = vpow.bf16.pop %v5536
      %v5539 = vmul.bf16 %v5192, 1069105081
      %v5540 = vpow.bf16.pop %v5539
      %v5542 = vmul.bf16 %v5193, 1069105081
      %v5543 = vpow.bf16.pop %v5542
      %v5545 = vmul.bf16 %v5194, 1069105081
      %v5546 = vpow.bf16.pop %v5545
      %v5548 = vmul.bf16 %v5195, 1069105081
      %v5549 = vpow.bf16.pop %v5548
      %v5551 = vmul.bf16 %v5196, 1069105081
      %v5552 = vpow.bf16.pop %v5551
      %v5554 = vmul.bf16 %v5197, 1069105081
      %v5555 = vpow.bf16.pop %v5554
      %v5557 = vmul.bf16 %v5198, 1069105081
      %v5558 = vpow.bf16.pop %v5557
      %v5560 = vmul.bf16 %v5199, 1069105081
      %v5561 = vpow.bf16.pop %v5560
      %v5563 = vmul.bf16 %v5200, 1069105081
      %v5564 = vpow.bf16.pop %v5563
      %v5566 = vmul.bf16 %v5201, 1069105081
      %v5567 = vpow.bf16.pop %v5566
      %v5569 = vmul.bf16 %v5202, 1069105081
      %v5570 = vpow.bf16.pop %v5569
      %v5572 = vmul.bf16 %v5203, 1069105081
      %v5573 = vpow.bf16.pop %v5572
      %v5575 = vmul.bf16 %v5204, 1069105081
      %v5576 = vpow.bf16.pop %v5575
      %v5578 = vmul.bf16 %v5205, 1069105081
      %v5579 = vpow.bf16.pop %v5578
      %v5581 = vmul.bf16 %v5206, 1069105081
      %v5582 = vpow.bf16.pop %v5581
      %v5584 = vmul.bf16 %v5207, 1069105081
      %v5585 = vpow.bf16.pop %v5584
      %v5587 = vmul.bf16 %v5208, 1069105081
      %v5588 = vpow.bf16.pop %v5587
      %v5590 = vmul.bf16 %v5209, 1069105081
      %v5591 = vpow.bf16.pop %v5590
      %v5593 = vmul.bf16 %v5210, 1069105081
      %v5594 = vpow.bf16.pop %v5593
      %v5596 = vmul.bf16 %v5211, 1069105081
      %v5597 = vpow.bf16.pop %v5596
      %v5599 = vmul.bf16 %v5212, 1069105081
      %v5600 = vpow.bf16.pop %v5599
      %v5602 = vmul.bf16 %v5213, 1069105081
      %v5603 = vpow.bf16.pop %v5602
      %v5605 = vmul.bf16 %v5214, 1069105081
      %v5606 = vpow.bf16.pop %v5605
      %v5608 = vmul.bf16 %v5215, 1069105081
      %v5609 = vpow.bf16.pop %v5608
      %v5611 = vmul.bf16 %v5216, 1069105081
      %v5612 = vpow.bf16.pop %v5611
      %v5614 = vmul.bf16 %v5217, 1069105081
      %v5615 = vpow.bf16.pop %v5614
      %v5617 = vmul.bf16 %v5218, 1069105081
      %v5618 = vpow.bf16.pop %v5617
      %v5620 = vmul.bf16 %v5219, 1069105081
      %v5621 = vpow.bf16.pop %v5620
      %v5623 = vmul.bf16 %v5220, 1069105081
      %v5624 = vpow.bf16.pop %v5623
      %v5626 = vmul.bf16 %v5221, 1069105081
      %v5627 = vpow.bf16.pop %v5626
      %v5629 = vmul.bf16 %v5222, 1069105081
      %v5630 = vpow.bf16.pop %v5629
      %v5632 = vmul.bf16 %v5223, 1069105081
      %v5633 = vpow.bf16.pop %v5632
      %v5635 = vmul.bf16 %v5224, 1069105081
      %v5636 = vpow.bf16.pop %v5635
      %v5638 = vmul.bf16 %v5225, 1069105081
      %v5639 = vpow.bf16.pop %v5638
      %v5641 = vmul.bf16 %v5226, 1069105081
      %v5642 = vpow.bf16.pop %v5641
      %v5644 = vmul.bf16 %v5227, 1069105081
      %v5645 = vpow.bf16.pop %v5644
      %v5647 = vmul.bf16 %v5228, 1069105081
      %v5648 = vpow.bf16.pop %v5647
      %v5650 = vmul.bf16 %v5229, 1069105081
      %v5651 = vpow.bf16.pop %v5650
      %v5653 = vmul.bf16 %v5230, 1069105081
      %v5654 = vpow.bf16.pop %v5653
      %v5656 = vmul.bf16 %v5231, 1069105081
      %v5657 = vpow.bf16.pop %v5656
      %v5659 = vmul.bf16 %v5232, 1069105081
      %v5660 = vpow.bf16.pop %v5659
      %v5662 = vmul.bf16 %v5233, 1069105081
      %v5663 = vpow.bf16.pop %v5662
      %v5665 = vmul.bf16 %v5234, 1069105081
      %v5666 = vpow.bf16.pop %v5665
      %v5668 = vmul.bf16 %v5235, 1069105081
      %v5669 = vpow.bf16.pop %v5668
      %v5671 = vmul.bf16 %v5236, 1069105081
      %v5672 = vpow.bf16.pop %v5671
      %v5674 = vmul.bf16 %v5237, 1069105081
      %v5675 = vpow.bf16.pop %v5674
      %v5677 = vmul.bf16 %v5238, 1069105081
      %v5678 = vpow.bf16.pop %v5677
      %v5680 = vmul.bf16 %v5239, 1069105081
      %v5681 = vpow.bf16.pop %v5680
      %v5683 = vmul.bf16 %v5240, 1069105081
      %v5684 = vpow.bf16.pop %v5683
      %v5686 = vmul.bf16 %v5241, 1069105081
      %v5687 = vpow.bf16.pop %v5686
      %v5689 = vmul.bf16 %v5242, 1069105081
      %v5690 = vpow.bf16.pop %v5689
      %v5692 = vmul.bf16 %v5243, 1069105081
      %v5693 = vpow.bf16.pop %v5692
      %v5695 = vmul.bf16 %v5244, 1069105081
      %v5696 = vpow.bf16.pop %v5695
      %v5698 = vmul.bf16 %v5245, 1069105081
      %v5699 = vpow.bf16.pop %v5698
      %v5701 = vmul.bf16 %v5246, 1069105081
      %v5702 = vpow.bf16.pop %v5701
      %v5704 = vmul.bf16 %v5247, 1069105081
      %v5705 = vpow.bf16.pop %v5704
      %v5707 = vmul.bf16 %v5248, 1069105081
      %v5708 = vpow.bf16.pop %v5707
      %v5710 = vmul.bf16 %v5249, 1069105081
      %v5711 = vpow.bf16.pop %v5710
      %v5713 = vmul.bf16 %v5250, 1069105081
      %v5714 = vpow.bf16.pop %v5713
      %v5716 = vmul.bf16 %v5251, 1069105081
      %v5717 = vpow.bf16.pop %v5716
      %v5719 = vmul.bf16 %v5252, 1069105081
      %v5720 = vpow.bf16.pop %v5719
      %v5722 = vmul.bf16 %v5253, 1069105081
      %v5723 = vpow.bf16.pop %v5722
      %v5725 = vmul.bf16 %v5254, 1069105081
      %v5726 = vpow.bf16.pop %v5725
      %v5728 = vmul.bf16 %v5255, 1069105081
      %v5729 = vpow.bf16.pop %v5728
      %v5731 = vmul.bf16 %v5256, 1069105081
      %v5732 = vpow.bf16.pop %v5731
      %v5734 = vmul.bf16 %v5257, 1069105081
      %v5735 = vpow.bf16.pop %v5734
      %v5737 = vmul.bf16 %v5258, 1069105081
      %v5738 = vpow.bf16.pop %v5737
      %v5740 = vmul.bf16 %v5259, 1069105081
      %v5741 = vpow.bf16.pop %v5740
      %v5743 = vmul.bf16 %v5260, 1069105081
      %v5744 = vpow.bf16.pop %v5743
      %v5746 = vmul.bf16 %v5261, 1069105081
      %v5747 = vpow.bf16.pop %v5746
      %v5749 = vmul.bf16 %v5262, 1069105081
      %v5750 = vpow.bf16.pop %v5749
      %v5752 = vmul.bf16 %v5263, 1069105081
      %v5753 = vpow.bf16.pop %v5752
      %v5755 = vmul.bf16 %v5264, 1069105081
      %v5756 = vpow.bf16.pop %v5755
      %v5758 = vmul.bf16 %v5265, 1069105081
      %v5759 = vpow.bf16.pop %v5758
      %v5761 = vmul.bf16 %v5266, 1069105081
      %v5762 = vpow.bf16.pop %v5761
      %v5764 = vmul.bf16 %v5267, 1069105081
      %v5765 = vpow.bf16.pop %v5764
      %v5767 = vmul.bf16 %v5268, 1069105081
      %v5768 = vpow.bf16.pop %v5767
      %v5770 = vmul.bf16 %v5269, 1069105081
      %v5771 = vpow.bf16.pop %v5770
      %v5773 = vmul.bf16 %v5270, 1069105081
      %v5774 = vpow.bf16.pop %v5773
      %v5776 = vmul.bf16 %v5271, 1069105081
      %v5777 = vpow.bf16.pop %v5776
      %v5779 = vmul.bf16 %v5272, 1069105081
      %v5780 = vpow.bf16.pop %v5779
      %v5782 = vmul.bf16 %v5273, 1069105081
      %v5783 = vpow.bf16.pop %v5782
      %v5785 = vmul.bf16 %v5274, 1069105081
      %v5786 = vpow.bf16.pop %v5785
      %v5788 = vmul.bf16 %v5275, 1069105081
      %v5789 = vpow.bf16.pop %v5788
      %v5791 = vmul.bf16 %v5276, 1069105081
      %v5792 = vpow.bf16.pop %v5791
      %v5794 = vmul.bf16 %v5277, 1069105081
      %v5795 = vpow.bf16.pop %v5794
      %v5797 = vmul.bf16 %v5278, 1069105081
      %v5798 = vpow.bf16.pop %v5797
      %v5800 = vmul.bf16 %v5279, 1069105081
      %v5801 = vpow.bf16.pop %v5800
      %v5803 = vmul.bf16 %v5280, 1069105081
      %v5804 = vpow.bf16.pop %v5803
      %v5806 = vmul.bf16 %v5281, 1069105081
      %v5807 = vpow.bf16.pop %v5806
      %v5809 = vmul.bf16 %v5282, 1069105081
      %v5810 = vpow.bf16.pop %v5809
      %v5812 = vmul.bf16 %v5283, 1069105081
      %v5813 = vpow.bf16.pop %v5812
      %v5815 = vmul.bf16 %v5284, 1069105081
      %v5816 = vpow.bf16.pop %v5815
      %v5818 = vmul.bf16 %v5285, 1069105081
      %v5819 = vpow.bf16.pop %v5818
      %v5821 = vmul.bf16 %v5286, 1069105081
      %v5822 = vpow.bf16.pop %v5821
      %v5824 = vmul.bf16 %v5287, 1069105081
      %v5825 = vpow.bf16.pop %v5824
      %v5827 = vmul.bf16 %v5288, 1069105081
      %v5828 = vpow.bf16.pop %v5827
      %v5830 = vmul.bf16 %v5289, 1069105081
      %v5831 = vpow.bf16.pop %v5830
      %v5833 = vmul.bf16 %v5290, 1069105081
      %v5834 = vpow.bf16.pop %v5833
      %v5836 = vmul.bf16 %v5291, 1069105081
      %v5837 = vpow.bf16.pop %v5836
      %v5839 = vmul.bf16 %v5292, 1069105081
      %v5840 = vpow.bf16.pop %v5839
      %v5842 = vmul.bf16 %v5293, 1069105081
      %v5843 = vpow.bf16.pop %v5842
      %v5845 = vmul.bf16 %v5294, 1069105081
      %v5846 = vpow.bf16.pop %v5845
      %v5848 = vmul.bf16 %v5295, 1069105081
      %v5849 = vpow.bf16.pop %v5848
      %v5851 = vmul.bf16 %v5296, 1069105081
      %v5852 = vpow.bf16.pop %v5851
      %v5854 = vmul.bf16 %v5297, 1069105081
      %v5855 = vpow.bf16.pop %v5854
      %v5857 = vmul.bf16 %v5298, 1069105081
      %v5858 = vpow.bf16.pop %v5857
      %v5860 = vmul.bf16 %v5299, 1069105081
      %v5861 = vpow.bf16.pop %v5860
      %v5863 = vmul.bf16 %v5300, 1069105081
      %v5864 = vpow.bf16.pop %v5863
      %v5866 = vmul.bf16 %v5301, 1069105081
      %v5867 = vpow.bf16.pop %v5866
      %v5869 = vmul.bf16 %v5302, 1069105081
      %v5870 = vpow.bf16.pop %v5869
      %v5872 = vmul.bf16 %v5303, 1069105081
      %v5873 = vpow.bf16.pop %v5872
      %v5875 = vmul.bf16 %v5304, 1069105081
      %v5876 = vpow.bf16.pop %v5875
      %v5878 = vmul.bf16 %v5305, 1069105081
      %v5879 = vpow.bf16.pop %v5878
      %v5881 = vmul.bf16 %v5306, 1069105081
      %v5882 = vpow.bf16.pop %v5881
      %v5884 = vmul.bf16 %v5307, 1069105081
      %v5885 = vpow.bf16.pop %v5884
      %v5887 = vmul.bf16 %v5308, 1069105081
      %v5888 = vpow.bf16.pop %v5887
      %v5890 = vmul.bf16 %v5309, 1069105081
      %v5891 = vpow.bf16.pop %v5890
      %v5893 = vmul.bf16 %v5310, 1069105081
      %v5894 = vpow.bf16.pop %v5893
      %v5896 = vmul.bf16 %v5311, 1069105081
      %v5897 = vpow.bf16.pop %v5896
      %v5899 = vmul.bf16 %v5312, 1069105081
      %v5900 = vpow.bf16.pop %v5899
      %v5902 = vmul.bf16 %v5313, 1069105081
      %v5903 = vpow.bf16.pop %v5902
      %v5905 = vmul.bf16 %v5314, 1069105081
      %v5906 = vpow.bf16.pop %v5905
      %v5908 = vmul.bf16 %v5315, 1069105081
      %v5909 = vpow.bf16.pop %v5908
      %v5911 = vmul.bf16 %v5316, 1069105081
      %v5912 = vpow.bf16.pop %v5911
      %v5914 = vmul.bf16 %v5317, 1069105081
      %v5915 = vpow.bf16.pop %v5914
      %v5917 = vmul.bf16 %v5318, 1069105081
      %v5918 = vpow.bf16.pop %v5917
      %v5920 = vmul.bf16 %v5319, 1069105081
      %v5921 = vpow.bf16.pop %v5920
      %v5923 = vmul.bf16 %v5320, 1069105081
      %v5924 = vpow.bf16.pop %v5923
      %v5926 = vmul.bf16 %v5321, 1069105081
      %v5927 = vpow.bf16.pop %v5926
      %v5929 = vmul.bf16 %v5322, 1069105081
      %v5930 = vpow.bf16.pop %v5929
      %v5932 = vmul.bf16 %v5323, 1069105081
      %v5933 = vpow.bf16.pop %v5932
      %v5935 = vmul.bf16 %v5324, 1069105081
      %v5936 = vpow.bf16.pop %v5935
      %v5938 = vmul.bf16 %v5325, 1069105081
      %v5939 = vpow.bf16.pop %v5938
      %v5941 = vmul.bf16 %v5326, 1069105081
      %v5942 = vpow.bf16.pop %v5941
      %v5944 = vmul.bf16 %v5327, 1069105081
      %v5945 = vpow.bf16.pop %v5944
      %v5947 = vmul.bf16 %v5328, 1069105081
      %v5948 = vpow.bf16.pop %v5947
      %v5950 = vmul.bf16 %v5329, 1069105081
      %v5951 = vpow.bf16.pop %v5950
      %v5953 = vmul.bf16 %v5330, 1069105081
      %v5954 = vpow.bf16.pop %v5953
      %v5956 = vmul.bf16 %v5331, 1069105081
      %v5957 = vpow.bf16.pop %v5956
      %v5959 = vmul.bf16 %v5332, 1069105081
      %v5960 = vpow.bf16.pop %v5959
      %v5962 = vmul.bf16 %v5333, 1069105081
      %v5963 = vpow.bf16.pop %v5962
      %v5965 = vmul.bf16 %v5334, 1069105081
      %v5966 = vpow.bf16.pop %v5965
      %v5968 = vmul.bf16 %v5335, 1069105081
      %v5969 = vpow.bf16.pop %v5968
      %v5971 = vmul.bf16 %v5336, 1069105081
      %v5972 = vpow.bf16.pop %v5971
      %v5974 = vmul.bf16 %v5337, 1069105081
      %v5975 = vpow.bf16.pop %v5974
      %v5977 = vmul.bf16 %v5338, 1069105081
      %v5978 = vpow.bf16.pop %v5977
      %v5980 = vmul.bf16 %v5339, 1069105081
      %v5981 = vpow.bf16.pop %v5980
      %v5983 = vmul.bf16 %v5340, 1069105081
      %v5984 = vpow.bf16.pop %v5983
      %v5986 = vmul.bf16 %v5341, 1069105081
      %v5987 = vpow.bf16.pop %v5986
      %v5989 = vmul.bf16 %v5342, 1069105081
      %v5990 = vpow.bf16.pop %v5989
      %v5992 = vmul.bf16 %v5343, 1069105081
      %v5993 = vpow.bf16.pop %v5992
      %v5995 = vmul.bf16 %v5344, 1069105081
      %v5996 = vpow.bf16.pop %v5995
      %v5998 = vmul.bf16 %v5345, 1069105081
      %v5999 = vpow.bf16.pop %v5998
      %v6001 = vmul.bf16 %v5346, 1069105081
      %v6002 = vpow.bf16.pop %v6001
      %v6004 = vmul.bf16 %v5347, 1069105081
      %v6005 = vpow.bf16.pop %v6004
      %v6007 = vmul.bf16 %v5348, 1069105081
      %v6008 = vpow.bf16.pop %v6007
      %v6010 = vmul.bf16 %v5349, 1069105081
      %v6011 = vpow.bf16.pop %v6010
      %v6013 = vmul.bf16 %v5350, 1069105081
      %v6014 = vpow.bf16.pop %v6013
      %v6016 = vmul.bf16 %v5351, 1069105081
      %v6017 = vpow.bf16.pop %v6016
      %v6019 = vmul.bf16 %v5352, 1069105081
      %v6020 = vpow.bf16.pop %v6019
      %v6022 = vmul.bf16 %v5353, 1069105081
      %v6023 = vpow.bf16.pop %v6022
      %v6025 = vmul.bf16 %v5354, 1069105081
      %v6026 = vpow.bf16.pop %v6025
      %v6028 = vmul.bf16 %v5355, 1069105081
      %v6029 = vpow.bf16.pop %v6028
      %v6031 = vmul.bf16 %v5356, 1069105081
      %v6032 = vpow.bf16.pop %v6031
      %v6034 = vmul.bf16 %v5357, 1069105081
      %v6035 = vpow.bf16.pop %v6034
      %v6037 = vmul.bf16 %v5358, 1069105081
      %v6038 = vpow.bf16.pop %v6037
      %v6040 = vmul.bf16 %v5359, 1069105081
      %v6041 = vpow.bf16.pop %v6040
      %v6043 = vmul.bf16 %v5360, 1069105081
      %v6044 = vpow.bf16.pop %v6043
      %v6046 = vmul.bf16 %v5361, 1069105081
      %v6047 = vpow.bf16.pop %v6046
      %v6049 = vmul.bf16 %v5362, 1069105081
      %v6050 = vpow.bf16.pop %v6049
      %v6052 = vmul.bf16 %v5363, 1069105081
      %v6053 = vpow.bf16.pop %v6052
      %v6055 = vmul.bf16 %v5364, 1069105081
      %v6056 = vpow.bf16.pop %v6055
      %v6058 = vmul.bf16 %v5365, 1069105081
      %v6059 = vpow.bf16.pop %v6058
      %v6061 = vmul.bf16 %v5366, 1069105081
      %v6062 = vpow.bf16.pop %v6061
      %v6064 = vmul.bf16 %v5367, 1069105081
      %v6065 = vpow.bf16.pop %v6064
      %v6067 = vmul.bf16 %v5368, 1069105081
      %v6068 = vpow.bf16.pop %v6067
      %v6070 = vmul.bf16 %v5369, 1069105081
      %v6071 = vpow.bf16.pop %v6070
      %v6073 = vmul.bf16 %v5370, 1069105081
      %v6074 = vpow.bf16.pop %v6073
      %v6076 = vmul.bf16 %v5371, 1069105081
      %v6077 = vpow.bf16.pop %v6076
      %v6079 = vmul.bf16 %v5372, 1069105081
      %v6080 = vpow.bf16.pop %v6079
      %v6082 = vmul.bf16 %v5373, 1069105081
      %v6083 = vpow.bf16.pop %v6082
      %v6085 = vmul.bf16 %v5374, 1069105081
      %v6086 = vpow.bf16.pop %v6085
      %v6088 = vmul.bf16 %v5375, 1069105081
      %v6089 = vpow.bf16.pop %v6088
      %v6091 = vmul.bf16 %v5376, 1069105081
      %v6092 = vpow.bf16.pop %v6091
      %v6094 = vmul.bf16 %v5377, 1069105081
      %v6095 = vpow.bf16.pop %v6094
      %v6097 = vmul.bf16 %v5378, 1069105081
      %v6098 = vpow.bf16.pop %v6097
      %v6100 = vmul.bf16 %v5379, 1069105081
      %v6101 = vpow.bf16.pop %v6100
      %v6103 = vmul.bf16 %v5380, 1069105081
      %v6104 = vpow.bf16.pop %v6103
      %v6106 = vmul.bf16 %v5381, 1069105081
      %v6107 = vpow.bf16.pop %v6106
      %v6109 = vmul.bf16 %v5382, 1069105081
      %v6110 = vpow.bf16.pop %v6109
      %v6112 = vmul.bf16 %v5383, 1069105081
      %v6113 = vpow.bf16.pop %v6112
      %v6115 = vmul.bf16 %v5384, 1069105081
      %v6116 = vpow.bf16.pop %v6115
      %v6118 = vmul.bf16 %v5385, 1069105081
      %v6119 = vpow.bf16.pop %v6118
      %v6121 = vmul.bf16 %v5386, 1069105081
      %v6122 = vpow.bf16.pop %v6121
      %v6124 = vmul.bf16 %v5387, 1069105081
      %v6125 = vpow.bf16.pop %v6124
      %v6127 = vmul.bf16 %v5388, 1069105081
      %v6128 = vpow.bf16.pop %v6127
      %v6130 = vmul.bf16 %v5389, 1069105081
      %v6131 = vpow.bf16.pop %v6130
      %v6133 = vmul.bf16 %v5390, 1069105081
      %v6134 = vpow.bf16.pop %v6133
      %v6136 = vmul.bf16 %v5391, 1069105081
      %v6137 = vpow.bf16.pop %v6136
      %v6139 = vmul.bf16 %v5392, 1069105081
      %v6140 = vpow.bf16.pop %v6139
      %v6142 = vmul.bf16 %v5393, 1069105081
      %v6143 = vpow.bf16.pop %v6142
      %v6145 = vmul.bf16 %v5394, 1069105081
      %v6146 = vpow.bf16.pop %v6145
      %v6148 = vmul.bf16 %v5395, 1069105081
      %v6149 = vpow.bf16.pop %v6148
      %v6151 = vmul.bf16 %v5396, 1069105081
      %v6152 = vpow.bf16.pop %v6151
      %v6154 = vmul.bf16 %v5397, 1069105081
      %v6155 = vpow.bf16.pop %v6154
      %v6157 = vmul.bf16 %v5398, 1069105081
      %v6158 = vpow.bf16.pop %v6157
      %v6160 = vmul.bf16 %v5399, 1069105081
      %v6161 = vpow.bf16.pop %v6160
      %v6163 = vmul.bf16 %v5400, 1069105081
      %v6164 = vpow.bf16.pop %v6163
      %v6166 = vmul.bf16 %v5401, 1069105081
      %v6167 = vpow.bf16.pop %v6166
      %v6169 = vmul.bf16 %v5402, 1069105081
      %v6170 = vpow.bf16.pop %v6169
      %v6171 = vunpack.c.l.bf16 %v5405
      %v6172 = vunpack.c.l.bf16 %v5408
      %v6173 = vunpack.c.h.bf16 %v5405
      %v6174 = vunpack.c.h.bf16 %v5408
      %v6175 = vunpack.c.l.bf16 %v5411
      %v6176 = vunpack.c.l.bf16 %v5414
      %v6177 = vunpack.c.h.bf16 %v5411
      %v6178 = vunpack.c.h.bf16 %v5414
      %v6179 = vunpack.c.l.bf16 %v5417
      %v6180 = vunpack.c.l.bf16 %v5420
      %v6181 = vunpack.c.h.bf16 %v5417
      %v6182 = vunpack.c.h.bf16 %v5420
      %v6183 = vunpack.c.l.bf16 %v5423
      %v6184 = vunpack.c.l.bf16 %v5426
      %v6185 = vunpack.c.h.bf16 %v5423
      %v6186 = vunpack.c.h.bf16 %v5426
      %v6187 = vunpack.c.l.bf16 %v5429
      %v6188 = vunpack.c.l.bf16 %v5432
      %v6189 = vunpack.c.h.bf16 %v5429
      %v6190 = vunpack.c.h.bf16 %v5432
      %v6191 = vunpack.c.l.bf16 %v5435
      %v6192 = vunpack.c.l.bf16 %v5438
      %v6193 = vunpack.c.h.bf16 %v5435
      %v6194 = vunpack.c.h.bf16 %v5438
      %v6195 = vunpack.c.l.bf16 %v5441
      %v6196 = vunpack.c.l.bf16 %v5444
      %v6197 = vunpack.c.h.bf16 %v5441
      %v6198 = vunpack.c.h.bf16 %v5444
      %v6199 = vunpack.c.l.bf16 %v5447
      %v6200 = vunpack.c.l.bf16 %v5450
      %v6201 = vunpack.c.h.bf16 %v5447
      %v6202 = vunpack.c.h.bf16 %v5450
      %v6203 = vunpack.c.l.bf16 %v5453
      %v6204 = vunpack.c.l.bf16 %v5456
      %v6205 = vunpack.c.h.bf16 %v5453
      %v6206 = vunpack.c.h.bf16 %v5456
      %v6207 = vunpack.c.l.bf16 %v5459
      %v6208 = vunpack.c.l.bf16 %v5462
      %v6209 = vunpack.c.h.bf16 %v5459
      %v6210 = vunpack.c.h.bf16 %v5462
      %v6211 = vunpack.c.l.bf16 %v5465
      %v6212 = vunpack.c.l.bf16 %v5468
      %v6213 = vunpack.c.h.bf16 %v5465
      %v6214 = vunpack.c.h.bf16 %v5468
      %v6215 = vunpack.c.l.bf16 %v5471
      %v6216 = vunpack.c.l.bf16 %v5474
      %v6217 = vunpack.c.h.bf16 %v5471
      %v6218 = vunpack.c.h.bf16 %v5474
      %v6219 = vunpack.c.l.bf16 %v5477
      %v6220 = vunpack.c.l.bf16 %v5480
      %v6221 = vunpack.c.h.bf16 %v5477
      %v6222 = vunpack.c.h.bf16 %v5480
      %v6223 = vunpack.c.l.bf16 %v5483
      %v6224 = vunpack.c.l.bf16 %v5486
      %v6225 = vunpack.c.h.bf16 %v5483
      %v6226 = vunpack.c.h.bf16 %v5486
      %v6227 = vunpack.c.l.bf16 %v5489
      %v6228 = vunpack.c.l.bf16 %v5492
      %v6229 = vunpack.c.h.bf16 %v5489
      %v6230 = vunpack.c.h.bf16 %v5492
      %v6231 = vunpack.c.l.bf16 %v5495
      %v6232 = vunpack.c.l.bf16 %v5498
      %v6233 = vunpack.c.h.bf16 %v5495
      %v6234 = vunpack.c.h.bf16 %v5498
      %v6235 = vunpack.c.l.bf16 %v5501
      %v6236 = vunpack.c.l.bf16 %v5504
      %v6237 = vunpack.c.h.bf16 %v5501
      %v6238 = vunpack.c.h.bf16 %v5504
      %v6239 = vunpack.c.l.bf16 %v5507
      %v6240 = vunpack.c.l.bf16 %v5510
      %v6241 = vunpack.c.h.bf16 %v5507
      %v6242 = vunpack.c.h.bf16 %v5510
      %v6243 = vunpack.c.l.bf16 %v5513
      %v6244 = vunpack.c.l.bf16 %v5516
      %v6245 = vunpack.c.h.bf16 %v5513
      %v6246 = vunpack.c.h.bf16 %v5516
      %v6247 = vunpack.c.l.bf16 %v5519
      %v6248 = vunpack.c.l.bf16 %v5522
      %v6249 = vunpack.c.h.bf16 %v5519
      %v6250 = vunpack.c.h.bf16 %v5522
      %v6251 = vunpack.c.l.bf16 %v5525
      %v6252 = vunpack.c.l.bf16 %v5528
      %v6253 = vunpack.c.h.bf16 %v5525
      %v6254 = vunpack.c.h.bf16 %v5528
      %v6255 = vunpack.c.l.bf16 %v5531
      %v6256 = vunpack.c.l.bf16 %v5534
      %v6257 = vunpack.c.h.bf16 %v5531
      %v6258 = vunpack.c.h.bf16 %v5534
      %v6259 = vunpack.c.l.bf16 %v5537
      %v6260 = vunpack.c.l.bf16 %v5540
      %v6261 = vunpack.c.h.bf16 %v5537
      %v6262 = vunpack.c.h.bf16 %v5540
      %v6263 = vunpack.c.l.bf16 %v5543
      %v6264 = vunpack.c.l.bf16 %v5546
      %v6265 = vunpack.c.h.bf16 %v5543
      %v6266 = vunpack.c.h.bf16 %v5546
      %v6267 = vunpack.c.l.bf16 %v5549
      %v6268 = vunpack.c.l.bf16 %v5552
      %v6269 = vunpack.c.h.bf16 %v5549
      %v6270 = vunpack.c.h.bf16 %v5552
      %v6271 = vunpack.c.l.bf16 %v5555
      %v6272 = vunpack.c.l.bf16 %v5558
      %v6273 = vunpack.c.h.bf16 %v5555
      %v6274 = vunpack.c.h.bf16 %v5558
      %v6275 = vunpack.c.l.bf16 %v5561
      %v6276 = vunpack.c.l.bf16 %v5564
      %v6277 = vunpack.c.h.bf16 %v5561
      %v6278 = vunpack.c.h.bf16 %v5564
      %v6279 = vunpack.c.l.bf16 %v5567
      %v6280 = vunpack.c.l.bf16 %v5570
      %v6281 = vunpack.c.h.bf16 %v5567
      %v6282 = vunpack.c.h.bf16 %v5570
      %v6283 = vunpack.c.l.bf16 %v5573
      %v6284 = vunpack.c.l.bf16 %v5576
      %v6285 = vunpack.c.h.bf16 %v5573
      %v6286 = vunpack.c.h.bf16 %v5576
      %v6287 = vunpack.c.l.bf16 %v5579
      %v6288 = vunpack.c.l.bf16 %v5582
      %v6289 = vunpack.c.h.bf16 %v5579
      %v6290 = vunpack.c.h.bf16 %v5582
      %v6291 = vunpack.c.l.bf16 %v5585
      %v6292 = vunpack.c.l.bf16 %v5588
      %v6293 = vunpack.c.h.bf16 %v5585
      %v6294 = vunpack.c.h.bf16 %v5588
      %v6295 = vunpack.c.l.bf16 %v5591
      %v6296 = vunpack.c.l.bf16 %v5594
      %v6297 = vunpack.c.h.bf16 %v5591
      %v6298 = vunpack.c.h.bf16 %v5594
      %v6299 = vunpack.c.l.bf16 %v5597
      %v6300 = vunpack.c.l.bf16 %v5600
      %v6301 = vunpack.c.h.bf16 %v5597
      %v6302 = vunpack.c.h.bf16 %v5600
      %v6303 = vunpack.c.l.bf16 %v5603
      %v6304 = vunpack.c.l.bf16 %v5606
      %v6305 = vunpack.c.h.bf16 %v5603
      %v6306 = vunpack.c.h.bf16 %v5606
      %v6307 = vunpack.c.l.bf16 %v5609
      %v6308 = vunpack.c.l.bf16 %v5612
      %v6309 = vunpack.c.h.bf16 %v5609
      %v6310 = vunpack.c.h.bf16 %v5612
      %v6311 = vunpack.c.l.bf16 %v5615
      %v6312 = vunpack.c.l.bf16 %v5618
      %v6313 = vunpack.c.h.bf16 %v5615
      %v6314 = vunpack.c.h.bf16 %v5618
      %v6315 = vunpack.c.l.bf16 %v5621
      %v6316 = vunpack.c.l.bf16 %v5624
      %v6317 = vunpack.c.h.bf16 %v5621
      %v6318 = vunpack.c.h.bf16 %v5624
      %v6319 = vunpack.c.l.bf16 %v5627
      %v6320 = vunpack.c.l.bf16 %v5630
      %v6321 = vunpack.c.h.bf16 %v5627
      %v6322 = vunpack.c.h.bf16 %v5630
      %v6323 = vunpack.c.l.bf16 %v5633
      %v6324 = vunpack.c.l.bf16 %v5636
      %v6325 = vunpack.c.h.bf16 %v5633
      %v6326 = vunpack.c.h.bf16 %v5636
      %v6327 = vunpack.c.l.bf16 %v5639
      %v6328 = vunpack.c.l.bf16 %v5642
      %v6329 = vunpack.c.h.bf16 %v5639
      %v6330 = vunpack.c.h.bf16 %v5642
      %v6331 = vunpack.c.l.bf16 %v5645
      %v6332 = vunpack.c.l.bf16 %v5648
      %v6333 = vunpack.c.h.bf16 %v5645
      %v6334 = vunpack.c.h.bf16 %v5648
      %v6335 = vunpack.c.l.bf16 %v5651
      %v6336 = vunpack.c.l.bf16 %v5654
      %v6337 = vunpack.c.h.bf16 %v5651
      %v6338 = vunpack.c.h.bf16 %v5654
      %v6339 = vunpack.c.l.bf16 %v5657
      %v6340 = vunpack.c.l.bf16 %v5660
      %v6341 = vunpack.c.h.bf16 %v5657
      %v6342 = vunpack.c.h.bf16 %v5660
      %v6343 = vunpack.c.l.bf16 %v5663
      %v6344 = vunpack.c.l.bf16 %v5666
      %v6345 = vunpack.c.h.bf16 %v5663
      %v6346 = vunpack.c.h.bf16 %v5666
      %v6347 = vunpack.c.l.bf16 %v5669
      %v6348 = vunpack.c.l.bf16 %v5672
      %v6349 = vunpack.c.h.bf16 %v5669
      %v6350 = vunpack.c.h.bf16 %v5672
      %v6351 = vunpack.c.l.bf16 %v5675
      %v6352 = vunpack.c.l.bf16 %v5678
      %v6353 = vunpack.c.h.bf16 %v5675
      %v6354 = vunpack.c.h.bf16 %v5678
      %v6355 = vunpack.c.l.bf16 %v5681
      %v6356 = vunpack.c.l.bf16 %v5684
      %v6357 = vunpack.c.h.bf16 %v5681
      %v6358 = vunpack.c.h.bf16 %v5684
      %v6359 = vunpack.c.l.bf16 %v5687
      %v6360 = vunpack.c.l.bf16 %v5690
      %v6361 = vunpack.c.h.bf16 %v5687
      %v6362 = vunpack.c.h.bf16 %v5690
      %v6363 = vunpack.c.l.bf16 %v5693
      %v6364 = vunpack.c.l.bf16 %v5696
      %v6365 = vunpack.c.h.bf16 %v5693
      %v6366 = vunpack.c.h.bf16 %v5696
      %v6367 = vunpack.c.l.bf16 %v5699
      %v6368 = vunpack.c.l.bf16 %v5702
      %v6369 = vunpack.c.h.bf16 %v5699
      %v6370 = vunpack.c.h.bf16 %v5702
      %v6371 = vunpack.c.l.bf16 %v5705
      %v6372 = vunpack.c.l.bf16 %v5708
      %v6373 = vunpack.c.h.bf16 %v5705
      %v6374 = vunpack.c.h.bf16 %v5708
      %v6375 = vunpack.c.l.bf16 %v5711
      %v6376 = vunpack.c.l.bf16 %v5714
      %v6377 = vunpack.c.h.bf16 %v5711
      %v6378 = vunpack.c.h.bf16 %v5714
      %v6379 = vunpack.c.l.bf16 %v5717
      %v6380 = vunpack.c.l.bf16 %v5720
      %v6381 = vunpack.c.h.bf16 %v5717
      %v6382 = vunpack.c.h.bf16 %v5720
      %v6383 = vunpack.c.l.bf16 %v5723
      %v6384 = vunpack.c.l.bf16 %v5726
      %v6385 = vunpack.c.h.bf16 %v5723
      %v6386 = vunpack.c.h.bf16 %v5726
      %v6387 = vunpack.c.l.bf16 %v5729
      %v6388 = vunpack.c.l.bf16 %v5732
      %v6389 = vunpack.c.h.bf16 %v5729
      %v6390 = vunpack.c.h.bf16 %v5732
      %v6391 = vunpack.c.l.bf16 %v5735
      %v6392 = vunpack.c.l.bf16 %v5738
      %v6393 = vunpack.c.h.bf16 %v5735
      %v6394 = vunpack.c.h.bf16 %v5738
      %v6395 = vunpack.c.l.bf16 %v5741
      %v6396 = vunpack.c.l.bf16 %v5744
      %v6397 = vunpack.c.h.bf16 %v5741
      %v6398 = vunpack.c.h.bf16 %v5744
      %v6399 = vunpack.c.l.bf16 %v5747
      %v6400 = vunpack.c.l.bf16 %v5750
      %v6401 = vunpack.c.h.bf16 %v5747
      %v6402 = vunpack.c.h.bf16 %v5750
      %v6403 = vunpack.c.l.bf16 %v5753
      %v6404 = vunpack.c.l.bf16 %v5756
      %v6405 = vunpack.c.h.bf16 %v5753
      %v6406 = vunpack.c.h.bf16 %v5756
      %v6407 = vunpack.c.l.bf16 %v5759
      %v6408 = vunpack.c.l.bf16 %v5762
      %v6409 = vunpack.c.h.bf16 %v5759
      %v6410 = vunpack.c.h.bf16 %v5762
      %v6411 = vunpack.c.l.bf16 %v5765
      %v6412 = vunpack.c.l.bf16 %v5768
      %v6413 = vunpack.c.h.bf16 %v5765
      %v6414 = vunpack.c.h.bf16 %v5768
      %v6415 = vunpack.c.l.bf16 %v5771
      %v6416 = vunpack.c.l.bf16 %v5774
      %v6417 = vunpack.c.h.bf16 %v5771
      %v6418 = vunpack.c.h.bf16 %v5774
      %v6419 = vunpack.c.l.bf16 %v5777
      %v6420 = vunpack.c.l.bf16 %v5780
      %v6421 = vunpack.c.h.bf16 %v5777
      %v6422 = vunpack.c.h.bf16 %v5780
      %v6423 = vunpack.c.l.bf16 %v5783
      %v6424 = vunpack.c.l.bf16 %v5786
      %v6425 = vunpack.c.h.bf16 %v5783
      %v6426 = vunpack.c.h.bf16 %v5786
      %v6427 = vunpack.c.l.bf16 %v5789
      %v6428 = vunpack.c.l.bf16 %v5792
      %v6429 = vunpack.c.h.bf16 %v5789
      %v6430 = vunpack.c.h.bf16 %v5792
      %v6431 = vunpack.c.l.bf16 %v5795
      %v6432 = vunpack.c.l.bf16 %v5798
      %v6433 = vunpack.c.h.bf16 %v5795
      %v6434 = vunpack.c.h.bf16 %v5798
      %v6435 = vunpack.c.l.bf16 %v5801
      %v6436 = vunpack.c.l.bf16 %v5804
      %v6437 = vunpack.c.h.bf16 %v5801
      %v6438 = vunpack.c.h.bf16 %v5804
      %v6439 = vunpack.c.l.bf16 %v5807
      %v6440 = vunpack.c.l.bf16 %v5810
      %v6441 = vunpack.c.h.bf16 %v5807
      %v6442 = vunpack.c.h.bf16 %v5810
      %v6443 = vunpack.c.l.bf16 %v5813
      %v6444 = vunpack.c.l.bf16 %v5816
      %v6445 = vunpack.c.h.bf16 %v5813
      %v6446 = vunpack.c.h.bf16 %v5816
      %v6447 = vunpack.c.l.bf16 %v5819
      %v6448 = vunpack.c.l.bf16 %v5822
      %v6449 = vunpack.c.h.bf16 %v5819
      %v6450 = vunpack.c.h.bf16 %v5822
      %v6451 = vunpack.c.l.bf16 %v5825
      %v6452 = vunpack.c.l.bf16 %v5828
      %v6453 = vunpack.c.h.bf16 %v5825
      %v6454 = vunpack.c.h.bf16 %v5828
      %v6455 = vunpack.c.l.bf16 %v5831
      %v6456 = vunpack.c.l.bf16 %v5834
      %v6457 = vunpack.c.h.bf16 %v5831
      %v6458 = vunpack.c.h.bf16 %v5834
      %v6459 = vunpack.c.l.bf16 %v5837
      %v6460 = vunpack.c.l.bf16 %v5840
      %v6461 = vunpack.c.h.bf16 %v5837
      %v6462 = vunpack.c.h.bf16 %v5840
      %v6463 = vunpack.c.l.bf16 %v5843
      %v6464 = vunpack.c.l.bf16 %v5846
      %v6465 = vunpack.c.h.bf16 %v5843
      %v6466 = vunpack.c.h.bf16 %v5846
      %v6467 = vunpack.c.l.bf16 %v5849
      %v6468 = vunpack.c.l.bf16 %v5852
      %v6469 = vunpack.c.h.bf16 %v5849
      %v6470 = vunpack.c.h.bf16 %v5852
      %v6471 = vunpack.c.l.bf16 %v5855
      %v6472 = vunpack.c.l.bf16 %v5858
      %v6473 = vunpack.c.h.bf16 %v5855
      %v6474 = vunpack.c.h.bf16 %v5858
      %v6475 = vunpack.c.l.bf16 %v5861
      %v6476 = vunpack.c.l.bf16 %v5864
      %v6477 = vunpack.c.h.bf16 %v5861
      %v6478 = vunpack.c.h.bf16 %v5864
      %v6479 = vunpack.c.l.bf16 %v5867
      %v6480 = vunpack.c.l.bf16 %v5870
      %v6481 = vunpack.c.h.bf16 %v5867
      %v6482 = vunpack.c.h.bf16 %v5870
      %v6483 = vunpack.c.l.bf16 %v5873
      %v6484 = vunpack.c.l.bf16 %v5876
      %v6485 = vunpack.c.h.bf16 %v5873
      %v6486 = vunpack.c.h.bf16 %v5876
      %v6487 = vunpack.c.l.bf16 %v5879
      %v6488 = vunpack.c.l.bf16 %v5882
      %v6489 = vunpack.c.h.bf16 %v5879
      %v6490 = vunpack.c.h.bf16 %v5882
      %v6491 = vunpack.c.l.bf16 %v5885
      %v6492 = vunpack.c.l.bf16 %v5888
      %v6493 = vunpack.c.h.bf16 %v5885
      %v6494 = vunpack.c.h.bf16 %v5888
      %v6495 = vunpack.c.l.bf16 %v5891
      %v6496 = vunpack.c.l.bf16 %v5894
      %v6497 = vunpack.c.h.bf16 %v5891
      %v6498 = vunpack.c.h.bf16 %v5894
      %v6499 = vunpack.c.l.bf16 %v5897
      %v6500 = vunpack.c.l.bf16 %v5900
      %v6501 = vunpack.c.h.bf16 %v5897
      %v6502 = vunpack.c.h.bf16 %v5900
      %v6503 = vunpack.c.l.bf16 %v5903
      %v6504 = vunpack.c.l.bf16 %v5906
      %v6505 = vunpack.c.h.bf16 %v5903
      %v6506 = vunpack.c.h.bf16 %v5906
      %v6507 = vunpack.c.l.bf16 %v5909
      %v6508 = vunpack.c.l.bf16 %v5912
      %v6509 = vunpack.c.h.bf16 %v5909
      %v6510 = vunpack.c.h.bf16 %v5912
      %v6511 = vunpack.c.l.bf16 %v5915
      %v6512 = vunpack.c.l.bf16 %v5918
      %v6513 = vunpack.c.h.bf16 %v5915
      %v6514 = vunpack.c.h.bf16 %v5918
      %v6515 = vunpack.c.l.bf16 %v5921
      %v6516 = vunpack.c.l.bf16 %v5924
      %v6517 = vunpack.c.h.bf16 %v5921
      %v6518 = vunpack.c.h.bf16 %v5924
      %v6519 = vunpack.c.l.bf16 %v5927
      %v6520 = vunpack.c.l.bf16 %v5930
      %v6521 = vunpack.c.h.bf16 %v5927
      %v6522 = vunpack.c.h.bf16 %v5930
      %v6523 = vunpack.c.l.bf16 %v5933
      %v6524 = vunpack.c.l.bf16 %v5936
      %v6525 = vunpack.c.h.bf16 %v5933
      %v6526 = vunpack.c.h.bf16 %v5936
      %v6527 = vunpack.c.l.bf16 %v5939
      %v6528 = vunpack.c.l.bf16 %v5942
      %v6529 = vunpack.c.h.bf16 %v5939
      %v6530 = vunpack.c.h.bf16 %v5942
      %v6531 = vunpack.c.l.bf16 %v5945
      %v6532 = vunpack.c.l.bf16 %v5948
      %v6533 = vunpack.c.h.bf16 %v5945
      %v6534 = vunpack.c.h.bf16 %v5948
      %v6535 = vunpack.c.l.bf16 %v5951
      %v6536 = vunpack.c.l.bf16 %v5954
      %v6537 = vunpack.c.h.bf16 %v5951
      %v6538 = vunpack.c.h.bf16 %v5954
      %v6539 = vunpack.c.l.bf16 %v5957
      %v6540 = vunpack.c.l.bf16 %v5960
      %v6541 = vunpack.c.h.bf16 %v5957
      %v6542 = vunpack.c.h.bf16 %v5960
      %v6543 = vunpack.c.l.bf16 %v5963
      %v6544 = vunpack.c.l.bf16 %v5966
      %v6545 = vunpack.c.h.bf16 %v5963
      %v6546 = vunpack.c.h.bf16 %v5966
      %v6547 = vunpack.c.l.bf16 %v5969
      %v6548 = vunpack.c.l.bf16 %v5972
      %v6549 = vunpack.c.h.bf16 %v5969
      %v6550 = vunpack.c.h.bf16 %v5972
      %v6551 = vunpack.c.l.bf16 %v5975
      %v6552 = vunpack.c.l.bf16 %v5978
      %v6553 = vunpack.c.h.bf16 %v5975
      %v6554 = vunpack.c.h.bf16 %v5978
      %v6555 = vunpack.c.l.bf16 %v5981
      %v6556 = vunpack.c.l.bf16 %v5984
      %v6557 = vunpack.c.h.bf16 %v5981
      %v6558 = vunpack.c.h.bf16 %v5984
      %v6559 = vunpack.c.l.bf16 %v5987
      %v6560 = vunpack.c.l.bf16 %v5990
      %v6561 = vunpack.c.h.bf16 %v5987
      %v6562 = vunpack.c.h.bf16 %v5990
      %v6563 = vunpack.c.l.bf16 %v5993
      %v6564 = vunpack.c.l.bf16 %v5996
      %v6565 = vunpack.c.h.bf16 %v5993
      %v6566 = vunpack.c.h.bf16 %v5996
      %v6567 = vunpack.c.l.bf16 %v5999
      %v6568 = vunpack.c.l.bf16 %v6002
      %v6569 = vunpack.c.h.bf16 %v5999
      %v6570 = vunpack.c.h.bf16 %v6002
      %v6571 = vunpack.c.l.bf16 %v6005
      %v6572 = vunpack.c.l.bf16 %v6008
      %v6573 = vunpack.c.h.bf16 %v6005
      %v6574 = vunpack.c.h.bf16 %v6008
      %v6575 = vunpack.c.l.bf16 %v6011
      %v6576 = vunpack.c.l.bf16 %v6014
      %v6577 = vunpack.c.h.bf16 %v6011
      %v6578 = vunpack.c.h.bf16 %v6014
      %v6579 = vunpack.c.l.bf16 %v6017
      %v6580 = vunpack.c.l.bf16 %v6020
      %v6581 = vunpack.c.h.bf16 %v6017
      %v6582 = vunpack.c.h.bf16 %v6020
      %v6583 = vunpack.c.l.bf16 %v6023
      %v6584 = vunpack.c.l.bf16 %v6026
      %v6585 = vunpack.c.h.bf16 %v6023
      %v6586 = vunpack.c.h.bf16 %v6026
      %v6587 = vunpack.c.l.bf16 %v6029
      %v6588 = vunpack.c.l.bf16 %v6032
      %v6589 = vunpack.c.h.bf16 %v6029
      %v6590 = vunpack.c.h.bf16 %v6032
      %v6591 = vunpack.c.l.bf16 %v6035
      %v6592 = vunpack.c.l.bf16 %v6038
      %v6593 = vunpack.c.h.bf16 %v6035
      %v6594 = vunpack.c.h.bf16 %v6038
      %v6595 = vunpack.c.l.bf16 %v6041
      %v6596 = vunpack.c.l.bf16 %v6044
      %v6597 = vunpack.c.h.bf16 %v6041
      %v6598 = vunpack.c.h.bf16 %v6044
      %v6599 = vunpack.c.l.bf16 %v6047
      %v6600 = vunpack.c.l.bf16 %v6050
      %v6601 = vunpack.c.h.bf16 %v6047
      %v6602 = vunpack.c.h.bf16 %v6050
      %v6603 = vunpack.c.l.bf16 %v6053
      %v6604 = vunpack.c.l.bf16 %v6056
      %v6605 = vunpack.c.h.bf16 %v6053
      %v6606 = vunpack.c.h.bf16 %v6056
      %v6607 = vunpack.c.l.bf16 %v6059
      %v6608 = vunpack.c.l.bf16 %v6062
      %v6609 = vunpack.c.h.bf16 %v6059
      %v6610 = vunpack.c.h.bf16 %v6062
      %v6611 = vunpack.c.l.bf16 %v6065
      %v6612 = vunpack.c.l.bf16 %v6068
      %v6613 = vunpack.c.h.bf16 %v6065
      %v6614 = vunpack.c.h.bf16 %v6068
      %v6615 = vunpack.c.l.bf16 %v6071
      %v6616 = vunpack.c.l.bf16 %v6074
      %v6617 = vunpack.c.h.bf16 %v6071
      %v6618 = vunpack.c.h.bf16 %v6074
      %v6619 = vunpack.c.l.bf16 %v6077
      %v6620 = vunpack.c.l.bf16 %v6080
      %v6621 = vunpack.c.h.bf16 %v6077
      %v6622 = vunpack.c.h.bf16 %v6080
      %v6623 = vunpack.c.l.bf16 %v6083
      %v6624 = vunpack.c.l.bf16 %v6086
      %v6625 = vunpack.c.h.bf16 %v6083
      %v6626 = vunpack.c.h.bf16 %v6086
      %v6627 = vunpack.c.l.bf16 %v6089
      %v6628 = vunpack.c.l.bf16 %v6092
      %v6629 = vunpack.c.h.bf16 %v6089
      %v6630 = vunpack.c.h.bf16 %v6092
      %v6631 = vunpack.c.l.bf16 %v6095
      %v6632 = vunpack.c.l.bf16 %v6098
      %v6633 = vunpack.c.h.bf16 %v6095
      %v6634 = vunpack.c.h.bf16 %v6098
      %v6635 = vunpack.c.l.bf16 %v6101
      %v6636 = vunpack.c.l.bf16 %v6104
      %v6637 = vunpack.c.h.bf16 %v6101
      %v6638 = vunpack.c.h.bf16 %v6104
      %v6639 = vunpack.c.l.bf16 %v6107
      %v6640 = vunpack.c.l.bf16 %v6110
      %v6641 = vunpack.c.h.bf16 %v6107
      %v6642 = vunpack.c.h.bf16 %v6110
      %v6643 = vunpack.c.l.bf16 %v6113
      %v6644 = vunpack.c.l.bf16 %v6116
      %v6645 = vunpack.c.h.bf16 %v6113
      %v6646 = vunpack.c.h.bf16 %v6116
      %v6647 = vunpack.c.l.bf16 %v6119
      %v6648 = vunpack.c.l.bf16 %v6122
      %v6649 = vunpack.c.h.bf16 %v6119
      %v6650 = vunpack.c.h.bf16 %v6122
      %v6651 = vunpack.c.l.bf16 %v6125
      %v6652 = vunpack.c.l.bf16 %v6128
      %v6653 = vunpack.c.h.bf16 %v6125
      %v6654 = vunpack.c.h.bf16 %v6128
      %v6655 = vunpack.c.l.bf16 %v6131
      %v6656 = vunpack.c.l.bf16 %v6134
      %v6657 = vunpack.c.h.bf16 %v6131
      %v6658 = vunpack.c.h.bf16 %v6134
      %v6659 = vunpack.c.l.bf16 %v6137
      %v6660 = vunpack.c.l.bf16 %v6140
      %v6661 = vunpack.c.h.bf16 %v6137
      %v6662 = vunpack.c.h.bf16 %v6140
      %v6663 = vunpack.c.l.bf16 %v6143
      %v6664 = vunpack.c.l.bf16 %v6146
      %v6665 = vunpack.c.h.bf16 %v6143
      %v6666 = vunpack.c.h.bf16 %v6146
      %v6667 = vunpack.c.l.bf16 %v6149
      %v6668 = vunpack.c.l.bf16 %v6152
      %v6669 = vunpack.c.h.bf16 %v6149
      %v6670 = vunpack.c.h.bf16 %v6152
      %v6671 = vunpack.c.l.bf16 %v6155
      %v6672 = vunpack.c.l.bf16 %v6158
      %v6673 = vunpack.c.h.bf16 %v6155
      %v6674 = vunpack.c.h.bf16 %v6158
      %v6675 = vunpack.c.l.bf16 %v6161
      %v6676 = vunpack.c.l.bf16 %v6164
      %v6677 = vunpack.c.h.bf16 %v6161
      %v6678 = vunpack.c.h.bf16 %v6164
      %v6679 = vunpack.c.l.bf16 %v6167
      %v6680 = vunpack.c.l.bf16 %v6170
      %v6681 = vunpack.c.h.bf16 %v6167
      %v6682 = vunpack.c.h.bf16 %v6170
      %v6683 = vadd.f32 %v6171, %v6172
      %6684 = vadd.xlane.f32.xlu0 %v6683
      %v6685 = vpop.xlane.xlu0 %6684
      %v6686 = vadd.f32 %v6173, %v6174
      %6687 = vadd.xlane.f32.xlu0 %v6686
      %v6688 = vpop.xlane.xlu0 %6687
      %v6689 = vadd.f32 %v6175, %v6176
      %6690 = vadd.xlane.f32.xlu0 %v6689
      %v6691 = vpop.xlane.xlu0 %6690
      %v6692 = vadd.f32 %v6177, %v6178
      %6693 = vadd.xlane.f32.xlu0 %v6692
      %v6694 = vpop.xlane.xlu0 %6693
      %v6695 = vadd.f32 %v6179, %v6180
      %6696 = vadd.xlane.f32.xlu0 %v6695
      %v6697 = vpop.xlane.xlu0 %6696
      %v6698 = vadd.f32 %v6181, %v6182
      %6699 = vadd.xlane.f32.xlu0 %v6698
      %v6700 = vpop.xlane.xlu0 %6699
      %v6701 = vadd.f32 %v6183, %v6184
      %6702 = vadd.xlane.f32.xlu0 %v6701
      %v6703 = vpop.xlane.xlu0 %6702
      %v6704 = vadd.f32 %v6185, %v6186
      %6705 = vadd.xlane.f32.xlu0 %v6704
      %v6706 = vpop.xlane.xlu0 %6705
      %v6707 = vadd.f32 %v6187, %v6188
      %6708 = vadd.xlane.f32.xlu0 %v6707
      %v6709 = vpop.xlane.xlu0 %6708
      %v6710 = vadd.f32 %v6189, %v6190
      %6711 = vadd.xlane.f32.xlu0 %v6710
      %v6712 = vpop.xlane.xlu0 %6711
      %v6713 = vadd.f32 %v6191, %v6192
      %6714 = vadd.xlane.f32.xlu0 %v6713
      %v6715 = vpop.xlane.xlu0 %6714
      %v6716 = vadd.f32 %v6193, %v6194
      %6717 = vadd.xlane.f32.xlu0 %v6716
      %v6718 = vpop.xlane.xlu0 %6717
      %v6719 = vadd.f32 %v6195, %v6196
      %6720 = vadd.xlane.f32.xlu0 %v6719
      %v6721 = vpop.xlane.xlu0 %6720
      %v6722 = vadd.f32 %v6197, %v6198
      %6723 = vadd.xlane.f32.xlu0 %v6722
      %v6724 = vpop.xlane.xlu0 %6723
      %v6725 = vadd.f32 %v6199, %v6200
      %6726 = vadd.xlane.f32.xlu0 %v6725
      %v6727 = vpop.xlane.xlu0 %6726
      %v6728 = vadd.f32 %v6201, %v6202
      %6729 = vadd.xlane.f32.xlu0 %v6728
      %v6730 = vpop.xlane.xlu0 %6729
      %v6731 = vadd.f32 %v6203, %v6204
      %6732 = vadd.xlane.f32.xlu0 %v6731
      %v6733 = vpop.xlane.xlu0 %6732
      %v6734 = vadd.f32 %v6205, %v6206
      %6735 = vadd.xlane.f32.xlu0 %v6734
      %v6736 = vpop.xlane.xlu0 %6735
      %v6737 = vadd.f32 %v6207, %v6208
      %6738 = vadd.xlane.f32.xlu0 %v6737
      %v6739 = vpop.xlane.xlu0 %6738
      %v6740 = vadd.f32 %v6209, %v6210
      %6741 = vadd.xlane.f32.xlu0 %v6740
      %v6742 = vpop.xlane.xlu0 %6741
      %v6743 = vadd.f32 %v6211, %v6212
      %6744 = vadd.xlane.f32.xlu0 %v6743
      %v6745 = vpop.xlane.xlu0 %6744
      %v6746 = vadd.f32 %v6213, %v6214
      %6747 = vadd.xlane.f32.xlu0 %v6746
      %v6748 = vpop.xlane.xlu0 %6747
      %v6749 = vadd.f32 %v6215, %v6216
      %6750 = vadd.xlane.f32.xlu0 %v6749
      %v6751 = vpop.xlane.xlu0 %6750
      %v6752 = vadd.f32 %v6217, %v6218
      %6753 = vadd.xlane.f32.xlu0 %v6752
      %v6754 = vpop.xlane.xlu0 %6753
      %v6755 = vadd.f32 %v6219, %v6220
      %6756 = vadd.xlane.f32.xlu0 %v6755
      %v6757 = vpop.xlane.xlu0 %6756
      %v6758 = vadd.f32 %v6221, %v6222
      %6759 = vadd.xlane.f32.xlu0 %v6758
      %v6760 = vpop.xlane.xlu0 %6759
      %v6761 = vadd.f32 %v6223, %v6224
      %6762 = vadd.xlane.f32.xlu0 %v6761
      %v6763 = vpop.xlane.xlu0 %6762
      %v6764 = vadd.f32 %v6225, %v6226
      %6765 = vadd.xlane.f32.xlu0 %v6764
      %v6766 = vpop.xlane.xlu0 %6765
      %v6767 = vadd.f32 %v6227, %v6228
      %6768 = vadd.xlane.f32.xlu0 %v6767
      %v6769 = vpop.xlane.xlu0 %6768
      %v6770 = vadd.f32 %v6229, %v6230
      %6771 = vadd.xlane.f32.xlu0 %v6770
      %v6772 = vpop.xlane.xlu0 %6771
      %v6773 = vadd.f32 %v6231, %v6232
      %6774 = vadd.xlane.f32.xlu0 %v6773
      %v6775 = vpop.xlane.xlu0 %6774
      %v6776 = vadd.f32 %v6233, %v6234
      %6777 = vadd.xlane.f32.xlu0 %v6776
      %v6778 = vpop.xlane.xlu0 %6777
      %v6779 = vadd.f32 %v6235, %v6236
      %6780 = vadd.xlane.f32.xlu0 %v6779
      %v6781 = vpop.xlane.xlu0 %6780
      %v6782 = vadd.f32 %v6237, %v6238
      %6783 = vadd.xlane.f32.xlu0 %v6782
      %v6784 = vpop.xlane.xlu0 %6783
      %v6785 = vadd.f32 %v6239, %v6240
      %6786 = vadd.xlane.f32.xlu0 %v6785
      %v6787 = vpop.xlane.xlu0 %6786
      %v6788 = vadd.f32 %v6241, %v6242
      %6789 = vadd.xlane.f32.xlu0 %v6788
      %v6790 = vpop.xlane.xlu0 %6789
      %v6791 = vadd.f32 %v6243, %v6244
      %6792 = vadd.xlane.f32.xlu0 %v6791
      %v6793 = vpop.xlane.xlu0 %6792
      %v6794 = vadd.f32 %v6245, %v6246
      %6795 = vadd.xlane.f32.xlu0 %v6794
      %v6796 = vpop.xlane.xlu0 %6795
      %v6797 = vadd.f32 %v6247, %v6248
      %6798 = vadd.xlane.f32.xlu0 %v6797
      %v6799 = vpop.xlane.xlu0 %6798
      %v6800 = vadd.f32 %v6249, %v6250
      %6801 = vadd.xlane.f32.xlu0 %v6800
      %v6802 = vpop.xlane.xlu0 %6801
      %v6803 = vadd.f32 %v6251, %v6252
      %6804 = vadd.xlane.f32.xlu0 %v6803
      %v6805 = vpop.xlane.xlu0 %6804
      %v6806 = vadd.f32 %v6253, %v6254
      %6807 = vadd.xlane.f32.xlu0 %v6806
      %v6808 = vpop.xlane.xlu0 %6807
      %v6809 = vadd.f32 %v6255, %v6256
      %6810 = vadd.xlane.f32.xlu0 %v6809
      %v6811 = vpop.xlane.xlu0 %6810
      %v6812 = vadd.f32 %v6257, %v6258
      %6813 = vadd.xlane.f32.xlu0 %v6812
      %v6814 = vpop.xlane.xlu0 %6813
      %v6815 = vadd.f32 %v6259, %v6260
      %6816 = vadd.xlane.f32.xlu0 %v6815
      %v6817 = vpop.xlane.xlu0 %6816
      %v6818 = vadd.f32 %v6261, %v6262
      %6819 = vadd.xlane.f32.xlu0 %v6818
      %v6820 = vpop.xlane.xlu0 %6819
      %v6821 = vadd.f32 %v6263, %v6264
      %6822 = vadd.xlane.f32.xlu0 %v6821
      %v6823 = vpop.xlane.xlu0 %6822
      %v6824 = vadd.f32 %v6265, %v6266
      %6825 = vadd.xlane.f32.xlu0 %v6824
      %v6826 = vpop.xlane.xlu0 %6825
      %v6827 = vadd.f32 %v6267, %v6268
      %6828 = vadd.xlane.f32.xlu0 %v6827
      %v6829 = vpop.xlane.xlu0 %6828
      %v6830 = vadd.f32 %v6269, %v6270
      %6831 = vadd.xlane.f32.xlu0 %v6830
      %v6832 = vpop.xlane.xlu0 %6831
      %v6833 = vadd.f32 %v6271, %v6272
      %6834 = vadd.xlane.f32.xlu0 %v6833
      %v6835 = vpop.xlane.xlu0 %6834
      %v6836 = vadd.f32 %v6273, %v6274
      %6837 = vadd.xlane.f32.xlu0 %v6836
      %v6838 = vpop.xlane.xlu0 %6837
      %v6839 = vadd.f32 %v6275, %v6276
      %6840 = vadd.xlane.f32.xlu0 %v6839
      %v6841 = vpop.xlane.xlu0 %6840
      %v6842 = vadd.f32 %v6277, %v6278
      %6843 = vadd.xlane.f32.xlu0 %v6842
      %v6844 = vpop.xlane.xlu0 %6843
      %v6845 = vadd.f32 %v6279, %v6280
      %6846 = vadd.xlane.f32.xlu0 %v6845
      %v6847 = vpop.xlane.xlu0 %6846
      %v6848 = vadd.f32 %v6281, %v6282
      %6849 = vadd.xlane.f32.xlu0 %v6848
      %v6850 = vpop.xlane.xlu0 %6849
      %v6851 = vadd.f32 %v6283, %v6284
      %6852 = vadd.xlane.f32.xlu0 %v6851
      %v6853 = vpop.xlane.xlu0 %6852
      %v6854 = vadd.f32 %v6285, %v6286
      %6855 = vadd.xlane.f32.xlu0 %v6854
      %v6856 = vpop.xlane.xlu0 %6855
      %v6857 = vadd.f32 %v6287, %v6288
      %6858 = vadd.xlane.f32.xlu0 %v6857
      %v6859 = vpop.xlane.xlu0 %6858
      %v6860 = vadd.f32 %v6289, %v6290
      %6861 = vadd.xlane.f32.xlu0 %v6860
      %v6862 = vpop.xlane.xlu0 %6861
      %v6863 = vadd.f32 %v6291, %v6292
      %6864 = vadd.xlane.f32.xlu0 %v6863
      %v6865 = vpop.xlane.xlu0 %6864
      %v6866 = vadd.f32 %v6293, %v6294
      %6867 = vadd.xlane.f32.xlu0 %v6866
      %v6868 = vpop.xlane.xlu0 %6867
      %v6869 = vadd.f32 %v6295, %v6296
      %6870 = vadd.xlane.f32.xlu0 %v6869
      %v6871 = vpop.xlane.xlu0 %6870
      %v6872 = vadd.f32 %v6297, %v6298
      %6873 = vadd.xlane.f32.xlu0 %v6872
      %v6874 = vpop.xlane.xlu0 %6873
      %v6875 = vadd.f32 %v6299, %v6300
      %6876 = vadd.xlane.f32.xlu0 %v6875
      %v6877 = vpop.xlane.xlu0 %6876
      %v6878 = vadd.f32 %v6301, %v6302
      %6879 = vadd.xlane.f32.xlu0 %v6878
      %v6880 = vpop.xlane.xlu0 %6879
      %v6881 = vadd.f32 %v6303, %v6304
      %6882 = vadd.xlane.f32.xlu0 %v6881
      %v6883 = vpop.xlane.xlu0 %6882
      %v6884 = vadd.f32 %v6305, %v6306
      %6885 = vadd.xlane.f32.xlu0 %v6884
      %v6886 = vpop.xlane.xlu0 %6885
      %v6887 = vadd.f32 %v6307, %v6308
      %6888 = vadd.xlane.f32.xlu0 %v6887
      %v6889 = vpop.xlane.xlu0 %6888
      %v6890 = vadd.f32 %v6309, %v6310
      %6891 = vadd.xlane.f32.xlu0 %v6890
      %v6892 = vpop.xlane.xlu0 %6891
      %v6893 = vadd.f32 %v6311, %v6312
      %6894 = vadd.xlane.f32.xlu0 %v6893
      %v6895 = vpop.xlane.xlu0 %6894
      %v6896 = vadd.f32 %v6313, %v6314
      %6897 = vadd.xlane.f32.xlu0 %v6896
      %v6898 = vpop.xlane.xlu0 %6897
      %v6899 = vadd.f32 %v6315, %v6316
      %6900 = vadd.xlane.f32.xlu0 %v6899
      %v6901 = vpop.xlane.xlu0 %6900
      %v6902 = vadd.f32 %v6317, %v6318
      %6903 = vadd.xlane.f32.xlu0 %v6902
      %v6904 = vpop.xlane.xlu0 %6903
      %v6905 = vadd.f32 %v6319, %v6320
      %6906 = vadd.xlane.f32.xlu0 %v6905
      %v6907 = vpop.xlane.xlu0 %6906
      %v6908 = vadd.f32 %v6321, %v6322
      %6909 = vadd.xlane.f32.xlu0 %v6908
      %v6910 = vpop.xlane.xlu0 %6909
      %v6911 = vadd.f32 %v6323, %v6324
      %6912 = vadd.xlane.f32.xlu0 %v6911
      %v6913 = vpop.xlane.xlu0 %6912
      %v6914 = vadd.f32 %v6325, %v6326
      %6915 = vadd.xlane.f32.xlu0 %v6914
      %v6916 = vpop.xlane.xlu0 %6915
      %v6917 = vadd.f32 %v6327, %v6328
      %6918 = vadd.xlane.f32.xlu0 %v6917
      %v6919 = vpop.xlane.xlu0 %6918
      %v6920 = vadd.f32 %v6329, %v6330
      %6921 = vadd.xlane.f32.xlu0 %v6920
      %v6922 = vpop.xlane.xlu0 %6921
      %v6923 = vadd.f32 %v6331, %v6332
      %6924 = vadd.xlane.f32.xlu0 %v6923
      %v6925 = vpop.xlane.xlu0 %6924
      %v6926 = vadd.f32 %v6333, %v6334
      %6927 = vadd.xlane.f32.xlu0 %v6926
      %v6928 = vpop.xlane.xlu0 %6927
      %v6929 = vadd.f32 %v6335, %v6336
      %6930 = vadd.xlane.f32.xlu0 %v6929
      %v6931 = vpop.xlane.xlu0 %6930
      %v6932 = vadd.f32 %v6337, %v6338
      %6933 = vadd.xlane.f32.xlu0 %v6932
      %v6934 = vpop.xlane.xlu0 %6933
      %v6935 = vadd.f32 %v6339, %v6340
      %6936 = vadd.xlane.f32.xlu0 %v6935
      %v6937 = vpop.xlane.xlu0 %6936
      %v6938 = vadd.f32 %v6341, %v6342
      %6939 = vadd.xlane.f32.xlu0 %v6938
      %v6940 = vpop.xlane.xlu0 %6939
      %v6941 = vadd.f32 %v6343, %v6344
      %6942 = vadd.xlane.f32.xlu0 %v6941
      %v6943 = vpop.xlane.xlu0 %6942
      %v6944 = vadd.f32 %v6345, %v6346
      %6945 = vadd.xlane.f32.xlu0 %v6944
      %v6946 = vpop.xlane.xlu0 %6945
      %v6947 = vadd.f32 %v6347, %v6348
      %6948 = vadd.xlane.f32.xlu0 %v6947
      %v6949 = vpop.xlane.xlu0 %6948
      %v6950 = vadd.f32 %v6349, %v6350
      %6951 = vadd.xlane.f32.xlu0 %v6950
      %v6952 = vpop.xlane.xlu0 %6951
      %v6953 = vadd.f32 %v6351, %v6352
      %6954 = vadd.xlane.f32.xlu0 %v6953
      %v6955 = vpop.xlane.xlu0 %6954
      %v6956 = vadd.f32 %v6353, %v6354
      %6957 = vadd.xlane.f32.xlu0 %v6956
      %v6958 = vpop.xlane.xlu0 %6957
      %v6959 = vadd.f32 %v6355, %v6356
      %6960 = vadd.xlane.f32.xlu0 %v6959
      %v6961 = vpop.xlane.xlu0 %6960
      %v6962 = vadd.f32 %v6357, %v6358
      %6963 = vadd.xlane.f32.xlu0 %v6962
      %v6964 = vpop.xlane.xlu0 %6963
      %v6965 = vadd.f32 %v6359, %v6360
      %6966 = vadd.xlane.f32.xlu0 %v6965
      %v6967 = vpop.xlane.xlu0 %6966
      %v6968 = vadd.f32 %v6361, %v6362
      %6969 = vadd.xlane.f32.xlu0 %v6968
      %v6970 = vpop.xlane.xlu0 %6969
      %v6971 = vadd.f32 %v6363, %v6364
      %6972 = vadd.xlane.f32.xlu0 %v6971
      %v6973 = vpop.xlane.xlu0 %6972
      %v6974 = vadd.f32 %v6365, %v6366
      %6975 = vadd.xlane.f32.xlu0 %v6974
      %v6976 = vpop.xlane.xlu0 %6975
      %v6977 = vadd.f32 %v6367, %v6368
      %6978 = vadd.xlane.f32.xlu0 %v6977
      %v6979 = vpop.xlane.xlu0 %6978
      %v6980 = vadd.f32 %v6369, %v6370
      %6981 = vadd.xlane.f32.xlu0 %v6980
      %v6982 = vpop.xlane.xlu0 %6981
      %v6983 = vadd.f32 %v6371, %v6372
      %6984 = vadd.xlane.f32.xlu0 %v6983
      %v6985 = vpop.xlane.xlu0 %6984
      %v6986 = vadd.f32 %v6373, %v6374
      %6987 = vadd.xlane.f32.xlu0 %v6986
      %v6988 = vpop.xlane.xlu0 %6987
      %v6989 = vadd.f32 %v6375, %v6376
      %6990 = vadd.xlane.f32.xlu0 %v6989
      %v6991 = vpop.xlane.xlu0 %6990
      %v6992 = vadd.f32 %v6377, %v6378
      %6993 = vadd.xlane.f32.xlu0 %v6992
      %v6994 = vpop.xlane.xlu0 %6993
      %v6995 = vadd.f32 %v6379, %v6380
      %6996 = vadd.xlane.f32.xlu0 %v6995
      %v6997 = vpop.xlane.xlu0 %6996
      %v6998 = vadd.f32 %v6381, %v6382
      %6999 = vadd.xlane.f32.xlu0 %v6998
      %v7000 = vpop.xlane.xlu0 %6999
      %v7001 = vadd.f32 %v6383, %v6384
      %7002 = vadd.xlane.f32.xlu0 %v7001
      %v7003 = vpop.xlane.xlu0 %7002
      %v7004 = vadd.f32 %v6385, %v6386
      %7005 = vadd.xlane.f32.xlu0 %v7004
      %v7006 = vpop.xlane.xlu0 %7005
      %v7007 = vadd.f32 %v6387, %v6388
      %7008 = vadd.xlane.f32.xlu0 %v7007
      %v7009 = vpop.xlane.xlu0 %7008
      %v7010 = vadd.f32 %v6389, %v6390
      %7011 = vadd.xlane.f32.xlu0 %v7010
      %v7012 = vpop.xlane.xlu0 %7011
      %v7013 = vadd.f32 %v6391, %v6392
      %7014 = vadd.xlane.f32.xlu0 %v7013
      %v7015 = vpop.xlane.xlu0 %7014
      %v7016 = vadd.f32 %v6393, %v6394
      %7017 = vadd.xlane.f32.xlu0 %v7016
      %v7018 = vpop.xlane.xlu0 %7017
      %v7019 = vadd.f32 %v6395, %v6396
      %7020 = vadd.xlane.f32.xlu0 %v7019
      %v7021 = vpop.xlane.xlu0 %7020
      %v7022 = vadd.f32 %v6397, %v6398
      %7023 = vadd.xlane.f32.xlu0 %v7022
      %v7024 = vpop.xlane.xlu0 %7023
      %v7025 = vadd.f32 %v6399, %v6400
      %7026 = vadd.xlane.f32.xlu0 %v7025
      %v7027 = vpop.xlane.xlu0 %7026
      %v7028 = vadd.f32 %v6401, %v6402
      %7029 = vadd.xlane.f32.xlu0 %v7028
      %v7030 = vpop.xlane.xlu0 %7029
      %v7031 = vadd.f32 %v6403, %v6404
      %7032 = vadd.xlane.f32.xlu0 %v7031
      %v7033 = vpop.xlane.xlu0 %7032
      %v7034 = vadd.f32 %v6405, %v6406
      %7035 = vadd.xlane.f32.xlu0 %v7034
      %v7036 = vpop.xlane.xlu0 %7035
      %v7037 = vadd.f32 %v6407, %v6408
      %7038 = vadd.xlane.f32.xlu0 %v7037
      %v7039 = vpop.xlane.xlu0 %7038
      %v7040 = vadd.f32 %v6409, %v6410
      %7041 = vadd.xlane.f32.xlu0 %v7040
      %v7042 = vpop.xlane.xlu0 %7041
      %v7043 = vadd.f32 %v6411, %v6412
      %7044 = vadd.xlane.f32.xlu0 %v7043
      %v7045 = vpop.xlane.xlu0 %7044
      %v7046 = vadd.f32 %v6413, %v6414
      %7047 = vadd.xlane.f32.xlu0 %v7046
      %v7048 = vpop.xlane.xlu0 %7047
      %v7049 = vadd.f32 %v6415, %v6416
      %7050 = vadd.xlane.f32.xlu0 %v7049
      %v7051 = vpop.xlane.xlu0 %7050
      %v7052 = vadd.f32 %v6417, %v6418
      %7053 = vadd.xlane.f32.xlu0 %v7052
      %v7054 = vpop.xlane.xlu0 %7053
      %v7055 = vadd.f32 %v6419, %v6420
      %7056 = vadd.xlane.f32.xlu0 %v7055
      %v7057 = vpop.xlane.xlu0 %7056
      %v7058 = vadd.f32 %v6421, %v6422
      %7059 = vadd.xlane.f32.xlu0 %v7058
      %v7060 = vpop.xlane.xlu0 %7059
      %v7061 = vadd.f32 %v6423, %v6424
      %7062 = vadd.xlane.f32.xlu0 %v7061
      %v7063 = vpop.xlane.xlu0 %7062
      %v7064 = vadd.f32 %v6425, %v6426
      %7065 = vadd.xlane.f32.xlu0 %v7064
      %v7066 = vpop.xlane.xlu0 %7065
      %v7067 = vadd.f32 %v6427, %v6428
      %7068 = vadd.xlane.f32.xlu0 %v7067
      %v7069 = vpop.xlane.xlu0 %7068
      %v7070 = vadd.f32 %v6429, %v6430
      %7071 = vadd.xlane.f32.xlu0 %v7070
      %v7072 = vpop.xlane.xlu0 %7071
      %v7073 = vadd.f32 %v6431, %v6432
      %7074 = vadd.xlane.f32.xlu0 %v7073
      %v7075 = vpop.xlane.xlu0 %7074
      %v7076 = vadd.f32 %v6433, %v6434
      %7077 = vadd.xlane.f32.xlu0 %v7076
      %v7078 = vpop.xlane.xlu0 %7077
      %v7079 = vadd.f32 %v6435, %v6436
      %7080 = vadd.xlane.f32.xlu0 %v7079
      %v7081 = vpop.xlane.xlu0 %7080
      %v7082 = vadd.f32 %v6437, %v6438
      %7083 = vadd.xlane.f32.xlu0 %v7082
      %v7084 = vpop.xlane.xlu0 %7083
      %v7085 = vadd.f32 %v6439, %v6440
      %7086 = vadd.xlane.f32.xlu0 %v7085
      %v7087 = vpop.xlane.xlu0 %7086
      %v7088 = vadd.f32 %v6441, %v6442
      %7089 = vadd.xlane.f32.xlu0 %v7088
      %v7090 = vpop.xlane.xlu0 %7089
      %v7091 = vadd.f32 %v6443, %v6444
      %7092 = vadd.xlane.f32.xlu0 %v7091
      %v7093 = vpop.xlane.xlu0 %7092
      %v7094 = vadd.f32 %v6445, %v6446
      %7095 = vadd.xlane.f32.xlu0 %v7094
      %v7096 = vpop.xlane.xlu0 %7095
      %v7097 = vadd.f32 %v6447, %v6448
      %7098 = vadd.xlane.f32.xlu0 %v7097
      %v7099 = vpop.xlane.xlu0 %7098
      %v7100 = vadd.f32 %v6449, %v6450
      %7101 = vadd.xlane.f32.xlu0 %v7100
      %v7102 = vpop.xlane.xlu0 %7101
      %v7103 = vadd.f32 %v6451, %v6452
      %7104 = vadd.xlane.f32.xlu0 %v7103
      %v7105 = vpop.xlane.xlu0 %7104
      %v7106 = vadd.f32 %v6453, %v6454
      %7107 = vadd.xlane.f32.xlu0 %v7106
      %v7108 = vpop.xlane.xlu0 %7107
      %v7109 = vadd.f32 %v6455, %v6456
      %7110 = vadd.xlane.f32.xlu0 %v7109
      %v7111 = vpop.xlane.xlu0 %7110
      %v7112 = vadd.f32 %v6457, %v6458
      %7113 = vadd.xlane.f32.xlu0 %v7112
      %v7114 = vpop.xlane.xlu0 %7113
      %v7115 = vadd.f32 %v6459, %v6460
      %7116 = vadd.xlane.f32.xlu0 %v7115
      %v7117 = vpop.xlane.xlu0 %7116
      %v7118 = vadd.f32 %v6461, %v6462
      %7119 = vadd.xlane.f32.xlu0 %v7118
      %v7120 = vpop.xlane.xlu0 %7119
      %v7121 = vadd.f32 %v6463, %v6464
      %7122 = vadd.xlane.f32.xlu0 %v7121
      %v7123 = vpop.xlane.xlu0 %7122
      %v7124 = vadd.f32 %v6465, %v6466
      %7125 = vadd.xlane.f32.xlu0 %v7124
      %v7126 = vpop.xlane.xlu0 %7125
      %v7127 = vadd.f32 %v6467, %v6468
      %7128 = vadd.xlane.f32.xlu0 %v7127
      %v7129 = vpop.xlane.xlu0 %7128
      %v7130 = vadd.f32 %v6469, %v6470
      %7131 = vadd.xlane.f32.xlu0 %v7130
      %v7132 = vpop.xlane.xlu0 %7131
      %v7133 = vadd.f32 %v6471, %v6472
      %7134 = vadd.xlane.f32.xlu0 %v7133
      %v7135 = vpop.xlane.xlu0 %7134
      %v7136 = vadd.f32 %v6473, %v6474
      %7137 = vadd.xlane.f32.xlu0 %v7136
      %v7138 = vpop.xlane.xlu0 %7137
      %v7139 = vadd.f32 %v6475, %v6476
      %7140 = vadd.xlane.f32.xlu0 %v7139
      %v7141 = vpop.xlane.xlu0 %7140
      %v7142 = vadd.f32 %v6477, %v6478
      %7143 = vadd.xlane.f32.xlu0 %v7142
      %v7144 = vpop.xlane.xlu0 %7143
      %v7145 = vadd.f32 %v6479, %v6480
      %7146 = vadd.xlane.f32.xlu0 %v7145
      %v7147 = vpop.xlane.xlu0 %7146
      %v7148 = vadd.f32 %v6481, %v6482
      %7149 = vadd.xlane.f32.xlu0 %v7148
      %v7150 = vpop.xlane.xlu0 %7149
      %v7151 = vadd.f32 %v6483, %v6484
      %7152 = vadd.xlane.f32.xlu0 %v7151
      %v7153 = vpop.xlane.xlu0 %7152
      %v7154 = vadd.f32 %v6485, %v6486
      %7155 = vadd.xlane.f32.xlu0 %v7154
      %v7156 = vpop.xlane.xlu0 %7155
      %v7157 = vadd.f32 %v6487, %v6488
      %7158 = vadd.xlane.f32.xlu0 %v7157
      %v7159 = vpop.xlane.xlu0 %7158
      %v7160 = vadd.f32 %v6489, %v6490
      %7161 = vadd.xlane.f32.xlu0 %v7160
      %v7162 = vpop.xlane.xlu0 %7161
      %v7163 = vadd.f32 %v6491, %v6492
      %7164 = vadd.xlane.f32.xlu0 %v7163
      %v7165 = vpop.xlane.xlu0 %7164
      %v7166 = vadd.f32 %v6493, %v6494
      %7167 = vadd.xlane.f32.xlu0 %v7166
      %v7168 = vpop.xlane.xlu0 %7167
      %v7169 = vadd.f32 %v6495, %v6496
      %7170 = vadd.xlane.f32.xlu0 %v7169
      %v7171 = vpop.xlane.xlu0 %7170
      %v7172 = vadd.f32 %v6497, %v6498
      %7173 = vadd.xlane.f32.xlu0 %v7172
      %v7174 = vpop.xlane.xlu0 %7173
      %v7175 = vadd.f32 %v6499, %v6500
      %7176 = vadd.xlane.f32.xlu0 %v7175
      %v7177 = vpop.xlane.xlu0 %7176
      %v7178 = vadd.f32 %v6501, %v6502
      %7179 = vadd.xlane.f32.xlu0 %v7178
      %v7180 = vpop.xlane.xlu0 %7179
      %v7181 = vadd.f32 %v6503, %v6504
      %7182 = vadd.xlane.f32.xlu0 %v7181
      %v7183 = vpop.xlane.xlu0 %7182
      %v7184 = vadd.f32 %v6505, %v6506
      %7185 = vadd.xlane.f32.xlu0 %v7184
      %v7186 = vpop.xlane.xlu0 %7185
      %v7187 = vadd.f32 %v6507, %v6508
      %7188 = vadd.xlane.f32.xlu0 %v7187
      %v7189 = vpop.xlane.xlu0 %7188
      %v7190 = vadd.f32 %v6509, %v6510
      %7191 = vadd.xlane.f32.xlu0 %v7190
      %v7192 = vpop.xlane.xlu0 %7191
      %v7193 = vadd.f32 %v6511, %v6512
      %7194 = vadd.xlane.f32.xlu0 %v7193
      %v7195 = vpop.xlane.xlu0 %7194
      %v7196 = vadd.f32 %v6513, %v6514
      %7197 = vadd.xlane.f32.xlu0 %v7196
      %v7198 = vpop.xlane.xlu0 %7197
      %v7199 = vadd.f32 %v6515, %v6516
      %7200 = vadd.xlane.f32.xlu0 %v7199
      %v7201 = vpop.xlane.xlu0 %7200
      %v7202 = vadd.f32 %v6517, %v6518
      %7203 = vadd.xlane.f32.xlu0 %v7202
      %v7204 = vpop.xlane.xlu0 %7203
      %v7205 = vadd.f32 %v6519, %v6520
      %7206 = vadd.xlane.f32.xlu0 %v7205
      %v7207 = vpop.xlane.xlu0 %7206
      %v7208 = vadd.f32 %v6521, %v6522
      %7209 = vadd.xlane.f32.xlu0 %v7208
      %v7210 = vpop.xlane.xlu0 %7209
      %v7211 = vadd.f32 %v6523, %v6524
      %7212 = vadd.xlane.f32.xlu0 %v7211
      %v7213 = vpop.xlane.xlu0 %7212
      %v7214 = vadd.f32 %v6525, %v6526
      %7215 = vadd.xlane.f32.xlu0 %v7214
      %v7216 = vpop.xlane.xlu0 %7215
      %v7217 = vadd.f32 %v6527, %v6528
      %7218 = vadd.xlane.f32.xlu0 %v7217
      %v7219 = vpop.xlane.xlu0 %7218
      %v7220 = vadd.f32 %v6529, %v6530
      %7221 = vadd.xlane.f32.xlu0 %v7220
      %v7222 = vpop.xlane.xlu0 %7221
      %v7223 = vadd.f32 %v6531, %v6532
      %7224 = vadd.xlane.f32.xlu0 %v7223
      %v7225 = vpop.xlane.xlu0 %7224
      %v7226 = vadd.f32 %v6533, %v6534
      %7227 = vadd.xlane.f32.xlu0 %v7226
      %v7228 = vpop.xlane.xlu0 %7227
      %v7229 = vadd.f32 %v6535, %v6536
      %7230 = vadd.xlane.f32.xlu0 %v7229
      %v7231 = vpop.xlane.xlu0 %7230
      %v7232 = vadd.f32 %v6537, %v6538
      %7233 = vadd.xlane.f32.xlu0 %v7232
      %v7234 = vpop.xlane.xlu0 %7233
      %v7235 = vadd.f32 %v6539, %v6540
      %7236 = vadd.xlane.f32.xlu0 %v7235
      %v7237 = vpop.xlane.xlu0 %7236
      %v7238 = vadd.f32 %v6541, %v6542
      %7239 = vadd.xlane.f32.xlu0 %v7238
      %v7240 = vpop.xlane.xlu0 %7239
      %v7241 = vadd.f32 %v6543, %v6544
      %7242 = vadd.xlane.f32.xlu0 %v7241
      %v7243 = vpop.xlane.xlu0 %7242
      %v7244 = vadd.f32 %v6545, %v6546
      %7245 = vadd.xlane.f32.xlu0 %v7244
      %v7246 = vpop.xlane.xlu0 %7245
      %v7247 = vadd.f32 %v6547, %v6548
      %7248 = vadd.xlane.f32.xlu0 %v7247
      %v7249 = vpop.xlane.xlu0 %7248
      %v7250 = vadd.f32 %v6549, %v6550
      %7251 = vadd.xlane.f32.xlu0 %v7250
      %v7252 = vpop.xlane.xlu0 %7251
      %v7253 = vadd.f32 %v6551, %v6552
      %7254 = vadd.xlane.f32.xlu0 %v7253
      %v7255 = vpop.xlane.xlu0 %7254
      %v7256 = vadd.f32 %v6553, %v6554
      %7257 = vadd.xlane.f32.xlu0 %v7256
      %v7258 = vpop.xlane.xlu0 %7257
      %v7259 = vadd.f32 %v6555, %v6556
      %7260 = vadd.xlane.f32.xlu0 %v7259
      %v7261 = vpop.xlane.xlu0 %7260
      %v7262 = vadd.f32 %v6557, %v6558
      %7263 = vadd.xlane.f32.xlu0 %v7262
      %v7264 = vpop.xlane.xlu0 %7263
      %v7265 = vadd.f32 %v6559, %v6560
      %7266 = vadd.xlane.f32.xlu0 %v7265
      %v7267 = vpop.xlane.xlu0 %7266
      %v7268 = vadd.f32 %v6561, %v6562
      %7269 = vadd.xlane.f32.xlu0 %v7268
      %v7270 = vpop.xlane.xlu0 %7269
      %v7271 = vadd.f32 %v6563, %v6564
      %7272 = vadd.xlane.f32.xlu0 %v7271
      %v7273 = vpop.xlane.xlu0 %7272
      %v7274 = vadd.f32 %v6565, %v6566
      %7275 = vadd.xlane.f32.xlu0 %v7274
      %v7276 = vpop.xlane.xlu0 %7275
      %v7277 = vadd.f32 %v6567, %v6568
      %7278 = vadd.xlane.f32.xlu0 %v7277
      %v7279 = vpop.xlane.xlu0 %7278
      %v7280 = vadd.f32 %v6569, %v6570
      %7281 = vadd.xlane.f32.xlu0 %v7280
      %v7282 = vpop.xlane.xlu0 %7281
      %v7283 = vadd.f32 %v6571, %v6572
      %7284 = vadd.xlane.f32.xlu0 %v7283
      %v7285 = vpop.xlane.xlu0 %7284
      %v7286 = vadd.f32 %v6573, %v6574
      %7287 = vadd.xlane.f32.xlu0 %v7286
      %v7288 = vpop.xlane.xlu0 %7287
      %v7289 = vadd.f32 %v6575, %v6576
      %7290 = vadd.xlane.f32.xlu0 %v7289
      %v7291 = vpop.xlane.xlu0 %7290
      %v7292 = vadd.f32 %v6577, %v6578
      %7293 = vadd.xlane.f32.xlu0 %v7292
      %v7294 = vpop.xlane.xlu0 %7293
      %v7295 = vadd.f32 %v6579, %v6580
      %7296 = vadd.xlane.f32.xlu0 %v7295
      %v7297 = vpop.xlane.xlu0 %7296
      %v7298 = vadd.f32 %v6581, %v6582
      %7299 = vadd.xlane.f32.xlu0 %v7298
      %v7300 = vpop.xlane.xlu0 %7299
      %v7301 = vadd.f32 %v6583, %v6584
      %7302 = vadd.xlane.f32.xlu0 %v7301
      %v7303 = vpop.xlane.xlu0 %7302
      %v7304 = vadd.f32 %v6585, %v6586
      %7305 = vadd.xlane.f32.xlu0 %v7304
      %v7306 = vpop.xlane.xlu0 %7305
      %v7307 = vadd.f32 %v6587, %v6588
      %7308 = vadd.xlane.f32.xlu0 %v7307
      %v7309 = vpop.xlane.xlu0 %7308
      %v7310 = vadd.f32 %v6589, %v6590
      %7311 = vadd.xlane.f32.xlu0 %v7310
      %v7312 = vpop.xlane.xlu0 %7311
      %v7313 = vadd.f32 %v6591, %v6592
      %7314 = vadd.xlane.f32.xlu0 %v7313
      %v7315 = vpop.xlane.xlu0 %7314
      %v7316 = vadd.f32 %v6593, %v6594
      %7317 = vadd.xlane.f32.xlu0 %v7316
      %v7318 = vpop.xlane.xlu0 %7317
      %v7319 = vadd.f32 %v6595, %v6596
      %7320 = vadd.xlane.f32.xlu0 %v7319
      %v7321 = vpop.xlane.xlu0 %7320
      %v7322 = vadd.f32 %v6597, %v6598
      %7323 = vadd.xlane.f32.xlu0 %v7322
      %v7324 = vpop.xlane.xlu0 %7323
      %v7325 = vadd.f32 %v6599, %v6600
      %7326 = vadd.xlane.f32.xlu0 %v7325
      %v7327 = vpop.xlane.xlu0 %7326
      %v7328 = vadd.f32 %v6601, %v6602
      %7329 = vadd.xlane.f32.xlu0 %v7328
      %v7330 = vpop.xlane.xlu0 %7329
      %v7331 = vadd.f32 %v6603, %v6604
      %7332 = vadd.xlane.f32.xlu0 %v7331
      %v7333 = vpop.xlane.xlu0 %7332
      %v7334 = vadd.f32 %v6605, %v6606
      %7335 = vadd.xlane.f32.xlu0 %v7334
      %v7336 = vpop.xlane.xlu0 %7335
      %v7337 = vadd.f32 %v6607, %v6608
      %7338 = vadd.xlane.f32.xlu0 %v7337
      %v7339 = vpop.xlane.xlu0 %7338
      %v7340 = vadd.f32 %v6609, %v6610
      %7341 = vadd.xlane.f32.xlu0 %v7340
      %v7342 = vpop.xlane.xlu0 %7341
      %v7343 = vadd.f32 %v6611, %v6612
      %7344 = vadd.xlane.f32.xlu0 %v7343
      %v7345 = vpop.xlane.xlu0 %7344
      %v7346 = vadd.f32 %v6613, %v6614
      %7347 = vadd.xlane.f32.xlu0 %v7346
      %v7348 = vpop.xlane.xlu0 %7347
      %v7349 = vadd.f32 %v6615, %v6616
      %7350 = vadd.xlane.f32.xlu0 %v7349
      %v7351 = vpop.xlane.xlu0 %7350
      %v7352 = vadd.f32 %v6617, %v6618
      %7353 = vadd.xlane.f32.xlu0 %v7352
      %v7354 = vpop.xlane.xlu0 %7353
      %v7355 = vadd.f32 %v6619, %v6620
      %7356 = vadd.xlane.f32.xlu0 %v7355
      %v7357 = vpop.xlane.xlu0 %7356
      %v7358 = vadd.f32 %v6621, %v6622
      %7359 = vadd.xlane.f32.xlu0 %v7358
      %v7360 = vpop.xlane.xlu0 %7359
      %v7361 = vadd.f32 %v6623, %v6624
      %7362 = vadd.xlane.f32.xlu0 %v7361
      %v7363 = vpop.xlane.xlu0 %7362
      %v7364 = vadd.f32 %v6625, %v6626
      %7365 = vadd.xlane.f32.xlu0 %v7364
      %v7366 = vpop.xlane.xlu0 %7365
      %v7367 = vadd.f32 %v6627, %v6628
      %7368 = vadd.xlane.f32.xlu0 %v7367
      %v7369 = vpop.xlane.xlu0 %7368
      %v7370 = vadd.f32 %v6629, %v6630
      %7371 = vadd.xlane.f32.xlu0 %v7370
      %v7372 = vpop.xlane.xlu0 %7371
      %v7373 = vadd.f32 %v6631, %v6632
      %7374 = vadd.xlane.f32.xlu0 %v7373
      %v7375 = vpop.xlane.xlu0 %7374
      %v7376 = vadd.f32 %v6633, %v6634
      %7377 = vadd.xlane.f32.xlu0 %v7376
      %v7378 = vpop.xlane.xlu0 %7377
      %v7379 = vadd.f32 %v6635, %v6636
      %7380 = vadd.xlane.f32.xlu0 %v7379
      %v7381 = vpop.xlane.xlu0 %7380
      %v7382 = vadd.f32 %v6637, %v6638
      %7383 = vadd.xlane.f32.xlu0 %v7382
      %v7384 = vpop.xlane.xlu0 %7383
      %v7385 = vadd.f32 %v6639, %v6640
      %7386 = vadd.xlane.f32.xlu0 %v7385
      %v7387 = vpop.xlane.xlu0 %7386
      %v7388 = vadd.f32 %v6641, %v6642
      %7389 = vadd.xlane.f32.xlu0 %v7388
      %v7390 = vpop.xlane.xlu0 %7389
      %v7391 = vadd.f32 %v6643, %v6644
      %7392 = vadd.xlane.f32.xlu0 %v7391
      %v7393 = vpop.xlane.xlu0 %7392
      %v7394 = vadd.f32 %v6645, %v6646
      %7395 = vadd.xlane.f32.xlu0 %v7394
      %v7396 = vpop.xlane.xlu0 %7395
      %v7397 = vadd.f32 %v6647, %v6648
      %7398 = vadd.xlane.f32.xlu0 %v7397
      %v7399 = vpop.xlane.xlu0 %7398
      %v7400 = vadd.f32 %v6649, %v6650
      %7401 = vadd.xlane.f32.xlu0 %v7400
      %v7402 = vpop.xlane.xlu0 %7401
      %v7403 = vadd.f32 %v6651, %v6652
      %7404 = vadd.xlane.f32.xlu0 %v7403
      %v7405 = vpop.xlane.xlu0 %7404
      %v7406 = vadd.f32 %v6653, %v6654
      %7407 = vadd.xlane.f32.xlu0 %v7406
      %v7408 = vpop.xlane.xlu0 %7407
      %v7409 = vadd.f32 %v6655, %v6656
      %7410 = vadd.xlane.f32.xlu0 %v7409
      %v7411 = vpop.xlane.xlu0 %7410
      %v7412 = vadd.f32 %v6657, %v6658
      %7413 = vadd.xlane.f32.xlu0 %v7412
      %v7414 = vpop.xlane.xlu0 %7413
      %v7415 = vadd.f32 %v6659, %v6660
      %7416 = vadd.xlane.f32.xlu0 %v7415
      %v7417 = vpop.xlane.xlu0 %7416
      %v7418 = vadd.f32 %v6661, %v6662
      %7419 = vadd.xlane.f32.xlu0 %v7418
      %v7420 = vpop.xlane.xlu0 %7419
      %v7421 = vadd.f32 %v6663, %v6664
      %7422 = vadd.xlane.f32.xlu0 %v7421
      %v7423 = vpop.xlane.xlu0 %7422
      %v7424 = vadd.f32 %v6665, %v6666
      %7425 = vadd.xlane.f32.xlu0 %v7424
      %v7426 = vpop.xlane.xlu0 %7425
      %v7427 = vadd.f32 %v6667, %v6668
      %7428 = vadd.xlane.f32.xlu0 %v7427
      %v7429 = vpop.xlane.xlu0 %7428
      %v7430 = vadd.f32 %v6669, %v6670
      %7431 = vadd.xlane.f32.xlu0 %v7430
      %v7432 = vpop.xlane.xlu0 %7431
      %v7433 = vadd.f32 %v6671, %v6672
      %7434 = vadd.xlane.f32.xlu0 %v7433
      %v7435 = vpop.xlane.xlu0 %7434
      %v7436 = vadd.f32 %v6673, %v6674
      %7437 = vadd.xlane.f32.xlu0 %v7436
      %v7438 = vpop.xlane.xlu0 %7437
      %v7439 = vadd.f32 %v6675, %v6676
      %7440 = vadd.xlane.f32.xlu0 %v7439
      %v7441 = vpop.xlane.xlu0 %7440
      %v7442 = vadd.f32 %v6677, %v6678
      %7443 = vadd.xlane.f32.xlu0 %v7442
      %v7444 = vpop.xlane.xlu0 %7443
      %v7445 = vadd.f32 %v6679, %v6680
      %7446 = vadd.xlane.f32.xlu0 %v7445
      %v7447 = vpop.xlane.xlu0 %7446
      %v7448 = vadd.f32 %v6681, %v6682
      %7449 = vadd.xlane.f32.xlu0 %v7448
      %v7450 = vpop.xlane.xlu0 %7449
      %7451 = vmatprep.subr.bf16.mxu0 %v5408
      %7452 = vmatpush1.bf16.xpose.msra.mxu0 %v5405
      %7453 = vmatprep.subr.bf16.mxu0 %v5414
      %7454 = vmatpush1.bf16.xpose.msra.mxu0 %v5411
      %7455 = vmatprep.subr.bf16.mxu0 %v5420
      %7456 = vmatpush1.bf16.xpose.msra.mxu0 %v5417
      %7457 = vmatprep.subr.bf16.mxu0 %v5426
      %7458 = vmatpush1.bf16.xpose.msra.mxu0 %v5423
      %7459 = vmatprep.subr.bf16.mxu0 %v5432
      %7460 = vmatpush1.bf16.xpose.msra.mxu0 %v5429
      %7461 = vmatprep.subr.bf16.mxu0 %v5438
      %7462 = vmatpush1.bf16.xpose.msra.mxu0 %v5435
      %7463 = vmatprep.subr.bf16.mxu0 %v5444
      %7464 = vmatpush1.bf16.xpose.msra.mxu0 %v5441
      %7465 = vmatprep.subr.bf16.mxu0 %v5450
      %7466 = vmatpush1.bf16.xpose.msra.mxu0 %v5447
      %7467 = vmatprep.subr.bf16.mxu0 %v5456
      %7468 = vmatpush1.bf16.xpose.msra.mxu0 %v5453
      %7469 = vmatprep.subr.bf16.mxu0 %v5462
      %7470 = vmatpush1.bf16.xpose.msra.mxu0 %v5459
      %7471 = vmatprep.subr.bf16.mxu0 %v5468
      %7472 = vmatpush1.bf16.xpose.msra.mxu0 %v5465
      %7473 = vmatprep.subr.bf16.mxu0 %v5474
      %7474 = vmatpush1.bf16.xpose.msra.mxu0 %v5471
      %7475 = vmatprep.subr.bf16.mxu0 %v5480
      %7476 = vmatpush1.bf16.xpose.msra.mxu0 %v5477
      %7477 = vmatprep.subr.bf16.mxu0 %v5486
      %7478 = vmatpush1.bf16.xpose.msra.mxu0 %v5483
      %7479 = vmatprep.subr.bf16.mxu0 %v5492
      %7480 = vmatpush1.bf16.xpose.msra.mxu0 %v5489
      %7481 = vmatprep.subr.bf16.mxu0 %v5498
      %7482 = vmatpush1.bf16.xpose.msra.mxu0 %v5495
      %7483 = vmatprep.mubr.bf16.mxu0 %v1667
      %7484 = vmatmul.mubr.bf16.gmra.mrb[0].mxu0 %v1666
      %v7485 = vpop.f32.mrb[0].mxu0
      %v7486 = vadd.f32 0.0, %v7485
      %v7487 = vpop.f32.mrb[0].mxu0
      %v7488 = vadd.f32 0.0, %v7487
      %v7489 = vpop.f32.mrb[0].mxu0
      %v7490 = vadd.f32 0.0, %v7489
      %v7491 = vpop.f32.mrb[0].mxu0
      %v7492 = vadd.f32 0.0, %v7491
      %7493 = vdwg.mxu0
      %7494 = vmatprep.subr.bf16.mxu0 %v5504
      %7495 = vmatpush1.bf16.xpose.msra.mxu0 %v5501
      %7496 = vmatprep.subr.bf16.mxu0 %v5510
      %7497 = vmatpush1.bf16.xpose.msra.mxu0 %v5507
      %7498 = vmatprep.subr.bf16.mxu0 %v5516
      %7499 = vmatpush1.bf16.xpose.msra.mxu0 %v5513
      %7500 = vmatprep.subr.bf16.mxu0 %v5522
      %7501 = vmatpush1.bf16.xpose.msra.mxu0 %v5519
      %7502 = vmatprep.subr.bf16.mxu0 %v5528
      %7503 = vmatpush1.bf16.xpose.msra.mxu0 %v5525
      %7504 = vmatprep.subr.bf16.mxu0 %v5534
      %7505 = vmatpush1.bf16.xpose.msra.mxu0 %v5531
      %7506 = vmatprep.subr.bf16.mxu0 %v5540
      %7507 = vmatpush1.bf16.xpose.msra.mxu0 %v5537
      %7508 = vmatprep.subr.bf16.mxu0 %v5546
      %7509 = vmatpush1.bf16.xpose.msra.mxu0 %v5543
      %7510 = vmatprep.subr.bf16.mxu0 %v5552
      %7511 = vmatpush1.bf16.xpose.msra.mxu0 %v5549
      %7512 = vmatprep.subr.bf16.mxu0 %v5558
      %7513 = vmatpush1.bf16.xpose.msra.mxu0 %v5555
      %7514 = vmatprep.subr.bf16.mxu0 %v5564
      %7515 = vmatpush1.bf16.xpose.msra.mxu0 %v5561
      %7516 = vmatprep.subr.bf16.mxu0 %v5570
      %7517 = vmatpush1.bf16.xpose.msra.mxu0 %v5567
      %7518 = vmatprep.subr.bf16.mxu0 %v5576
      %7519 = vmatpush1.bf16.xpose.msra.mxu0 %v5573
      %7520 = vmatprep.subr.bf16.mxu0 %v5582
      %7521 = vmatpush1.bf16.xpose.msra.mxu0 %v5579
      %7522 = vmatprep.subr.bf16.mxu0 %v5588
      %7523 = vmatpush1.bf16.xpose.msra.mxu0 %v5585
      %7524 = vmatprep.subr.bf16.mxu0 %v5594
      %7525 = vmatpush1.bf16.xpose.msra.mxu0 %v5591
      %7526 = vmatprep.mubr.bf16.mxu0 %v1669
      %7527 = vmatmul.mubr.bf16.gmra.mrb[0].mxu0 %v1668
      %v7528 = vpop.f32.mrb[0].mxu0
      %v7529 = vadd.f32 0.0, %v7528
      %v7530 = vpop.f32.mrb[0].mxu0
      %v7531 = vadd.f32 0.0, %v7530
      %v7532 = vpop.f32.mrb[0].mxu0
      %v7533 = vadd.f32 0.0, %v7532
      %v7534 = vpop.f32.mrb[0].mxu0
      %v7535 = vadd.f32 0.0, %v7534
      %7536 = vdwg.mxu0
      %7537 = vmatprep.subr.bf16.mxu0 %v5600
      %7538 = vmatpush1.bf16.xpose.msra.mxu0 %v5597
      %7539 = vmatprep.subr.bf16.mxu0 %v5606
      %7540 = vmatpush1.bf16.xpose.msra.mxu0 %v5603
      %7541 = vmatprep.subr.bf16.mxu0 %v5612
      %7542 = vmatpush1.bf16.xpose.msra.mxu0 %v5609
      %7543 = vmatprep.subr.bf16.mxu0 %v5618
      %7544 = vmatpush1.bf16.xpose.msra.mxu0 %v5615
      %7545 = vmatprep.subr.bf16.mxu0 %v5624
      %7546 = vmatpush1.bf16.xpose.msra.mxu0 %v5621
      %7547 = vmatprep.subr.bf16.mxu0 %v5630
      %7548 = vmatpush1.bf16.xpose.msra.mxu0 %v5627
      %7549 = vmatprep.subr.bf16.mxu0 %v5636
      %7550 = vmatpush1.bf16.xpose.msra.mxu0 %v5633
      %7551 = vmatprep.subr.bf16.mxu0 %v5642
      %7552 = vmatpush1.bf16.xpose.msra.mxu0 %v5639
      %7553 = vmatprep.subr.bf16.mxu0 %v5648
      %7554 = vmatpush1.bf16.xpose.msra.mxu0 %v5645
      %7555 = vmatprep.subr.bf16.mxu0 %v5654
      %7556 = vmatpush1.bf16.xpose.msra.mxu0 %v5651
      %7557 = vmatprep.subr.bf16.mxu0 %v5660
      %7558 = vmatpush1.bf16.xpose.msra.mxu0 %v5657
      %7559 = vmatprep.subr.bf16.mxu0 %v5666
      %7560 = vmatpush1.bf16.xpose.msra.mxu0 %v5663
      %7561 = vmatprep.subr.bf16.mxu0 %v5672
      %7562 = vmatpush1.bf16.xpose.msra.mxu0 %v5669
      %7563 = vmatprep.subr.bf16.mxu0 %v5678
      %7564 = vmatpush1.bf16.xpose.msra.mxu0 %v5675
      %7565 = vmatprep.subr.bf16.mxu0 %v5684
      %7566 = vmatpush1.bf16.xpose.msra.mxu0 %v5681
      %7567 = vmatprep.subr.bf16.mxu0 %v5690
      %7568 = vmatpush1.bf16.xpose.msra.mxu0 %v5687
      %7569 = vmatprep.mubr.bf16.mxu0 %v1671
      %7570 = vmatmul.mubr.bf16.gmra.mrb[0].mxu0 %v1670
      %v7571 = vpop.f32.mrb[0].mxu0
      %v7572 = vadd.f32 0.0, %v7571
      %v7573 = vpop.f32.mrb[0].mxu0
      %v7574 = vadd.f32 0.0, %v7573
      %v7575 = vpop.f32.mrb[0].mxu0
      %v7576 = vadd.f32 0.0, %v7575
      %v7577 = vpop.f32.mrb[0].mxu0
      %v7578 = vadd.f32 0.0, %v7577
      %7579 = vdwg.mxu0
      %7580 = vmatprep.subr.bf16.mxu0 %v5696
      %7581 = vmatpush1.bf16.xpose.msra.mxu0 %v5693
      %7582 = vmatprep.subr.bf16.mxu0 %v5702
      %7583 = vmatpush1.bf16.xpose.msra.mxu0 %v5699
      %7584 = vmatprep.subr.bf16.mxu0 %v5708
      %7585 = vmatpush1.bf16.xpose.msra.mxu0 %v5705
      %7586 = vmatprep.subr.bf16.mxu0 %v5714
      %7587 = vmatpush1.bf16.xpose.msra.mxu0 %v5711
      %7588 = vmatprep.subr.bf16.mxu0 %v5720
      %7589 = vmatpush1.bf16.xpose.msra.mxu0 %v5717
      %7590 = vmatprep.subr.bf16.mxu0 %v5726
      %7591 = vmatpush1.bf16.xpose.msra.mxu0 %v5723
      %7592 = vmatprep.subr.bf16.mxu0 %v5732
      %7593 = vmatpush1.bf16.xpose.msra.mxu0 %v5729
      %7594 = vmatprep.subr.bf16.mxu0 %v5738
      %7595 = vmatpush1.bf16.xpose.msra.mxu0 %v5735
      %7596 = vmatprep.subr.bf16.mxu0 %v5744
      %7597 = vmatpush1.bf16.xpose.msra.mxu0 %v5741
      %7598 = vmatprep.subr.bf16.mxu0 %v5750
      %7599 = vmatpush1.bf16.xpose.msra.mxu0 %v5747
      %7600 = vmatprep.subr.bf16.mxu0 %v5756
      %7601 = vmatpush1.bf16.xpose.msra.mxu0 %v5753
      %7602 = vmatprep.subr.bf16.mxu0 %v5762
      %7603 = vmatpush1.bf16.xpose.msra.mxu0 %v5759
      %7604 = vmatprep.subr.bf16.mxu0 %v5768
      %7605 = vmatpush1.bf16.xpose.msra.mxu0 %v5765
      %7606 = vmatprep.subr.bf16.mxu0 %v5774
      %7607 = vmatpush1.bf16.xpose.msra.mxu0 %v5771
      %7608 = vmatprep.subr.bf16.mxu0 %v5780
      %7609 = vmatpush1.bf16.xpose.msra.mxu0 %v5777
      %7610 = vmatprep.subr.bf16.mxu0 %v5786
      %7611 = vmatpush1.bf16.xpose.msra.mxu0 %v5783
      %7612 = vmatprep.mubr.bf16.mxu0 %v1673
      %7613 = vmatmul.mubr.bf16.gmra.mrb[0].mxu0 %v1672
      %v7614 = vpop.f32.mrb[0].mxu0
      %v7615 = vadd.f32 0.0, %v7614
      %v7616 = vpop.f32.mrb[0].mxu0
      %v7617 = vadd.f32 0.0, %v7616
      %v7618 = vpop.f32.mrb[0].mxu0
      %v7619 = vadd.f32 0.0, %v7618
      %v7620 = vpop.f32.mrb[0].mxu0
      %v7621 = vadd.f32 0.0, %v7620
      %7622 = vdwg.mxu0
      %7623 = vmatprep.subr.bf16.mxu0 %v5792
      %7624 = vmatpush1.bf16.xpose.msra.mxu0 %v5789
      %7625 = vmatprep.subr.bf16.mxu0 %v5798
      %7626 = vmatpush1.bf16.xpose.msra.mxu0 %v5795
      %7627 = vmatprep.subr.bf16.mxu0 %v5804
      %7628 = vmatpush1.bf16.xpose.msra.mxu0 %v5801
      %7629 = vmatprep.subr.bf16.mxu0 %v5810
      %7630 = vmatpush1.bf16.xpose.msra.mxu0 %v5807
      %7631 = vmatprep.subr.bf16.mxu0 %v5816
      %7632 = vmatpush1.bf16.xpose.msra.mxu0 %v5813
      %7633 = vmatprep.subr.bf16.mxu0 %v5822
      %7634 = vmatpush1.bf16.xpose.msra.mxu0 %v5819
      %7635 = vmatprep.subr.bf16.mxu0 %v5828
      %7636 = vmatpush1.bf16.xpose.msra.mxu0 %v5825
      %7637 = vmatprep.subr.bf16.mxu0 %v5834
      %7638 = vmatpush1.bf16.xpose.msra.mxu0 %v5831
      %7639 = vmatprep.subr.bf16.mxu0 %v5840
      %7640 = vmatpush1.bf16.xpose.msra.mxu0 %v5837
      %7641 = vmatprep.subr.bf16.mxu0 %v5846
      %7642 = vmatpush1.bf16.xpose.msra.mxu0 %v5843
      %7643 = vmatprep.subr.bf16.mxu0 %v5852
      %7644 = vmatpush1.bf16.xpose.msra.mxu0 %v5849
      %7645 = vmatprep.subr.bf16.mxu0 %v5858
      %7646 = vmatpush1.bf16.xpose.msra.mxu0 %v5855
      %7647 = vmatprep.subr.bf16.mxu0 %v5864
      %7648 = vmatpush1.bf16.xpose.msra.mxu0 %v5861
      %7649 = vmatprep.subr.bf16.mxu0 %v5870
      %7650 = vmatpush1.bf16.xpose.msra.mxu0 %v5867
      %7651 = vmatprep.subr.bf16.mxu0 %v5876
      %7652 = vmatpush1.bf16.xpose.msra.mxu0 %v5873
      %7653 = vmatprep.subr.bf16.mxu0 %v5882
      %7654 = vmatpush1.bf16.xpose.msra.mxu0 %v5879
      %7655 = vmatprep.mubr.bf16.mxu0 %v1675
      %7656 = vmatmul.mubr.bf16.gmra.mrb[0].mxu0 %v1674
      %v7657 = vpop.f32.mrb[0].mxu0
      %v7658 = vadd.f32 0.0, %v7657
      %v7659 = vpop.f32.mrb[0].mxu0
      %v7660 = vadd.f32 0.0, %v7659
      %v7661 = vpop.f32.mrb[0].mxu0
      %v7662 = vadd.f32 0.0, %v7661
      %v7663 = vpop.f32.mrb[0].mxu0
      %v7664 = vadd.f32 0.0, %v7663
      %7665 = vdwg.mxu0
      %7666 = vmatprep.subr.bf16.mxu0 %v5888
      %7667 = vmatpush1.bf16.xpose.msra.mxu0 %v5885
      %7668 = vmatprep.subr.bf16.mxu0 %v5894
      %7669 = vmatpush1.bf16.xpose.msra.mxu0 %v5891
      %7670 = vmatprep.subr.bf16.mxu0 %v5900
      %7671 = vmatpush1.bf16.xpose.msra.mxu0 %v5897
      %7672 = vmatprep.subr.bf16.mxu0 %v5906
      %7673 = vmatpush1.bf16.xpose.msra.mxu0 %v5903
      %7674 = vmatprep.subr.bf16.mxu0 %v5912
      %7675 = vmatpush1.bf16.xpose.msra.mxu0 %v5909
      %7676 = vmatprep.subr.bf16.mxu0 %v5918
      %7677 = vmatpush1.bf16.xpose.msra.mxu0 %v5915
      %7678 = vmatprep.subr.bf16.mxu0 %v5924
      %7679 = vmatpush1.bf16.xpose.msra.mxu0 %v5921
      %7680 = vmatprep.subr.bf16.mxu0 %v5930
      %7681 = vmatpush1.bf16.xpose.msra.mxu0 %v5927
      %7682 = vmatprep.subr.bf16.mxu0 %v5936
      %7683 = vmatpush1.bf16.xpose.msra.mxu0 %v5933
      %7684 = vmatprep.subr.bf16.mxu0 %v5942
      %7685 = vmatpush1.bf16.xpose.msra.mxu0 %v5939
      %7686 = vmatprep.subr.bf16.mxu0 %v5948
      %7687 = vmatpush1.bf16.xpose.msra.mxu0 %v5945
      %7688 = vmatprep.subr.bf16.mxu0 %v5954
      %7689 = vmatpush1.bf16.xpose.msra.mxu0 %v5951
      %7690 = vmatprep.subr.bf16.mxu0 %v5960
      %7691 = vmatpush1.bf16.xpose.msra.mxu0 %v5957
      %7692 = vmatprep.subr.bf16.mxu0 %v5966
      %7693 = vmatpush1.bf16.xpose.msra.mxu0 %v5963
      %7694 = vmatprep.subr.bf16.mxu0 %v5972
      %7695 = vmatpush1.bf16.xpose.msra.mxu0 %v5969
      %7696 = vmatprep.subr.bf16.mxu0 %v5978
      %7697 = vmatpush1.bf16.xpose.msra.mxu0 %v5975
      %7698 = vmatprep.mubr.bf16.mxu0 %v1677
      %7699 = vmatmul.mubr.bf16.gmra.mrb[0].mxu0 %v1676
      %v7700 = vpop.f32.mrb[0].mxu0
      %v7701 = vadd.f32 0.0, %v7700
      %v7702 = vpop.f32.mrb[0].mxu0
      %v7703 = vadd.f32 0.0, %v7702
      %v7704 = vpop.f32.mrb[0].mxu0
      %v7705 = vadd.f32 0.0, %v7704
      %v7706 = vpop.f32.mrb[0].mxu0
      %v7707 = vadd.f32 0.0, %v7706
      %7708 = vdwg.mxu0
      %7709 = vmatprep.subr.bf16.mxu0 %v5984
      %7710 = vmatpush1.bf16.xpose.msra.mxu0 %v5981
      %7711 = vmatprep.subr.bf16.mxu0 %v5990
      %7712 = vmatpush1.bf16.xpose.msra.mxu0 %v5987
      %7713 = vmatprep.subr.bf16.mxu0 %v5996
      %7714 = vmatpush1.bf16.xpose.msra.mxu0 %v5993
      %7715 = vmatprep.subr.bf16.mxu0 %v6002
      %7716 = vmatpush1.bf16.xpose.msra.mxu0 %v5999
      %7717 = vmatprep.subr.bf16.mxu0 %v6008
      %7718 = vmatpush1.bf16.xpose.msra.mxu0 %v6005
      %7719 = vmatprep.subr.bf16.mxu0 %v6014
      %7720 = vmatpush1.bf16.xpose.msra.mxu0 %v6011
      %7721 = vmatprep.subr.bf16.mxu0 %v6020
      %7722 = vmatpush1.bf16.xpose.msra.mxu0 %v6017
      %7723 = vmatprep.subr.bf16.mxu0 %v6026
      %7724 = vmatpush1.bf16.xpose.msra.mxu0 %v6023
      %7725 = vmatprep.subr.bf16.mxu0 %v6032
      %7726 = vmatpush1.bf16.xpose.msra.mxu0 %v6029
      %7727 = vmatprep.subr.bf16.mxu0 %v6038
      %7728 = vmatpush1.bf16.xpose.msra.mxu0 %v6035
      %7729 = vmatprep.subr.bf16.mxu0 %v6044
      %7730 = vmatpush1.bf16.xpose.msra.mxu0 %v6041
      %7731 = vmatprep.subr.bf16.mxu0 %v6050
      %7732 = vmatpush1.bf16.xpose.msra.mxu0 %v6047
      %7733 = vmatprep.subr.bf16.mxu0 %v6056
      %7734 = vmatpush1.bf16.xpose.msra.mxu0 %v6053
      %7735 = vmatprep.subr.bf16.mxu0 %v6062
      %7736 = vmatpush1.bf16.xpose.msra.mxu0 %v6059
      %7737 = vmatprep.subr.bf16.mxu0 %v6068
      %7738 = vmatpush1.bf16.xpose.msra.mxu0 %v6065
      %7739 = vmatprep.subr.bf16.mxu0 %v6074
      %7740 = vmatpush1.bf16.xpose.msra.mxu0 %v6071
      %7741 = vmatprep.mubr.bf16.mxu0 %v1679
      %7742 = vmatmul.mubr.bf16.gmra.mrb[0].mxu0 %v1678
      %v7743 = vpop.f32.mrb[0].mxu0
      %v7744 = vadd.f32 0.0, %v7743
      %v7745 = vpop.f32.mrb[0].mxu0
      %v7746 = vadd.f32 0.0, %v7745
      %v7747 = vpop.f32.mrb[0].mxu0
      %v7748 = vadd.f32 0.0, %v7747
      %v7749 = vpop.f32.mrb[0].mxu0
      %v7750 = vadd.f32 0.0, %v7749
      %7751 = vdwg.mxu0
      %7752 = vmatprep.subr.bf16.mxu0 %v6080
      %7753 = vmatpush1.bf16.xpose.msra.mxu0 %v6077
      %7754 = vmatprep.subr.bf16.mxu0 %v6086
      %7755 = vmatpush1.bf16.xpose.msra.mxu0 %v6083
      %7756 = vmatprep.subr.bf16.mxu0 %v6092
      %7757 = vmatpush1.bf16.xpose.msra.mxu0 %v6089
      %7758 = vmatprep.subr.bf16.mxu0 %v6098
      %7759 = vmatpush1.bf16.xpose.msra.mxu0 %v6095
      %7760 = vmatprep.subr.bf16.mxu0 %v6104
      %7761 = vmatpush1.bf16.xpose.msra.mxu0 %v6101
      %7762 = vmatprep.subr.bf16.mxu0 %v6110
      %7763 = vmatpush1.bf16.xpose.msra.mxu0 %v6107
      %7764 = vmatprep.subr.bf16.mxu0 %v6116
      %7765 = vmatpush1.bf16.xpose.msra.mxu0 %v6113
      %7766 = vmatprep.subr.bf16.mxu0 %v6122
      %7767 = vmatpush1.bf16.xpose.msra.mxu0 %v6119
      %7768 = vmatprep.subr.bf16.mxu0 %v6128
      %7769 = vmatpush1.bf16.xpose.msra.mxu0 %v6125
      %7770 = vmatprep.subr.bf16.mxu0 %v6134
      %7771 = vmatpush1.bf16.xpose.msra.mxu0 %v6131
      %7772 = vmatprep.subr.bf16.mxu0 %v6140
      %7773 = vmatpush1.bf16.xpose.msra.mxu0 %v6137
      %7774 = vmatprep.subr.bf16.mxu0 %v6146
      %7775 = vmatpush1.bf16.xpose.msra.mxu0 %v6143
      %7776 = vmatprep.subr.bf16.mxu0 %v6152
      %7777 = vmatpush1.bf16.xpose.msra.mxu0 %v6149
      %7778 = vmatprep.subr.bf16.mxu0 %v6158
      %7779 = vmatpush1.bf16.xpose.msra.mxu0 %v6155
      %7780 = vmatprep.subr.bf16.mxu0 %v6164
      %7781 = vmatpush1.bf16.xpose.msra.mxu0 %v6161
      %7782 = vmatprep.subr.bf16.mxu0 %v6170
      %7783 = vmatpush1.bf16.xpose.msra.mxu0 %v6167
      %7784 = vmatprep.mubr.bf16.mxu0 %v1681
      %7785 = vmatmul.mubr.bf16.gmra.mrb[0].mxu0 %v1680
      %v7786 = vpop.f32.mrb[0].mxu0
      %v7787 = vadd.f32 0.0, %v7786
      %v7788 = vpop.f32.mrb[0].mxu0
      %v7789 = vadd.f32 0.0, %v7788
      %v7790 = vpop.f32.mrb[0].mxu0
      %v7791 = vadd.f32 0.0, %v7790
      %v7792 = vpop.f32.mrb[0].mxu0
      %v7793 = vadd.f32 0.0, %v7792
      %7794 = vdwg.mxu0
      %v7795 = vrcp.pop %v6685
      %v7796 = vrcp.pop %v6688
      %v7797 = vrcp.pop %v6691
      %v7798 = vrcp.pop %v6694
      %v7799 = vrcp.pop %v6697
      %v7800 = vrcp.pop %v6700
      %v7801 = vrcp.pop %v6703
      %v7802 = vrcp.pop %v6706
      %v7803 = vrcp.pop %v6709
      %v7804 = vrcp.pop %v6712
      %v7805 = vrcp.pop %v6715
      %v7806 = vrcp.pop %v6718
      %v7807 = vrcp.pop %v6721
      %v7808 = vrcp.pop %v6724
      %v7809 = vrcp.pop %v6727
      %v7810 = vrcp.pop %v6730
      %v7811 = vrcp.pop %v6733
      %v7812 = vrcp.pop %v6736
      %v7813 = vrcp.pop %v6739
      %v7814 = vrcp.pop %v6742
      %v7815 = vrcp.pop %v6745
      %v7816 = vrcp.pop %v6748
      %v7817 = vrcp.pop %v6751
      %v7818 = vrcp.pop %v6754
      %v7819 = vrcp.pop %v6757
      %v7820 = vrcp.pop %v6760
      %v7821 = vrcp.pop %v6763
      %v7822 = vrcp.pop %v6766
      %v7823 = vrcp.pop %v6769
      %v7824 = vrcp.pop %v6772
      %v7825 = vrcp.pop %v6775
      %v7826 = vrcp.pop %v6778
      %v7827 = vrcp.pop %v6781
      %v7828 = vrcp.pop %v6784
      %v7829 = vrcp.pop %v6787
      %v7830 = vrcp.pop %v6790
      %v7831 = vrcp.pop %v6793
      %v7832 = vrcp.pop %v6796
      %v7833 = vrcp.pop %v6799
      %v7834 = vrcp.pop %v6802
      %v7835 = vrcp.pop %v6805
      %v7836 = vrcp.pop %v6808
      %v7837 = vrcp.pop %v6811
      %v7838 = vrcp.pop %v6814
      %v7839 = vrcp.pop %v6817
      %v7840 = vrcp.pop %v6820
      %v7841 = vrcp.pop %v6823
      %v7842 = vrcp.pop %v6826
      %v7843 = vrcp.pop %v6829
      %v7844 = vrcp.pop %v6832
      %v7845 = vrcp.pop %v6835
      %v7846 = vrcp.pop %v6838
      %v7847 = vrcp.pop %v6841
      %v7848 = vrcp.pop %v6844
      %v7849 = vrcp.pop %v6847
      %v7850 = vrcp.pop %v6850
      %v7851 = vrcp.pop %v6853
      %v7852 = vrcp.pop %v6856
      %v7853 = vrcp.pop %v6859
      %v7854 = vrcp.pop %v6862
      %v7855 = vrcp.pop %v6865
      %v7856 = vrcp.pop %v6868
      %v7857 = vrcp.pop %v6871
      %v7858 = vrcp.pop %v6874
      %v7859 = vrcp.pop %v6877
      %v7860 = vrcp.pop %v6880
      %v7861 = vrcp.pop %v6883
      %v7862 = vrcp.pop %v6886
      %v7863 = vrcp.pop %v6889
      %v7864 = vrcp.pop %v6892
      %v7865 = vrcp.pop %v6895
      %v7866 = vrcp.pop %v6898
      %v7867 = vrcp.pop %v6901
      %v7868 = vrcp.pop %v6904
      %v7869 = vrcp.pop %v6907
      %v7870 = vrcp.pop %v6910
      %v7871 = vrcp.pop %v6913
      %v7872 = vrcp.pop %v6916
      %v7873 = vrcp.pop %v6919
      %v7874 = vrcp.pop %v6922
      %v7875 = vrcp.pop %v6925
      %v7876 = vrcp.pop %v6928
      %v7877 = vrcp.pop %v6931
      %v7878 = vrcp.pop %v6934
      %v7879 = vrcp.pop %v6937
      %v7880 = vrcp.pop %v6940
      %v7881 = vrcp.pop %v6943
      %v7882 = vrcp.pop %v6946
      %v7883 = vrcp.pop %v6949
      %v7884 = vrcp.pop %v6952
      %v7885 = vrcp.pop %v6955
      %v7886 = vrcp.pop %v6958
      %v7887 = vrcp.pop %v6961
      %v7888 = vrcp.pop %v6964
      %v7889 = vrcp.pop %v6967
      %v7890 = vrcp.pop %v6970
      %v7891 = vrcp.pop %v6973
      %v7892 = vrcp.pop %v6976
      %v7893 = vrcp.pop %v6979
      %v7894 = vrcp.pop %v6982
      %v7895 = vrcp.pop %v6985
      %v7896 = vrcp.pop %v6988
      %v7897 = vrcp.pop %v6991
      %v7898 = vrcp.pop %v6994
      %v7899 = vrcp.pop %v6997
      %v7900 = vrcp.pop %v7000
      %v7901 = vrcp.pop %v7003
      %v7902 = vrcp.pop %v7006
      %v7903 = vrcp.pop %v7009
      %v7904 = vrcp.pop %v7012
      %v7905 = vrcp.pop %v7015
      %v7906 = vrcp.pop %v7018
      %v7907 = vrcp.pop %v7021
      %v7908 = vrcp.pop %v7024
      %v7909 = vrcp.pop %v7027
      %v7910 = vrcp.pop %v7030
      %v7911 = vrcp.pop %v7033
      %v7912 = vrcp.pop %v7036
      %v7913 = vrcp.pop %v7039
      %v7914 = vrcp.pop %v7042
      %v7915 = vrcp.pop %v7045
      %v7916 = vrcp.pop %v7048
      %v7917 = vrcp.pop %v7051
      %v7918 = vrcp.pop %v7054
      %v7919 = vrcp.pop %v7057
      %v7920 = vrcp.pop %v7060
      %v7921 = vrcp.pop %v7063
      %v7922 = vrcp.pop %v7066
      %v7923 = vrcp.pop %v7069
      %v7924 = vrcp.pop %v7072
      %v7925 = vrcp.pop %v7075
      %v7926 = vrcp.pop %v7078
      %v7927 = vrcp.pop %v7081
      %v7928 = vrcp.pop %v7084
      %v7929 = vrcp.pop %v7087
      %v7930 = vrcp.pop %v7090
      %v7931 = vrcp.pop %v7093
      %v7932 = vrcp.pop %v7096
      %v7933 = vrcp.pop %v7099
      %v7934 = vrcp.pop %v7102
      %v7935 = vrcp.pop %v7105
      %v7936 = vrcp.pop %v7108
      %v7937 = vrcp.pop %v7111
      %v7938 = vrcp.pop %v7114
      %v7939 = vrcp.pop %v7117
      %v7940 = vrcp.pop %v7120
      %v7941 = vrcp.pop %v7123
      %v7942 = vrcp.pop %v7126
      %v7943 = vrcp.pop %v7129
      %v7944 = vrcp.pop %v7132
      %v7945 = vrcp.pop %v7135
      %v7946 = vrcp.pop %v7138
      %v7947 = vrcp.pop %v7141
      %v7948 = vrcp.pop %v7144
      %v7949 = vrcp.pop %v7147
      %v7950 = vrcp.pop %v7150
      %v7951 = vrcp.pop %v7153
      %v7952 = vrcp.pop %v7156
      %v7953 = vrcp.pop %v7159
      %v7954 = vrcp.pop %v7162
      %v7955 = vrcp.pop %v7165
      %v7956 = vrcp.pop %v7168
      %v7957 = vrcp.pop %v7171
      %v7958 = vrcp.pop %v7174
      %v7959 = vrcp.pop %v7177
      %v7960 = vrcp.pop %v7180
      %v7961 = vrcp.pop %v7183
      %v7962 = vrcp.pop %v7186
      %v7963 = vrcp.pop %v7189
      %v7964 = vrcp.pop %v7192
      %v7965 = vrcp.pop %v7195
      %v7966 = vrcp.pop %v7198
      %v7967 = vrcp.pop %v7201
      %v7968 = vrcp.pop %v7204
      %v7969 = vrcp.pop %v7207
      %v7970 = vrcp.pop %v7210
      %v7971 = vrcp.pop %v7213
      %v7972 = vrcp.pop %v7216
      %v7973 = vrcp.pop %v7219
      %v7974 = vrcp.pop %v7222
      %v7975 = vrcp.pop %v7225
      %v7976 = vrcp.pop %v7228
      %v7977 = vrcp.pop %v7231
      %v7978 = vrcp.pop %v7234
      %v7979 = vrcp.pop %v7237
      %v7980 = vrcp.pop %v7240
      %v7981 = vrcp.pop %v7243
      %v7982 = vrcp.pop %v7246
      %v7983 = vrcp.pop %v7249
      %v7984 = vrcp.pop %v7252
      %v7985 = vrcp.pop %v7255
      %v7986 = vrcp.pop %v7258
      %v7987 = vrcp.pop %v7261
      %v7988 = vrcp.pop %v7264
      %v7989 = vrcp.pop %v7267
      %v7990 = vrcp.pop %v7270
      %v7991 = vrcp.pop %v7273
      %v7992 = vrcp.pop %v7276
      %v7993 = vrcp.pop %v7279
      %v7994 = vrcp.pop %v7282
      %v7995 = vrcp.pop %v7285
      %v7996 = vrcp.pop %v7288
      %v7997 = vrcp.pop %v7291
      %v7998 = vrcp.pop %v7294
      %v7999 = vrcp.pop %v7297
      %v8000 = vrcp.pop %v7300
      %v8001 = vrcp.pop %v7303
      %v8002 = vrcp.pop %v7306
      %v8003 = vrcp.pop %v7309
      %v8004 = vrcp.pop %v7312
      %v8005 = vrcp.pop %v7315
      %v8006 = vrcp.pop %v7318
      %v8007 = vrcp.pop %v7321
      %v8008 = vrcp.pop %v7324
      %v8009 = vrcp.pop %v7327
      %v8010 = vrcp.pop %v7330
      %v8011 = vrcp.pop %v7333
      %v8012 = vrcp.pop %v7336
      %v8013 = vrcp.pop %v7339
      %v8014 = vrcp.pop %v7342
      %v8015 = vrcp.pop %v7345
      %v8016 = vrcp.pop %v7348
      %v8017 = vrcp.pop %v7351
      %v8018 = vrcp.pop %v7354
      %v8019 = vrcp.pop %v7357
      %v8020 = vrcp.pop %v7360
      %v8021 = vrcp.pop %v7363
      %v8022 = vrcp.pop %v7366
      %v8023 = vrcp.pop %v7369
      %v8024 = vrcp.pop %v7372
      %v8025 = vrcp.pop %v7375
      %v8026 = vrcp.pop %v7378
      %v8027 = vrcp.pop %v7381
      %v8028 = vrcp.pop %v7384
      %v8029 = vrcp.pop %v7387
      %v8030 = vrcp.pop %v7390
      %v8031 = vrcp.pop %v7393
      %v8032 = vrcp.pop %v7396
      %v8033 = vrcp.pop %v7399
      %v8034 = vrcp.pop %v7402
      %v8035 = vrcp.pop %v7405
      %v8036 = vrcp.pop %v7408
      %v8037 = vrcp.pop %v7411
      %v8038 = vrcp.pop %v7414
      %v8039 = vrcp.pop %v7417
      %v8040 = vrcp.pop %v7420
      %v8041 = vrcp.pop %v7423
      %v8042 = vrcp.pop %v7426
      %v8043 = vrcp.pop %v7429
      %v8044 = vrcp.pop %v7432
      %v8045 = vrcp.pop %v7435
      %v8046 = vrcp.pop %v7438
      %v8047 = vrcp.pop %v7441
      %v8048 = vrcp.pop %v7444
      %v8049 = vrcp.pop %v7447
      %v8050 = vrcp.pop %v7450
      %v8307 = vlaneseq
      %v8308 = vand.u32 %v8307, 127
      %v8309 = vlaneseq
      %v8310 = vshrl.u32 %v8309, 7
      %v8311 = vsub.s32 %v8308, %v8310
      %v8312 = vrot.slane %v7795, %v8311
      %v8313 = vadd.s32 %v8308, 4294967288
      %v8314 = vlaneseq
      %v8315 = vshrl.u32 %v8314, 7
      %v8316 = vsub.s32 %v8313, %v8315
      %v8317 = vrot.slane %v7796, %v8316
      %vm8318 = vcmask 130112
      %v8319 = vsel %vm8318, %v8317, %v8312
      %v8320 = vadd.s32 %v8308, 4294967280
      %v8321 = vlaneseq
      %v8322 = vshrl.u32 %v8321, 7
      %v8323 = vsub.s32 %v8320, %v8322
      %v8324 = vrot.slane %v7797, %v8323
      %vm8325 = vcmask 195712
      %v8326 = vsel %vm8325, %v8324, %v8319
      %v8327 = vadd.s32 %v8308, 4294967272
      %v8328 = vlaneseq
      %v8329 = vshrl.u32 %v8328, 7
      %v8330 = vsub.s32 %v8327, %v8329
      %v8331 = vrot.slane %v7798, %v8330
      %vm8332 = vcmask 261312
      %v8333 = vsel %vm8332, %v8331, %v8326
      %v8334 = vadd.s32 %v8308, 4294967264
      %v8335 = vlaneseq
      %v8336 = vshrl.u32 %v8335, 7
      %v8337 = vsub.s32 %v8334, %v8336
      %v8338 = vrot.slane %v7799, %v8337
      %vm8339 = vcmask 326912
      %v8340 = vsel %vm8339, %v8338, %v8333
      %v8341 = vadd.s32 %v8308, 4294967256
      %v8342 = vlaneseq
      %v8343 = vshrl.u32 %v8342, 7
      %v8344 = vsub.s32 %v8341, %v8343
      %v8345 = vrot.slane %v7800, %v8344
      %vm8346 = vcmask 392512
      %v8347 = vsel %vm8346, %v8345, %v8340
      %v8348 = vadd.s32 %v8308, 4294967248
      %v8349 = vlaneseq
      %v8350 = vshrl.u32 %v8349, 7
      %v8351 = vsub.s32 %v8348, %v8350
      %v8352 = vrot.slane %v7801, %v8351
      %vm8353 = vcmask 458112
      %v8354 = vsel %vm8353, %v8352, %v8347
      %v8355 = vadd.s32 %v8308, 4294967240
      %v8356 = vlaneseq
      %v8357 = vshrl.u32 %v8356, 7
      %v8358 = vsub.s32 %v8355, %v8357
      %v8359 = vrot.slane %v7802, %v8358
      %vm8360 = vcmask 523712
      %v8361 = vsel %vm8360, %v8359, %v8354
      %v8362 = vadd.s32 %v8308, 4294967232
      %v8363 = vlaneseq
      %v8364 = vshrl.u32 %v8363, 7
      %v8365 = vsub.s32 %v8362, %v8364
      %v8366 = vrot.slane %v7803, %v8365
      %vm8367 = vcmask 589312
      %v8368 = vsel %vm8367, %v8366, %v8361
      %v8369 = vadd.s32 %v8308, 4294967224
      %v8370 = vlaneseq
      %v8371 = vshrl.u32 %v8370, 7
      %v8372 = vsub.s32 %v8369, %v8371
      %v8373 = vrot.slane %v7804, %v8372
      %vm8374 = vcmask 654912
      %v8375 = vsel %vm8374, %v8373, %v8368
      %v8376 = vadd.s32 %v8308, 4294967216
      %v8377 = vlaneseq
      %v8378 = vshrl.u32 %v8377, 7
      %v8379 = vsub.s32 %v8376, %v8378
      %v8380 = vrot.slane %v7805, %v8379
      %vm8381 = vcmask 720512
      %v8382 = vsel %vm8381, %v8380, %v8375
      %v8383 = vadd.s32 %v8308, 4294967208
      %v8384 = vlaneseq
      %v8385 = vshrl.u32 %v8384, 7
      %v8386 = vsub.s32 %v8383, %v8385
      %v8387 = vrot.slane %v7806, %v8386
      %vm8388 = vcmask 786112
      %v8389 = vsel %vm8388, %v8387, %v8382
      %v8390 = vadd.s32 %v8308, 4294967200
      %v8391 = vlaneseq
      %v8392 = vshrl.u32 %v8391, 7
      %v8393 = vsub.s32 %v8390, %v8392
      %v8394 = vrot.slane %v7807, %v8393
      %vm8395 = vcmask 851712
      %v8396 = vsel %vm8395, %v8394, %v8389
      %v8397 = vadd.s32 %v8308, 4294967192
      %v8398 = vlaneseq
      %v8399 = vshrl.u32 %v8398, 7
      %v8400 = vsub.s32 %v8397, %v8399
      %v8401 = vrot.slane %v7808, %v8400
      %vm8402 = vcmask 917312
      %v8403 = vsel %vm8402, %v8401, %v8396
      %v8404 = vadd.s32 %v8308, 4294967184
      %v8405 = vlaneseq
      %v8406 = vshrl.u32 %v8405, 7
      %v8407 = vsub.s32 %v8404, %v8406
      %v8408 = vrot.slane %v7809, %v8407
      %vm8409 = vcmask 982912
      %v8410 = vsel %vm8409, %v8408, %v8403
      %v8411 = vadd.s32 %v8308, 4294967176
      %v8412 = vlaneseq
      %v8413 = vshrl.u32 %v8412, 7
      %v8414 = vsub.s32 %v8411, %v8413
      %v8415 = vrot.slane %v7810, %v8414
      %vm8416 = vcmask 1048512
      %v8417 = vsel %vm8416, %v8415, %v8410
      %v8418 = vlaneseq
      %v8419 = vshrl.u32 %v8418, 7
      %v8420 = vsub.s32 %v8308, %v8419
      %v8421 = vrot.slane %v7811, %v8420
      %v8422 = vlaneseq
      %v8423 = vshrl.u32 %v8422, 7
      %v8424 = vsub.s32 %v8313, %v8423
      %v8425 = vrot.slane %v7812, %v8424
      %v8426 = vsel %vm8318, %v8425, %v8421
      %v8427 = vlaneseq
      %v8428 = vshrl.u32 %v8427, 7
      %v8429 = vsub.s32 %v8320, %v8428
      %v8430 = vrot.slane %v7813, %v8429
      %v8431 = vsel %vm8325, %v8430, %v8426
      %v8432 = vlaneseq
      %v8433 = vshrl.u32 %v8432, 7
      %v8434 = vsub.s32 %v8327, %v8433
      %v8435 = vrot.slane %v7814, %v8434
      %v8436 = vsel %vm8332, %v8435, %v8431
      %v8437 = vlaneseq
      %v8438 = vshrl.u32 %v8437, 7
      %v8439 = vsub.s32 %v8334, %v8438
      %v8440 = vrot.slane %v7815, %v8439
      %v8441 = vsel %vm8339, %v8440, %v8436
      %v8442 = vlaneseq
      %v8443 = vshrl.u32 %v8442, 7
      %v8444 = vsub.s32 %v8341, %v8443
      %v8445 = vrot.slane %v7816, %v8444
      %v8446 = vsel %vm8346, %v8445, %v8441
      %v8447 = vlaneseq
      %v8448 = vshrl.u32 %v8447, 7
      %v8449 = vsub.s32 %v8348, %v8448
      %v8450 = vrot.slane %v7817, %v8449
      %v8451 = vsel %vm8353, %v8450, %v8446
      %v8452 = vlaneseq
      %v8453 = vshrl.u32 %v8452, 7
      %v8454 = vsub.s32 %v8355, %v8453
      %v8455 = vrot.slane %v7818, %v8454
      %v8456 = vsel %vm8360, %v8455, %v8451
      %v8457 = vlaneseq
      %v8458 = vshrl.u32 %v8457, 7
      %v8459 = vsub.s32 %v8362, %v8458
      %v8460 = vrot.slane %v7819, %v8459
      %v8461 = vsel %vm8367, %v8460, %v8456
      %v8462 = vlaneseq
      %v8463 = vshrl.u32 %v8462, 7
      %v8464 = vsub.s32 %v8369, %v8463
      %v8465 = vrot.slane %v7820, %v8464
      %v8466 = vsel %vm8374, %v8465, %v8461
      %v8467 = vlaneseq
      %v8468 = vshrl.u32 %v8467, 7
      %v8469 = vsub.s32 %v8376, %v8468
      %v8470 = vrot.slane %v7821, %v8469
      %v8471 = vsel %vm8381, %v8470, %v8466
      %v8472 = vlaneseq
      %v8473 = vshrl.u32 %v8472, 7
      %v8474 = vsub.s32 %v8383, %v8473
      %v8475 = vrot.slane %v7822, %v8474
      %v8476 = vsel %vm8388, %v8475, %v8471
      %v8477 = vlaneseq
      %v8478 = vshrl.u32 %v8477, 7
      %v8479 = vsub.s32 %v8390, %v8478
      %v8480 = vrot.slane %v7823, %v8479
      %v8481 = vsel %vm8395, %v8480, %v8476
      %v8482 = vlaneseq
      %v8483 = vshrl.u32 %v8482, 7
      %v8484 = vsub.s32 %v8397, %v8483
      %v8485 = vrot.slane %v7824, %v8484
      %v8486 = vsel %vm8402, %v8485, %v8481
      %v8487 = vlaneseq
      %v8488 = vshrl.u32 %v8487, 7
      %v8489 = vsub.s32 %v8404, %v8488
      %v8490 = vrot.slane %v7825, %v8489
      %v8491 = vsel %vm8409, %v8490, %v8486
      %v8492 = vlaneseq
      %v8493 = vshrl.u32 %v8492, 7
      %v8494 = vsub.s32 %v8411, %v8493
      %v8495 = vrot.slane %v7826, %v8494
      %v8496 = vsel %vm8416, %v8495, %v8491
      %v8497 = vlaneseq
      %v8498 = vshrl.u32 %v8497, 7
      %v8499 = vsub.s32 %v8308, %v8498
      %v8500 = vrot.slane %v7827, %v8499
      %v8501 = vlaneseq
      %v8502 = vshrl.u32 %v8501, 7
      %v8503 = vsub.s32 %v8313, %v8502
      %v8504 = vrot.slane %v7828, %v8503
      %v8505 = vsel %vm8318, %v8504, %v8500
      %v8506 = vlaneseq
      %v8507 = vshrl.u32 %v8506, 7
      %v8508 = vsub.s32 %v8320, %v8507
      %v8509 = vrot.slane %v7829, %v8508
      %v8510 = vsel %vm8325, %v8509, %v8505
      %v8511 = vlaneseq
      %v8512 = vshrl.u32 %v8511, 7
      %v8513 = vsub.s32 %v8327, %v8512
      %v8514 = vrot.slane %v7830, %v8513
      %v8515 = vsel %vm8332, %v8514, %v8510
      %v8516 = vlaneseq
      %v8517 = vshrl.u32 %v8516, 7
      %v8518 = vsub.s32 %v8334, %v8517
      %v8519 = vrot.slane %v7831, %v8518
      %v8520 = vsel %vm8339, %v8519, %v8515
      %v8521 = vlaneseq
      %v8522 = vshrl.u32 %v8521, 7
      %v8523 = vsub.s32 %v8341, %v8522
      %v8524 = vrot.slane %v7832, %v8523
      %v8525 = vsel %vm8346, %v8524, %v8520
      %v8526 = vlaneseq
      %v8527 = vshrl.u32 %v8526, 7
      %v8528 = vsub.s32 %v8348, %v8527
      %v8529 = vrot.slane %v7833, %v8528
      %v8530 = vsel %vm8353, %v8529, %v8525
      %v8531 = vlaneseq
      %v8532 = vshrl.u32 %v8531, 7
      %v8533 = vsub.s32 %v8355, %v8532
      %v8534 = vrot.slane %v7834, %v8533
      %v8535 = vsel %vm8360, %v8534, %v8530
      %v8536 = vlaneseq
      %v8537 = vshrl.u32 %v8536, 7
      %v8538 = vsub.s32 %v8362, %v8537
      %v8539 = vrot.slane %v7835, %v8538
      %v8540 = vsel %vm8367, %v8539, %v8535
      %v8541 = vlaneseq
      %v8542 = vshrl.u32 %v8541, 7
      %v8543 = vsub.s32 %v8369, %v8542
      %v8544 = vrot.slane %v7836, %v8543
      %v8545 = vsel %vm8374, %v8544, %v8540
      %v8546 = vlaneseq
      %v8547 = vshrl.u32 %v8546, 7
      %v8548 = vsub.s32 %v8376, %v8547
      %v8549 = vrot.slane %v7837, %v8548
      %v8550 = vsel %vm8381, %v8549, %v8545
      %v8551 = vlaneseq
      %v8552 = vshrl.u32 %v8551, 7
      %v8553 = vsub.s32 %v8383, %v8552
      %v8554 = vrot.slane %v7838, %v8553
      %v8555 = vsel %vm8388, %v8554, %v8550
      %v8556 = vlaneseq
      %v8557 = vshrl.u32 %v8556, 7
      %v8558 = vsub.s32 %v8390, %v8557
      %v8559 = vrot.slane %v7839, %v8558
      %v8560 = vsel %vm8395, %v8559, %v8555
      %v8561 = vlaneseq
      %v8562 = vshrl.u32 %v8561, 7
      %v8563 = vsub.s32 %v8397, %v8562
      %v8564 = vrot.slane %v7840, %v8563
      %v8565 = vsel %vm8402, %v8564, %v8560
      %v8566 = vlaneseq
      %v8567 = vshrl.u32 %v8566, 7
      %v8568 = vsub.s32 %v8404, %v8567
      %v8569 = vrot.slane %v7841, %v8568
      %v8570 = vsel %vm8409, %v8569, %v8565
      %v8571 = vlaneseq
      %v8572 = vshrl.u32 %v8571, 7
      %v8573 = vsub.s32 %v8411, %v8572
      %v8574 = vrot.slane %v7842, %v8573
      %v8575 = vsel %vm8416, %v8574, %v8570
      %v8576 = vlaneseq
      %v8577 = vshrl.u32 %v8576, 7
      %v8578 = vsub.s32 %v8308, %v8577
      %v8579 = vrot.slane %v7843, %v8578
      %v8580 = vlaneseq
      %v8581 = vshrl.u32 %v8580, 7
      %v8582 = vsub.s32 %v8313, %v8581
      %v8583 = vrot.slane %v7844, %v8582
      %v8584 = vsel %vm8318, %v8583, %v8579
      %v8585 = vlaneseq
      %v8586 = vshrl.u32 %v8585, 7
      %v8587 = vsub.s32 %v8320, %v8586
      %v8588 = vrot.slane %v7845, %v8587
      %v8589 = vsel %vm8325, %v8588, %v8584
      %v8590 = vlaneseq
      %v8591 = vshrl.u32 %v8590, 7
      %v8592 = vsub.s32 %v8327, %v8591
      %v8593 = vrot.slane %v7846, %v8592
      %v8594 = vsel %vm8332, %v8593, %v8589
      %v8595 = vlaneseq
      %v8596 = vshrl.u32 %v8595, 7
      %v8597 = vsub.s32 %v8334, %v8596
      %v8598 = vrot.slane %v7847, %v8597
      %v8599 = vsel %vm8339, %v8598, %v8594
      %v8600 = vlaneseq
      %v8601 = vshrl.u32 %v8600, 7
      %v8602 = vsub.s32 %v8341, %v8601
      %v8603 = vrot.slane %v7848, %v8602
      %v8604 = vsel %vm8346, %v8603, %v8599
      %v8605 = vlaneseq
      %v8606 = vshrl.u32 %v8605, 7
      %v8607 = vsub.s32 %v8348, %v8606
      %v8608 = vrot.slane %v7849, %v8607
      %v8609 = vsel %vm8353, %v8608, %v8604
      %v8610 = vlaneseq
      %v8611 = vshrl.u32 %v8610, 7
      %v8612 = vsub.s32 %v8355, %v8611
      %v8613 = vrot.slane %v7850, %v8612
      %v8614 = vsel %vm8360, %v8613, %v8609
      %v8615 = vlaneseq
      %v8616 = vshrl.u32 %v8615, 7
      %v8617 = vsub.s32 %v8362, %v8616
      %v8618 = vrot.slane %v7851, %v8617
      %v8619 = vsel %vm8367, %v8618, %v8614
      %v8620 = vlaneseq
      %v8621 = vshrl.u32 %v8620, 7
      %v8622 = vsub.s32 %v8369, %v8621
      %v8623 = vrot.slane %v7852, %v8622
      %v8624 = vsel %vm8374, %v8623, %v8619
      %v8625 = vlaneseq
      %v8626 = vshrl.u32 %v8625, 7
      %v8627 = vsub.s32 %v8376, %v8626
      %v8628 = vrot.slane %v7853, %v8627
      %v8629 = vsel %vm8381, %v8628, %v8624
      %v8630 = vlaneseq
      %v8631 = vshrl.u32 %v8630, 7
      %v8632 = vsub.s32 %v8383, %v8631
      %v8633 = vrot.slane %v7854, %v8632
      %v8634 = vsel %vm8388, %v8633, %v8629
      %v8635 = vlaneseq
      %v8636 = vshrl.u32 %v8635, 7
      %v8637 = vsub.s32 %v8390, %v8636
      %v8638 = vrot.slane %v7855, %v8637
      %v8639 = vsel %vm8395, %v8638, %v8634
      %v8640 = vlaneseq
      %v8641 = vshrl.u32 %v8640, 7
      %v8642 = vsub.s32 %v8397, %v8641
      %v8643 = vrot.slane %v7856, %v8642
      %v8644 = vsel %vm8402, %v8643, %v8639
      %v8645 = vlaneseq
      %v8646 = vshrl.u32 %v8645, 7
      %v8647 = vsub.s32 %v8404, %v8646
      %v8648 = vrot.slane %v7857, %v8647
      %v8649 = vsel %vm8409, %v8648, %v8644
      %v8650 = vlaneseq
      %v8651 = vshrl.u32 %v8650, 7
      %v8652 = vsub.s32 %v8411, %v8651
      %v8653 = vrot.slane %v7858, %v8652
      %v8654 = vsel %vm8416, %v8653, %v8649
      %v8655 = vlaneseq
      %v8656 = vshrl.u32 %v8655, 7
      %v8657 = vsub.s32 %v8308, %v8656
      %v8658 = vrot.slane %v7859, %v8657
      %v8659 = vlaneseq
      %v8660 = vshrl.u32 %v8659, 7
      %v8661 = vsub.s32 %v8313, %v8660
      %v8662 = vrot.slane %v7860, %v8661
      %v8663 = vsel %vm8318, %v8662, %v8658
      %v8664 = vlaneseq
      %v8665 = vshrl.u32 %v8664, 7
      %v8666 = vsub.s32 %v8320, %v8665
      %v8667 = vrot.slane %v7861, %v8666
      %v8668 = vsel %vm8325, %v8667, %v8663
      %v8669 = vlaneseq
      %v8670 = vshrl.u32 %v8669, 7
      %v8671 = vsub.s32 %v8327, %v8670
      %v8672 = vrot.slane %v7862, %v8671
      %v8673 = vsel %vm8332, %v8672, %v8668
      %v8674 = vlaneseq
      %v8675 = vshrl.u32 %v8674, 7
      %v8676 = vsub.s32 %v8334, %v8675
      %v8677 = vrot.slane %v7863, %v8676
      %v8678 = vsel %vm8339, %v8677, %v8673
      %v8679 = vlaneseq
      %v8680 = vshrl.u32 %v8679, 7
      %v8681 = vsub.s32 %v8341, %v8680
      %v8682 = vrot.slane %v7864, %v8681
      %v8683 = vsel %vm8346, %v8682, %v8678
      %v8684 = vlaneseq
      %v8685 = vshrl.u32 %v8684, 7
      %v8686 = vsub.s32 %v8348, %v8685
      %v8687 = vrot.slane %v7865, %v8686
      %v8688 = vsel %vm8353, %v8687, %v8683
      %v8689 = vlaneseq
      %v8690 = vshrl.u32 %v8689, 7
      %v8691 = vsub.s32 %v8355, %v8690
      %v8692 = vrot.slane %v7866, %v8691
      %v8693 = vsel %vm8360, %v8692, %v8688
      %v8694 = vlaneseq
      %v8695 = vshrl.u32 %v8694, 7
      %v8696 = vsub.s32 %v8362, %v8695
      %v8697 = vrot.slane %v7867, %v8696
      %v8698 = vsel %vm8367, %v8697, %v8693
      %v8699 = vlaneseq
      %v8700 = vshrl.u32 %v8699, 7
      %v8701 = vsub.s32 %v8369, %v8700
      %v8702 = vrot.slane %v7868, %v8701
      %v8703 = vsel %vm8374, %v8702, %v8698
      %v8704 = vlaneseq
      %v8705 = vshrl.u32 %v8704, 7
      %v8706 = vsub.s32 %v8376, %v8705
      %v8707 = vrot.slane %v7869, %v8706
      %v8708 = vsel %vm8381, %v8707, %v8703
      %v8709 = vlaneseq
      %v8710 = vshrl.u32 %v8709, 7
      %v8711 = vsub.s32 %v8383, %v8710
      %v8712 = vrot.slane %v7870, %v8711
      %v8713 = vsel %vm8388, %v8712, %v8708
      %v8714 = vlaneseq
      %v8715 = vshrl.u32 %v8714, 7
      %v8716 = vsub.s32 %v8390, %v8715
      %v8717 = vrot.slane %v7871, %v8716
      %v8718 = vsel %vm8395, %v8717, %v8713
      %v8719 = vlaneseq
      %v8720 = vshrl.u32 %v8719, 7
      %v8721 = vsub.s32 %v8397, %v8720
      %v8722 = vrot.slane %v7872, %v8721
      %v8723 = vsel %vm8402, %v8722, %v8718
      %v8724 = vlaneseq
      %v8725 = vshrl.u32 %v8724, 7
      %v8726 = vsub.s32 %v8404, %v8725
      %v8727 = vrot.slane %v7873, %v8726
      %v8728 = vsel %vm8409, %v8727, %v8723
      %v8729 = vlaneseq
      %v8730 = vshrl.u32 %v8729, 7
      %v8731 = vsub.s32 %v8411, %v8730
      %v8732 = vrot.slane %v7874, %v8731
      %v8733 = vsel %vm8416, %v8732, %v8728
      %v8734 = vlaneseq
      %v8735 = vshrl.u32 %v8734, 7
      %v8736 = vsub.s32 %v8308, %v8735
      %v8737 = vrot.slane %v7875, %v8736
      %v8738 = vlaneseq
      %v8739 = vshrl.u32 %v8738, 7
      %v8740 = vsub.s32 %v8313, %v8739
      %v8741 = vrot.slane %v7876, %v8740
      %v8742 = vsel %vm8318, %v8741, %v8737
      %v8743 = vlaneseq
      %v8744 = vshrl.u32 %v8743, 7
      %v8745 = vsub.s32 %v8320, %v8744
      %v8746 = vrot.slane %v7877, %v8745
      %v8747 = vsel %vm8325, %v8746, %v8742
      %v8748 = vlaneseq
      %v8749 = vshrl.u32 %v8748, 7
      %v8750 = vsub.s32 %v8327, %v8749
      %v8751 = vrot.slane %v7878, %v8750
      %v8752 = vsel %vm8332, %v8751, %v8747
      %v8753 = vlaneseq
      %v8754 = vshrl.u32 %v8753, 7
      %v8755 = vsub.s32 %v8334, %v8754
      %v8756 = vrot.slane %v7879, %v8755
      %v8757 = vsel %vm8339, %v8756, %v8752
      %v8758 = vlaneseq
      %v8759 = vshrl.u32 %v8758, 7
      %v8760 = vsub.s32 %v8341, %v8759
      %v8761 = vrot.slane %v7880, %v8760
      %v8762 = vsel %vm8346, %v8761, %v8757
      %v8763 = vlaneseq
      %v8764 = vshrl.u32 %v8763, 7
      %v8765 = vsub.s32 %v8348, %v8764
      %v8766 = vrot.slane %v7881, %v8765
      %v8767 = vsel %vm8353, %v8766, %v8762
      %v8768 = vlaneseq
      %v8769 = vshrl.u32 %v8768, 7
      %v8770 = vsub.s32 %v8355, %v8769
      %v8771 = vrot.slane %v7882, %v8770
      %v8772 = vsel %vm8360, %v8771, %v8767
      %v8773 = vlaneseq
      %v8774 = vshrl.u32 %v8773, 7
      %v8775 = vsub.s32 %v8362, %v8774
      %v8776 = vrot.slane %v7883, %v8775
      %v8777 = vsel %vm8367, %v8776, %v8772
      %v8778 = vlaneseq
      %v8779 = vshrl.u32 %v8778, 7
      %v8780 = vsub.s32 %v8369, %v8779
      %v8781 = vrot.slane %v7884, %v8780
      %v8782 = vsel %vm8374, %v8781, %v8777
      %v8783 = vlaneseq
      %v8784 = vshrl.u32 %v8783, 7
      %v8785 = vsub.s32 %v8376, %v8784
      %v8786 = vrot.slane %v7885, %v8785
      %v8787 = vsel %vm8381, %v8786, %v8782
      %v8788 = vlaneseq
      %v8789 = vshrl.u32 %v8788, 7
      %v8790 = vsub.s32 %v8383, %v8789
      %v8791 = vrot.slane %v7886, %v8790
      %v8792 = vsel %vm8388, %v8791, %v8787
      %v8793 = vlaneseq
      %v8794 = vshrl.u32 %v8793, 7
      %v8795 = vsub.s32 %v8390, %v8794
      %v8796 = vrot.slane %v7887, %v8795
      %v8797 = vsel %vm8395, %v8796, %v8792
      %v8798 = vlaneseq
      %v8799 = vshrl.u32 %v8798, 7
      %v8800 = vsub.s32 %v8397, %v8799
      %v8801 = vrot.slane %v7888, %v8800
      %v8802 = vsel %vm8402, %v8801, %v8797
      %v8803 = vlaneseq
      %v8804 = vshrl.u32 %v8803, 7
      %v8805 = vsub.s32 %v8404, %v8804
      %v8806 = vrot.slane %v7889, %v8805
      %v8807 = vsel %vm8409, %v8806, %v8802
      %v8808 = vlaneseq
      %v8809 = vshrl.u32 %v8808, 7
      %v8810 = vsub.s32 %v8411, %v8809
      %v8811 = vrot.slane %v7890, %v8810
      %v8812 = vsel %vm8416, %v8811, %v8807
      %v8813 = vlaneseq
      %v8814 = vshrl.u32 %v8813, 7
      %v8815 = vsub.s32 %v8308, %v8814
      %v8816 = vrot.slane %v7891, %v8815
      %v8817 = vlaneseq
      %v8818 = vshrl.u32 %v8817, 7
      %v8819 = vsub.s32 %v8313, %v8818
      %v8820 = vrot.slane %v7892, %v8819
      %v8821 = vsel %vm8318, %v8820, %v8816
      %v8822 = vlaneseq
      %v8823 = vshrl.u32 %v8822, 7
      %v8824 = vsub.s32 %v8320, %v8823
      %v8825 = vrot.slane %v7893, %v8824
      %v8826 = vsel %vm8325, %v8825, %v8821
      %v8827 = vlaneseq
      %v8828 = vshrl.u32 %v8827, 7
      %v8829 = vsub.s32 %v8327, %v8828
      %v8830 = vrot.slane %v7894, %v8829
      %v8831 = vsel %vm8332, %v8830, %v8826
      %v8832 = vlaneseq
      %v8833 = vshrl.u32 %v8832, 7
      %v8834 = vsub.s32 %v8334, %v8833
      %v8835 = vrot.slane %v7895, %v8834
      %v8836 = vsel %vm8339, %v8835, %v8831
      %v8837 = vlaneseq
      %v8838 = vshrl.u32 %v8837, 7
      %v8839 = vsub.s32 %v8341, %v8838
      %v8840 = vrot.slane %v7896, %v8839
      %v8841 = vsel %vm8346, %v8840, %v8836
      %v8842 = vlaneseq
      %v8843 = vshrl.u32 %v8842, 7
      %v8844 = vsub.s32 %v8348, %v8843
      %v8845 = vrot.slane %v7897, %v8844
      %v8846 = vsel %vm8353, %v8845, %v8841
      %v8847 = vlaneseq
      %v8848 = vshrl.u32 %v8847, 7
      %v8849 = vsub.s32 %v8355, %v8848
      %v8850 = vrot.slane %v7898, %v8849
      %v8851 = vsel %vm8360, %v8850, %v8846
      %v8852 = vlaneseq
      %v8853 = vshrl.u32 %v8852, 7
      %v8854 = vsub.s32 %v8362, %v8853
      %v8855 = vrot.slane %v7899, %v8854
      %v8856 = vsel %vm8367, %v8855, %v8851
      %v8857 = vlaneseq
      %v8858 = vshrl.u32 %v8857, 7
      %v8859 = vsub.s32 %v8369, %v8858
      %v8860 = vrot.slane %v7900, %v8859
      %v8861 = vsel %vm8374, %v8860, %v8856
      %v8862 = vlaneseq
      %v8863 = vshrl.u32 %v8862, 7
      %v8864 = vsub.s32 %v8376, %v8863
      %v8865 = vrot.slane %v7901, %v8864
      %v8866 = vsel %vm8381, %v8865, %v8861
      %v8867 = vlaneseq
      %v8868 = vshrl.u32 %v8867, 7
      %v8869 = vsub.s32 %v8383, %v8868
      %v8870 = vrot.slane %v7902, %v8869
      %v8871 = vsel %vm8388, %v8870, %v8866
      %v8872 = vlaneseq
      %v8873 = vshrl.u32 %v8872, 7
      %v8874 = vsub.s32 %v8390, %v8873
      %v8875 = vrot.slane %v7903, %v8874
      %v8876 = vsel %vm8395, %v8875, %v8871
      %v8877 = vlaneseq
      %v8878 = vshrl.u32 %v8877, 7
      %v8879 = vsub.s32 %v8397, %v8878
      %v8880 = vrot.slane %v7904, %v8879
      %v8881 = vsel %vm8402, %v8880, %v8876
      %v8882 = vlaneseq
      %v8883 = vshrl.u32 %v8882, 7
      %v8884 = vsub.s32 %v8404, %v8883
      %v8885 = vrot.slane %v7905, %v8884
      %v8886 = vsel %vm8409, %v8885, %v8881
      %v8887 = vlaneseq
      %v8888 = vshrl.u32 %v8887, 7
      %v8889 = vsub.s32 %v8411, %v8888
      %v8890 = vrot.slane %v7906, %v8889
      %v8891 = vsel %vm8416, %v8890, %v8886
      %v8892 = vlaneseq
      %v8893 = vshrl.u32 %v8892, 7
      %v8894 = vsub.s32 %v8308, %v8893
      %v8895 = vrot.slane %v7907, %v8894
      %v8896 = vlaneseq
      %v8897 = vshrl.u32 %v8896, 7
      %v8898 = vsub.s32 %v8313, %v8897
      %v8899 = vrot.slane %v7908, %v8898
      %v8900 = vsel %vm8318, %v8899, %v8895
      %v8901 = vlaneseq
      %v8902 = vshrl.u32 %v8901, 7
      %v8903 = vsub.s32 %v8320, %v8902
      %v8904 = vrot.slane %v7909, %v8903
      %v8905 = vsel %vm8325, %v8904, %v8900
      %v8906 = vlaneseq
      %v8907 = vshrl.u32 %v8906, 7
      %v8908 = vsub.s32 %v8327, %v8907
      %v8909 = vrot.slane %v7910, %v8908
      %v8910 = vsel %vm8332, %v8909, %v8905
      %v8911 = vlaneseq
      %v8912 = vshrl.u32 %v8911, 7
      %v8913 = vsub.s32 %v8334, %v8912
      %v8914 = vrot.slane %v7911, %v8913
      %v8915 = vsel %vm8339, %v8914, %v8910
      %v8916 = vlaneseq
      %v8917 = vshrl.u32 %v8916, 7
      %v8918 = vsub.s32 %v8341, %v8917
      %v8919 = vrot.slane %v7912, %v8918
      %v8920 = vsel %vm8346, %v8919, %v8915
      %v8921 = vlaneseq
      %v8922 = vshrl.u32 %v8921, 7
      %v8923 = vsub.s32 %v8348, %v8922
      %v8924 = vrot.slane %v7913, %v8923
      %v8925 = vsel %vm8353, %v8924, %v8920
      %v8926 = vlaneseq
      %v8927 = vshrl.u32 %v8926, 7
      %v8928 = vsub.s32 %v8355, %v8927
      %v8929 = vrot.slane %v7914, %v8928
      %v8930 = vsel %vm8360, %v8929, %v8925
      %v8931 = vlaneseq
      %v8932 = vshrl.u32 %v8931, 7
      %v8933 = vsub.s32 %v8362, %v8932
      %v8934 = vrot.slane %v7915, %v8933
      %v8935 = vsel %vm8367, %v8934, %v8930
      %v8936 = vlaneseq
      %v8937 = vshrl.u32 %v8936, 7
      %v8938 = vsub.s32 %v8369, %v8937
      %v8939 = vrot.slane %v7916, %v8938
      %v8940 = vsel %vm8374, %v8939, %v8935
      %v8941 = vlaneseq
      %v8942 = vshrl.u32 %v8941, 7
      %v8943 = vsub.s32 %v8376, %v8942
      %v8944 = vrot.slane %v7917, %v8943
      %v8945 = vsel %vm8381, %v8944, %v8940
      %v8946 = vlaneseq
      %v8947 = vshrl.u32 %v8946, 7
      %v8948 = vsub.s32 %v8383, %v8947
      %v8949 = vrot.slane %v7918, %v8948
      %v8950 = vsel %vm8388, %v8949, %v8945
      %v8951 = vlaneseq
      %v8952 = vshrl.u32 %v8951, 7
      %v8953 = vsub.s32 %v8390, %v8952
      %v8954 = vrot.slane %v7919, %v8953
      %v8955 = vsel %vm8395, %v8954, %v8950
      %v8956 = vlaneseq
      %v8957 = vshrl.u32 %v8956, 7
      %v8958 = vsub.s32 %v8397, %v8957
      %v8959 = vrot.slane %v7920, %v8958
      %v8960 = vsel %vm8402, %v8959, %v8955
      %v8961 = vlaneseq
      %v8962 = vshrl.u32 %v8961, 7
      %v8963 = vsub.s32 %v8404, %v8962
      %v8964 = vrot.slane %v7921, %v8963
      %v8965 = vsel %vm8409, %v8964, %v8960
      %v8966 = vlaneseq
      %v8967 = vshrl.u32 %v8966, 7
      %v8968 = vsub.s32 %v8411, %v8967
      %v8969 = vrot.slane %v7922, %v8968
      %v8970 = vsel %vm8416, %v8969, %v8965
      %v8971 = vlaneseq
      %v8972 = vshrl.u32 %v8971, 7
      %v8973 = vsub.s32 %v8308, %v8972
      %v8974 = vrot.slane %v7923, %v8973
      %v8975 = vlaneseq
      %v8976 = vshrl.u32 %v8975, 7
      %v8977 = vsub.s32 %v8313, %v8976
      %v8978 = vrot.slane %v7924, %v8977
      %v8979 = vsel %vm8318, %v8978, %v8974
      %v8980 = vlaneseq
      %v8981 = vshrl.u32 %v8980, 7
      %v8982 = vsub.s32 %v8320, %v8981
      %v8983 = vrot.slane %v7925, %v8982
      %v8984 = vsel %vm8325, %v8983, %v8979
      %v8985 = vlaneseq
      %v8986 = vshrl.u32 %v8985, 7
      %v8987 = vsub.s32 %v8327, %v8986
      %v8988 = vrot.slane %v7926, %v8987
      %v8989 = vsel %vm8332, %v8988, %v8984
      %v8990 = vlaneseq
      %v8991 = vshrl.u32 %v8990, 7
      %v8992 = vsub.s32 %v8334, %v8991
      %v8993 = vrot.slane %v7927, %v8992
      %v8994 = vsel %vm8339, %v8993, %v8989
      %v8995 = vlaneseq
      %v8996 = vshrl.u32 %v8995, 7
      %v8997 = vsub.s32 %v8341, %v8996
      %v8998 = vrot.slane %v7928, %v8997
      %v8999 = vsel %vm8346, %v8998, %v8994
      %v9000 = vlaneseq
      %v9001 = vshrl.u32 %v9000, 7
      %v9002 = vsub.s32 %v8348, %v9001
      %v9003 = vrot.slane %v7929, %v9002
      %v9004 = vsel %vm8353, %v9003, %v8999
      %v9005 = vlaneseq
      %v9006 = vshrl.u32 %v9005, 7
      %v9007 = vsub.s32 %v8355, %v9006
      %v9008 = vrot.slane %v7930, %v9007
      %v9009 = vsel %vm8360, %v9008, %v9004
      %v9010 = vlaneseq
      %v9011 = vshrl.u32 %v9010, 7
      %v9012 = vsub.s32 %v8362, %v9011
      %v9013 = vrot.slane %v7931, %v9012
      %v9014 = vsel %vm8367, %v9013, %v9009
      %v9015 = vlaneseq
      %v9016 = vshrl.u32 %v9015, 7
      %v9017 = vsub.s32 %v8369, %v9016
      %v9018 = vrot.slane %v7932, %v9017
      %v9019 = vsel %vm8374, %v9018, %v9014
      %v9020 = vlaneseq
      %v9021 = vshrl.u32 %v9020, 7
      %v9022 = vsub.s32 %v8376, %v9021
      %v9023 = vrot.slane %v7933, %v9022
      %v9024 = vsel %vm8381, %v9023, %v9019
      %v9025 = vlaneseq
      %v9026 = vshrl.u32 %v9025, 7
      %v9027 = vsub.s32 %v8383, %v9026
      %v9028 = vrot.slane %v7934, %v9027
      %v9029 = vsel %vm8388, %v9028, %v9024
      %v9030 = vlaneseq
      %v9031 = vshrl.u32 %v9030, 7
      %v9032 = vsub.s32 %v8390, %v9031
      %v9033 = vrot.slane %v7935, %v9032
      %v9034 = vsel %vm8395, %v9033, %v9029
      %v9035 = vlaneseq
      %v9036 = vshrl.u32 %v9035, 7
      %v9037 = vsub.s32 %v8397, %v9036
      %v9038 = vrot.slane %v7936, %v9037
      %v9039 = vsel %vm8402, %v9038, %v9034
      %v9040 = vlaneseq
      %v9041 = vshrl.u32 %v9040, 7
      %v9042 = vsub.s32 %v8404, %v9041
      %v9043 = vrot.slane %v7937, %v9042
      %v9044 = vsel %vm8409, %v9043, %v9039
      %v9045 = vlaneseq
      %v9046 = vshrl.u32 %v9045, 7
      %v9047 = vsub.s32 %v8411, %v9046
      %v9048 = vrot.slane %v7938, %v9047
      %v9049 = vsel %vm8416, %v9048, %v9044
      %v9050 = vlaneseq
      %v9051 = vshrl.u32 %v9050, 7
      %v9052 = vsub.s32 %v8308, %v9051
      %v9053 = vrot.slane %v7939, %v9052
      %v9054 = vlaneseq
      %v9055 = vshrl.u32 %v9054, 7
      %v9056 = vsub.s32 %v8313, %v9055
      %v9057 = vrot.slane %v7940, %v9056
      %v9058 = vsel %vm8318, %v9057, %v9053
      %v9059 = vlaneseq
      %v9060 = vshrl.u32 %v9059, 7
      %v9061 = vsub.s32 %v8320, %v9060
      %v9062 = vrot.slane %v7941, %v9061
      %v9063 = vsel %vm8325, %v9062, %v9058
      %v9064 = vlaneseq
      %v9065 = vshrl.u32 %v9064, 7
      %v9066 = vsub.s32 %v8327, %v9065
      %v9067 = vrot.slane %v7942, %v9066
      %v9068 = vsel %vm8332, %v9067, %v9063
      %v9069 = vlaneseq
      %v9070 = vshrl.u32 %v9069, 7
      %v9071 = vsub.s32 %v8334, %v9070
      %v9072 = vrot.slane %v7943, %v9071
      %v9073 = vsel %vm8339, %v9072, %v9068
      %v9074 = vlaneseq
      %v9075 = vshrl.u32 %v9074, 7
      %v9076 = vsub.s32 %v8341, %v9075
      %v9077 = vrot.slane %v7944, %v9076
      %v9078 = vsel %vm8346, %v9077, %v9073
      %v9079 = vlaneseq
      %v9080 = vshrl.u32 %v9079, 7
      %v9081 = vsub.s32 %v8348, %v9080
      %v9082 = vrot.slane %v7945, %v9081
      %v9083 = vsel %vm8353, %v9082, %v9078
      %v9084 = vlaneseq
      %v9085 = vshrl.u32 %v9084, 7
      %v9086 = vsub.s32 %v8355, %v9085
      %v9087 = vrot.slane %v7946, %v9086
      %v9088 = vsel %vm8360, %v9087, %v9083
      %v9089 = vlaneseq
      %v9090 = vshrl.u32 %v9089, 7
      %v9091 = vsub.s32 %v8362, %v9090
      %v9092 = vrot.slane %v7947, %v9091
      %v9093 = vsel %vm8367, %v9092, %v9088
      %v9094 = vlaneseq
      %v9095 = vshrl.u32 %v9094, 7
      %v9096 = vsub.s32 %v8369, %v9095
      %v9097 = vrot.slane %v7948, %v9096
      %v9098 = vsel %vm8374, %v9097, %v9093
      %v9099 = vlaneseq
      %v9100 = vshrl.u32 %v9099, 7
      %v9101 = vsub.s32 %v8376, %v9100
      %v9102 = vrot.slane %v7949, %v9101
      %v9103 = vsel %vm8381, %v9102, %v9098
      %v9104 = vlaneseq
      %v9105 = vshrl.u32 %v9104, 7
      %v9106 = vsub.s32 %v8383, %v9105
      %v9107 = vrot.slane %v7950, %v9106
      %v9108 = vsel %vm8388, %v9107, %v9103
      %v9109 = vlaneseq
      %v9110 = vshrl.u32 %v9109, 7
      %v9111 = vsub.s32 %v8390, %v9110
      %v9112 = vrot.slane %v7951, %v9111
      %v9113 = vsel %vm8395, %v9112, %v9108
      %v9114 = vlaneseq
      %v9115 = vshrl.u32 %v9114, 7
      %v9116 = vsub.s32 %v8397, %v9115
      %v9117 = vrot.slane %v7952, %v9116
      %v9118 = vsel %vm8402, %v9117, %v9113
      %v9119 = vlaneseq
      %v9120 = vshrl.u32 %v9119, 7
      %v9121 = vsub.s32 %v8404, %v9120
      %v9122 = vrot.slane %v7953, %v9121
      %v9123 = vsel %vm8409, %v9122, %v9118
      %v9124 = vlaneseq
      %v9125 = vshrl.u32 %v9124, 7
      %v9126 = vsub.s32 %v8411, %v9125
      %v9127 = vrot.slane %v7954, %v9126
      %v9128 = vsel %vm8416, %v9127, %v9123
      %v9129 = vlaneseq
      %v9130 = vshrl.u32 %v9129, 7
      %v9131 = vsub.s32 %v8308, %v9130
      %v9132 = vrot.slane %v7955, %v9131
      %v9133 = vlaneseq
      %v9134 = vshrl.u32 %v9133, 7
      %v9135 = vsub.s32 %v8313, %v9134
      %v9136 = vrot.slane %v7956, %v9135
      %v9137 = vsel %vm8318, %v9136, %v9132
      %v9138 = vlaneseq
      %v9139 = vshrl.u32 %v9138, 7
      %v9140 = vsub.s32 %v8320, %v9139
      %v9141 = vrot.slane %v7957, %v9140
      %v9142 = vsel %vm8325, %v9141, %v9137
      %v9143 = vlaneseq
      %v9144 = vshrl.u32 %v9143, 7
      %v9145 = vsub.s32 %v8327, %v9144
      %v9146 = vrot.slane %v7958, %v9145
      %v9147 = vsel %vm8332, %v9146, %v9142
      %v9148 = vlaneseq
      %v9149 = vshrl.u32 %v9148, 7
      %v9150 = vsub.s32 %v8334, %v9149
      %v9151 = vrot.slane %v7959, %v9150
      %v9152 = vsel %vm8339, %v9151, %v9147
      %v9153 = vlaneseq
      %v9154 = vshrl.u32 %v9153, 7
      %v9155 = vsub.s32 %v8341, %v9154
      %v9156 = vrot.slane %v7960, %v9155
      %v9157 = vsel %vm8346, %v9156, %v9152
      %v9158 = vlaneseq
      %v9159 = vshrl.u32 %v9158, 7
      %v9160 = vsub.s32 %v8348, %v9159
      %v9161 = vrot.slane %v7961, %v9160
      %v9162 = vsel %vm8353, %v9161, %v9157
      %v9163 = vlaneseq
      %v9164 = vshrl.u32 %v9163, 7
      %v9165 = vsub.s32 %v8355, %v9164
      %v9166 = vrot.slane %v7962, %v9165
      %v9167 = vsel %vm8360, %v9166, %v9162
      %v9168 = vlaneseq
      %v9169 = vshrl.u32 %v9168, 7
      %v9170 = vsub.s32 %v8362, %v9169
      %v9171 = vrot.slane %v7963, %v9170
      %v9172 = vsel %vm8367, %v9171, %v9167
      %v9173 = vlaneseq
      %v9174 = vshrl.u32 %v9173, 7
      %v9175 = vsub.s32 %v8369, %v9174
      %v9176 = vrot.slane %v7964, %v9175
      %v9177 = vsel %vm8374, %v9176, %v9172
      %v9178 = vlaneseq
      %v9179 = vshrl.u32 %v9178, 7
      %v9180 = vsub.s32 %v8376, %v9179
      %v9181 = vrot.slane %v7965, %v9180
      %v9182 = vsel %vm8381, %v9181, %v9177
      %v9183 = vlaneseq
      %v9184 = vshrl.u32 %v9183, 7
      %v9185 = vsub.s32 %v8383, %v9184
      %v9186 = vrot.slane %v7966, %v9185
      %v9187 = vsel %vm8388, %v9186, %v9182
      %v9188 = vlaneseq
      %v9189 = vshrl.u32 %v9188, 7
      %v9190 = vsub.s32 %v8390, %v9189
      %v9191 = vrot.slane %v7967, %v9190
      %v9192 = vsel %vm8395, %v9191, %v9187
      %v9193 = vlaneseq
      %v9194 = vshrl.u32 %v9193, 7
      %v9195 = vsub.s32 %v8397, %v9194
      %v9196 = vrot.slane %v7968, %v9195
      %v9197 = vsel %vm8402, %v9196, %v9192
      %v9198 = vlaneseq
      %v9199 = vshrl.u32 %v9198, 7
      %v9200 = vsub.s32 %v8404, %v9199
      %v9201 = vrot.slane %v7969, %v9200
      %v9202 = vsel %vm8409, %v9201, %v9197
      %v9203 = vlaneseq
      %v9204 = vshrl.u32 %v9203, 7
      %v9205 = vsub.s32 %v8411, %v9204
      %v9206 = vrot.slane %v7970, %v9205
      %v9207 = vsel %vm8416, %v9206, %v9202
      %v9208 = vlaneseq
      %v9209 = vshrl.u32 %v9208, 7
      %v9210 = vsub.s32 %v8308, %v9209
      %v9211 = vrot.slane %v7971, %v9210
      %v9212 = vlaneseq
      %v9213 = vshrl.u32 %v9212, 7
      %v9214 = vsub.s32 %v8313, %v9213
      %v9215 = vrot.slane %v7972, %v9214
      %v9216 = vsel %vm8318, %v9215, %v9211
      %v9217 = vlaneseq
      %v9218 = vshrl.u32 %v9217, 7
      %v9219 = vsub.s32 %v8320, %v9218
      %v9220 = vrot.slane %v7973, %v9219
      %v9221 = vsel %vm8325, %v9220, %v9216
      %v9222 = vlaneseq
      %v9223 = vshrl.u32 %v9222, 7
      %v9224 = vsub.s32 %v8327, %v9223
      %v9225 = vrot.slane %v7974, %v9224
      %v9226 = vsel %vm8332, %v9225, %v9221
      %v9227 = vlaneseq
      %v9228 = vshrl.u32 %v9227, 7
      %v9229 = vsub.s32 %v8334, %v9228
      %v9230 = vrot.slane %v7975, %v9229
      %v9231 = vsel %vm8339, %v9230, %v9226
      %v9232 = vlaneseq
      %v9233 = vshrl.u32 %v9232, 7
      %v9234 = vsub.s32 %v8341, %v9233
      %v9235 = vrot.slane %v7976, %v9234
      %v9236 = vsel %vm8346, %v9235, %v9231
      %v9237 = vlaneseq
      %v9238 = vshrl.u32 %v9237, 7
      %v9239 = vsub.s32 %v8348, %v9238
      %v9240 = vrot.slane %v7977, %v9239
      %v9241 = vsel %vm8353, %v9240, %v9236
      %v9242 = vlaneseq
      %v9243 = vshrl.u32 %v9242, 7
      %v9244 = vsub.s32 %v8355, %v9243
      %v9245 = vrot.slane %v7978, %v9244
      %v9246 = vsel %vm8360, %v9245, %v9241
      %v9247 = vlaneseq
      %v9248 = vshrl.u32 %v9247, 7
      %v9249 = vsub.s32 %v8362, %v9248
      %v9250 = vrot.slane %v7979, %v9249
      %v9251 = vsel %vm8367, %v9250, %v9246
      %v9252 = vlaneseq
      %v9253 = vshrl.u32 %v9252, 7
      %v9254 = vsub.s32 %v8369, %v9253
      %v9255 = vrot.slane %v7980, %v9254
      %v9256 = vsel %vm8374, %v9255, %v9251
      %v9257 = vlaneseq
      %v9258 = vshrl.u32 %v9257, 7
      %v9259 = vsub.s32 %v8376, %v9258
      %v9260 = vrot.slane %v7981, %v9259
      %v9261 = vsel %vm8381, %v9260, %v9256
      %v9262 = vlaneseq
      %v9263 = vshrl.u32 %v9262, 7
      %v9264 = vsub.s32 %v8383, %v9263
      %v9265 = vrot.slane %v7982, %v9264
      %v9266 = vsel %vm8388, %v9265, %v9261
      %v9267 = vlaneseq
      %v9268 = vshrl.u32 %v9267, 7
      %v9269 = vsub.s32 %v8390, %v9268
      %v9270 = vrot.slane %v7983, %v9269
      %v9271 = vsel %vm8395, %v9270, %v9266
      %v9272 = vlaneseq
      %v9273 = vshrl.u32 %v9272, 7
      %v9274 = vsub.s32 %v8397, %v9273
      %v9275 = vrot.slane %v7984, %v9274
      %v9276 = vsel %vm8402, %v9275, %v9271
      %v9277 = vlaneseq
      %v9278 = vshrl.u32 %v9277, 7
      %v9279 = vsub.s32 %v8404, %v9278
      %v9280 = vrot.slane %v7985, %v9279
      %v9281 = vsel %vm8409, %v9280, %v9276
      %v9282 = vlaneseq
      %v9283 = vshrl.u32 %v9282, 7
      %v9284 = vsub.s32 %v8411, %v9283
      %v9285 = vrot.slane %v7986, %v9284
      %v9286 = vsel %vm8416, %v9285, %v9281
      %v9287 = vlaneseq
      %v9288 = vshrl.u32 %v9287, 7
      %v9289 = vsub.s32 %v8308, %v9288
      %v9290 = vrot.slane %v7987, %v9289
      %v9291 = vlaneseq
      %v9292 = vshrl.u32 %v9291, 7
      %v9293 = vsub.s32 %v8313, %v9292
      %v9294 = vrot.slane %v7988, %v9293
      %v9295 = vsel %vm8318, %v9294, %v9290
      %v9296 = vlaneseq
      %v9297 = vshrl.u32 %v9296, 7
      %v9298 = vsub.s32 %v8320, %v9297
      %v9299 = vrot.slane %v7989, %v9298
      %v9300 = vsel %vm8325, %v9299, %v9295
      %v9301 = vlaneseq
      %v9302 = vshrl.u32 %v9301, 7
      %v9303 = vsub.s32 %v8327, %v9302
      %v9304 = vrot.slane %v7990, %v9303
      %v9305 = vsel %vm8332, %v9304, %v9300
      %v9306 = vlaneseq
      %v9307 = vshrl.u32 %v9306, 7
      %v9308 = vsub.s32 %v8334, %v9307
      %v9309 = vrot.slane %v7991, %v9308
      %v9310 = vsel %vm8339, %v9309, %v9305
      %v9311 = vlaneseq
      %v9312 = vshrl.u32 %v9311, 7
      %v9313 = vsub.s32 %v8341, %v9312
      %v9314 = vrot.slane %v7992, %v9313
      %v9315 = vsel %vm8346, %v9314, %v9310
      %v9316 = vlaneseq
      %v9317 = vshrl.u32 %v9316, 7
      %v9318 = vsub.s32 %v8348, %v9317
      %v9319 = vrot.slane %v7993, %v9318
      %v9320 = vsel %vm8353, %v9319, %v9315
      %v9321 = vlaneseq
      %v9322 = vshrl.u32 %v9321, 7
      %v9323 = vsub.s32 %v8355, %v9322
      %v9324 = vrot.slane %v7994, %v9323
      %v9325 = vsel %vm8360, %v9324, %v9320
      %v9326 = vlaneseq
      %v9327 = vshrl.u32 %v9326, 7
      %v9328 = vsub.s32 %v8362, %v9327
      %v9329 = vrot.slane %v7995, %v9328
      %v9330 = vsel %vm8367, %v9329, %v9325
      %v9331 = vlaneseq
      %v9332 = vshrl.u32 %v9331, 7
      %v9333 = vsub.s32 %v8369, %v9332
      %v9334 = vrot.slane %v7996, %v9333
      %v9335 = vsel %vm8374, %v9334, %v9330
      %v9336 = vlaneseq
      %v9337 = vshrl.u32 %v9336, 7
      %v9338 = vsub.s32 %v8376, %v9337
      %v9339 = vrot.slane %v7997, %v9338
      %v9340 = vsel %vm8381, %v9339, %v9335
      %v9341 = vlaneseq
      %v9342 = vshrl.u32 %v9341, 7
      %v9343 = vsub.s32 %v8383, %v9342
      %v9344 = vrot.slane %v7998, %v9343
      %v9345 = vsel %vm8388, %v9344, %v9340
      %v9346 = vlaneseq
      %v9347 = vshrl.u32 %v9346, 7
      %v9348 = vsub.s32 %v8390, %v9347
      %v9349 = vrot.slane %v7999, %v9348
      %v9350 = vsel %vm8395, %v9349, %v9345
      %v9351 = vlaneseq
      %v9352 = vshrl.u32 %v9351, 7
      %v9353 = vsub.s32 %v8397, %v9352
      %v9354 = vrot.slane %v8000, %v9353
      %v9355 = vsel %vm8402, %v9354, %v9350
      %v9356 = vlaneseq
      %v9357 = vshrl.u32 %v9356, 7
      %v9358 = vsub.s32 %v8404, %v9357
      %v9359 = vrot.slane %v8001, %v9358
      %v9360 = vsel %vm8409, %v9359, %v9355
      %v9361 = vlaneseq
      %v9362 = vshrl.u32 %v9361, 7
      %v9363 = vsub.s32 %v8411, %v9362
      %v9364 = vrot.slane %v8002, %v9363
      %v9365 = vsel %vm8416, %v9364, %v9360
      %v9366 = vlaneseq
      %v9367 = vshrl.u32 %v9366, 7
      %v9368 = vsub.s32 %v8308, %v9367
      %v9369 = vrot.slane %v8003, %v9368
      %v9370 = vlaneseq
      %v9371 = vshrl.u32 %v9370, 7
      %v9372 = vsub.s32 %v8313, %v9371
      %v9373 = vrot.slane %v8004, %v9372
      %v9374 = vsel %vm8318, %v9373, %v9369
      %v9375 = vlaneseq
      %v9376 = vshrl.u32 %v9375, 7
      %v9377 = vsub.s32 %v8320, %v9376
      %v9378 = vrot.slane %v8005, %v9377
      %v9379 = vsel %vm8325, %v9378, %v9374
      %v9380 = vlaneseq
      %v9381 = vshrl.u32 %v9380, 7
      %v9382 = vsub.s32 %v8327, %v9381
      %v9383 = vrot.slane %v8006, %v9382
      %v9384 = vsel %vm8332, %v9383, %v9379
      %v9385 = vlaneseq
      %v9386 = vshrl.u32 %v9385, 7
      %v9387 = vsub.s32 %v8334, %v9386
      %v9388 = vrot.slane %v8007, %v9387
      %v9389 = vsel %vm8339, %v9388, %v9384
      %v9390 = vlaneseq
      %v9391 = vshrl.u32 %v9390, 7
      %v9392 = vsub.s32 %v8341, %v9391
      %v9393 = vrot.slane %v8008, %v9392
      %v9394 = vsel %vm8346, %v9393, %v9389
      %v9395 = vlaneseq
      %v9396 = vshrl.u32 %v9395, 7
      %v9397 = vsub.s32 %v8348, %v9396
      %v9398 = vrot.slane %v8009, %v9397
      %v9399 = vsel %vm8353, %v9398, %v9394
      %v9400 = vlaneseq
      %v9401 = vshrl.u32 %v9400, 7
      %v9402 = vsub.s32 %v8355, %v9401
      %v9403 = vrot.slane %v8010, %v9402
      %v9404 = vsel %vm8360, %v9403, %v9399
      %v9405 = vlaneseq
      %v9406 = vshrl.u32 %v9405, 7
      %v9407 = vsub.s32 %v8362, %v9406
      %v9408 = vrot.slane %v8011, %v9407
      %v9409 = vsel %vm8367, %v9408, %v9404
      %v9410 = vlaneseq
      %v9411 = vshrl.u32 %v9410, 7
      %v9412 = vsub.s32 %v8369, %v9411
      %v9413 = vrot.slane %v8012, %v9412
      %v9414 = vsel %vm8374, %v9413, %v9409
      %v9415 = vlaneseq
      %v9416 = vshrl.u32 %v9415, 7
      %v9417 = vsub.s32 %v8376, %v9416
      %v9418 = vrot.slane %v8013, %v9417
      %v9419 = vsel %vm8381, %v9418, %v9414
      %v9420 = vlaneseq
      %v9421 = vshrl.u32 %v9420, 7
      %v9422 = vsub.s32 %v8383, %v9421
      %v9423 = vrot.slane %v8014, %v9422
      %v9424 = vsel %vm8388, %v9423, %v9419
      %v9425 = vlaneseq
      %v9426 = vshrl.u32 %v9425, 7
      %v9427 = vsub.s32 %v8390, %v9426
      %v9428 = vrot.slane %v8015, %v9427
      %v9429 = vsel %vm8395, %v9428, %v9424
      %v9430 = vlaneseq
      %v9431 = vshrl.u32 %v9430, 7
      %v9432 = vsub.s32 %v8397, %v9431
      %v9433 = vrot.slane %v8016, %v9432
      %v9434 = vsel %vm8402, %v9433, %v9429
      %v9435 = vlaneseq
      %v9436 = vshrl.u32 %v9435, 7
      %v9437 = vsub.s32 %v8404, %v9436
      %v9438 = vrot.slane %v8017, %v9437
      %v9439 = vsel %vm8409, %v9438, %v9434
      %v9440 = vlaneseq
      %v9441 = vshrl.u32 %v9440, 7
      %v9442 = vsub.s32 %v8411, %v9441
      %v9443 = vrot.slane %v8018, %v9442
      %v9444 = vsel %vm8416, %v9443, %v9439
      %v9445 = vlaneseq
      %v9446 = vshrl.u32 %v9445, 7
      %v9447 = vsub.s32 %v8308, %v9446
      %v9448 = vrot.slane %v8019, %v9447
      %v9449 = vlaneseq
      %v9450 = vshrl.u32 %v9449, 7
      %v9451 = vsub.s32 %v8313, %v9450
      %v9452 = vrot.slane %v8020, %v9451
      %v9453 = vsel %vm8318, %v9452, %v9448
      %v9454 = vlaneseq
      %v9455 = vshrl.u32 %v9454, 7
      %v9456 = vsub.s32 %v8320, %v9455
      %v9457 = vrot.slane %v8021, %v9456
      %v9458 = vsel %vm8325, %v9457, %v9453
      %v9459 = vlaneseq
      %v9460 = vshrl.u32 %v9459, 7
      %v9461 = vsub.s32 %v8327, %v9460
      %v9462 = vrot.slane %v8022, %v9461
      %v9463 = vsel %vm8332, %v9462, %v9458
      %v9464 = vlaneseq
      %v9465 = vshrl.u32 %v9464, 7
      %v9466 = vsub.s32 %v8334, %v9465
      %v9467 = vrot.slane %v8023, %v9466
      %v9468 = vsel %vm8339, %v9467, %v9463
      %v9469 = vlaneseq
      %v9470 = vshrl.u32 %v9469, 7
      %v9471 = vsub.s32 %v8341, %v9470
      %v9472 = vrot.slane %v8024, %v9471
      %v9473 = vsel %vm8346, %v9472, %v9468
      %v9474 = vlaneseq
      %v9475 = vshrl.u32 %v9474, 7
      %v9476 = vsub.s32 %v8348, %v9475
      %v9477 = vrot.slane %v8025, %v9476
      %v9478 = vsel %vm8353, %v9477, %v9473
      %v9479 = vlaneseq
      %v9480 = vshrl.u32 %v9479, 7
      %v9481 = vsub.s32 %v8355, %v9480
      %v9482 = vrot.slane %v8026, %v9481
      %v9483 = vsel %vm8360, %v9482, %v9478
      %v9484 = vlaneseq
      %v9485 = vshrl.u32 %v9484, 7
      %v9486 = vsub.s32 %v8362, %v9485
      %v9487 = vrot.slane %v8027, %v9486
      %v9488 = vsel %vm8367, %v9487, %v9483
      %v9489 = vlaneseq
      %v9490 = vshrl.u32 %v9489, 7
      %v9491 = vsub.s32 %v8369, %v9490
      %v9492 = vrot.slane %v8028, %v9491
      %v9493 = vsel %vm8374, %v9492, %v9488
      %v9494 = vlaneseq
      %v9495 = vshrl.u32 %v9494, 7
      %v9496 = vsub.s32 %v8376, %v9495
      %v9497 = vrot.slane %v8029, %v9496
      %v9498 = vsel %vm8381, %v9497, %v9493
      %v9499 = vlaneseq
      %v9500 = vshrl.u32 %v9499, 7
      %v9501 = vsub.s32 %v8383, %v9500
      %v9502 = vrot.slane %v8030, %v9501
      %v9503 = vsel %vm8388, %v9502, %v9498
      %v9504 = vlaneseq
      %v9505 = vshrl.u32 %v9504, 7
      %v9506 = vsub.s32 %v8390, %v9505
      %v9507 = vrot.slane %v8031, %v9506
      %v9508 = vsel %vm8395, %v9507, %v9503
      %v9509 = vlaneseq
      %v9510 = vshrl.u32 %v9509, 7
      %v9511 = vsub.s32 %v8397, %v9510
      %v9512 = vrot.slane %v8032, %v9511
      %v9513 = vsel %vm8402, %v9512, %v9508
      %v9514 = vlaneseq
      %v9515 = vshrl.u32 %v9514, 7
      %v9516 = vsub.s32 %v8404, %v9515
      %v9517 = vrot.slane %v8033, %v9516
      %v9518 = vsel %vm8409, %v9517, %v9513
      %v9519 = vlaneseq
      %v9520 = vshrl.u32 %v9519, 7
      %v9521 = vsub.s32 %v8411, %v9520
      %v9522 = vrot.slane %v8034, %v9521
      %v9523 = vsel %vm8416, %v9522, %v9518
      %v9524 = vlaneseq
      %v9525 = vshrl.u32 %v9524, 7
      %v9526 = vsub.s32 %v8308, %v9525
      %v9527 = vrot.slane %v8035, %v9526
      %v9528 = vlaneseq
      %v9529 = vshrl.u32 %v9528, 7
      %v9530 = vsub.s32 %v8313, %v9529
      %v9531 = vrot.slane %v8036, %v9530
      %v9532 = vsel %vm8318, %v9531, %v9527
      %v9533 = vlaneseq
      %v9534 = vshrl.u32 %v9533, 7
      %v9535 = vsub.s32 %v8320, %v9534
      %v9536 = vrot.slane %v8037, %v9535
      %v9537 = vsel %vm8325, %v9536, %v9532
      %v9538 = vlaneseq
      %v9539 = vshrl.u32 %v9538, 7
      %v9540 = vsub.s32 %v8327, %v9539
      %v9541 = vrot.slane %v8038, %v9540
      %v9542 = vsel %vm8332, %v9541, %v9537
      %v9543 = vlaneseq
      %v9544 = vshrl.u32 %v9543, 7
      %v9545 = vsub.s32 %v8334, %v9544
      %v9546 = vrot.slane %v8039, %v9545
      %v9547 = vsel %vm8339, %v9546, %v9542
      %v9548 = vlaneseq
      %v9549 = vshrl.u32 %v9548, 7
      %v9550 = vsub.s32 %v8341, %v9549
      %v9551 = vrot.slane %v8040, %v9550
      %v9552 = vsel %vm8346, %v9551, %v9547
      %v9553 = vlaneseq
      %v9554 = vshrl.u32 %v9553, 7
      %v9555 = vsub.s32 %v8348, %v9554
      %v9556 = vrot.slane %v8041, %v9555
      %v9557 = vsel %vm8353, %v9556, %v9552
      %v9558 = vlaneseq
      %v9559 = vshrl.u32 %v9558, 7
      %v9560 = vsub.s32 %v8355, %v9559
      %v9561 = vrot.slane %v8042, %v9560
      %v9562 = vsel %vm8360, %v9561, %v9557
      %v9563 = vlaneseq
      %v9564 = vshrl.u32 %v9563, 7
      %v9565 = vsub.s32 %v8362, %v9564
      %v9566 = vrot.slane %v8043, %v9565
      %v9567 = vsel %vm8367, %v9566, %v9562
      %v9568 = vlaneseq
      %v9569 = vshrl.u32 %v9568, 7
      %v9570 = vsub.s32 %v8369, %v9569
      %v9571 = vrot.slane %v8044, %v9570
      %v9572 = vsel %vm8374, %v9571, %v9567
      %v9573 = vlaneseq
      %v9574 = vshrl.u32 %v9573, 7
      %v9575 = vsub.s32 %v8376, %v9574
      %v9576 = vrot.slane %v8045, %v9575
      %v9577 = vsel %vm8381, %v9576, %v9572
      %v9578 = vlaneseq
      %v9579 = vshrl.u32 %v9578, 7
      %v9580 = vsub.s32 %v8383, %v9579
      %v9581 = vrot.slane %v8046, %v9580
      %v9582 = vsel %vm8388, %v9581, %v9577
      %v9583 = vlaneseq
      %v9584 = vshrl.u32 %v9583, 7
      %v9585 = vsub.s32 %v8390, %v9584
      %v9586 = vrot.slane %v8047, %v9585
      %v9587 = vsel %vm8395, %v9586, %v9582
      %v9588 = vlaneseq
      %v9589 = vshrl.u32 %v9588, 7
      %v9590 = vsub.s32 %v8397, %v9589
      %v9591 = vrot.slane %v8048, %v9590
      %v9592 = vsel %vm8402, %v9591, %v9587
      %v9593 = vlaneseq
      %v9594 = vshrl.u32 %v9593, 7
      %v9595 = vsub.s32 %v8404, %v9594
      %v9596 = vrot.slane %v8049, %v9595
      %v9597 = vsel %vm8409, %v9596, %v9592
      %v9598 = vlaneseq
      %v9599 = vshrl.u32 %v9598, 7
      %v9600 = vsub.s32 %v8411, %v9599
      %v9601 = vrot.slane %v8050, %v9600
      %v9602 = vsel %vm8416, %v9601, %v9597
      %vm9603 = vcmask 1042434
      %v9604 = vsel %vm9603, %v8417, %v8417
      %vm9605 = vcmask 1043459
      %v9606 = vsel %vm9605, %v8417, %v9604
      %vm9607 = vcmask 1044484
      %v9608 = vsel %vm9607, %v8417, %v9606
      %vm9609 = vcmask 1045509
      %v9610 = vsel %vm9609, %v8417, %v9608
      %vm9611 = vcmask 1046534
      %v9612 = vsel %vm9611, %v8417, %v9610
      %vm9613 = vcmask 1047559
      %v9614 = vsel %vm9613, %v8417, %v9612
      %v9615 = vsel %vm9603, %v8496, %v8496
      %v9616 = vsel %vm9605, %v8496, %v9615
      %v9617 = vsel %vm9607, %v8496, %v9616
      %v9618 = vsel %vm9609, %v8496, %v9617
      %v9619 = vsel %vm9611, %v8496, %v9618
      %v9620 = vsel %vm9613, %v8496, %v9619
      %v9621 = vsel %vm9603, %v8575, %v8575
      %v9622 = vsel %vm9605, %v8575, %v9621
      %v9623 = vsel %vm9607, %v8575, %v9622
      %v9624 = vsel %vm9609, %v8575, %v9623
      %v9625 = vsel %vm9611, %v8575, %v9624
      %v9626 = vsel %vm9613, %v8575, %v9625
      %v9627 = vsel %vm9603, %v8654, %v8654
      %v9628 = vsel %vm9605, %v8654, %v9627
      %v9629 = vsel %vm9607, %v8654, %v9628
      %v9630 = vsel %vm9609, %v8654, %v9629
      %v9631 = vsel %vm9611, %v8654, %v9630
      %v9632 = vsel %vm9613, %v8654, %v9631
      %v9633 = vsel %vm9603, %v8733, %v8733
      %v9634 = vsel %vm9605, %v8733, %v9633
      %v9635 = vsel %vm9607, %v8733, %v9634
      %v9636 = vsel %vm9609, %v8733, %v9635
      %v9637 = vsel %vm9611, %v8733, %v9636
      %v9638 = vsel %vm9613, %v8733, %v9637
      %v9639 = vsel %vm9603, %v8812, %v8812
      %v9640 = vsel %vm9605, %v8812, %v9639
      %v9641 = vsel %vm9607, %v8812, %v9640
      %v9642 = vsel %vm9609, %v8812, %v9641
      %v9643 = vsel %vm9611, %v8812, %v9642
      %v9644 = vsel %vm9613, %v8812, %v9643
      %v9645 = vsel %vm9603, %v8891, %v8891
      %v9646 = vsel %vm9605, %v8891, %v9645
      %v9647 = vsel %vm9607, %v8891, %v9646
      %v9648 = vsel %vm9609, %v8891, %v9647
      %v9649 = vsel %vm9611, %v8891, %v9648
      %v9650 = vsel %vm9613, %v8891, %v9649
      %v9651 = vsel %vm9603, %v8970, %v8970
      %v9652 = vsel %vm9605, %v8970, %v9651
      %v9653 = vsel %vm9607, %v8970, %v9652
      %v9654 = vsel %vm9609, %v8970, %v9653
      %v9655 = vsel %vm9611, %v8970, %v9654
      %v9656 = vsel %vm9613, %v8970, %v9655
      %v9657 = vsel %vm9603, %v9049, %v9049
      %v9658 = vsel %vm9605, %v9049, %v9657
      %v9659 = vsel %vm9607, %v9049, %v9658
      %v9660 = vsel %vm9609, %v9049, %v9659
      %v9661 = vsel %vm9611, %v9049, %v9660
      %v9662 = vsel %vm9613, %v9049, %v9661
      %v9663 = vsel %vm9603, %v9128, %v9128
      %v9664 = vsel %vm9605, %v9128, %v9663
      %v9665 = vsel %vm9607, %v9128, %v9664
      %v9666 = vsel %vm9609, %v9128, %v9665
      %v9667 = vsel %vm9611, %v9128, %v9666
      %v9668 = vsel %vm9613, %v9128, %v9667
      %v9669 = vsel %vm9603, %v9207, %v9207
      %v9670 = vsel %vm9605, %v9207, %v9669
      %v9671 = vsel %vm9607, %v9207, %v9670
      %v9672 = vsel %vm9609, %v9207, %v9671
      %v9673 = vsel %vm9611, %v9207, %v9672
      %v9674 = vsel %vm9613, %v9207, %v9673
      %v9675 = vsel %vm9603, %v9286, %v9286
      %v9676 = vsel %vm9605, %v9286, %v9675
      %v9677 = vsel %vm9607, %v9286, %v9676
      %v9678 = vsel %vm9609, %v9286, %v9677
      %v9679 = vsel %vm9611, %v9286, %v9678
      %v9680 = vsel %vm9613, %v9286, %v9679
      %v9681 = vsel %vm9603, %v9365, %v9365
      %v9682 = vsel %vm9605, %v9365, %v9681
      %v9683 = vsel %vm9607, %v9365, %v9682
      %v9684 = vsel %vm9609, %v9365, %v9683
      %v9685 = vsel %vm9611, %v9365, %v9684
      %v9686 = vsel %vm9613, %v9365, %v9685
      %v9687 = vsel %vm9603, %v9444, %v9444
      %v9688 = vsel %vm9605, %v9444, %v9687
      %v9689 = vsel %vm9607, %v9444, %v9688
      %v9690 = vsel %vm9609, %v9444, %v9689
      %v9691 = vsel %vm9611, %v9444, %v9690
      %v9692 = vsel %vm9613, %v9444, %v9691
      %v9693 = vsel %vm9603, %v9523, %v9523
      %v9694 = vsel %vm9605, %v9523, %v9693
      %v9695 = vsel %vm9607, %v9523, %v9694
      %v9696 = vsel %vm9609, %v9523, %v9695
      %v9697 = vsel %vm9611, %v9523, %v9696
      %v9698 = vsel %vm9613, %v9523, %v9697
      %v9699 = vsel %vm9603, %v9602, %v9602
      %v9700 = vsel %vm9605, %v9602, %v9699
      %v9701 = vsel %vm9607, %v9602, %v9700
      %v9702 = vsel %vm9609, %v9602, %v9701
      %v9703 = vsel %vm9611, %v9602, %v9702
      %v9704 = vsel %vm9613, %v9602, %v9703
      %v9721 = vmul.f32 %v7486, %v9614
      %v9722 = vmul.f32 %v7488, %v9620
      %v9723 = vmul.f32 %v7490, %v9614
      %v9724 = vmul.f32 %v7492, %v9620
      %v9725 = vmul.f32 %v7529, %v9626
      %v9726 = vmul.f32 %v7531, %v9632
      %v9727 = vmul.f32 %v7533, %v9626
      %v9728 = vmul.f32 %v7535, %v9632
      %v9729 = vmul.f32 %v7572, %v9638
      %v9730 = vmul.f32 %v7574, %v9644
      %v9731 = vmul.f32 %v7576, %v9638
      %v9732 = vmul.f32 %v7578, %v9644
      %v9733 = vmul.f32 %v7615, %v9650
      %v9734 = vmul.f32 %v7617, %v9656
      %v9735 = vmul.f32 %v7619, %v9650
      %v9736 = vmul.f32 %v7621, %v9656
      %v9737 = vmul.f32 %v7658, %v9662
      %v9738 = vmul.f32 %v7660, %v9668
      %v9739 = vmul.f32 %v7662, %v9662
      %v9740 = vmul.f32 %v7664, %v9668
      %v9741 = vmul.f32 %v7701, %v9674
      %v9742 = vmul.f32 %v7703, %v9680
      %v9743 = vmul.f32 %v7705, %v9674
      %v9744 = vmul.f32 %v7707, %v9680
      %v9745 = vmul.f32 %v7744, %v9686
      %v9746 = vmul.f32 %v7746, %v9692
      %v9747 = vmul.f32 %v7748, %v9686
      %v9748 = vmul.f32 %v7750, %v9692
      %v9749 = vmul.f32 %v7787, %v9698
      %v9750 = vmul.f32 %v7789, %v9704
      %v9751 = vmul.f32 %v7791, %v9698
      %v9752 = vmul.f32 %v7793, %v9704
      %v9753 = vld [vmem:[%s5] sm:$0xf]
      %v9754 = vld [vmem:[%s5 + $0x4] sm:$0xf]
      %v9755 = vld [vmem:[%s5 + $0x8] sm:$0xf]
      %v9756 = vld [vmem:[%s5 + $0xc] sm:$0xf]
      %v9757 = vld [vmem:[%s5 + $0x10] sm:$0xf]
      %v9758 = vld [vmem:[%s5 + $0x14] sm:$0xf]
      %v9759 = vld [vmem:[%s5 + $0x18] sm:$0xf]
      %v9760 = vld [vmem:[%s5 + $0x1c] sm:$0xf]
      %v9761 = vld [vmem:[%s5 + $0x20] sm:$0xf]
      %v9762 = vld [vmem:[%s5 + $0x24] sm:$0xf]
      %v9763 = vld [vmem:[%s5 + $0x28] sm:$0xf]
      %v9764 = vld [vmem:[%s5 + $0x2c] sm:$0xf]
      %v9765 = vld [vmem:[%s5 + $0x30] sm:$0xf]
      %v9766 = vld [vmem:[%s5 + $0x34] sm:$0xf]
      %v9767 = vld [vmem:[%s5 + $0x38] sm:$0xf]
      %v9768 = vld [vmem:[%s5 + $0x3c] sm:$0xf]
      %v9769 = vpack.c.bf16 %v9723, %v9721
      %v9770 = vpack.c.bf16 %v9724, %v9722
      %v9771 = vpack.c.bf16 %v9727, %v9725
      %v9772 = vpack.c.bf16 %v9728, %v9726
      %v9773 = vpack.c.bf16 %v9731, %v9729
      %v9774 = vpack.c.bf16 %v9732, %v9730
      %v9775 = vpack.c.bf16 %v9735, %v9733
      %v9776 = vpack.c.bf16 %v9736, %v9734
      %v9777 = vpack.c.bf16 %v9739, %v9737
      %v9778 = vpack.c.bf16 %v9740, %v9738
      %v9779 = vpack.c.bf16 %v9743, %v9741
      %v9780 = vpack.c.bf16 %v9744, %v9742
      %v9781 = vpack.c.bf16 %v9747, %v9745
      %v9782 = vpack.c.bf16 %v9748, %v9746
      %v9783 = vpack.c.bf16 %v9751, %v9749
      %v9784 = vpack.c.bf16 %v9752, %v9750
      %v9785 = vld [vmem:[%s6] sm:$0xff]
      %v9786 = vld [vmem:[%s6 + $0x8] sm:$0xff]
      %v9787 = vld [vmem:[%s6 + $0x10] sm:$0xff]
      %v9788 = vld [vmem:[%s6 + $0x18] sm:$0xff]
      %v9789 = vld [vmem:[%s6 + $0x20] sm:$0xff]
      %v9790 = vld [vmem:[%s6 + $0x28] sm:$0xff]
      %v9791 = vld [vmem:[%s6 + $0x30] sm:$0xff]
      %v9792 = vld [vmem:[%s6 + $0x38] sm:$0xff]
      %v9793 = vld [vmem:[%s6 + $0x40] sm:$0xff]
      %v9794 = vld [vmem:[%s6 + $0x48] sm:$0xff]
      %v9795 = vld [vmem:[%s6 + $0x50] sm:$0xff]
      %v9796 = vld [vmem:[%s6 + $0x58] sm:$0xff]
      %v9797 = vld [vmem:[%s6 + $0x60] sm:$0xff]
      %v9798 = vld [vmem:[%s6 + $0x68] sm:$0xff]
      %v9799 = vld [vmem:[%s6 + $0x70] sm:$0xff]
      %v9800 = vld [vmem:[%s6 + $0x78] sm:$0xff]
      %9802 = vset.pattern.permute.xlu0 0
      %9803 = vperm.xlu0 %9802, %v9785
      %v9804 = vpop.permute.xlu0 %9803
      %9807 = vset.pattern.permute.xlu0 0
      %9808 = vperm.xlu0 %9807, %v9786
      %v9809 = vpop.permute.xlu0 %9808
      %9812 = vset.pattern.permute.xlu0 0
      %9813 = vperm.xlu0 %9812, %v9787
      %v9814 = vpop.permute.xlu0 %9813
      %9817 = vset.pattern.permute.xlu0 0
      %9818 = vperm.xlu0 %9817, %v9788
      %v9819 = vpop.permute.xlu0 %9818
      %9822 = vset.pattern.permute.xlu0 0
      %9823 = vperm.xlu0 %9822, %v9789
      %v9824 = vpop.permute.xlu0 %9823
      %9827 = vset.pattern.permute.xlu0 0
      %9828 = vperm.xlu0 %9827, %v9790
      %v9829 = vpop.permute.xlu0 %9828
      %9832 = vset.pattern.permute.xlu0 0
      %9833 = vperm.xlu0 %9832, %v9791
      %v9834 = vpop.permute.xlu0 %9833
      %9837 = vset.pattern.permute.xlu0 0
      %9838 = vperm.xlu0 %9837, %v9792
      %v9839 = vpop.permute.xlu0 %9838
      %9842 = vset.pattern.permute.xlu0 0
      %9843 = vperm.xlu0 %9842, %v9793
      %v9844 = vpop.permute.xlu0 %9843
      %9847 = vset.pattern.permute.xlu0 0
      %9848 = vperm.xlu0 %9847, %v9794
      %v9849 = vpop.permute.xlu0 %9848
      %9852 = vset.pattern.permute.xlu0 0
      %9853 = vperm.xlu0 %9852, %v9795
      %v9854 = vpop.permute.xlu0 %9853
      %9857 = vset.pattern.permute.xlu0 0
      %9858 = vperm.xlu0 %9857, %v9796
      %v9859 = vpop.permute.xlu0 %9858
      %9862 = vset.pattern.permute.xlu0 0
      %9863 = vperm.xlu0 %9862, %v9797
      %v9864 = vpop.permute.xlu0 %9863
      %9867 = vset.pattern.permute.xlu0 0
      %9868 = vperm.xlu0 %9867, %v9798
      %v9869 = vpop.permute.xlu0 %9868
      %9872 = vset.pattern.permute.xlu0 0
      %9873 = vperm.xlu0 %9872, %v9799
      %v9874 = vpop.permute.xlu0 %9873
      %9877 = vset.pattern.permute.xlu0 0
      %9878 = vperm.xlu0 %9877, %v9800
      %v9879 = vpop.permute.xlu0 %9878
      %v9897 = vunpack.c.l.b16 %v9753
      %v9898 = vunpack.c.l.b16 %v9754
      %v9899 = vunpack.c.l.b16 %v9755
      %v9900 = vunpack.c.l.b16 %v9756
      %v9901 = vunpack.c.l.b16 %v9757
      %v9902 = vunpack.c.l.b16 %v9758
      %v9903 = vunpack.c.l.b16 %v9759
      %v9904 = vunpack.c.l.b16 %v9760
      %v9905 = vunpack.c.l.b16 %v9761
      %v9906 = vunpack.c.l.b16 %v9762
      %v9907 = vunpack.c.l.b16 %v9763
      %v9908 = vunpack.c.l.b16 %v9764
      %v9909 = vunpack.c.l.b16 %v9765
      %v9910 = vunpack.c.l.b16 %v9766
      %v9911 = vunpack.c.l.b16 %v9767
      %v9912 = vunpack.c.l.b16 %v9768
      %v9913 = vpack.c.b16 %v9898, %v9897
      %v9914 = vpack.c.b16 %v9900, %v9899
      %v9915 = vpack.c.b16 %v9902, %v9901
      %v9916 = vpack.c.b16 %v9904, %v9903
      %v9917 = vpack.c.b16 %v9906, %v9905
      %v9918 = vpack.c.b16 %v9908, %v9907
      %v9919 = vpack.c.b16 %v9910, %v9909
      %v9920 = vpack.c.b16 %v9912, %v9911
      %9929 = vmatprep.subr.bf16.mxu0 %v9770
      %9930 = vmatpush1.bf16.msra.mxu0 %v9769
      %9931 = vmatprep.subr.bf16.mxu0 %v9772
      %9932 = vmatpush1.bf16.msra.mxu0 %v9771
      %9933 = vmatprep.subr.bf16.mxu0 %v9774
      %9934 = vmatpush1.bf16.msra.mxu0 %v9773
      %9935 = vmatprep.subr.bf16.mxu0 %v9776
      %9936 = vmatpush1.bf16.msra.mxu0 %v9775
      %9937 = vmatprep.subr.bf16.mxu0 %v9778
      %9938 = vmatpush1.bf16.msra.mxu0 %v9777
      %9939 = vmatprep.subr.bf16.mxu0 %v9780
      %9940 = vmatpush1.bf16.msra.mxu0 %v9779
      %9941 = vmatprep.subr.bf16.mxu0 %v9782
      %9942 = vmatpush1.bf16.msra.mxu0 %v9781
      %9943 = vmatprep.subr.bf16.mxu0 %v9784
      %9944 = vmatpush1.bf16.msra.mxu0 %v9783
      %9945 = vmatprep.subr.bf16.mxu0 0
      %9946 = vmatpush1.bf16.msra.mxu0 0
      %9947 = vmatprep.subr.bf16.mxu0 0
      %9948 = vmatpush1.bf16.msra.mxu0 0
      %9949 = vmatprep.subr.bf16.mxu0 0
      %9950 = vmatpush1.bf16.msra.mxu0 0
      %9951 = vmatprep.subr.bf16.mxu0 0
      %9952 = vmatpush1.bf16.msra.mxu0 0
      %9953 = vmatprep.subr.bf16.mxu0 0
      %9954 = vmatpush1.bf16.msra.mxu0 0
      %9955 = vmatprep.subr.bf16.mxu0 0
      %9956 = vmatpush1.bf16.msra.mxu0 0
      %9957 = vmatprep.subr.bf16.mxu0 0
      %9958 = vmatpush1.bf16.msra.mxu0 0
      %9959 = vmatprep.subr.bf16.mxu0 0
      %9960 = vmatpush1.bf16.msra.mxu0 0
      %9961 = vmatprep.mubr.bf16.mxu0 0
      %9962 = vmatmul.mubr.bf16.gmra.mrb[0].mxu0 %v9913
      %v9963 = vpop.f32.mrb[0].mxu0
      %v9964 = vadd.f32 %v9804, %v9963
      %v9965 = vpop.f32.mrb[0].mxu0
      %v9966 = vadd.f32 %v9804, %v9965
      %v9967 = vpop.f32.mrb[0].mxu0
      %v9968 = vadd.f32 %v9809, %v9967
      %v9969 = vpop.f32.mrb[0].mxu0
      %v9970 = vadd.f32 %v9809, %v9969
      %9971 = vmatprep.mubr.bf16.mxu0 0
      %9972 = vmatmul.mubr.bf16.gmra.mrb[0].mxu0 %v9914
      %v9973 = vpop.f32.mrb[0].mxu0
      %v9974 = vadd.f32 %v9814, %v9973
      %v9975 = vpop.f32.mrb[0].mxu0
      %v9976 = vadd.f32 %v9814, %v9975
      %v9977 = vpop.f32.mrb[0].mxu0
      %v9978 = vadd.f32 %v9819, %v9977
      %v9979 = vpop.f32.mrb[0].mxu0
      %v9980 = vadd.f32 %v9819, %v9979
      %9981 = vmatprep.mubr.bf16.mxu0 0
      %9982 = vmatmul.mubr.bf16.gmra.mrb[0].mxu0 %v9915
      %v9983 = vpop.f32.mrb[0].mxu0
      %v9984 = vadd.f32 %v9824, %v9983
      %v9985 = vpop.f32.mrb[0].mxu0
      %v9986 = vadd.f32 %v9824, %v9985
      %v9987 = vpop.f32.mrb[0].mxu0
      %v9988 = vadd.f32 %v9829, %v9987
      %v9989 = vpop.f32.mrb[0].mxu0
      %v9990 = vadd.f32 %v9829, %v9989
      %9991 = vmatprep.mubr.bf16.mxu0 0
      %9992 = vmatmul.mubr.bf16.gmra.mrb[0].mxu0 %v9916
      %v9993 = vpop.f32.mrb[0].mxu0
      %v9994 = vadd.f32 %v9834, %v9993
      %v9995 = vpop.f32.mrb[0].mxu0
      %v9996 = vadd.f32 %v9834, %v9995
      %v9997 = vpop.f32.mrb[0].mxu0
      %v9998 = vadd.f32 %v9839, %v9997
      %v9999 = vpop.f32.mrb[0].mxu0
      %v10000 = vadd.f32 %v9839, %v9999
      %10001 = vmatprep.mubr.bf16.mxu0 0
      %10002 = vmatmul.mubr.bf16.gmra.mrb[0].mxu0 %v9917
      %v10003 = vpop.f32.mrb[0].mxu0
      %v10004 = vadd.f32 %v9844, %v10003
      %v10005 = vpop.f32.mrb[0].mxu0
      %v10006 = vadd.f32 %v9844, %v10005
      %v10007 = vpop.f32.mrb[0].mxu0
      %v10008 = vadd.f32 %v9849, %v10007
      %v10009 = vpop.f32.mrb[0].mxu0
      %v10010 = vadd.f32 %v9849, %v10009
      %10011 = vmatprep.mubr.bf16.mxu0 0
      %10012 = vmatmul.mubr.bf16.gmra.mrb[0].mxu0 %v9918
      %v10013 = vpop.f32.mrb[0].mxu0
      %v10014 = vadd.f32 %v9854, %v10013
      %v10015 = vpop.f32.mrb[0].mxu0
      %v10016 = vadd.f32 %v9854, %v10015
      %v10017 = vpop.f32.mrb[0].mxu0
      %v10018 = vadd.f32 %v9859, %v10017
      %v10019 = vpop.f32.mrb[0].mxu0
      %v10020 = vadd.f32 %v9859, %v10019
      %10021 = vmatprep.mubr.bf16.mxu0 0
      %10022 = vmatmul.mubr.bf16.gmra.mrb[0].mxu0 %v9919
      %v10023 = vpop.f32.mrb[0].mxu0
      %v10024 = vadd.f32 %v9864, %v10023
      %v10025 = vpop.f32.mrb[0].mxu0
      %v10026 = vadd.f32 %v9864, %v10025
      %v10027 = vpop.f32.mrb[0].mxu0
      %v10028 = vadd.f32 %v9869, %v10027
      %v10029 = vpop.f32.mrb[0].mxu0
      %v10030 = vadd.f32 %v9869, %v10029
      %10031 = vmatprep.mubr.bf16.mxu0 0
      %10032 = vmatmul.mubr.bf16.gmra.mrb[0].mxu0 %v9920
      %v10033 = vpop.f32.mrb[0].mxu0
      %v10034 = vadd.f32 %v9874, %v10033
      %v10035 = vpop.f32.mrb[0].mxu0
      %v10036 = vadd.f32 %v9874, %v10035
      %v10037 = vpop.f32.mrb[0].mxu0
      %v10038 = vadd.f32 %v9879, %v10037
      %v10039 = vpop.f32.mrb[0].mxu0
      %v10040 = vadd.f32 %v9879, %v10039
      %10041 = vdwg.mxu0
      %v10042 = vadd.f32 %v388, %v9964
      %v10043 = vadd.f32 %v389, %v9966
      %v10044 = vadd.f32 %v390, %v9968
      %v10045 = vadd.f32 %v391, %v9970
      %v10046 = vadd.f32 %v392, %v9974
      %v10047 = vadd.f32 %v393, %v9976
      %v10048 = vadd.f32 %v394, %v9978
      %v10049 = vadd.f32 %v395, %v9980
      %v10050 = vadd.f32 %v396, %v9984
      %v10051 = vadd.f32 %v397, %v9986
      %v10052 = vadd.f32 %v398, %v9988
      %v10053 = vadd.f32 %v399, %v9990
      %v10054 = vadd.f32 %v400, %v9994
      %v10055 = vadd.f32 %v401, %v9996
      %v10056 = vadd.f32 %v402, %v9998
      %v10057 = vadd.f32 %v403, %v10000
      %v10058 = vadd.f32 %v404, %v10004
      %v10059 = vadd.f32 %v405, %v10006
      %v10060 = vadd.f32 %v406, %v10008
      %v10061 = vadd.f32 %v407, %v10010
      %v10062 = vadd.f32 %v408, %v10014
      %v10063 = vadd.f32 %v409, %v10016
      %v10064 = vadd.f32 %v410, %v10018
      %v10065 = vadd.f32 %v411, %v10020
      %v10066 = vadd.f32 %v412, %v10024
      %v10067 = vadd.f32 %v413, %v10026
      %v10068 = vadd.f32 %v414, %v10028
      %v10069 = vadd.f32 %v415, %v10030
      %v10070 = vadd.f32 %v416, %v10034
      %v10071 = vadd.f32 %v417, %v10036
      %v10072 = vadd.f32 %v418, %v10038
      %v10073 = vadd.f32 %v419, %v10040
      %v10074 = vld [vmem:[%s7] sm:$0xff]
      %v10075 = vld [vmem:[%s7 + $0x8] sm:$0xff]
      %v10076 = vld [vmem:[%s7 + $0x10] sm:$0xff]
      %v10077 = vld [vmem:[%s7 + $0x18] sm:$0xff]
      %v10078 = vld [vmem:[%s7 + $0x20] sm:$0xff]
      %v10079 = vld [vmem:[%s7 + $0x28] sm:$0xff]
      %v10080 = vld [vmem:[%s7 + $0x30] sm:$0xff]
      %v10081 = vld [vmem:[%s7 + $0x38] sm:$0xff]
      %v10082 = vld [vmem:[%s7 + $0x40] sm:$0xff]
      %v10083 = vld [vmem:[%s7 + $0x48] sm:$0xff]
      %v10084 = vld [vmem:[%s7 + $0x50] sm:$0xff]
      %v10085 = vld [vmem:[%s7 + $0x58] sm:$0xff]
      %v10086 = vld [vmem:[%s7 + $0x60] sm:$0xff]
      %v10087 = vld [vmem:[%s7 + $0x68] sm:$0xff]
      %v10088 = vld [vmem:[%s7 + $0x70] sm:$0xff]
      %v10089 = vld [vmem:[%s7 + $0x78] sm:$0xff]
      %v10090 = vld [vmem:[%s8] sm:$0xff]
      %v10091 = vld [vmem:[%s8 + $0x8] sm:$0xff]
      %v10092 = vld [vmem:[%s8 + $0x10] sm:$0xff]
      %v10093 = vld [vmem:[%s8 + $0x18] sm:$0xff]
      %v10094 = vld [vmem:[%s8 + $0x20] sm:$0xff]
      %v10095 = vld [vmem:[%s8 + $0x28] sm:$0xff]
      %v10096 = vld [vmem:[%s8 + $0x30] sm:$0xff]
      %v10097 = vld [vmem:[%s8 + $0x38] sm:$0xff]
      %v10098 = vld [vmem:[%s8 + $0x40] sm:$0xff]
      %v10099 = vld [vmem:[%s8 + $0x48] sm:$0xff]
      %v10100 = vld [vmem:[%s8 + $0x50] sm:$0xff]
      %v10101 = vld [vmem:[%s8 + $0x58] sm:$0xff]
      %v10102 = vld [vmem:[%s8 + $0x60] sm:$0xff]
      %v10103 = vld [vmem:[%s8 + $0x68] sm:$0xff]
      %v10104 = vld [vmem:[%s8 + $0x70] sm:$0xff]
      %v10105 = vld [vmem:[%s8 + $0x78] sm:$0xff]
      %v10106 = vadd.f32 %v10042, %v10044
      %v10107 = vadd.f32 %v10106, %v10046
      %v10108 = vadd.f32 %v10107, %v10048
      %v10109 = vadd.f32 %v10108, %v10050
      %v10110 = vadd.f32 %v10109, %v10052
      %v10111 = vadd.f32 %v10110, %v10054
      %v10112 = vadd.f32 %v10111, %v10056
      %v10113 = vadd.f32 %v10112, %v10058
      %v10114 = vadd.f32 %v10113, %v10060
      %v10115 = vadd.f32 %v10114, %v10062
      %v10116 = vadd.f32 %v10115, %v10064
      %v10117 = vadd.f32 %v10116, %v10066
      %v10118 = vadd.f32 %v10117, %v10068
      %v10119 = vadd.f32 %v10118, %v10070
      %v10120 = vadd.f32 %v10119, %v10072
      %v10121 = vrot.slane %v10120, 4
      %v10122 = vadd.f32 %v10120, %v10121
      %v10123 = vrot.slane %v10122, 2
      %v10124 = vadd.f32 %v10122, %v10123
      %v10125 = vrot.slane %v10124, 1
      %v10126 = vadd.f32 %v10124, %v10125
      %v10127 = vadd.f32 %v10043, %v10045
      %v10128 = vadd.f32 %v10127, %v10047
      %v10129 = vadd.f32 %v10128, %v10049
      %v10130 = vadd.f32 %v10129, %v10051
      %v10131 = vadd.f32 %v10130, %v10053
      %v10132 = vadd.f32 %v10131, %v10055
      %v10133 = vadd.f32 %v10132, %v10057
      %v10134 = vadd.f32 %v10133, %v10059
      %v10135 = vadd.f32 %v10134, %v10061
      %v10136 = vadd.f32 %v10135, %v10063
      %v10137 = vadd.f32 %v10136, %v10065
      %v10138 = vadd.f32 %v10137, %v10067
      %v10139 = vadd.f32 %v10138, %v10069
      %v10140 = vadd.f32 %v10139, %v10071
      %v10141 = vadd.f32 %v10140, %v10073
      %v10142 = vrot.slane %v10141, 4
      %v10143 = vadd.f32 %v10141, %v10142
      %v10144 = vrot.slane %v10143, 2
      %v10145 = vadd.f32 %v10143, %v10144
      %v10146 = vrot.slane %v10145, 1
      %v10147 = vadd.f32 %v10145, %v10146
      %v10148 = vmul.f32 %v10126, %v494
      %v10149 = vmul.f32 %v10147, %v494
      %v10150 = vsub.f32 %v10042, %v10148
      %v10151 = vsub.f32 %v10043, %v10149
      %v10152 = vsub.f32 %v10044, %v10148
      %v10153 = vsub.f32 %v10045, %v10149
      %v10154 = vsub.f32 %v10046, %v10148
      %v10155 = vsub.f32 %v10047, %v10149
      %v10156 = vsub.f32 %v10048, %v10148
      %v10157 = vsub.f32 %v10049, %v10149
      %v10158 = vsub.f32 %v10050, %v10148
      %v10159 = vsub.f32 %v10051, %v10149
      %v10160 = vsub.f32 %v10052, %v10148
      %v10161 = vsub.f32 %v10053, %v10149
      %v10162 = vsub.f32 %v10054, %v10148
      %v10163 = vsub.f32 %v10055, %v10149
      %v10164 = vsub.f32 %v10056, %v10148
      %v10165 = vsub.f32 %v10057, %v10149
      %v10166 = vsub.f32 %v10058, %v10148
      %v10167 = vsub.f32 %v10059, %v10149
      %v10168 = vsub.f32 %v10060, %v10148
      %v10169 = vsub.f32 %v10061, %v10149
      %v10170 = vsub.f32 %v10062, %v10148
      %v10171 = vsub.f32 %v10063, %v10149
      %v10172 = vsub.f32 %v10064, %v10148
      %v10173 = vsub.f32 %v10065, %v10149
      %v10174 = vsub.f32 %v10066, %v10148
      %v10175 = vsub.f32 %v10067, %v10149
      %v10176 = vsub.f32 %v10068, %v10148
      %v10177 = vsub.f32 %v10069, %v10149
      %v10178 = vsub.f32 %v10070, %v10148
      %v10179 = vsub.f32 %v10071, %v10149
      %v10180 = vsub.f32 %v10072, %v10148
      %v10181 = vsub.f32 %v10073, %v10149
      %v10182 = vmul.f32 %v10150, %v10150
      %v10183 = vmul.f32 %v10151, %v10151
      %v10184 = vmul.f32 %v10152, %v10152
      %v10185 = vmul.f32 %v10153, %v10153
      %v10186 = vmul.f32 %v10154, %v10154
      %v10187 = vmul.f32 %v10155, %v10155
      %v10188 = vmul.f32 %v10156, %v10156
      %v10189 = vmul.f32 %v10157, %v10157
      %v10190 = vmul.f32 %v10158, %v10158
      %v10191 = vmul.f32 %v10159, %v10159
      %v10192 = vmul.f32 %v10160, %v10160
      %v10193 = vmul.f32 %v10161, %v10161
      %v10194 = vmul.f32 %v10162, %v10162
      %v10195 = vmul.f32 %v10163, %v10163
      %v10196 = vmul.f32 %v10164, %v10164
      %v10197 = vmul.f32 %v10165, %v10165
      %v10198 = vmul.f32 %v10166, %v10166
      %v10199 = vmul.f32 %v10167, %v10167
      %v10200 = vmul.f32 %v10168, %v10168
      %v10201 = vmul.f32 %v10169, %v10169
      %v10202 = vmul.f32 %v10170, %v10170
      %v10203 = vmul.f32 %v10171, %v10171
      %v10204 = vmul.f32 %v10172, %v10172
      %v10205 = vmul.f32 %v10173, %v10173
      %v10206 = vmul.f32 %v10174, %v10174
      %v10207 = vmul.f32 %v10175, %v10175
      %v10208 = vmul.f32 %v10176, %v10176
      %v10209 = vmul.f32 %v10177, %v10177
      %v10210 = vmul.f32 %v10178, %v10178
      %v10211 = vmul.f32 %v10179, %v10179
      %v10212 = vmul.f32 %v10180, %v10180
      %v10213 = vmul.f32 %v10181, %v10181
      %v10214 = vadd.f32 %v10182, %v10184
      %v10215 = vadd.f32 %v10214, %v10186
      %v10216 = vadd.f32 %v10215, %v10188
      %v10217 = vadd.f32 %v10216, %v10190
      %v10218 = vadd.f32 %v10217, %v10192
      %v10219 = vadd.f32 %v10218, %v10194
      %v10220 = vadd.f32 %v10219, %v10196
      %v10221 = vadd.f32 %v10220, %v10198
      %v10222 = vadd.f32 %v10221, %v10200
      %v10223 = vadd.f32 %v10222, %v10202
      %v10224 = vadd.f32 %v10223, %v10204
      %v10225 = vadd.f32 %v10224, %v10206
      %v10226 = vadd.f32 %v10225, %v10208
      %v10227 = vadd.f32 %v10226, %v10210
      %v10228 = vadd.f32 %v10227, %v10212
      %v10229 = vrot.slane %v10228, 4
      %v10230 = vadd.f32 %v10228, %v10229
      %v10231 = vrot.slane %v10230, 2
      %v10232 = vadd.f32 %v10230, %v10231
      %v10233 = vrot.slane %v10232, 1
      %v10234 = vadd.f32 %v10232, %v10233
      %v10235 = vadd.f32 %v10183, %v10185
      %v10236 = vadd.f32 %v10235, %v10187
      %v10237 = vadd.f32 %v10236, %v10189
      %v10238 = vadd.f32 %v10237, %v10191
      %v10239 = vadd.f32 %v10238, %v10193
      %v10240 = vadd.f32 %v10239, %v10195
      %v10241 = vadd.f32 %v10240, %v10197
      %v10242 = vadd.f32 %v10241, %v10199
      %v10243 = vadd.f32 %v10242, %v10201
      %v10244 = vadd.f32 %v10243, %v10203
      %v10245 = vadd.f32 %v10244, %v10205
      %v10246 = vadd.f32 %v10245, %v10207
      %v10247 = vadd.f32 %v10246, %v10209
      %v10248 = vadd.f32 %v10247, %v10211
      %v10249 = vadd.f32 %v10248, %v10213
      %v10250 = vrot.slane %v10249, 4
      %v10251 = vadd.f32 %v10249, %v10250
      %v10252 = vrot.slane %v10251, 2
      %v10253 = vadd.f32 %v10251, %v10252
      %v10254 = vrot.slane %v10253, 1
      %v10255 = vadd.f32 %v10253, %v10254
      %v10256 = vmul.f32 %v10234, %v494
      %v10257 = vmul.f32 %v10255, %v494
      %v10258 = vadd.f32 %v10256, 1e-05
      %v10259 = vadd.f32 %v10257, 1e-05
      %v10260 = vrsqrt.pop %v10258
      %v10261 = vrsqrt.pop %v10259
      %v10262 = vmul.f32 %v10150, %v10260
      %v10263 = vmul.f32 %v10151, %v10261
      %v10264 = vmul.f32 %v10152, %v10260
      %v10265 = vmul.f32 %v10153, %v10261
      %v10266 = vmul.f32 %v10154, %v10260
      %v10267 = vmul.f32 %v10155, %v10261
      %v10268 = vmul.f32 %v10156, %v10260
      %v10269 = vmul.f32 %v10157, %v10261
      %v10270 = vmul.f32 %v10158, %v10260
      %v10271 = vmul.f32 %v10159, %v10261
      %v10272 = vmul.f32 %v10160, %v10260
      %v10273 = vmul.f32 %v10161, %v10261
      %v10274 = vmul.f32 %v10162, %v10260
      %v10275 = vmul.f32 %v10163, %v10261
      %v10276 = vmul.f32 %v10164, %v10260
      %v10277 = vmul.f32 %v10165, %v10261
      %v10278 = vmul.f32 %v10166, %v10260
      %v10279 = vmul.f32 %v10167, %v10261
      %v10280 = vmul.f32 %v10168, %v10260
      %v10281 = vmul.f32 %v10169, %v10261
      %v10282 = vmul.f32 %v10170, %v10260
      %v10283 = vmul.f32 %v10171, %v10261
      %v10284 = vmul.f32 %v10172, %v10260
      %v10285 = vmul.f32 %v10173, %v10261
      %v10286 = vmul.f32 %v10174, %v10260
      %v10287 = vmul.f32 %v10175, %v10261
      %v10288 = vmul.f32 %v10176, %v10260
      %v10289 = vmul.f32 %v10177, %v10261
      %v10290 = vmul.f32 %v10178, %v10260
      %v10291 = vmul.f32 %v10179, %v10261
      %v10292 = vmul.f32 %v10180, %v10260
      %v10293 = vmul.f32 %v10181, %v10261
      %10295 = vset.pattern.permute.xlu0 0
      %10296 = vperm.xlu0 %10295, %v10074
      %v10297 = vpop.permute.xlu0 %10296
      %10300 = vset.pattern.permute.xlu0 0
      %10301 = vperm.xlu0 %10300, %v10075
      %v10302 = vpop.permute.xlu0 %10301
      %10305 = vset.pattern.permute.xlu0 0
      %10306 = vperm.xlu0 %10305, %v10076
      %v10307 = vpop.permute.xlu0 %10306
      %10310 = vset.pattern.permute.xlu0 0
      %10311 = vperm.xlu0 %10310, %v10077
      %v10312 = vpop.permute.xlu0 %10311
      %10315 = vset.pattern.permute.xlu0 0
      %10316 = vperm.xlu0 %10315, %v10078
      %v10317 = vpop.permute.xlu0 %10316
      %10320 = vset.pattern.permute.xlu0 0
      %10321 = vperm.xlu0 %10320, %v10079
      %v10322 = vpop.permute.xlu0 %10321
      %10325 = vset.pattern.permute.xlu0 0
      %10326 = vperm.xlu0 %10325, %v10080
      %v10327 = vpop.permute.xlu0 %10326
      %10330 = vset.pattern.permute.xlu0 0
      %10331 = vperm.xlu0 %10330, %v10081
      %v10332 = vpop.permute.xlu0 %10331
      %10335 = vset.pattern.permute.xlu0 0
      %10336 = vperm.xlu0 %10335, %v10082
      %v10337 = vpop.permute.xlu0 %10336
      %10340 = vset.pattern.permute.xlu0 0
      %10341 = vperm.xlu0 %10340, %v10083
      %v10342 = vpop.permute.xlu0 %10341
      %10345 = vset.pattern.permute.xlu0 0
      %10346 = vperm.xlu0 %10345, %v10084
      %v10347 = vpop.permute.xlu0 %10346
      %10350 = vset.pattern.permute.xlu0 0
      %10351 = vperm.xlu0 %10350, %v10085
      %v10352 = vpop.permute.xlu0 %10351
      %10355 = vset.pattern.permute.xlu0 0
      %10356 = vperm.xlu0 %10355, %v10086
      %v10357 = vpop.permute.xlu0 %10356
      %10360 = vset.pattern.permute.xlu0 0
      %10361 = vperm.xlu0 %10360, %v10087
      %v10362 = vpop.permute.xlu0 %10361
      %10365 = vset.pattern.permute.xlu0 0
      %10366 = vperm.xlu0 %10365, %v10088
      %v10367 = vpop.permute.xlu0 %10366
      %10370 = vset.pattern.permute.xlu0 0
      %10371 = vperm.xlu0 %10370, %v10089
      %v10372 = vpop.permute.xlu0 %10371
      %v10374 = vmul.f32 %v10262, %v10297
      %v10375 = vmul.f32 %v10263, %v10297
      %v10376 = vmul.f32 %v10264, %v10302
      %v10377 = vmul.f32 %v10265, %v10302
      %v10378 = vmul.f32 %v10266, %v10307
      %v10379 = vmul.f32 %v10267, %v10307
      %v10380 = vmul.f32 %v10268, %v10312
      %v10381 = vmul.f32 %v10269, %v10312
      %v10382 = vmul.f32 %v10270, %v10317
      %v10383 = vmul.f32 %v10271, %v10317
      %v10384 = vmul.f32 %v10272, %v10322
      %v10385 = vmul.f32 %v10273, %v10322
      %v10386 = vmul.f32 %v10274, %v10327
      %v10387 = vmul.f32 %v10275, %v10327
      %v10388 = vmul.f32 %v10276, %v10332
      %v10389 = vmul.f32 %v10277, %v10332
      %v10390 = vmul.f32 %v10278, %v10337
      %v10391 = vmul.f32 %v10279, %v10337
      %v10392 = vmul.f32 %v10280, %v10342
      %v10393 = vmul.f32 %v10281, %v10342
      %v10394 = vmul.f32 %v10282, %v10347
      %v10395 = vmul.f32 %v10283, %v10347
      %v10396 = vmul.f32 %v10284, %v10352
      %v10397 = vmul.f32 %v10285, %v10352
      %v10398 = vmul.f32 %v10286, %v10357
      %v10399 = vmul.f32 %v10287, %v10357
      %v10400 = vmul.f32 %v10288, %v10362
      %v10401 = vmul.f32 %v10289, %v10362
      %v10402 = vmul.f32 %v10290, %v10367
      %v10403 = vmul.f32 %v10291, %v10367
      %v10404 = vmul.f32 %v10292, %v10372
      %v10405 = vmul.f32 %v10293, %v10372
      %10407 = vset.pattern.permute.xlu0 0
      %10408 = vperm.xlu0 %10407, %v10090
      %v10409 = vpop.permute.xlu0 %10408
      %10412 = vset.pattern.permute.xlu0 0
      %10413 = vperm.xlu0 %10412, %v10091
      %v10414 = vpop.permute.xlu0 %10413
      %10417 = vset.pattern.permute.xlu0 0
      %10418 = vperm.xlu0 %10417, %v10092
      %v10419 = vpop.permute.xlu0 %10418
      %10422 = vset.pattern.permute.xlu0 0
      %10423 = vperm.xlu0 %10422, %v10093
      %v10424 = vpop.permute.xlu0 %10423
      %10427 = vset.pattern.permute.xlu0 0
      %10428 = vperm.xlu0 %10427, %v10094
      %v10429 = vpop.permute.xlu0 %10428
      %10432 = vset.pattern.permute.xlu0 0
      %10433 = vperm.xlu0 %10432, %v10095
      %v10434 = vpop.permute.xlu0 %10433
      %10437 = vset.pattern.permute.xlu0 0
      %10438 = vperm.xlu0 %10437, %v10096
      %v10439 = vpop.permute.xlu0 %10438
      %10442 = vset.pattern.permute.xlu0 0
      %10443 = vperm.xlu0 %10442, %v10097
      %v10444 = vpop.permute.xlu0 %10443
      %10447 = vset.pattern.permute.xlu0 0
      %10448 = vperm.xlu0 %10447, %v10098
      %v10449 = vpop.permute.xlu0 %10448
      %10452 = vset.pattern.permute.xlu0 0
      %10453 = vperm.xlu0 %10452, %v10099
      %v10454 = vpop.permute.xlu0 %10453
      %10457 = vset.pattern.permute.xlu0 0
      %10458 = vperm.xlu0 %10457, %v10100
      %v10459 = vpop.permute.xlu0 %10458
      %10462 = vset.pattern.permute.xlu0 0
      %10463 = vperm.xlu0 %10462, %v10101
      %v10464 = vpop.permute.xlu0 %10463
      %10467 = vset.pattern.permute.xlu0 0
      %10468 = vperm.xlu0 %10467, %v10102
      %v10469 = vpop.permute.xlu0 %10468
      %10472 = vset.pattern.permute.xlu0 0
      %10473 = vperm.xlu0 %10472, %v10103
      %v10474 = vpop.permute.xlu0 %10473
      %10477 = vset.pattern.permute.xlu0 0
      %10478 = vperm.xlu0 %10477, %v10104
      %v10479 = vpop.permute.xlu0 %10478
      %10482 = vset.pattern.permute.xlu0 0
      %10483 = vperm.xlu0 %10482, %v10105
      %v10484 = vpop.permute.xlu0 %10483
      %v10486 = vadd.f32 %v10374, %v10409
      %v10487 = vadd.f32 %v10375, %v10409
      %v10488 = vadd.f32 %v10376, %v10414
      %v10489 = vadd.f32 %v10377, %v10414
      %v10490 = vadd.f32 %v10378, %v10419
      %v10491 = vadd.f32 %v10379, %v10419
      %v10492 = vadd.f32 %v10380, %v10424
      %v10493 = vadd.f32 %v10381, %v10424
      %v10494 = vadd.f32 %v10382, %v10429
      %v10495 = vadd.f32 %v10383, %v10429
      %v10496 = vadd.f32 %v10384, %v10434
      %v10497 = vadd.f32 %v10385, %v10434
      %v10498 = vadd.f32 %v10386, %v10439
      %v10499 = vadd.f32 %v10387, %v10439
      %v10500 = vadd.f32 %v10388, %v10444
      %v10501 = vadd.f32 %v10389, %v10444
      %v10502 = vadd.f32 %v10390, %v10449
      %v10503 = vadd.f32 %v10391, %v10449
      %v10504 = vadd.f32 %v10392, %v10454
      %v10505 = vadd.f32 %v10393, %v10454
      %v10506 = vadd.f32 %v10394, %v10459
      %v10507 = vadd.f32 %v10395, %v10459
      %v10508 = vadd.f32 %v10396, %v10464
      %v10509 = vadd.f32 %v10397, %v10464
      %v10510 = vadd.f32 %v10398, %v10469
      %v10511 = vadd.f32 %v10399, %v10469
      %v10512 = vadd.f32 %v10400, %v10474
      %v10513 = vadd.f32 %v10401, %v10474
      %v10514 = vadd.f32 %v10402, %v10479
      %v10515 = vadd.f32 %v10403, %v10479
      %v10516 = vadd.f32 %v10404, %v10484
      %v10517 = vadd.f32 %v10405, %v10484
      %v10518 = vpack.c.bf16 %v10488, %v10486
      %v10519 = vpack.c.bf16 %v10489, %v10487
      %v10520 = vpack.c.bf16 %v10492, %v10490
      %v10521 = vpack.c.bf16 %v10493, %v10491
      %v10522 = vpack.c.bf16 %v10496, %v10494
      %v10523 = vpack.c.bf16 %v10497, %v10495
      %v10524 = vpack.c.bf16 %v10500, %v10498
      %v10525 = vpack.c.bf16 %v10501, %v10499
      %v10526 = vpack.c.bf16 %v10504, %v10502
      %v10527 = vpack.c.bf16 %v10505, %v10503
      %v10528 = vpack.c.bf16 %v10508, %v10506
      %v10529 = vpack.c.bf16 %v10509, %v10507
      %v10530 = vpack.c.bf16 %v10512, %v10510
      %v10531 = vpack.c.bf16 %v10513, %v10511
      %v10532 = vpack.c.bf16 %v10516, %v10514
      %v10533 = vpack.c.bf16 %v10517, %v10515
      %v10534 = vld [vmem:[%s9] sm:$0xf]
      %v10535 = vld [vmem:[%s9 + $0x4] sm:$0xf]
      %v10536 = vld [vmem:[%s9 + $0x8] sm:$0xf]
      %v10537 = vld [vmem:[%s9 + $0xc] sm:$0xf]
      %v10538 = vld [vmem:[%s9 + $0x10] sm:$0xf]
      %v10539 = vld [vmem:[%s9 + $0x14] sm:$0xf]
      %v10540 = vld [vmem:[%s9 + $0x18] sm:$0xf]
      %v10541 = vld [vmem:[%s9 + $0x1c] sm:$0xf]
      %v10542 = vld [vmem:[%s9 + $0x20] sm:$0xf]
      %v10543 = vld [vmem:[%s9 + $0x24] sm:$0xf]
      %v10544 = vld [vmem:[%s9 + $0x28] sm:$0xf]
      %v10545 = vld [vmem:[%s9 + $0x2c] sm:$0xf]
      %v10546 = vld [vmem:[%s9 + $0x30] sm:$0xf]
      %v10547 = vld [vmem:[%s9 + $0x34] sm:$0xf]
      %v10548 = vld [vmem:[%s9 + $0x38] sm:$0xf]
      %v10549 = vld [vmem:[%s9 + $0x3c] sm:$0xf]
      %v10550 = vld [vmem:[%s9 + $0x40] sm:$0xf]
      %v10551 = vld [vmem:[%s9 + $0x44] sm:$0xf]
      %v10552 = vld [vmem:[%s9 + $0x48] sm:$0xf]
      %v10553 = vld [vmem:[%s9 + $0x4c] sm:$0xf]
      %v10554 = vld [vmem:[%s9 + $0x50] sm:$0xf]
      %v10555 = vld [vmem:[%s9 + $0x54] sm:$0xf]
      %v10556 = vld [vmem:[%s9 + $0x58] sm:$0xf]
      %v10557 = vld [vmem:[%s9 + $0x5c] sm:$0xf]
      %v10558 = vld [vmem:[%s9 + $0x60] sm:$0xf]
      %v10559 = vld [vmem:[%s9 + $0x64] sm:$0xf]
      %v10560 = vld [vmem:[%s9 + $0x68] sm:$0xf]
      %v10561 = vld [vmem:[%s9 + $0x6c] sm:$0xf]
      %v10562 = vld [vmem:[%s9 + $0x70] sm:$0xf]
      %v10563 = vld [vmem:[%s9 + $0x74] sm:$0xf]
      %v10564 = vld [vmem:[%s9 + $0x78] sm:$0xf]
      %v10565 = vld [vmem:[%s9 + $0x7c] sm:$0xf]
      %v10566 = vld [vmem:[%s10] sm:$0xff]
      %v10567 = vld [vmem:[%s10 + $0x8] sm:$0xff]
      %v10568 = vld [vmem:[%s10 + $0x10] sm:$0xff]
      %v10569 = vld [vmem:[%s10 + $0x18] sm:$0xff]
      %v10570 = vld [vmem:[%s10 + $0x20] sm:$0xff]
      %v10571 = vld [vmem:[%s10 + $0x28] sm:$0xff]
      %v10572 = vld [vmem:[%s10 + $0x30] sm:$0xff]
      %v10573 = vld [vmem:[%s10 + $0x38] sm:$0xff]
      %v10574 = vld [vmem:[%s10 + $0x40] sm:$0xff]
      %v10575 = vld [vmem:[%s10 + $0x48] sm:$0xff]
      %v10576 = vld [vmem:[%s10 + $0x50] sm:$0xff]
      %v10577 = vld [vmem:[%s10 + $0x58] sm:$0xff]
      %v10578 = vld [vmem:[%s10 + $0x60] sm:$0xff]
      %v10579 = vld [vmem:[%s10 + $0x68] sm:$0xff]
      %v10580 = vld [vmem:[%s10 + $0x70] sm:$0xff]
      %v10581 = vld [vmem:[%s10 + $0x78] sm:$0xff]
      %v10582 = vld [vmem:[%s10 + $0x80] sm:$0xff]
      %v10583 = vld [vmem:[%s10 + $0x88] sm:$0xff]
      %v10584 = vld [vmem:[%s10 + $0x90] sm:$0xff]
      %v10585 = vld [vmem:[%s10 + $0x98] sm:$0xff]
      %v10586 = vld [vmem:[%s10 + $0xa0] sm:$0xff]
      %v10587 = vld [vmem:[%s10 + $0xa8] sm:$0xff]
      %v10588 = vld [vmem:[%s10 + $0xb0] sm:$0xff]
      %v10589 = vld [vmem:[%s10 + $0xb8] sm:$0xff]
      %v10590 = vld [vmem:[%s10 + $0xc0] sm:$0xff]
      %v10591 = vld [vmem:[%s10 + $0xc8] sm:$0xff]
      %v10592 = vld [vmem:[%s10 + $0xd0] sm:$0xff]
      %v10593 = vld [vmem:[%s10 + $0xd8] sm:$0xff]
      %v10594 = vld [vmem:[%s10 + $0xe0] sm:$0xff]
      %v10595 = vld [vmem:[%s10 + $0xe8] sm:$0xff]
      %v10596 = vld [vmem:[%s10 + $0xf0] sm:$0xff]
      %v10597 = vld [vmem:[%s10 + $0xf8] sm:$0xff]
      %10599 = vset.pattern.permute.xlu0 0
      %10600 = vperm.xlu0 %10599, %v10566
      %v10601 = vpop.permute.xlu0 %10600
      %10604 = vset.pattern.permute.xlu0 0
      %10605 = vperm.xlu0 %10604, %v10567
      %v10606 = vpop.permute.xlu0 %10605
      %10609 = vset.pattern.permute.xlu0 0
      %10610 = vperm.xlu0 %10609, %v10568
      %v10611 = vpop.permute.xlu0 %10610
      %10614 = vset.pattern.permute.xlu0 0
      %10615 = vperm.xlu0 %10614, %v10569
      %v10616 = vpop.permute.xlu0 %10615
      %10619 = vset.pattern.permute.xlu0 0
      %10620 = vperm.xlu0 %10619, %v10570
      %v10621 = vpop.permute.xlu0 %10620
      %10624 = vset.pattern.permute.xlu0 0
      %10625 = vperm.xlu0 %10624, %v10571
      %v10626 = vpop.permute.xlu0 %10625
      %10629 = vset.pattern.permute.xlu0 0
      %10630 = vperm.xlu0 %10629, %v10572
      %v10631 = vpop.permute.xlu0 %10630
      %10634 = vset.pattern.permute.xlu0 0
      %10635 = vperm.xlu0 %10634, %v10573
      %v10636 = vpop.permute.xlu0 %10635
      %10639 = vset.pattern.permute.xlu0 0
      %10640 = vperm.xlu0 %10639, %v10574
      %v10641 = vpop.permute.xlu0 %10640
      %10644 = vset.pattern.permute.xlu0 0
      %10645 = vperm.xlu0 %10644, %v10575
      %v10646 = vpop.permute.xlu0 %10645
      %10649 = vset.pattern.permute.xlu0 0
      %10650 = vperm.xlu0 %10649, %v10576
      %v10651 = vpop.permute.xlu0 %10650
      %10654 = vset.pattern.permute.xlu0 0
      %10655 = vperm.xlu0 %10654, %v10577
      %v10656 = vpop.permute.xlu0 %10655
      %10659 = vset.pattern.permute.xlu0 0
      %10660 = vperm.xlu0 %10659, %v10578
      %v10661 = vpop.permute.xlu0 %10660
      %10664 = vset.pattern.permute.xlu0 0
      %10665 = vperm.xlu0 %10664, %v10579
      %v10666 = vpop.permute.xlu0 %10665
      %10669 = vset.pattern.permute.xlu0 0
      %10670 = vperm.xlu0 %10669, %v10580
      %v10671 = vpop.permute.xlu0 %10670
      %10674 = vset.pattern.permute.xlu0 0
      %10675 = vperm.xlu0 %10674, %v10581
      %v10676 = vpop.permute.xlu0 %10675
      %10679 = vset.pattern.permute.xlu0 0
      %10680 = vperm.xlu0 %10679, %v10582
      %v10681 = vpop.permute.xlu0 %10680
      %10684 = vset.pattern.permute.xlu0 0
      %10685 = vperm.xlu0 %10684, %v10583
      %v10686 = vpop.permute.xlu0 %10685
      %10689 = vset.pattern.permute.xlu0 0
      %10690 = vperm.xlu0 %10689, %v10584
      %v10691 = vpop.permute.xlu0 %10690
      %10694 = vset.pattern.permute.xlu0 0
      %10695 = vperm.xlu0 %10694, %v10585
      %v10696 = vpop.permute.xlu0 %10695
      %10699 = vset.pattern.permute.xlu0 0
      %10700 = vperm.xlu0 %10699, %v10586
      %v10701 = vpop.permute.xlu0 %10700
      %10704 = vset.pattern.permute.xlu0 0
      %10705 = vperm.xlu0 %10704, %v10587
      %v10706 = vpop.permute.xlu0 %10705
      %10709 = vset.pattern.permute.xlu0 0
      %10710 = vperm.xlu0 %10709, %v10588
      %v10711 = vpop.permute.xlu0 %10710
      %10714 = vset.pattern.permute.xlu0 0
      %10715 = vperm.xlu0 %10714, %v10589
      %v10716 = vpop.permute.xlu0 %10715
      %10719 = vset.pattern.permute.xlu0 0
      %10720 = vperm.xlu0 %10719, %v10590
      %v10721 = vpop.permute.xlu0 %10720
      %10724 = vset.pattern.permute.xlu0 0
      %10725 = vperm.xlu0 %10724, %v10591
      %v10726 = vpop.permute.xlu0 %10725
      %10729 = vset.pattern.permute.xlu0 0
      %10730 = vperm.xlu0 %10729, %v10592
      %v10731 = vpop.permute.xlu0 %10730
      %10734 = vset.pattern.permute.xlu0 0
      %10735 = vperm.xlu0 %10734, %v10593
      %v10736 = vpop.permute.xlu0 %10735
      %10739 = vset.pattern.permute.xlu0 0
      %10740 = vperm.xlu0 %10739, %v10594
      %v10741 = vpop.permute.xlu0 %10740
      %10744 = vset.pattern.permute.xlu0 0
      %10745 = vperm.xlu0 %10744, %v10595
      %v10746 = vpop.permute.xlu0 %10745
      %10749 = vset.pattern.permute.xlu0 0
      %10750 = vperm.xlu0 %10749, %v10596
      %v10751 = vpop.permute.xlu0 %10750
      %10754 = vset.pattern.permute.xlu0 0
      %10755 = vperm.xlu0 %10754, %v10597
      %v10756 = vpop.permute.xlu0 %10755
      %v10790 = vunpack.c.l.b16 %v10534
      %v10791 = vunpack.c.l.b16 %v10535
      %v10792 = vunpack.c.l.b16 %v10536
      %v10793 = vunpack.c.l.b16 %v10537
      %v10794 = vunpack.c.l.b16 %v10538
      %v10795 = vunpack.c.l.b16 %v10539
      %v10796 = vunpack.c.l.b16 %v10540
      %v10797 = vunpack.c.l.b16 %v10541
      %v10798 = vunpack.c.l.b16 %v10542
      %v10799 = vunpack.c.l.b16 %v10543
      %v10800 = vunpack.c.l.b16 %v10544
      %v10801 = vunpack.c.l.b16 %v10545
      %v10802 = vunpack.c.l.b16 %v10546
      %v10803 = vunpack.c.l.b16 %v10547
      %v10804 = vunpack.c.l.b16 %v10548
      %v10805 = vunpack.c.l.b16 %v10549
      %v10806 = vunpack.c.l.b16 %v10550
      %v10807 = vunpack.c.l.b16 %v10551
      %v10808 = vunpack.c.l.b16 %v10552
      %v10809 = vunpack.c.l.b16 %v10553
      %v10810 = vunpack.c.l.b16 %v10554
      %v10811 = vunpack.c.l.b16 %v10555
      %v10812 = vunpack.c.l.b16 %v10556
      %v10813 = vunpack.c.l.b16 %v10557
      %v10814 = vunpack.c.l.b16 %v10558
      %v10815 = vunpack.c.l.b16 %v10559
      %v10816 = vunpack.c.l.b16 %v10560
      %v10817 = vunpack.c.l.b16 %v10561
      %v10818 = vunpack.c.l.b16 %v10562
      %v10819 = vunpack.c.l.b16 %v10563
      %v10820 = vunpack.c.l.b16 %v10564
      %v10821 = vunpack.c.l.b16 %v10565
      %v10822 = vpack.c.b16 %v10791, %v10790
      %v10823 = vpack.c.b16 %v10793, %v10792
      %v10824 = vpack.c.b16 %v10795, %v10794
      %v10825 = vpack.c.b16 %v10797, %v10796
      %v10826 = vpack.c.b16 %v10799, %v10798
      %v10827 = vpack.c.b16 %v10801, %v10800
      %v10828 = vpack.c.b16 %v10803, %v10802
      %v10829 = vpack.c.b16 %v10805, %v10804
      %v10830 = vpack.c.b16 %v10807, %v10806
      %v10831 = vpack.c.b16 %v10809, %v10808
      %v10832 = vpack.c.b16 %v10811, %v10810
      %v10833 = vpack.c.b16 %v10813, %v10812
      %v10834 = vpack.c.b16 %v10815, %v10814
      %v10835 = vpack.c.b16 %v10817, %v10816
      %v10836 = vpack.c.b16 %v10819, %v10818
      %v10837 = vpack.c.b16 %v10821, %v10820
      %10854 = vmatprep.subr.bf16.mxu0 %v10519
      %10855 = vmatpush1.bf16.msra.mxu0 %v10518
      %10856 = vmatprep.subr.bf16.mxu0 %v10521
      %10857 = vmatpush1.bf16.msra.mxu0 %v10520
      %10858 = vmatprep.subr.bf16.mxu0 %v10523
      %10859 = vmatpush1.bf16.msra.mxu0 %v10522
      %10860 = vmatprep.subr.bf16.mxu0 %v10525
      %10861 = vmatpush1.bf16.msra.mxu0 %v10524
      %10862 = vmatprep.subr.bf16.mxu0 %v10527
      %10863 = vmatpush1.bf16.msra.mxu0 %v10526
      %10864 = vmatprep.subr.bf16.mxu0 %v10529
      %10865 = vmatpush1.bf16.msra.mxu0 %v10528
      %10866 = vmatprep.subr.bf16.mxu0 %v10531
      %10867 = vmatpush1.bf16.msra.mxu0 %v10530
      %10868 = vmatprep.subr.bf16.mxu0 %v10533
      %10869 = vmatpush1.bf16.msra.mxu0 %v10532
      %10870 = vmatprep.subr.bf16.mxu0 0
      %10871 = vmatpush1.bf16.msra.mxu0 0
      %10872 = vmatprep.subr.bf16.mxu0 0
      %10873 = vmatpush1.bf16.msra.mxu0 0
      %10874 = vmatprep.subr.bf16.mxu0 0
      %10875 = vmatpush1.bf16.msra.mxu0 0
      %10876 = vmatprep.subr.bf16.mxu0 0
      %10877 = vmatpush1.bf16.msra.mxu0 0
      %10878 = vmatprep.subr.bf16.mxu0 0
      %10879 = vmatpush1.bf16.msra.mxu0 0
      %10880 = vmatprep.subr.bf16.mxu0 0
      %10881 = vmatpush1.bf16.msra.mxu0 0
      %10882 = vmatprep.subr.bf16.mxu0 0
      %10883 = vmatpush1.bf16.msra.mxu0 0
      %10884 = vmatprep.subr.bf16.mxu0 0
      %10885 = vmatpush1.bf16.msra.mxu0 0
      %10886 = vmatprep.mubr.bf16.mxu0 0
      %10887 = vmatmul.mubr.bf16.gmra.mrb[0].mxu0 %v10822
      %v10888 = vpop.f32.mrb[0].mxu0
      %v10889 = vadd.f32 %v10601, %v10888
      %v10890 = vpop.f32.mrb[0].mxu0
      %v10891 = vadd.f32 %v10601, %v10890
      %v10892 = vpop.f32.mrb[0].mxu0
      %v10893 = vadd.f32 %v10606, %v10892
      %v10894 = vpop.f32.mrb[0].mxu0
      %v10895 = vadd.f32 %v10606, %v10894
      %10896 = vmatprep.mubr.bf16.mxu0 0
      %10897 = vmatmul.mubr.bf16.gmra.mrb[0].mxu0 %v10823
      %v10898 = vpop.f32.mrb[0].mxu0
      %v10899 = vadd.f32 %v10611, %v10898
      %v10900 = vpop.f32.mrb[0].mxu0
      %v10901 = vadd.f32 %v10611, %v10900
      %v10902 = vpop.f32.mrb[0].mxu0
      %v10903 = vadd.f32 %v10616, %v10902
      %v10904 = vpop.f32.mrb[0].mxu0
      %v10905 = vadd.f32 %v10616, %v10904
      %10906 = vmatprep.mubr.bf16.mxu0 0
      %10907 = vmatmul.mubr.bf16.gmra.mrb[0].mxu0 %v10824
      %v10908 = vpop.f32.mrb[0].mxu0
      %v10909 = vadd.f32 %v10621, %v10908
      %v10910 = vpop.f32.mrb[0].mxu0
      %v10911 = vadd.f32 %v10621, %v10910
      %v10912 = vpop.f32.mrb[0].mxu0
      %v10913 = vadd.f32 %v10626, %v10912
      %v10914 = vpop.f32.mrb[0].mxu0
      %v10915 = vadd.f32 %v10626, %v10914
      %10916 = vmatprep.mubr.bf16.mxu0 0
      %10917 = vmatmul.mubr.bf16.gmra.mrb[0].mxu0 %v10825
      %v10918 = vpop.f32.mrb[0].mxu0
      %v10919 = vadd.f32 %v10631, %v10918
      %v10920 = vpop.f32.mrb[0].mxu0
      %v10921 = vadd.f32 %v10631, %v10920
      %v10922 = vpop.f32.mrb[0].mxu0
      %v10923 = vadd.f32 %v10636, %v10922
      %v10924 = vpop.f32.mrb[0].mxu0
      %v10925 = vadd.f32 %v10636, %v10924
      %10926 = vmatprep.mubr.bf16.mxu0 0
      %10927 = vmatmul.mubr.bf16.gmra.mrb[0].mxu0 %v10826
      %v10928 = vpop.f32.mrb[0].mxu0
      %v10929 = vadd.f32 %v10641, %v10928
      %v10930 = vpop.f32.mrb[0].mxu0
      %v10931 = vadd.f32 %v10641, %v10930
      %v10932 = vpop.f32.mrb[0].mxu0
      %v10933 = vadd.f32 %v10646, %v10932
      %v10934 = vpop.f32.mrb[0].mxu0
      %v10935 = vadd.f32 %v10646, %v10934
      %10936 = vmatprep.mubr.bf16.mxu0 0
      %10937 = vmatmul.mubr.bf16.gmra.mrb[0].mxu0 %v10827
      %v10938 = vpop.f32.mrb[0].mxu0
      %v10939 = vadd.f32 %v10651, %v10938
      %v10940 = vpop.f32.mrb[0].mxu0
      %v10941 = vadd.f32 %v10651, %v10940
      %v10942 = vpop.f32.mrb[0].mxu0
      %v10943 = vadd.f32 %v10656, %v10942
      %v10944 = vpop.f32.mrb[0].mxu0
      %v10945 = vadd.f32 %v10656, %v10944
      %10946 = vmatprep.mubr.bf16.mxu0 0
      %10947 = vmatmul.mubr.bf16.gmra.mrb[0].mxu0 %v10828
      %v10948 = vpop.f32.mrb[0].mxu0
      %v10949 = vadd.f32 %v10661, %v10948
      %v10950 = vpop.f32.mrb[0].mxu0
      %v10951 = vadd.f32 %v10661, %v10950
      %v10952 = vpop.f32.mrb[0].mxu0
      %v10953 = vadd.f32 %v10666, %v10952
      %v10954 = vpop.f32.mrb[0].mxu0
      %v10955 = vadd.f32 %v10666, %v10954
      %10956 = vmatprep.mubr.bf16.mxu0 0
      %10957 = vmatmul.mubr.bf16.gmra.mrb[0].mxu0 %v10829
      %v10958 = vpop.f32.mrb[0].mxu0
      %v10959 = vadd.f32 %v10671, %v10958
      %v10960 = vpop.f32.mrb[0].mxu0
      %v10961 = vadd.f32 %v10671, %v10960
      %v10962 = vpop.f32.mrb[0].mxu0
      %v10963 = vadd.f32 %v10676, %v10962
      %v10964 = vpop.f32.mrb[0].mxu0
      %v10965 = vadd.f32 %v10676, %v10964
      %10966 = vmatprep.mubr.bf16.mxu0 0
      %10967 = vmatmul.mubr.bf16.gmra.mrb[0].mxu0 %v10830
      %v10968 = vpop.f32.mrb[0].mxu0
      %v10969 = vadd.f32 %v10681, %v10968
      %v10970 = vpop.f32.mrb[0].mxu0
      %v10971 = vadd.f32 %v10681, %v10970
      %v10972 = vpop.f32.mrb[0].mxu0
      %v10973 = vadd.f32 %v10686, %v10972
      %v10974 = vpop.f32.mrb[0].mxu0
      %v10975 = vadd.f32 %v10686, %v10974
      %10976 = vmatprep.mubr.bf16.mxu0 0
      %10977 = vmatmul.mubr.bf16.gmra.mrb[0].mxu0 %v10831
      %v10978 = vpop.f32.mrb[0].mxu0
      %v10979 = vadd.f32 %v10691, %v10978
      %v10980 = vpop.f32.mrb[0].mxu0
      %v10981 = vadd.f32 %v10691, %v10980
      %v10982 = vpop.f32.mrb[0].mxu0
      %v10983 = vadd.f32 %v10696, %v10982
      %v10984 = vpop.f32.mrb[0].mxu0
      %v10985 = vadd.f32 %v10696, %v10984
      %10986 = vmatprep.mubr.bf16.mxu0 0
      %10987 = vmatmul.mubr.bf16.gmra.mrb[0].mxu0 %v10832
      %v10988 = vpop.f32.mrb[0].mxu0
      %v10989 = vadd.f32 %v10701, %v10988
      %v10990 = vpop.f32.mrb[0].mxu0
      %v10991 = vadd.f32 %v10701, %v10990
      %v10992 = vpop.f32.mrb[0].mxu0
      %v10993 = vadd.f32 %v10706, %v10992
      %v10994 = vpop.f32.mrb[0].mxu0
      %v10995 = vadd.f32 %v10706, %v10994
      %10996 = vmatprep.mubr.bf16.mxu0 0
      %10997 = vmatmul.mubr.bf16.gmra.mrb[0].mxu0 %v10833
      %v10998 = vpop.f32.mrb[0].mxu0
      %v10999 = vadd.f32 %v10711, %v10998
      %v11000 = vpop.f32.mrb[0].mxu0
      %v11001 = vadd.f32 %v10711, %v11000
      %v11002 = vpop.f32.mrb[0].mxu0
      %v11003 = vadd.f32 %v10716, %v11002
      %v11004 = vpop.f32.mrb[0].mxu0
      %v11005 = vadd.f32 %v10716, %v11004
      %11006 = vmatprep.mubr.bf16.mxu0 0
      %11007 = vmatmul.mubr.bf16.gmra.mrb[0].mxu0 %v10834
      %v11008 = vpop.f32.mrb[0].mxu0
      %v11009 = vadd.f32 %v10721, %v11008
      %v11010 = vpop.f32.mrb[0].mxu0
      %v11011 = vadd.f32 %v10721, %v11010
      %v11012 = vpop.f32.mrb[0].mxu0
      %v11013 = vadd.f32 %v10726, %v11012
      %v11014 = vpop.f32.mrb[0].mxu0
      %v11015 = vadd.f32 %v10726, %v11014
      %11016 = vmatprep.mubr.bf16.mxu0 0
      %11017 = vmatmul.mubr.bf16.gmra.mrb[0].mxu0 %v10835
      %v11018 = vpop.f32.mrb[0].mxu0
      %v11019 = vadd.f32 %v10731, %v11018
      %v11020 = vpop.f32.mrb[0].mxu0
      %v11021 = vadd.f32 %v10731, %v11020
      %v11022 = vpop.f32.mrb[0].mxu0
      %v11023 = vadd.f32 %v10736, %v11022
      %v11024 = vpop.f32.mrb[0].mxu0
      %v11025 = vadd.f32 %v10736, %v11024
      %11026 = vmatprep.mubr.bf16.mxu0 0
      %11027 = vmatmul.mubr.bf16.gmra.mrb[0].mxu0 %v10836
      %v11028 = vpop.f32.mrb[0].mxu0
      %v11029 = vadd.f32 %v10741, %v11028
      %v11030 = vpop.f32.mrb[0].mxu0
      %v11031 = vadd.f32 %v10741, %v11030
      %v11032 = vpop.f32.mrb[0].mxu0
      %v11033 = vadd.f32 %v10746, %v11032
      %v11034 = vpop.f32.mrb[0].mxu0
      %v11035 = vadd.f32 %v10746, %v11034
      %11036 = vmatprep.mubr.bf16.mxu0 0
      %11037 = vmatmul.mubr.bf16.gmra.mrb[0].mxu0 %v10837
      %v11038 = vpop.f32.mrb[0].mxu0
      %v11039 = vadd.f32 %v10751, %v11038
      %v11040 = vpop.f32.mrb[0].mxu0
      %v11041 = vadd.f32 %v10751, %v11040
      %v11042 = vpop.f32.mrb[0].mxu0
      %v11043 = vadd.f32 %v10756, %v11042
      %v11044 = vpop.f32.mrb[0].mxu0
      %v11045 = vadd.f32 %v10756, %v11044
      %11046 = vdwg.mxu0
      %v11047 = vmul.f32 %v10969, 0.5
      %v11048 = vmul.f32 %v10971, 0.5
      %v11049 = vmul.f32 %v10973, 0.5
      %v11050 = vmul.f32 %v10975, 0.5
      %v11051 = vmul.f32 %v10979, 0.5
      %v11052 = vmul.f32 %v10981, 0.5
      %v11053 = vmul.f32 %v10983, 0.5
      %v11054 = vmul.f32 %v10985, 0.5
      %v11055 = vmul.f32 %v10989, 0.5
      %v11056 = vmul.f32 %v10991, 0.5
      %v11057 = vmul.f32 %v10993, 0.5
      %v11058 = vmul.f32 %v10995, 0.5
      %v11059 = vmul.f32 %v10999, 0.5
      %v11060 = vmul.f32 %v11001, 0.5
      %v11061 = vmul.f32 %v11003, 0.5
      %v11062 = vmul.f32 %v11005, 0.5
      %v11063 = vmul.f32 %v11009, 0.5
      %v11064 = vmul.f32 %v11011, 0.5
      %v11065 = vmul.f32 %v11013, 0.5
      %v11066 = vmul.f32 %v11015, 0.5
      %v11067 = vmul.f32 %v11019, 0.5
      %v11068 = vmul.f32 %v11021, 0.5
      %v11069 = vmul.f32 %v11023, 0.5
      %v11070 = vmul.f32 %v11025, 0.5
      %v11071 = vmul.f32 %v11029, 0.5
      %v11072 = vmul.f32 %v11031, 0.5
      %v11073 = vmul.f32 %v11033, 0.5
      %v11074 = vmul.f32 %v11035, 0.5
      %v11075 = vmul.f32 %v11039, 0.5
      %v11076 = vmul.f32 %v11041, 0.5
      %v11077 = vmul.f32 %v11043, 0.5
      %v11078 = vmul.f32 %v11045, 0.5
      %v11079 = vmul.f32 %v10969, 0.70710677
      %v11080 = vmul.f32 %v10971, 0.70710677
      %v11081 = vmul.f32 %v10973, 0.70710677
      %v11082 = vmul.f32 %v10975, 0.70710677
      %v11083 = vmul.f32 %v10979, 0.70710677
      %v11084 = vmul.f32 %v10981, 0.70710677
      %v11085 = vmul.f32 %v10983, 0.70710677
      %v11086 = vmul.f32 %v10985, 0.70710677
      %v11087 = vmul.f32 %v10989, 0.70710677
      %v11088 = vmul.f32 %v10991, 0.70710677
      %v11089 = vmul.f32 %v10993, 0.70710677
      %v11090 = vmul.f32 %v10995, 0.70710677
      %v11091 = vmul.f32 %v10999, 0.70710677
      %v11092 = vmul.f32 %v11001, 0.70710677
      %v11093 = vmul.f32 %v11003, 0.70710677
      %v11094 = vmul.f32 %v11005, 0.70710677
      %v11095 = vmul.f32 %v11009, 0.70710677
      %v11096 = vmul.f32 %v11011, 0.70710677
      %v11097 = vmul.f32 %v11013, 0.70710677
      %v11098 = vmul.f32 %v11015, 0.70710677
      %v11099 = vmul.f32 %v11019, 0.70710677
      %v11100 = vmul.f32 %v11021, 0.70710677
      %v11101 = vmul.f32 %v11023, 0.70710677
      %v11102 = vmul.f32 %v11025, 0.70710677
      %v11103 = vmul.f32 %v11029, 0.70710677
      %v11104 = vmul.f32 %v11031, 0.70710677
      %v11105 = vmul.f32 %v11033, 0.70710677
      %v11106 = vmul.f32 %v11035, 0.70710677
      %v11107 = vmul.f32 %v11039, 0.70710677
      %v11108 = vmul.f32 %v11041, 0.70710677
      %v11109 = vmul.f32 %v11043, 0.70710677
      %v11110 = vmul.f32 %v11045, 0.70710677
      %v11111 = verf.f32.pop %v11079
      %v11112 = verf.f32.pop %v11080
      %v11113 = verf.f32.pop %v11081
      %v11114 = verf.f32.pop %v11082
      %v11115 = verf.f32.pop %v11083
      %v11116 = verf.f32.pop %v11084
      %v11117 = verf.f32.pop %v11085
      %v11118 = verf.f32.pop %v11086
      %v11119 = verf.f32.pop %v11087
      %v11120 = verf.f32.pop %v11088
      %v11121 = verf.f32.pop %v11089
      %v11122 = verf.f32.pop %v11090
      %v11123 = verf.f32.pop %v11091
      %v11124 = verf.f32.pop %v11092
      %v11125 = verf.f32.pop %v11093
      %v11126 = verf.f32.pop %v11094
      %v11127 = verf.f32.pop %v11095
      %v11128 = verf.f32.pop %v11096
      %v11129 = verf.f32.pop %v11097
      %v11130 = verf.f32.pop %v11098
      %v11131 = verf.f32.pop %v11099
      %v11132 = verf.f32.pop %v11100
      %v11133 = verf.f32.pop %v11101
      %v11134 = verf.f32.pop %v11102
      %v11135 = verf.f32.pop %v11103
      %v11136 = verf.f32.pop %v11104
      %v11137 = verf.f32.pop %v11105
      %v11138 = verf.f32.pop %v11106
      %v11139 = verf.f32.pop %v11107
      %v11140 = verf.f32.pop %v11108
      %v11141 = verf.f32.pop %v11109
      %v11142 = verf.f32.pop %v11110
      %v11143 = vadd.f32 %v11111, 1.0
      %v11144 = vadd.f32 %v11112, 1.0
      %v11145 = vadd.f32 %v11113, 1.0
      %v11146 = vadd.f32 %v11114, 1.0
      %v11147 = vadd.f32 %v11115, 1.0
      %v11148 = vadd.f32 %v11116, 1.0
      %v11149 = vadd.f32 %v11117, 1.0
      %v11150 = vadd.f32 %v11118, 1.0
      %v11151 = vadd.f32 %v11119, 1.0
      %v11152 = vadd.f32 %v11120, 1.0
      %v11153 = vadd.f32 %v11121, 1.0
      %v11154 = vadd.f32 %v11122, 1.0
      %v11155 = vadd.f32 %v11123, 1.0
      %v11156 = vadd.f32 %v11124, 1.0
      %v11157 = vadd.f32 %v11125, 1.0
      %v11158 = vadd.f32 %v11126, 1.0
      %v11159 = vadd.f32 %v11127, 1.0
      %v11160 = vadd.f32 %v11128, 1.0
      %v11161 = vadd.f32 %v11129, 1.0
      %v11162 = vadd.f32 %v11130, 1.0
      %v11163 = vadd.f32 %v11131, 1.0
      %v11164 = vadd.f32 %v11132, 1.0
      %v11165 = vadd.f32 %v11133, 1.0
      %v11166 = vadd.f32 %v11134, 1.0
      %v11167 = vadd.f32 %v11135, 1.0
      %v11168 = vadd.f32 %v11136, 1.0
      %v11169 = vadd.f32 %v11137, 1.0
      %v11170 = vadd.f32 %v11138, 1.0
      %v11171 = vadd.f32 %v11139, 1.0
      %v11172 = vadd.f32 %v11140, 1.0
      %v11173 = vadd.f32 %v11141, 1.0
      %v11174 = vadd.f32 %v11142, 1.0
      %v11175 = vmul.f32 %v11047, %v11143
      %v11176 = vmul.f32 %v11048, %v11144
      %v11177 = vmul.f32 %v11049, %v11145
      %v11178 = vmul.f32 %v11050, %v11146
      %v11179 = vmul.f32 %v11051, %v11147
      %v11180 = vmul.f32 %v11052, %v11148
      %v11181 = vmul.f32 %v11053, %v11149
      %v11182 = vmul.f32 %v11054, %v11150
      %v11183 = vmul.f32 %v11055, %v11151
      %v11184 = vmul.f32 %v11056, %v11152
      %v11185 = vmul.f32 %v11057, %v11153
      %v11186 = vmul.f32 %v11058, %v11154
      %v11187 = vmul.f32 %v11059, %v11155
      %v11188 = vmul.f32 %v11060, %v11156
      %v11189 = vmul.f32 %v11061, %v11157
      %v11190 = vmul.f32 %v11062, %v11158
      %v11191 = vmul.f32 %v11063, %v11159
      %v11192 = vmul.f32 %v11064, %v11160
      %v11193 = vmul.f32 %v11065, %v11161
      %v11194 = vmul.f32 %v11066, %v11162
      %v11195 = vmul.f32 %v11067, %v11163
      %v11196 = vmul.f32 %v11068, %v11164
      %v11197 = vmul.f32 %v11069, %v11165
      %v11198 = vmul.f32 %v11070, %v11166
      %v11199 = vmul.f32 %v11071, %v11167
      %v11200 = vmul.f32 %v11072, %v11168
      %v11201 = vmul.f32 %v11073, %v11169
      %v11202 = vmul.f32 %v11074, %v11170
      %v11203 = vmul.f32 %v11075, %v11171
      %v11204 = vmul.f32 %v11076, %v11172
      %v11205 = vmul.f32 %v11077, %v11173
      %v11206 = vmul.f32 %v11078, %v11174
      %v11207 = vmul.f32 %v10889, %v11175
      %v11208 = vmul.f32 %v10891, %v11176
      %v11209 = vmul.f32 %v10893, %v11177
      %v11210 = vmul.f32 %v10895, %v11178
      %v11211 = vmul.f32 %v10899, %v11179
      %v11212 = vmul.f32 %v10901, %v11180
      %v11213 = vmul.f32 %v10903, %v11181
      %v11214 = vmul.f32 %v10905, %v11182
      %v11215 = vmul.f32 %v10909, %v11183
      %v11216 = vmul.f32 %v10911, %v11184
      %v11217 = vmul.f32 %v10913, %v11185
      %v11218 = vmul.f32 %v10915, %v11186
      %v11219 = vmul.f32 %v10919, %v11187
      %v11220 = vmul.f32 %v10921, %v11188
      %v11221 = vmul.f32 %v10923, %v11189
      %v11222 = vmul.f32 %v10925, %v11190
      %v11223 = vmul.f32 %v10929, %v11191
      %v11224 = vmul.f32 %v10931, %v11192
      %v11225 = vmul.f32 %v10933, %v11193
      %v11226 = vmul.f32 %v10935, %v11194
      %v11227 = vmul.f32 %v10939, %v11195
      %v11228 = vmul.f32 %v10941, %v11196
      %v11229 = vmul.f32 %v10943, %v11197
      %v11230 = vmul.f32 %v10945, %v11198
      %v11231 = vmul.f32 %v10949, %v11199
      %v11232 = vmul.f32 %v10951, %v11200
      %v11233 = vmul.f32 %v10953, %v11201
      %v11234 = vmul.f32 %v10955, %v11202
      %v11235 = vmul.f32 %v10959, %v11203
      %v11236 = vmul.f32 %v10961, %v11204
      %v11237 = vmul.f32 %v10963, %v11205
      %v11238 = vmul.f32 %v10965, %v11206
      %v11239 = vadd.f32 %v10042, %v11207
      %v11240 = vadd.f32 %v10043, %v11208
      %v11241 = vadd.f32 %v10044, %v11209
      %v11242 = vadd.f32 %v10045, %v11210
      %v11243 = vadd.f32 %v10046, %v11211
      %v11244 = vadd.f32 %v10047, %v11212
      %v11245 = vadd.f32 %v10048, %v11213
      %v11246 = vadd.f32 %v10049, %v11214
      %v11247 = vadd.f32 %v10050, %v11215
      %v11248 = vadd.f32 %v10051, %v11216
      %v11249 = vadd.f32 %v10052, %v11217
      %v11250 = vadd.f32 %v10053, %v11218
      %v11251 = vadd.f32 %v10054, %v11219
      %v11252 = vadd.f32 %v10055, %v11220
      %v11253 = vadd.f32 %v10056, %v11221
      %v11254 = vadd.f32 %v10057, %v11222
      %v11255 = vadd.f32 %v10058, %v11223
      %v11256 = vadd.f32 %v10059, %v11224
      %v11257 = vadd.f32 %v10060, %v11225
      %v11258 = vadd.f32 %v10061, %v11226
      %v11259 = vadd.f32 %v10062, %v11227
      %v11260 = vadd.f32 %v10063, %v11228
      %v11261 = vadd.f32 %v10064, %v11229
      %v11262 = vadd.f32 %v10065, %v11230
      %v11263 = vadd.f32 %v10066, %v11231
      %v11264 = vadd.f32 %v10067, %v11232
      %v11265 = vadd.f32 %v10068, %v11233
      %v11266 = vadd.f32 %v10069, %v11234
      %v11267 = vadd.f32 %v10070, %v11235
      %v11268 = vadd.f32 %v10071, %v11236
      %v11269 = vadd.f32 %v10072, %v11237
      %v11270 = vadd.f32 %v10073, %v11238
      %11271 = vst [vmem:[%s386] sm:$0xff] %v11239
      %11272 = vst [vmem:[%s386 + $0x8] sm:$0xff] %v11240
      %11273 = vst [vmem:[%s386 + $0x10] sm:$0xff] %v11241
      %11274 = vst [vmem:[%s386 + $0x18] sm:$0xff] %v11242
      %11275 = vst [vmem:[%s386 + $0x20] sm:$0xff] %v11243
      %11276 = vst [vmem:[%s386 + $0x28] sm:$0xff] %v11244
      %11277 = vst [vmem:[%s386 + $0x30] sm:$0xff] %v11245
      %11278 = vst [vmem:[%s386 + $0x38] sm:$0xff] %v11246
      %11279 = vst [vmem:[%s386 + $0x40] sm:$0xff] %v11247
      %11280 = vst [vmem:[%s386 + $0x48] sm:$0xff] %v11248
      %11281 = vst [vmem:[%s386 + $0x50] sm:$0xff] %v11249
      %11282 = vst [vmem:[%s386 + $0x58] sm:$0xff] %v11250
      %11283 = vst [vmem:[%s386 + $0x60] sm:$0xff] %v11251
      %11284 = vst [vmem:[%s386 + $0x68] sm:$0xff] %v11252
      %11285 = vst [vmem:[%s386 + $0x70] sm:$0xff] %v11253
      %11286 = vst [vmem:[%s386 + $0x78] sm:$0xff] %v11254
      %11287 = vst [vmem:[%s386 + $0x80] sm:$0xff] %v11255
      %11288 = vst [vmem:[%s386 + $0x88] sm:$0xff] %v11256
      %11289 = vst [vmem:[%s386 + $0x90] sm:$0xff] %v11257
      %11290 = vst [vmem:[%s386 + $0x98] sm:$0xff] %v11258
      %11291 = vst [vmem:[%s386 + $0xa0] sm:$0xff] %v11259
      %11292 = vst [vmem:[%s386 + $0xa8] sm:$0xff] %v11260
      %11293 = vst [vmem:[%s386 + $0xb0] sm:$0xff] %v11261
      %11294 = vst [vmem:[%s386 + $0xb8] sm:$0xff] %v11262
      %11295 = vst [vmem:[%s386 + $0xc0] sm:$0xff] %v11263
      %11296 = vst [vmem:[%s386 + $0xc8] sm:$0xff] %v11264
      %11297 = vst [vmem:[%s386 + $0xd0] sm:$0xff] %v11265
      %11298 = vst [vmem:[%s386 + $0xd8] sm:$0xff] %v11266
      %11299 = vst [vmem:[%s386 + $0xe0] sm:$0xff] %v11267
      %11300 = vst [vmem:[%s386 + $0xe8] sm:$0xff] %v11268
      %11301 = vst [vmem:[%s386 + $0xf0] sm:$0xff] %v11269
      %11302 = vst [vmem:[%s386 + $0xf8] sm:$0xff] %v11270
      %p11303 = scmp.lt.s32.totalorder %s22, 1
      %s11304 = scalar_select %p11303, %s22, 1
      %s11305 = smul.addr %s11304, 32
      %s11306 = smul.addr %s11305, 8
      %s11307 = scalar_lea.vmem %s11, %s11306
      // Predicated region
      $region65: #{self_attention_block_2d.1} parent=63 // pred_check
        %p11308 = pneg %p276
      $region66: #{self_attention_block_2d.1} parent=63 // pred_check_branch
        %11310 = sbr.rel (%p11308) target = $region68
      $region67: #{self_attention_block_2d.1} parent=63 // pred_region
        _
      $region68: #{self_attention_block_2d.1} parent=63 // pred_fallthru
        _
    $region64: #{self_attention_block_2d.1} parent=5 // pred_fallthru
      _
    %p11311 = scmp.le.s32.totalorder 2, %s17
    // Predicated region
    $region69: #{self_attention_block_2d.1} parent=5 // pred_check
      %p11312 = pneg %p11311
    $region70: #{self_attention_block_2d.1} parent=5 // pred_check_branch
      %11314 = sbr.rel (%p11312) target = $region72
    $region71: #{self_attention_block_2d.1} parent=5 // pred_region
      %s11315 = ssub.s32 %s17, 2
      // Predicated region
      $region73: #{self_attention_block_2d.1} parent=71 // pred_check
        %p11316 = pneg %p282
      $region74: #{self_attention_block_2d.1} parent=71 // pred_check_branch
        %11318 = sbr.rel (%p11316) target = $region76
      $region75: #{self_attention_block_2d.1} parent=71 // pred_region
        %p11319 = scmp.lt.s32.totalorder %s23, 1
        %s11320 = scalar_select %p11319, %s23, 1
        %s11321 = smul.addr %s11320, 32
        %s11322 = smul.addr %s11321, 8
        %s11323 = scalar_lea.vmem %s11, %s11322
      $region76: #{self_attention_block_2d.1} parent=71 // pred_fallthru
        _
    $region72: #{self_attention_block_2d.1} parent=5 // pred_fallthru
      _
  $region6: #{self_attention_block_2d.1} parent=0 // loop_footer
    %s21 = sadd.s32 1, %s17
  $region7: #{self_attention_block_2d.1} parent=0 // loop_footer_branch
    %16 = sbr.rel target = $region3
  $region8: #{self_attention_block_2d.1} parent=0 // loop_exit
    _

</llo_original>
